<compile_context>
chip_gen: v6e
topology: v6e:2x2x1
jax: 0.10.0
libtpu: 0.0.40
codegen_flags: <defaults>
</compile_context>

<pallas_src>
import functools

import jax
import jax.numpy as jnp
from jax.experimental import pallas as pl
from jax.experimental.pallas import tpu as pltpu


# --------------------------------------------------------------------------
# Fused kernel: all transformer layers for one chunk of (G*N, D) tokens.
# --------------------------------------------------------------------------
def fused_transformer_kernel(
    x_ref,      # (1, G*N, D)
    wq_ref,     # (depth, heads, D, dh)
    wk_ref,     # (depth, heads, D, dh)
    wv_ref,     # (depth, heads, D, dh)
    wo_ref,     # (depth, heads, dh, D)
    w1_ref,     # (depth, D, mlp)
    w2_ref,     # (depth, mlp, D)
    vec_ref,    # (depth, 8, D)   rows: [ln1_g, ln1_b, b_out, ln2_g, ln2_b, b_ff2, 0, 0]
    bff1_ref,   # (depth, 1, mlp)
    o_ref,      # (1, G*N, D)
    *,
    depth,
    heads,
    dim_head,
    n_tokens,
):
    eps = 1e-5
    scale = dim_head ** (-0.5)
    GN = x_ref.shape[1]
    D = x_ref.shape[2]
    N = n_tokens
    G = GN // N

    x = x_ref[0]  # (GN, D) f32 -- stays resident across all layers

    def layernorm(z, g, b):
        mu = jnp.mean(z, axis=-1, keepdims=True)
        var = jnp.mean((z - mu) ** 2, axis=-1, keepdims=True)
        return (z - mu) * jax.lax.rsqrt(var + eps) * g + b

    for L in range(depth):  # static unrolled layer loop (depth is small)
        vec = vec_ref[L]          # (8, D) -- sublane-indexed param rows
        ln1_g = vec[0:1, :]
        ln1_b = vec[1:2, :]
        b_out = vec[2:3, :]
        ln2_g = vec[3:4, :]
        ln2_b = vec[4:5, :]
        b_ff2 = vec[5:6, :]
        b_ff1 = bff1_ref[L]       # (1, mlp)

        # ---------------- PreNorm(Attention) + residual ----------------
        xn = layernorm(x, ln1_g, ln1_b)

        attn_proj = jnp.zeros((GN, D), jnp.float32)
        for h in range(heads):  # heads is tiny; all indexing is leading-dim only
            qh = jnp.dot(xn, wq_ref[L, h], preferred_element_type=jnp.float32)
            kh = jnp.dot(xn, wk_ref[L, h], preferred_element_type=jnp.float32)
            vh = jnp.dot(xn, wv_ref[L, h], preferred_element_type=jnp.float32)
            qh = qh.reshape(G, N, dim_head)
            kh = kh.reshape(G, N, dim_head)
            vh = vh.reshape(G, N, dim_head)

            dots = jnp.einsum(
                "gnd,gmd->gnm", qh, kh, preferred_element_type=jnp.float32
            ) * scale                                              # (G, N, N)
            dots = dots - jnp.max(dots, axis=-1, keepdims=True)
            e = jnp.exp(dots)
            attn = e / jnp.sum(e, axis=-1, keepdims=True)

            oh = jnp.einsum(
                "gnm,gmd->gnd", attn, vh, preferred_element_type=jnp.float32
            ).reshape(GN, dim_head)
            # concat(out_h) @ W_out == sum_h out_h @ W_out[h]  (no concat needed)
            attn_proj = attn_proj + jnp.dot(
                oh, wo_ref[L, h], preferred_element_type=jnp.float32
            )

        x = x + attn_proj + b_out

        # ---------------- PreNorm(FeedForward) + residual ----------------
        xn2 = layernorm(x, ln2_g, ln2_b)
        h1 = jnp.dot(xn2, w1_ref[L], preferred_element_type=jnp.float32) + b_ff1
        h1 = h1 * jax.nn.sigmoid(h1)  # SiLU
        x = x + jnp.dot(h1, w2_ref[L], preferred_element_type=jnp.float32) + b_ff2

    o_ref[0] = x


# --------------------------------------------------------------------------
# Parameter packing: per-layer arrays -> depth-stacked, layout-friendly slabs.
# --------------------------------------------------------------------------
def _pack_params(layer_params, heads, dim_head):
    D = layer_params[0][2].shape[0]
    inner = heads * dim_head
    wqs, wks, wvs, wos, w1s, w2s, vecs, bff1s = ([] for _ in range(8))
    for (g1, be1, wqkv, wout, bout, g2, be2, w1, b1, w2, b2) in layer_params:
        wq = wqkv[:, :inner]
        wk = wqkv[:, inner:2 * inner]
        wv = wqkv[:, 2 * inner:]
        # (D, inner) -> (heads, D, dh): per-head weight slabs, head-major.
        per_head = lambda w: w.reshape(D, heads, dim_head).transpose(1, 0, 2)
        wqs.append(per_head(wq))
        wks.append(per_head(wk))
        wvs.append(per_head(wv))
        # (inner, D) -> (heads, dh, D)
        wos.append(wout.reshape(heads, dim_head, D))
        w1s.append(w1)
        w2s.append(w2)
        vec = jnp.zeros((8, D), jnp.float32)
        vec = vec.at[0].set(g1[0]).at[1].set(be1[0]).at[2].set(bout[0])
        vec = vec.at[3].set(g2[0]).at[4].set(be2[0]).at[5].set(b2[0])
        vecs.append(vec)
        bff1s.append(b1)
    return (jnp.stack(wqs), jnp.stack(wks), jnp.stack(wvs), jnp.stack(wos),
            jnp.stack(w1s), jnp.stack(w2s), jnp.stack(vecs), jnp.stack(bff1s))


def _default_num_chunks(total_groups):
    """1 chunk on single-TC chips (v5e/v6e); 2 only on v7x-class megacore."""
    try:
        kind = jax.devices()[0].device_kind.lower()
    except Exception:
        kind = ""
    if "v7" in kind and total_groups % 2 == 0:
        return 2
    return 1


def _const_index_map(ndim, i):
    return (0,) * ndim


# --------------------------------------------------------------------------
# Wrapper: single pallas_call; weights resident, activations chunked.
# --------------------------------------------------------------------------
def transformer_forward(x_bpnd, layer_params, heads, dim_head, num_chunks=None):
    b, p, n, d = x_bpnd.shape
    depth = len(layer_params)
    BP = b * p
    if num_chunks is None:
        num_chunks = _default_num_chunks(BP)
    assert BP % num_chunks == 0, "b*p must be divisible by num_chunks"
    gn = (BP // num_chunks) * n

    packed = _pack_params(layer_params, heads, dim_head)
    x_in = x_bpnd.reshape(num_chunks, gn, d)

    kernel = functools.partial(
        fused_transformer_kernel,
        depth=depth,
        heads=heads,
        dim_head=dim_head,
        n_tokens=n,
    )

    weight_specs = [
        pl.BlockSpec(w.shape, functools.partial(_const_index_map, w.ndim))
        for w in packed
    ]

    out = pl.pallas_call(
        kernel,
        out_shape=jax.ShapeDtypeStruct((num_chunks, gn, d), jnp.float32),
        grid=(num_chunks,),
        in_specs=[pl.BlockSpec((1, gn, d), lambda i: (i, 0, 0))] + weight_specs,
        out_specs=pl.BlockSpec((1, gn, d), lambda i: (i, 0, 0)),
        compiler_params=pltpu.CompilerParams(
            dimension_semantics=("parallel",)
        ),
    )(x_in, *packed)

    return out.reshape(b, p, n, d)


# --------------------------------------------------------------------------
# Pure-JAX reference (mirrors the PyTorch forward) for correctness check.
# --------------------------------------------------------------------------
def _reference_forward(x, layer_params, heads, dim_head):
    eps = 1e-5
    scale = dim_head ** (-0.5)
    inner = heads * dim_head
    b, p, n, d = x.shape

    def ln(z, g, bt):
        mu = jnp.mean(z, -1, keepdims=True)
        var = jnp.mean((z - mu) ** 2, -1, keepdims=True)
        return (z - mu) / jnp.sqrt(var + eps) * g[0] + bt[0]

    for (g1, be1, wqkv, wout, bout, g2, be2, w1, b1, w2, b2) in layer_params:
        xn = ln(x, g1, be1)
        qkv = jnp.einsum("bpnd,de->bpne", xn, wqkv)
        q, k, v = jnp.split(qkv, 3, axis=-1)
        reshape_h = lambda t: t.reshape(b, p, n, heads, dim_head).transpose(0, 1, 3, 2, 4)
        q, k, v = map(reshape_h, (q, k, v))
        dots = jnp.einsum("bphnd,bphmd->bphnm", q, k) * scale
        attn = jax.nn.softmax(dots, axis=-1)
        out = jnp.einsum("bphnm,bphmd->bphnd", attn, v)
        out = out.transpose(0, 1, 3, 2, 4).reshape(b, p, n, inner)
        out = jnp.einsum("bpni,id->bpnd", out, wout) + bout[0]
        x = x + out

        xn2 = ln(x, g2, be2)
        h1 = jnp.einsum("bpnd,dm->bpnm", xn2, w1) + b1[0]
        h1 = h1 * jax.nn.sigmoid(h1)
        h2 = jnp.einsum("bpnm,md->bpnd", h1, w2) + b2[0]
        x = x + h2
    return x


# --------------------------------------------------------------------------
# Parameter construction (deterministic, synthetic, non-trivial biases so the
# packing order is actually exercised by the correctness check).
# --------------------------------------------------------------------------
def make_params(key, depth, dim, heads, dim_head, mlp_dim):
    inner = heads * dim_head
    layer_params = []
    for L in range(depth):
        ks = jax.random.split(jax.random.fold_in(key, L), 9)
        params = (
            1.0 + 0.1 * jax.random.normal(ks[0], (1, dim), jnp.float32),      # ln1 gamma
            0.1 * jax.random.normal(ks[1], (1, dim), jnp.float32),            # ln1 beta
            0.05 * jax.random.normal(ks[2], (dim, 3 * inner), jnp.float32),   # W_qkv (no bias)
            0.05 * jax.random.normal(ks[3], (inner, dim), jnp.float32),       # W_out
            0.1 * jax.random.normal(ks[4], (1, dim), jnp.float32),            # b_out
            1.0 + 0.1 * jax.random.normal(ks[5], (1, dim), jnp.float32),      # ln2 gamma
            0.1 * jax.random.normal(ks[6], (1, dim), jnp.float32),            # ln2 beta
            0.05 * jax.random.normal(ks[7], (dim, mlp_dim), jnp.float32),     # W1
            0.1 * jax.random.normal(ks[8], (1, mlp_dim), jnp.float32),        # b1
            0.05 * jax.random.normal(jax.random.fold_in(ks[7], 1),
                                     (mlp_dim, dim), jnp.float32),            # W2
            0.1 * jax.random.normal(jax.random.fold_in(ks[8], 1),
                                    (1, dim), jnp.float32),                   # b2
        )
        layer_params.append(params)
    return layer_params


if __name__ == "__main__":
    # Small config consistent with MobileViT's Transformer:
    # x: (b, p, n, dim) = (2, 4, 8, 32), depth=2, heads=2, dim_head=16, mlp_dim=64
    b, p, n = 2, 4, 8
    dim, depth, heads, dim_head, mlp_dim = 32, 2, 2, 16, 64

    key = jax.random.PRNGKey(0)
    kx, kp = jax.random.split(key)
    x = jax.random.normal(kx, (b, p, n, dim), jnp.float32)
    layer_params = make_params(kp, depth, dim, heads, dim_head, mlp_dim)

    out = transformer_forward(x, layer_params, heads, dim_head)
    out = jax.block_until_ready(out)

    ref = _reference_forward(x, layer_params, heads, dim_head)
    assert out.shape == (b, p, n, dim)
    assert jnp.allclose(out, ref, atol=1e-4, rtol=1e-4), "mismatch vs reference"

    print("KERNEL_OK")
</pallas_src>

<mosaic_0001>
module attributes {stable_mosaic.version = 11 : i64} {
  func.func @fused_transformer_kernel(%arg0: i32, %arg1: memref<1x64x32xf32, #tpu.memory_space<vmem>>, %arg2: memref<2x2x32x16xf32, #tpu.memory_space<vmem>>, %arg3: memref<2x2x32x16xf32, #tpu.memory_space<vmem>>, %arg4: memref<2x2x32x16xf32, #tpu.memory_space<vmem>>, %arg5: memref<2x2x16x32xf32, #tpu.memory_space<vmem>>, %arg6: memref<2x32x64xf32, #tpu.memory_space<vmem>>, %arg7: memref<2x64x32xf32, #tpu.memory_space<vmem>>, %arg8: memref<2x8x32xf32, #tpu.memory_space<vmem>>, %arg9: memref<2x1x64xf32, #tpu.memory_space<vmem>>, %arg10: memref<1x64x32xf32, #tpu.memory_space<vmem>>) attributes {dimension_semantics = [#tpu.dimension_semantics<parallel>], iteration_bounds = array<i64: 1>, scalar_prefetch = 0 : i64, scratch_operands = 0 : i64, tpu.core_type = #tpu.core_type<tc>, window_params = [{transform_indices = @transform_0, window_bounds = array<i64: 1, 64, 32>}, {pipeline_mode = #tpu.pipeline_mode<synchronous>, transform_indices = @transform_1, window_bounds = array<i64: 2, 2, 32, 16>}, {pipeline_mode = #tpu.pipeline_mode<synchronous>, transform_indices = @transform_2, window_bounds = array<i64: 2, 2, 32, 16>}, {pipeline_mode = #tpu.pipeline_mode<synchronous>, transform_indices = @transform_3, window_bounds = array<i64: 2, 2, 32, 16>}, {pipeline_mode = #tpu.pipeline_mode<synchronous>, transform_indices = @transform_4, window_bounds = array<i64: 2, 2, 16, 32>}, {pipeline_mode = #tpu.pipeline_mode<synchronous>, transform_indices = @transform_5, window_bounds = array<i64: 2, 32, 64>}, {pipeline_mode = #tpu.pipeline_mode<synchronous>, transform_indices = @transform_6, window_bounds = array<i64: 2, 64, 32>}, {pipeline_mode = #tpu.pipeline_mode<synchronous>, transform_indices = @transform_7, window_bounds = array<i64: 2, 8, 32>}, {pipeline_mode = #tpu.pipeline_mode<synchronous>, transform_indices = @transform_8, window_bounds = array<i64: 2, 1, 64>}, {transform_indices = @transform_9, window_bounds = array<i64: 1, 64, 32>}]} {
    %c0 = arith.constant 0 : index
    %c0_0 = arith.constant 0 : index
    %c0_1 = arith.constant 0 : index
    %0 = vector.load %arg1[%c0, %c0_0, %c0_1] : memref<1x64x32xf32, #tpu.memory_space<vmem>>, vector<1x64x32xf32>
    %1 = vector.shape_cast %0 : vector<1x64x32xf32> to vector<64x32xf32>
    %c0_2 = arith.constant 0 : index
    %c0_3 = arith.constant 0 : index
    %c0_4 = arith.constant 0 : index
    %2 = vector.load %arg8[%c0_2, %c0_3, %c0_4] : memref<2x8x32xf32, #tpu.memory_space<vmem>>, vector<1x8x32xf32>
    %3 = vector.shape_cast %2 : vector<1x8x32xf32> to vector<8x32xf32>
    %4 = vector.extract_strided_slice %3 {offsets = [0, 0], sizes = [1, 32], strides = [1, 1]} : vector<8x32xf32> to vector<1x32xf32>
    %5 = vector.extract_strided_slice %3 {offsets = [1, 0], sizes = [1, 32], strides = [1, 1]} : vector<8x32xf32> to vector<1x32xf32>
    %6 = vector.extract_strided_slice %3 {offsets = [2, 0], sizes = [1, 32], strides = [1, 1]} : vector<8x32xf32> to vector<1x32xf32>
    %7 = vector.extract_strided_slice %3 {offsets = [3, 0], sizes = [1, 32], strides = [1, 1]} : vector<8x32xf32> to vector<1x32xf32>
    %8 = vector.extract_strided_slice %3 {offsets = [4, 0], sizes = [1, 32], strides = [1, 1]} : vector<8x32xf32> to vector<1x32xf32>
    %9 = vector.extract_strided_slice %3 {offsets = [5, 0], sizes = [1, 32], strides = [1, 1]} : vector<8x32xf32> to vector<1x32xf32>
    %c0_5 = arith.constant 0 : index
    %c0_6 = arith.constant 0 : index
    %c0_7 = arith.constant 0 : index
    %10 = vector.load %arg9[%c0_5, %c0_6, %c0_7] : memref<2x1x64xf32, #tpu.memory_space<vmem>>, vector<1x1x64xf32>
    %11 = vector.shape_cast %10 : vector<1x1x64xf32> to vector<1x64xf32>
    %cst = arith.constant dense<0.000000e+00> : vector<64xf32>
    %12 = vector.multi_reduction <add>, %1, %cst [1] : vector<64x32xf32> to vector<64xf32>
    %13 = vector.shape_cast %12 : vector<64xf32> to vector<64x1xf32>
    %cst_8 = arith.constant 3.200000e+01 : f32
    %14 = vector.broadcast %cst_8 : f32 to vector<64x1xf32>
    %15 = arith.divf %13, %14 : vector<64x1xf32>
    %16 = vector.broadcast %15 : vector<64x1xf32> to vector<64x32xf32>
    %17 = arith.subf %1, %16 : vector<64x32xf32>
    %18 = arith.mulf %17, %17 : vector<64x32xf32>
    %cst_9 = arith.constant dense<0.000000e+00> : vector<64xf32>
    %19 = vector.multi_reduction <add>, %18, %cst_9 [1] : vector<64x32xf32> to vector<64xf32>
    %20 = vector.shape_cast %19 : vector<64xf32> to vector<64x1xf32>
    %cst_10 = arith.constant 3.200000e+01 : f32
    %21 = vector.broadcast %cst_10 : f32 to vector<64x1xf32>
    %22 = arith.divf %20, %21 : vector<64x1xf32>
    %23 = vector.broadcast %15 : vector<64x1xf32> to vector<64x32xf32>
    %24 = arith.subf %1, %23 : vector<64x32xf32>
    %cst_11 = arith.constant 9.99999974E-6 : f32
    %25 = vector.broadcast %cst_11 : f32 to vector<64x1xf32>
    %26 = arith.addf %22, %25 : vector<64x1xf32>
    %27 = math.rsqrt %26 : vector<64x1xf32>
    %28 = vector.broadcast %27 : vector<64x1xf32> to vector<64x32xf32>
    %29 = arith.mulf %24, %28 : vector<64x32xf32>
    %30 = vector.broadcast %4 : vector<1x32xf32> to vector<64x32xf32>
    %31 = arith.mulf %29, %30 : vector<64x32xf32>
    %32 = vector.broadcast %5 : vector<1x32xf32> to vector<64x32xf32>
    %33 = arith.addf %31, %32 : vector<64x32xf32>
    %cst_12 = arith.constant 0.000000e+00 : f32
    %34 = vector.broadcast %cst_12 : f32 to vector<64x32xf32>
    %c0_13 = arith.constant 0 : index
    %c0_14 = arith.constant 0 : index
    %c0_15 = arith.constant 0 : index
    %c0_16 = arith.constant 0 : index
    %35 = vector.load %arg2[%c0_13, %c0_14, %c0_15, %c0_16] : memref<2x2x32x16xf32, #tpu.memory_space<vmem>>, vector<1x1x32x16xf32>
    %36 = vector.shape_cast %35 : vector<1x1x32x16xf32> to vector<32x16xf32>
    %cst_17 = arith.constant dense<0.000000e+00> : vector<64x16xf32>
    %37 = tpu.matmul %33, %36, %cst_17 {dimension_numbers = #tpu.dot_dimension_numbers<[1], [0], [0], [1], [0, 0, 1, 1], [], []>} : vector<64x32xf32>, vector<32x16xf32>, vector<64x16xf32> -> vector<64x16xf32>
    %c0_18 = arith.constant 0 : index
    %c0_19 = arith.constant 0 : index
    %c0_20 = arith.constant 0 : index
    %c0_21 = arith.constant 0 : index
    %38 = vector.load %arg3[%c0_18, %c0_19, %c0_20, %c0_21] : memref<2x2x32x16xf32, #tpu.memory_space<vmem>>, vector<1x1x32x16xf32>
    %39 = vector.shape_cast %38 : vector<1x1x32x16xf32> to vector<32x16xf32>
    %cst_22 = arith.constant dense<0.000000e+00> : vector<64x16xf32>
    %40 = tpu.matmul %33, %39, %cst_22 {dimension_numbers = #tpu.dot_dimension_numbers<[1], [0], [0], [1], [0, 0, 1, 1], [], []>} : vector<64x32xf32>, vector<32x16xf32>, vector<64x16xf32> -> vector<64x16xf32>
    %c0_23 = arith.constant 0 : index
    %c0_24 = arith.constant 0 : index
    %c0_25 = arith.constant 0 : index
    %c0_26 = arith.constant 0 : index
    %41 = vector.load %arg4[%c0_23, %c0_24, %c0_25, %c0_26] : memref<2x2x32x16xf32, #tpu.memory_space<vmem>>, vector<1x1x32x16xf32>
    %42 = vector.shape_cast %41 : vector<1x1x32x16xf32> to vector<32x16xf32>
    %cst_27 = arith.constant dense<0.000000e+00> : vector<64x16xf32>
    %43 = tpu.matmul %33, %42, %cst_27 {dimension_numbers = #tpu.dot_dimension_numbers<[1], [0], [0], [1], [0, 0, 1, 1], [], []>} : vector<64x32xf32>, vector<32x16xf32>, vector<64x16xf32> -> vector<64x16xf32>
    %44 = vector.shape_cast %37 : vector<64x16xf32> to vector<8x8x16xf32>
    %45 = vector.shape_cast %40 : vector<64x16xf32> to vector<8x8x16xf32>
    %46 = vector.shape_cast %43 : vector<64x16xf32> to vector<8x8x16xf32>
    "tpu.trace_start"() <{level = 10 : i32, message = "gnd,gmd->gnm"}> : () -> ()
    %cst_28 = arith.constant dense<0.000000e+00> : vector<8x8x8xf32>
    %47 = tpu.matmul %44, %45, %cst_28 {dimension_numbers = #tpu.dot_dimension_numbers<[2], [2], [1], [1], [0, 0, 0, 1, 1, 1], [0], [0]>} : vector<8x8x16xf32>, vector<8x8x16xf32>, vector<8x8x8xf32> -> vector<8x8x8xf32>
    "tpu.trace_stop"() : () -> ()
    %cst_29 = arith.constant 2.500000e-01 : f32
    %48 = vector.broadcast %cst_29 : f32 to vector<8x8x8xf32>
    %49 = arith.mulf %47, %48 : vector<8x8x8xf32>
    %cst_30 = arith.constant dense<0xFF800000> : vector<8x8xf32>
    %50 = vector.multi_reduction <maximumf>, %49, %cst_30 [2] : vector<8x8x8xf32> to vector<8x8xf32>
    %51 = vector.shape_cast %50 : vector<8x8xf32> to vector<8x8x1xf32>
    %52 = vector.broadcast %51 : vector<8x8x1xf32> to vector<8x8x8xf32>
    %53 = arith.subf %49, %52 : vector<8x8x8xf32>
    %54 = math.exp %53 : vector<8x8x8xf32>
    %cst_31 = arith.constant dense<0.000000e+00> : vector<8x8xf32>
    %55 = vector.multi_reduction <add>, %54, %cst_31 [2] : vector<8x8x8xf32> to vector<8x8xf32>
    %56 = vector.shape_cast %55 : vector<8x8xf32> to vector<8x8x1xf32>
    %57 = vector.broadcast %56 : vector<8x8x1xf32> to vector<8x8x8xf32>
    %58 = arith.divf %54, %57 : vector<8x8x8xf32>
    "tpu.trace_start"() <{level = 10 : i32, message = "gnm,gmd->gnd"}> : () -> ()
    %cst_32 = arith.constant dense<0.000000e+00> : vector<8x8x16xf32>
    %59 = tpu.matmul %58, %46, %cst_32 {dimension_numbers = #tpu.dot_dimension_numbers<[2], [1], [1], [2], [0, 0, 0, 1, 1, 2], [0], [0]>} : vector<8x8x8xf32>, vector<8x8x16xf32>, vector<8x8x16xf32> -> vector<8x8x16xf32>
    "tpu.trace_stop"() : () -> ()
    %60 = vector.shape_cast %59 : vector<8x8x16xf32> to vector<64x16xf32>
    %c0_33 = arith.constant 0 : index
    %c0_34 = arith.constant 0 : index
    %c0_35 = arith.constant 0 : index
    %c0_36 = arith.constant 0 : index
    %61 = vector.load %arg5[%c0_33, %c0_34, %c0_35, %c0_36] : memref<2x2x16x32xf32, #tpu.memory_space<vmem>>, vector<1x1x16x32xf32>
    %62 = vector.shape_cast %61 : vector<1x1x16x32xf32> to vector<16x32xf32>
    %cst_37 = arith.constant dense<0.000000e+00> : vector<64x32xf32>
    %63 = tpu.matmul %60, %62, %cst_37 {dimension_numbers = #tpu.dot_dimension_numbers<[1], [0], [0], [1], [0, 0, 1, 1], [], []>} : vector<64x16xf32>, vector<16x32xf32>, vector<64x32xf32> -> vector<64x32xf32>
    %64 = arith.addf %34, %63 : vector<64x32xf32>
    %c0_38 = arith.constant 0 : index
    %c1 = arith.constant 1 : index
    %c0_39 = arith.constant 0 : index
    %c0_40 = arith.constant 0 : index
    %65 = vector.load %arg2[%c0_38, %c1, %c0_39, %c0_40] : memref<2x2x32x16xf32, #tpu.memory_space<vmem>>, vector<1x1x32x16xf32>
    %66 = vector.shape_cast %65 : vector<1x1x32x16xf32> to vector<32x16xf32>
    %cst_41 = arith.constant dense<0.000000e+00> : vector<64x16xf32>
    %67 = tpu.matmul %33, %66, %cst_41 {dimension_numbers = #tpu.dot_dimension_numbers<[1], [0], [0], [1], [0, 0, 1, 1], [], []>} : vector<64x32xf32>, vector<32x16xf32>, vector<64x16xf32> -> vector<64x16xf32>
    %c0_42 = arith.constant 0 : index
    %c1_43 = arith.constant 1 : index
    %c0_44 = arith.constant 0 : index
    %c0_45 = arith.constant 0 : index
    %68 = vector.load %arg3[%c0_42, %c1_43, %c0_44, %c0_45] : memref<2x2x32x16xf32, #tpu.memory_space<vmem>>, vector<1x1x32x16xf32>
    %69 = vector.shape_cast %68 : vector<1x1x32x16xf32> to vector<32x16xf32>
    %cst_46 = arith.constant dense<0.000000e+00> : vector<64x16xf32>
    %70 = tpu.matmul %33, %69, %cst_46 {dimension_numbers = #tpu.dot_dimension_numbers<[1], [0], [0], [1], [0, 0, 1, 1], [], []>} : vector<64x32xf32>, vector<32x16xf32>, vector<64x16xf32> -> vector<64x16xf32>
    %c0_47 = arith.constant 0 : index
    %c1_48 = arith.constant 1 : index
    %c0_49 = arith.constant 0 : index
    %c0_50 = arith.constant 0 : index
    %71 = vector.load %arg4[%c0_47, %c1_48, %c0_49, %c0_50] : memref<2x2x32x16xf32, #tpu.memory_space<vmem>>, vector<1x1x32x16xf32>
    %72 = vector.shape_cast %71 : vector<1x1x32x16xf32> to vector<32x16xf32>
    %cst_51 = arith.constant dense<0.000000e+00> : vector<64x16xf32>
    %73 = tpu.matmul %33, %72, %cst_51 {dimension_numbers = #tpu.dot_dimension_numbers<[1], [0], [0], [1], [0, 0, 1, 1], [], []>} : vector<64x32xf32>, vector<32x16xf32>, vector<64x16xf32> -> vector<64x16xf32>
    %74 = vector.shape_cast %67 : vector<64x16xf32> to vector<8x8x16xf32>
    %75 = vector.shape_cast %70 : vector<64x16xf32> to vector<8x8x16xf32>
    %76 = vector.shape_cast %73 : vector<64x16xf32> to vector<8x8x16xf32>
    "tpu.trace_start"() <{level = 10 : i32, message = "gnd,gmd->gnm"}> : () -> ()
    %cst_52 = arith.constant dense<0.000000e+00> : vector<8x8x8xf32>
    %77 = tpu.matmul %74, %75, %cst_52 {dimension_numbers = #tpu.dot_dimension_numbers<[2], [2], [1], [1], [0, 0, 0, 1, 1, 1], [0], [0]>} : vector<8x8x16xf32>, vector<8x8x16xf32>, vector<8x8x8xf32> -> vector<8x8x8xf32>
    "tpu.trace_stop"() : () -> ()
    %cst_53 = arith.constant 2.500000e-01 : f32
    %78 = vector.broadcast %cst_53 : f32 to vector<8x8x8xf32>
    %79 = arith.mulf %77, %78 : vector<8x8x8xf32>
    %cst_54 = arith.constant dense<0xFF800000> : vector<8x8xf32>
    %80 = vector.multi_reduction <maximumf>, %79, %cst_54 [2] : vector<8x8x8xf32> to vector<8x8xf32>
    %81 = vector.shape_cast %80 : vector<8x8xf32> to vector<8x8x1xf32>
    %82 = vector.broadcast %81 : vector<8x8x1xf32> to vector<8x8x8xf32>
    %83 = arith.subf %79, %82 : vector<8x8x8xf32>
    %84 = math.exp %83 : vector<8x8x8xf32>
    %cst_55 = arith.constant dense<0.000000e+00> : vector<8x8xf32>
    %85 = vector.multi_reduction <add>, %84, %cst_55 [2] : vector<8x8x8xf32> to vector<8x8xf32>
    %86 = vector.shape_cast %85 : vector<8x8xf32> to vector<8x8x1xf32>
    %87 = vector.broadcast %86 : vector<8x8x1xf32> to vector<8x8x8xf32>
    %88 = arith.divf %84, %87 : vector<8x8x8xf32>
    "tpu.trace_start"() <{level = 10 : i32, message = "gnm,gmd->gnd"}> : () -> ()
    %cst_56 = arith.constant dense<0.000000e+00> : vector<8x8x16xf32>
    %89 = tpu.matmul %88, %76, %cst_56 {dimension_numbers = #tpu.dot_dimension_numbers<[2], [1], [1], [2], [0, 0, 0, 1, 1, 2], [0], [0]>} : vector<8x8x8xf32>, vector<8x8x16xf32>, vector<8x8x16xf32> -> vector<8x8x16xf32>
    "tpu.trace_stop"() : () -> ()
    %90 = vector.shape_cast %89 : vector<8x8x16xf32> to vector<64x16xf32>
    %c0_57 = arith.constant 0 : index
    %c1_58 = arith.constant 1 : index
    %c0_59 = arith.constant 0 : index
    %c0_60 = arith.constant 0 : index
    %91 = vector.load %arg5[%c0_57, %c1_58, %c0_59, %c0_60] : memref<2x2x16x32xf32, #tpu.memory_space<vmem>>, vector<1x1x16x32xf32>
    %92 = vector.shape_cast %91 : vector<1x1x16x32xf32> to vector<16x32xf32>
    %cst_61 = arith.constant dense<0.000000e+00> : vector<64x32xf32>
    %93 = tpu.matmul %90, %92, %cst_61 {dimension_numbers = #tpu.dot_dimension_numbers<[1], [0], [0], [1], [0, 0, 1, 1], [], []>} : vector<64x16xf32>, vector<16x32xf32>, vector<64x32xf32> -> vector<64x32xf32>
    %94 = arith.addf %64, %93 : vector<64x32xf32>
    %95 = arith.addf %1, %94 : vector<64x32xf32>
    %96 = vector.broadcast %6 : vector<1x32xf32> to vector<64x32xf32>
    %97 = arith.addf %95, %96 : vector<64x32xf32>
    %cst_62 = arith.constant dense<0.000000e+00> : vector<64xf32>
    %98 = vector.multi_reduction <add>, %97, %cst_62 [1] : vector<64x32xf32> to vector<64xf32>
    %99 = vector.shape_cast %98 : vector<64xf32> to vector<64x1xf32>
    %cst_63 = arith.constant 3.200000e+01 : f32
    %100 = vector.broadcast %cst_63 : f32 to vector<64x1xf32>
    %101 = arith.divf %99, %100 : vector<64x1xf32>
    %102 = vector.broadcast %101 : vector<64x1xf32> to vector<64x32xf32>
    %103 = arith.subf %97, %102 : vector<64x32xf32>
    %104 = arith.mulf %103, %103 : vector<64x32xf32>
    %cst_64 = arith.constant dense<0.000000e+00> : vector<64xf32>
    %105 = vector.multi_reduction <add>, %104, %cst_64 [1] : vector<64x32xf32> to vector<64xf32>
    %106 = vector.shape_cast %105 : vector<64xf32> to vector<64x1xf32>
    %cst_65 = arith.constant 3.200000e+01 : f32
    %107 = vector.broadcast %cst_65 : f32 to vector<64x1xf32>
    %108 = arith.divf %106, %107 : vector<64x1xf32>
    %109 = vector.broadcast %101 : vector<64x1xf32> to vector<64x32xf32>
    %110 = arith.subf %97, %109 : vector<64x32xf32>
    %cst_66 = arith.constant 9.99999974E-6 : f32
    %111 = vector.broadcast %cst_66 : f32 to vector<64x1xf32>
    %112 = arith.addf %108, %111 : vector<64x1xf32>
    %113 = math.rsqrt %112 : vector<64x1xf32>
    %114 = vector.broadcast %113 : vector<64x1xf32> to vector<64x32xf32>
    %115 = arith.mulf %110, %114 : vector<64x32xf32>
    %116 = vector.broadcast %7 : vector<1x32xf32> to vector<64x32xf32>
    %117 = arith.mulf %115, %116 : vector<64x32xf32>
    %118 = vector.broadcast %8 : vector<1x32xf32> to vector<64x32xf32>
    %119 = arith.addf %117, %118 : vector<64x32xf32>
    %c0_67 = arith.constant 0 : index
    %c0_68 = arith.constant 0 : index
    %c0_69 = arith.constant 0 : index
    %120 = vector.load %arg6[%c0_67, %c0_68, %c0_69] : memref<2x32x64xf32, #tpu.memory_space<vmem>>, vector<1x32x64xf32>
    %121 = vector.shape_cast %120 : vector<1x32x64xf32> to vector<32x64xf32>
    %cst_70 = arith.constant dense<0.000000e+00> : vector<64x64xf32>
    %122 = tpu.matmul %119, %121, %cst_70 {dimension_numbers = #tpu.dot_dimension_numbers<[1], [0], [0], [1], [0, 0, 1, 1], [], []>} : vector<64x32xf32>, vector<32x64xf32>, vector<64x64xf32> -> vector<64x64xf32>
    %123 = vector.broadcast %11 : vector<1x64xf32> to vector<64x64xf32>
    %124 = arith.addf %122, %123 : vector<64x64xf32>
    %125 = arith.negf %124 : vector<64x64xf32>
    %126 = math.exp %125 : vector<64x64xf32>
    %cst_71 = arith.constant 1.000000e+00 : f32
    %127 = vector.broadcast %cst_71 : f32 to vector<64x64xf32>
    %128 = arith.addf %127, %126 : vector<64x64xf32>
    %129 = arith.divf %127, %128 : vector<64x64xf32>
    %130 = arith.mulf %124, %129 : vector<64x64xf32>
    %c0_72 = arith.constant 0 : index
    %c0_73 = arith.constant 0 : index
    %c0_74 = arith.constant 0 : index
    %131 = vector.load %arg7[%c0_72, %c0_73, %c0_74] : memref<2x64x32xf32, #tpu.memory_space<vmem>>, vector<1x64x32xf32>
    %132 = vector.shape_cast %131 : vector<1x64x32xf32> to vector<64x32xf32>
    %cst_75 = arith.constant dense<0.000000e+00> : vector<64x32xf32>
    %133 = tpu.matmul %130, %132, %cst_75 {dimension_numbers = #tpu.dot_dimension_numbers<[1], [0], [0], [1], [0, 0, 1, 1], [], []>} : vector<64x64xf32>, vector<64x32xf32>, vector<64x32xf32> -> vector<64x32xf32>
    %134 = arith.addf %97, %133 : vector<64x32xf32>
    %135 = vector.broadcast %9 : vector<1x32xf32> to vector<64x32xf32>
    %136 = arith.addf %134, %135 : vector<64x32xf32>
    %c1_76 = arith.constant 1 : index
    %c0_77 = arith.constant 0 : index
    %c0_78 = arith.constant 0 : index
    %137 = vector.load %arg8[%c1_76, %c0_77, %c0_78] : memref<2x8x32xf32, #tpu.memory_space<vmem>>, vector<1x8x32xf32>
    %138 = vector.shape_cast %137 : vector<1x8x32xf32> to vector<8x32xf32>
    %139 = vector.extract_strided_slice %138 {offsets = [0, 0], sizes = [1, 32], strides = [1, 1]} : vector<8x32xf32> to vector<1x32xf32>
    %140 = vector.extract_strided_slice %138 {offsets = [1, 0], sizes = [1, 32], strides = [1, 1]} : vector<8x32xf32> to vector<1x32xf32>
    %141 = vector.extract_strided_slice %138 {offsets = [2, 0], sizes = [1, 32], strides = [1, 1]} : vector<8x32xf32> to vector<1x32xf32>
    %142 = vector.extract_strided_slice %138 {offsets = [3, 0], sizes = [1, 32], strides = [1, 1]} : vector<8x32xf32> to vector<1x32xf32>
    %143 = vector.extract_strided_slice %138 {offsets = [4, 0], sizes = [1, 32], strides = [1, 1]} : vector<8x32xf32> to vector<1x32xf32>
    %144 = vector.extract_strided_slice %138 {offsets = [5, 0], sizes = [1, 32], strides = [1, 1]} : vector<8x32xf32> to vector<1x32xf32>
    %c1_79 = arith.constant 1 : index
    %c0_80 = arith.constant 0 : index
    %c0_81 = arith.constant 0 : index
    %145 = vector.load %arg9[%c1_79, %c0_80, %c0_81] : memref<2x1x64xf32, #tpu.memory_space<vmem>>, vector<1x1x64xf32>
    %146 = vector.shape_cast %145 : vector<1x1x64xf32> to vector<1x64xf32>
    %cst_82 = arith.constant dense<0.000000e+00> : vector<64xf32>
    %147 = vector.multi_reduction <add>, %136, %cst_82 [1] : vector<64x32xf32> to vector<64xf32>
    %148 = vector.shape_cast %147 : vector<64xf32> to vector<64x1xf32>
    %cst_83 = arith.constant 3.200000e+01 : f32
    %149 = vector.broadcast %cst_83 : f32 to vector<64x1xf32>
    %150 = arith.divf %148, %149 : vector<64x1xf32>
    %151 = vector.broadcast %150 : vector<64x1xf32> to vector<64x32xf32>
    %152 = arith.subf %136, %151 : vector<64x32xf32>
    %153 = arith.mulf %152, %152 : vector<64x32xf32>
    %cst_84 = arith.constant dense<0.000000e+00> : vector<64xf32>
    %154 = vector.multi_reduction <add>, %153, %cst_84 [1] : vector<64x32xf32> to vector<64xf32>
    %155 = vector.shape_cast %154 : vector<64xf32> to vector<64x1xf32>
    %cst_85 = arith.constant 3.200000e+01 : f32
    %156 = vector.broadcast %cst_85 : f32 to vector<64x1xf32>
    %157 = arith.divf %155, %156 : vector<64x1xf32>
    %158 = vector.broadcast %150 : vector<64x1xf32> to vector<64x32xf32>
    %159 = arith.subf %136, %158 : vector<64x32xf32>
    %cst_86 = arith.constant 9.99999974E-6 : f32
    %160 = vector.broadcast %cst_86 : f32 to vector<64x1xf32>
    %161 = arith.addf %157, %160 : vector<64x1xf32>
    %162 = math.rsqrt %161 : vector<64x1xf32>
    %163 = vector.broadcast %162 : vector<64x1xf32> to vector<64x32xf32>
    %164 = arith.mulf %159, %163 : vector<64x32xf32>
    %165 = vector.broadcast %139 : vector<1x32xf32> to vector<64x32xf32>
    %166 = arith.mulf %164, %165 : vector<64x32xf32>
    %167 = vector.broadcast %140 : vector<1x32xf32> to vector<64x32xf32>
    %168 = arith.addf %166, %167 : vector<64x32xf32>
    %cst_87 = arith.constant 0.000000e+00 : f32
    %169 = vector.broadcast %cst_87 : f32 to vector<64x32xf32>
    %c1_88 = arith.constant 1 : index
    %c0_89 = arith.constant 0 : index
    %c0_90 = arith.constant 0 : index
    %c0_91 = arith.constant 0 : index
    %170 = vector.load %arg2[%c1_88, %c0_89, %c0_90, %c0_91] : memref<2x2x32x16xf32, #tpu.memory_space<vmem>>, vector<1x1x32x16xf32>
    %171 = vector.shape_cast %170 : vector<1x1x32x16xf32> to vector<32x16xf32>
    %cst_92 = arith.constant dense<0.000000e+00> : vector<64x16xf32>
    %172 = tpu.matmul %168, %171, %cst_92 {dimension_numbers = #tpu.dot_dimension_numbers<[1], [0], [0], [1], [0, 0, 1, 1], [], []>} : vector<64x32xf32>, vector<32x16xf32>, vector<64x16xf32> -> vector<64x16xf32>
    %c1_93 = arith.constant 1 : index
    %c0_94 = arith.constant 0 : index
    %c0_95 = arith.constant 0 : index
    %c0_96 = arith.constant 0 : index
    %173 = vector.load %arg3[%c1_93, %c0_94, %c0_95, %c0_96] : memref<2x2x32x16xf32, #tpu.memory_space<vmem>>, vector<1x1x32x16xf32>
    %174 = vector.shape_cast %173 : vector<1x1x32x16xf32> to vector<32x16xf32>
    %cst_97 = arith.constant dense<0.000000e+00> : vector<64x16xf32>
    %175 = tpu.matmul %168, %174, %cst_97 {dimension_numbers = #tpu.dot_dimension_numbers<[1], [0], [0], [1], [0, 0, 1, 1], [], []>} : vector<64x32xf32>, vector<32x16xf32>, vector<64x16xf32> -> vector<64x16xf32>
    %c1_98 = arith.constant 1 : index
    %c0_99 = arith.constant 0 : index
    %c0_100 = arith.constant 0 : index
    %c0_101 = arith.constant 0 : index
    %176 = vector.load %arg4[%c1_98, %c0_99, %c0_100, %c0_101] : memref<2x2x32x16xf32, #tpu.memory_space<vmem>>, vector<1x1x32x16xf32>
    %177 = vector.shape_cast %176 : vector<1x1x32x16xf32> to vector<32x16xf32>
    %cst_102 = arith.constant dense<0.000000e+00> : vector<64x16xf32>
    %178 = tpu.matmul %168, %177, %cst_102 {dimension_numbers = #tpu.dot_dimension_numbers<[1], [0], [0], [1], [0, 0, 1, 1], [], []>} : vector<64x32xf32>, vector<32x16xf32>, vector<64x16xf32> -> vector<64x16xf32>
    %179 = vector.shape_cast %172 : vector<64x16xf32> to vector<8x8x16xf32>
    %180 = vector.shape_cast %175 : vector<64x16xf32> to vector<8x8x16xf32>
    %181 = vector.shape_cast %178 : vector<64x16xf32> to vector<8x8x16xf32>
    "tpu.trace_start"() <{level = 10 : i32, message = "gnd,gmd->gnm"}> : () -> ()
    %cst_103 = arith.constant dense<0.000000e+00> : vector<8x8x8xf32>
    %182 = tpu.matmul %179, %180, %cst_103 {dimension_numbers = #tpu.dot_dimension_numbers<[2], [2], [1], [1], [0, 0, 0, 1, 1, 1], [0], [0]>} : vector<8x8x16xf32>, vector<8x8x16xf32>, vector<8x8x8xf32> -> vector<8x8x8xf32>
    "tpu.trace_stop"() : () -> ()
    %cst_104 = arith.constant 2.500000e-01 : f32
    %183 = vector.broadcast %cst_104 : f32 to vector<8x8x8xf32>
    %184 = arith.mulf %182, %183 : vector<8x8x8xf32>
    %cst_105 = arith.constant dense<0xFF800000> : vector<8x8xf32>
    %185 = vector.multi_reduction <maximumf>, %184, %cst_105 [2] : vector<8x8x8xf32> to vector<8x8xf32>
    %186 = vector.shape_cast %185 : vector<8x8xf32> to vector<8x8x1xf32>
    %187 = vector.broadcast %186 : vector<8x8x1xf32> to vector<8x8x8xf32>
    %188 = arith.subf %184, %187 : vector<8x8x8xf32>
    %189 = math.exp %188 : vector<8x8x8xf32>
    %cst_106 = arith.constant dense<0.000000e+00> : vector<8x8xf32>
    %190 = vector.multi_reduction <add>, %189, %cst_106 [2] : vector<8x8x8xf32> to vector<8x8xf32>
    %191 = vector.shape_cast %190 : vector<8x8xf32> to vector<8x8x1xf32>
    %192 = vector.broadcast %191 : vector<8x8x1xf32> to vector<8x8x8xf32>
    %193 = arith.divf %189, %192 : vector<8x8x8xf32>
    "tpu.trace_start"() <{level = 10 : i32, message = "gnm,gmd->gnd"}> : () -> ()
    %cst_107 = arith.constant dense<0.000000e+00> : vector<8x8x16xf32>
    %194 = tpu.matmul %193, %181, %cst_107 {dimension_numbers = #tpu.dot_dimension_numbers<[2], [1], [1], [2], [0, 0, 0, 1, 1, 2], [0], [0]>} : vector<8x8x8xf32>, vector<8x8x16xf32>, vector<8x8x16xf32> -> vector<8x8x16xf32>
    "tpu.trace_stop"() : () -> ()
    %195 = vector.shape_cast %194 : vector<8x8x16xf32> to vector<64x16xf32>
    %c1_108 = arith.constant 1 : index
    %c0_109 = arith.constant 0 : index
    %c0_110 = arith.constant 0 : index
    %c0_111 = arith.constant 0 : index
    %196 = vector.load %arg5[%c1_108, %c0_109, %c0_110, %c0_111] : memref<2x2x16x32xf32, #tpu.memory_space<vmem>>, vector<1x1x16x32xf32>
    %197 = vector.shape_cast %196 : vector<1x1x16x32xf32> to vector<16x32xf32>
    %cst_112 = arith.constant dense<0.000000e+00> : vector<64x32xf32>
    %198 = tpu.matmul %195, %197, %cst_112 {dimension_numbers = #tpu.dot_dimension_numbers<[1], [0], [0], [1], [0, 0, 1, 1], [], []>} : vector<64x16xf32>, vector<16x32xf32>, vector<64x32xf32> -> vector<64x32xf32>
    %199 = arith.addf %169, %198 : vector<64x32xf32>
    %c1_113 = arith.constant 1 : index
    %c1_114 = arith.constant 1 : index
    %c0_115 = arith.constant 0 : index
    %c0_116 = arith.constant 0 : index
    %200 = vector.load %arg2[%c1_113, %c1_114, %c0_115, %c0_116] : memref<2x2x32x16xf32, #tpu.memory_space<vmem>>, vector<1x1x32x16xf32>
    %201 = vector.shape_cast %200 : vector<1x1x32x16xf32> to vector<32x16xf32>
    %cst_117 = arith.constant dense<0.000000e+00> : vector<64x16xf32>
    %202 = tpu.matmul %168, %201, %cst_117 {dimension_numbers = #tpu.dot_dimension_numbers<[1], [0], [0], [1], [0, 0, 1, 1], [], []>} : vector<64x32xf32>, vector<32x16xf32>, vector<64x16xf32> -> vector<64x16xf32>
    %c1_118 = arith.constant 1 : index
    %c1_119 = arith.constant 1 : index
    %c0_120 = arith.constant 0 : index
    %c0_121 = arith.constant 0 : index
    %203 = vector.load %arg3[%c1_118, %c1_119, %c0_120, %c0_121] : memref<2x2x32x16xf32, #tpu.memory_space<vmem>>, vector<1x1x32x16xf32>
    %204 = vector.shape_cast %203 : vector<1x1x32x16xf32> to vector<32x16xf32>
    %cst_122 = arith.constant dense<0.000000e+00> : vector<64x16xf32>
    %205 = tpu.matmul %168, %204, %cst_122 {dimension_numbers = #tpu.dot_dimension_numbers<[1], [0], [0], [1], [0, 0, 1, 1], [], []>} : vector<64x32xf32>, vector<32x16xf32>, vector<64x16xf32> -> vector<64x16xf32>
    %c1_123 = arith.constant 1 : index
    %c1_124 = arith.constant 1 : index
    %c0_125 = arith.constant 0 : index
    %c0_126 = arith.constant 0 : index
    %206 = vector.load %arg4[%c1_123, %c1_124, %c0_125, %c0_126] : memref<2x2x32x16xf32, #tpu.memory_space<vmem>>, vector<1x1x32x16xf32>
    %207 = vector.shape_cast %206 : vector<1x1x32x16xf32> to vector<32x16xf32>
    %cst_127 = arith.constant dense<0.000000e+00> : vector<64x16xf32>
    %208 = tpu.matmul %168, %207, %cst_127 {dimension_numbers = #tpu.dot_dimension_numbers<[1], [0], [0], [1], [0, 0, 1, 1], [], []>} : vector<64x32xf32>, vector<32x16xf32>, vector<64x16xf32> -> vector<64x16xf32>
    %209 = vector.shape_cast %202 : vector<64x16xf32> to vector<8x8x16xf32>
    %210 = vector.shape_cast %205 : vector<64x16xf32> to vector<8x8x16xf32>
    %211 = vector.shape_cast %208 : vector<64x16xf32> to vector<8x8x16xf32>
    "tpu.trace_start"() <{level = 10 : i32, message = "gnd,gmd->gnm"}> : () -> ()
    %cst_128 = arith.constant dense<0.000000e+00> : vector<8x8x8xf32>
    %212 = tpu.matmul %209, %210, %cst_128 {dimension_numbers = #tpu.dot_dimension_numbers<[2], [2], [1], [1], [0, 0, 0, 1, 1, 1], [0], [0]>} : vector<8x8x16xf32>, vector<8x8x16xf32>, vector<8x8x8xf32> -> vector<8x8x8xf32>
    "tpu.trace_stop"() : () -> ()
    %cst_129 = arith.constant 2.500000e-01 : f32
    %213 = vector.broadcast %cst_129 : f32 to vector<8x8x8xf32>
    %214 = arith.mulf %212, %213 : vector<8x8x8xf32>
    %cst_130 = arith.constant dense<0xFF800000> : vector<8x8xf32>
    %215 = vector.multi_reduction <maximumf>, %214, %cst_130 [2] : vector<8x8x8xf32> to vector<8x8xf32>
    %216 = vector.shape_cast %215 : vector<8x8xf32> to vector<8x8x1xf32>
    %217 = vector.broadcast %216 : vector<8x8x1xf32> to vector<8x8x8xf32>
    %218 = arith.subf %214, %217 : vector<8x8x8xf32>
    %219 = math.exp %218 : vector<8x8x8xf32>
    %cst_131 = arith.constant dense<0.000000e+00> : vector<8x8xf32>
    %220 = vector.multi_reduction <add>, %219, %cst_131 [2] : vector<8x8x8xf32> to vector<8x8xf32>
    %221 = vector.shape_cast %220 : vector<8x8xf32> to vector<8x8x1xf32>
    %222 = vector.broadcast %221 : vector<8x8x1xf32> to vector<8x8x8xf32>
    %223 = arith.divf %219, %222 : vector<8x8x8xf32>
    "tpu.trace_start"() <{level = 10 : i32, message = "gnm,gmd->gnd"}> : () -> ()
    %cst_132 = arith.constant dense<0.000000e+00> : vector<8x8x16xf32>
    %224 = tpu.matmul %223, %211, %cst_132 {dimension_numbers = #tpu.dot_dimension_numbers<[2], [1], [1], [2], [0, 0, 0, 1, 1, 2], [0], [0]>} : vector<8x8x8xf32>, vector<8x8x16xf32>, vector<8x8x16xf32> -> vector<8x8x16xf32>
    "tpu.trace_stop"() : () -> ()
    %225 = vector.shape_cast %224 : vector<8x8x16xf32> to vector<64x16xf32>
    %c1_133 = arith.constant 1 : index
    %c1_134 = arith.constant 1 : index
    %c0_135 = arith.constant 0 : index
    %c0_136 = arith.constant 0 : index
    %226 = vector.load %arg5[%c1_133, %c1_134, %c0_135, %c0_136] : memref<2x2x16x32xf32, #tpu.memory_space<vmem>>, vector<1x1x16x32xf32>
    %227 = vector.shape_cast %226 : vector<1x1x16x32xf32> to vector<16x32xf32>
    %cst_137 = arith.constant dense<0.000000e+00> : vector<64x32xf32>
    %228 = tpu.matmul %225, %227, %cst_137 {dimension_numbers = #tpu.dot_dimension_numbers<[1], [0], [0], [1], [0, 0, 1, 1], [], []>} : vector<64x16xf32>, vector<16x32xf32>, vector<64x32xf32> -> vector<64x32xf32>
    %229 = arith.addf %199, %228 : vector<64x32xf32>
    %230 = arith.addf %136, %229 : vector<64x32xf32>
    %231 = vector.broadcast %141 : vector<1x32xf32> to vector<64x32xf32>
    %232 = arith.addf %230, %231 : vector<64x32xf32>
    %cst_138 = arith.constant dense<0.000000e+00> : vector<64xf32>
    %233 = vector.multi_reduction <add>, %232, %cst_138 [1] : vector<64x32xf32> to vector<64xf32>
    %234 = vector.shape_cast %233 : vector<64xf32> to vector<64x1xf32>
    %cst_139 = arith.constant 3.200000e+01 : f32
    %235 = vector.broadcast %cst_139 : f32 to vector<64x1xf32>
    %236 = arith.divf %234, %235 : vector<64x1xf32>
    %237 = vector.broadcast %236 : vector<64x1xf32> to vector<64x32xf32>
    %238 = arith.subf %232, %237 : vector<64x32xf32>
    %239 = arith.mulf %238, %238 : vector<64x32xf32>
    %cst_140 = arith.constant dense<0.000000e+00> : vector<64xf32>
    %240 = vector.multi_reduction <add>, %239, %cst_140 [1] : vector<64x32xf32> to vector<64xf32>
    %241 = vector.shape_cast %240 : vector<64xf32> to vector<64x1xf32>
    %cst_141 = arith.constant 3.200000e+01 : f32
    %242 = vector.broadcast %cst_141 : f32 to vector<64x1xf32>
    %243 = arith.divf %241, %242 : vector<64x1xf32>
    %244 = vector.broadcast %236 : vector<64x1xf32> to vector<64x32xf32>
    %245 = arith.subf %232, %244 : vector<64x32xf32>
    %cst_142 = arith.constant 9.99999974E-6 : f32
    %246 = vector.broadcast %cst_142 : f32 to vector<64x1xf32>
    %247 = arith.addf %243, %246 : vector<64x1xf32>
    %248 = math.rsqrt %247 : vector<64x1xf32>
    %249 = vector.broadcast %248 : vector<64x1xf32> to vector<64x32xf32>
    %250 = arith.mulf %245, %249 : vector<64x32xf32>
    %251 = vector.broadcast %142 : vector<1x32xf32> to vector<64x32xf32>
    %252 = arith.mulf %250, %251 : vector<64x32xf32>
    %253 = vector.broadcast %143 : vector<1x32xf32> to vector<64x32xf32>
    %254 = arith.addf %252, %253 : vector<64x32xf32>
    %c1_143 = arith.constant 1 : index
    %c0_144 = arith.constant 0 : index
    %c0_145 = arith.constant 0 : index
    %255 = vector.load %arg6[%c1_143, %c0_144, %c0_145] : memref<2x32x64xf32, #tpu.memory_space<vmem>>, vector<1x32x64xf32>
    %256 = vector.shape_cast %255 : vector<1x32x64xf32> to vector<32x64xf32>
    %cst_146 = arith.constant dense<0.000000e+00> : vector<64x64xf32>
    %257 = tpu.matmul %254, %256, %cst_146 {dimension_numbers = #tpu.dot_dimension_numbers<[1], [0], [0], [1], [0, 0, 1, 1], [], []>} : vector<64x32xf32>, vector<32x64xf32>, vector<64x64xf32> -> vector<64x64xf32>
    %258 = vector.broadcast %146 : vector<1x64xf32> to vector<64x64xf32>
    %259 = arith.addf %257, %258 : vector<64x64xf32>
    %260 = arith.negf %259 : vector<64x64xf32>
    %261 = math.exp %260 : vector<64x64xf32>
    %cst_147 = arith.constant 1.000000e+00 : f32
    %262 = vector.broadcast %cst_147 : f32 to vector<64x64xf32>
    %263 = arith.addf %262, %261 : vector<64x64xf32>
    %264 = arith.divf %262, %263 : vector<64x64xf32>
    %265 = arith.mulf %259, %264 : vector<64x64xf32>
    %c1_148 = arith.constant 1 : index
    %c0_149 = arith.constant 0 : index
    %c0_150 = arith.constant 0 : index
    %266 = vector.load %arg7[%c1_148, %c0_149, %c0_150] : memref<2x64x32xf32, #tpu.memory_space<vmem>>, vector<1x64x32xf32>
    %267 = vector.shape_cast %266 : vector<1x64x32xf32> to vector<64x32xf32>
    %cst_151 = arith.constant dense<0.000000e+00> : vector<64x32xf32>
    %268 = tpu.matmul %265, %267, %cst_151 {dimension_numbers = #tpu.dot_dimension_numbers<[1], [0], [0], [1], [0, 0, 1, 1], [], []>} : vector<64x64xf32>, vector<64x32xf32>, vector<64x32xf32> -> vector<64x32xf32>
    %269 = arith.addf %232, %268 : vector<64x32xf32>
    %270 = vector.broadcast %144 : vector<1x32xf32> to vector<64x32xf32>
    %271 = arith.addf %269, %270 : vector<64x32xf32>
    %c0_152 = arith.constant 0 : index
    %c0_153 = arith.constant 0 : index
    %c0_154 = arith.constant 0 : index
    %272 = vector.load %arg10[%c0_152, %c0_153, %c0_154] : memref<1x64x32xf32, #tpu.memory_space<vmem>>, vector<1x64x32xf32>
    %273 = vector.shape_cast %272 : vector<1x64x32xf32> to vector<64x32xf32>
    %274 = vector.shape_cast %271 : vector<64x32xf32> to vector<1x64x32xf32>
    tpu.vector_store %arg10[%c0_152, %c0_153, %c0_154], %274 {strides = array<i32>} : memref<1x64x32xf32, #tpu.memory_space<vmem>>, vector<1x64x32xf32>,
    return
  }
  func.func @transform_0(%arg0: i32) -> (i32, i32, i32) {
    %c0_i32 = arith.constant 0 : i32
    %c0_i32_0 = arith.constant 0 : i32
    %c0_i32_1 = arith.constant 0 : i32
    return %arg0, %c0_i32, %c0_i32_0 : i32, i32, i32
  }
  func.func @transform_1(%arg0: i32) -> (i32, i32, i32, i32) {
    %c0_i32 = arith.constant 0 : i32
    %c0_i32_0 = arith.constant 0 : i32
    %c0_i32_1 = arith.constant 0 : i32
    %c0_i32_2 = arith.constant 0 : i32
    %c0_i32_3 = arith.constant 0 : i32
    return %c0_i32, %c0_i32_0, %c0_i32_1, %c0_i32_2 : i32, i32, i32, i32
  }
  func.func @transform_2(%arg0: i32) -> (i32, i32, i32, i32) {
    %c0_i32 = arith.constant 0 : i32
    %c0_i32_0 = arith.constant 0 : i32
    %c0_i32_1 = arith.constant 0 : i32
    %c0_i32_2 = arith.constant 0 : i32
    %c0_i32_3 = arith.constant 0 : i32
    return %c0_i32, %c0_i32_0, %c0_i32_1, %c0_i32_2 : i32, i32, i32, i32
  }
  func.func @transform_3(%arg0: i32) -> (i32, i32, i32, i32) {
    %c0_i32 = arith.constant 0 : i32
    %c0_i32_0 = arith.constant 0 : i32
    %c0_i32_1 = arith.constant 0 : i32
    %c0_i32_2 = arith.constant 0 : i32
    %c0_i32_3 = arith.constant 0 : i32
    return %c0_i32, %c0_i32_0, %c0_i32_1, %c0_i32_2 : i32, i32, i32, i32
  }
  func.func @transform_4(%arg0: i32) -> (i32, i32, i32, i32) {
    %c0_i32 = arith.constant 0 : i32
    %c0_i32_0 = arith.constant 0 : i32
    %c0_i32_1 = arith.constant 0 : i32
    %c0_i32_2 = arith.constant 0 : i32
    %c0_i32_3 = arith.constant 0 : i32
    return %c0_i32, %c0_i32_0, %c0_i32_1, %c0_i32_2 : i32, i32, i32, i32
  }
  func.func @transform_5(%arg0: i32) -> (i32, i32, i32) {
    %c0_i32 = arith.constant 0 : i32
    %c0_i32_0 = arith.constant 0 : i32
    %c0_i32_1 = arith.constant 0 : i32
    %c0_i32_2 = arith.constant 0 : i32
    return %c0_i32, %c0_i32_0, %c0_i32_1 : i32, i32, i32
  }
  func.func @transform_6(%arg0: i32) -> (i32, i32, i32) {
    %c0_i32 = arith.constant 0 : i32
    %c0_i32_0 = arith.constant 0 : i32
    %c0_i32_1 = arith.constant 0 : i32
    %c0_i32_2 = arith.constant 0 : i32
    return %c0_i32, %c0_i32_0, %c0_i32_1 : i32, i32, i32
  }
  func.func @transform_7(%arg0: i32) -> (i32, i32, i32) {
    %c0_i32 = arith.constant 0 : i32
    %c0_i32_0 = arith.constant 0 : i32
    %c0_i32_1 = arith.constant 0 : i32
    %c0_i32_2 = arith.constant 0 : i32
    return %c0_i32, %c0_i32_0, %c0_i32_1 : i32, i32, i32
  }
  func.func @transform_8(%arg0: i32) -> (i32, i32, i32) {
    %c0_i32 = arith.constant 0 : i32
    %c0_i32_0 = arith.constant 0 : i32
    %c0_i32_1 = arith.constant 0 : i32
    %c0_i32_2 = arith.constant 0 : i32
    return %c0_i32, %c0_i32_0, %c0_i32_1 : i32, i32, i32
  }
  func.func @transform_9(%arg0: i32) -> (i32, i32, i32) {
    %c0_i32 = arith.constant 0 : i32
    %c0_i32_0 = arith.constant 0 : i32
    %c0_i32_1 = arith.constant 0 : i32
    return %arg0, %c0_i32, %c0_i32_0 : i32, i32, i32
  }
}

</mosaic_0001>

<llo_original>
// kernel: tpu_custom_call.1
$region0: #{tpu_custom_call.1}
  #allocation0 [shape = 'u32[]', space=smem, size = 0x4, offset = 0x4, fixed_abs, tag = 'smem constant byte address 0x4 - core index']
  #allocation1 [shape = 'u32[144,128]{1,0:T(1,128)}', space=vmem, size = 0x12000, scoped, tag = 'internal scratch']
  %s0 = inlined_call_operand.vmem [shape: f32[1,64,32], index: 0, kind: input, shape index: {}]
  %s1 = inlined_call_operand.vmem [shape: f32[2,2,32,16], index: 1, kind: input, shape index: {}]
  %s2 = inlined_call_operand.vmem [shape: f32[2,2,32,16], index: 2, kind: input, shape index: {}]
  %s3 = inlined_call_operand.vmem [shape: f32[2,2,32,16], index: 3, kind: input, shape index: {}]
  %s4 = inlined_call_operand.vmem [shape: f32[2,2,16,32], index: 4, kind: input, shape index: {}]
  %s5 = inlined_call_operand.vmem [shape: f32[2,32,64], index: 5, kind: input, shape index: {}]
  %s6 = inlined_call_operand.vmem [shape: f32[2,64,32], index: 6, kind: input, shape index: {}]
  %s7 = inlined_call_operand.vmem [shape: f32[2,8,32], index: 7, kind: input, shape index: {}]
  %s8 = inlined_call_operand.vmem [shape: f32[2,1,64], index: 8, kind: input, shape index: {}]
  %s9 = inlined_call_operand.vmem [shape: f32[1,64,32], index: 9, kind: output, shape index: {}]
  %s10 = sld [smem:[#allocation0]]
  $region46: #{tpu_custom_call.1} parent=0
    _
  %s12 = ssub.s32 1, %s10
  %s13 = scalar_select 0, %s12, %s10
  // Predicated region
  $region2: #{tpu_custom_call.1} parent=0 // pred_check
    _
  $region3: #{tpu_custom_call.1} parent=0 // pred_check_branch
    %15 = sbr.rel (0) target = $region5
  $region4: #{tpu_custom_call.1} parent=0 // pred_region
    _
  $region5: #{tpu_custom_call.1} parent=0 // pred_fallthru
    _
  // Predicated region
  $region6: #{tpu_custom_call.1} parent=0 // pred_check
    _
  $region7: #{tpu_custom_call.1} parent=0 // pred_check_branch
    %17 = sbr.rel (0) target = $region9
  $region8: #{tpu_custom_call.1} parent=0 // pred_region
    _
  $region9: #{tpu_custom_call.1} parent=0 // pred_fallthru
    _
  // Predicated region
  $region10: #{tpu_custom_call.1} parent=0 // pred_check
    _
  $region11: #{tpu_custom_call.1} parent=0 // pred_check_branch
    %19 = sbr.rel (0) target = $region13
  $region12: #{tpu_custom_call.1} parent=0 // pred_region
    _
  $region13: #{tpu_custom_call.1} parent=0 // pred_fallthru
    _
  // Predicated region
  $region14: #{tpu_custom_call.1} parent=0 // pred_check
    _
  $region15: #{tpu_custom_call.1} parent=0 // pred_check_branch
    %21 = sbr.rel (0) target = $region17
  $region16: #{tpu_custom_call.1} parent=0 // pred_region
    _
  $region17: #{tpu_custom_call.1} parent=0 // pred_fallthru
    _
  // Predicated region
  $region18: #{tpu_custom_call.1} parent=0 // pred_check
    _
  $region19: #{tpu_custom_call.1} parent=0 // pred_check_branch
    %23 = sbr.rel (0) target = $region21
  $region20: #{tpu_custom_call.1} parent=0 // pred_region
    _
  $region21: #{tpu_custom_call.1} parent=0 // pred_fallthru
    _
  // Predicated region
  $region22: #{tpu_custom_call.1} parent=0 // pred_check
    _
  $region23: #{tpu_custom_call.1} parent=0 // pred_check_branch
    %25 = sbr.rel (0) target = $region25
  $region24: #{tpu_custom_call.1} parent=0 // pred_region
    _
  $region25: #{tpu_custom_call.1} parent=0 // pred_fallthru
    _
  // Predicated region
  $region26: #{tpu_custom_call.1} parent=0 // pred_check
    _
  $region27: #{tpu_custom_call.1} parent=0 // pred_check_branch
    %27 = sbr.rel (0) target = $region29
  $region28: #{tpu_custom_call.1} parent=0 // pred_region
    _
  $region29: #{tpu_custom_call.1} parent=0 // pred_fallthru
    _
  // Predicated region
  $region30: #{tpu_custom_call.1} parent=0 // pred_check
    _
  $region31: #{tpu_custom_call.1} parent=0 // pred_check_branch
    %29 = sbr.rel (0) target = $region33
  $region32: #{tpu_custom_call.1} parent=0 // pred_region
    _
  $region33: #{tpu_custom_call.1} parent=0 // pred_fallthru
    _
  // Predicated region
  $region34: #{tpu_custom_call.1} parent=0 // pred_check
    _
  $region35: #{tpu_custom_call.1} parent=0 // pred_check_branch
    %31 = sbr.rel (0) target = $region37
  $region36: #{tpu_custom_call.1} parent=0 // pred_region
    _
  $region37: #{tpu_custom_call.1} parent=0 // pred_fallthru
    _
  %v32 = vld [vmem:[%s0] sm:$0xff]
  %v33 = vld [vmem:[%s0 + $0x8] sm:$0xff]
  %v34 = vld [vmem:[%s0 + $0x10] sm:$0xff]
  %v35 = vld [vmem:[%s0 + $0x18] sm:$0xff]
  %v36 = vld [vmem:[%s0 + $0x20] sm:$0xff]
  %v37 = vld [vmem:[%s0 + $0x28] sm:$0xff]
  %v38 = vld [vmem:[%s0 + $0x30] sm:$0xff]
  %v39 = vld [vmem:[%s0 + $0x38] sm:$0xff]
  %v40 = vld [vmem:[%s7] sm:$0xff]
  %v41 = vld [vmem:[%s8] sm:$0x1]
  %vm42 = vcmask 261120
  %v43 = vsel %vm42, %v32, 0.0
  %44 = vadd.xlane.f32.xlu0 %v43
  %v45 = vpop.xlane.xlu0 %44
  %v46 = vsel %vm42, %v33, 0.0
  %47 = vadd.xlane.f32.xlu0 %v46
  %v48 = vpop.xlane.xlu0 %47
  %v49 = vsel %vm42, %v34, 0.0
  %50 = vadd.xlane.f32.xlu0 %v49
  %v51 = vpop.xlane.xlu0 %50
  %v52 = vsel %vm42, %v35, 0.0
  %53 = vadd.xlane.f32.xlu0 %v52
  %v54 = vpop.xlane.xlu0 %53
  %v55 = vsel %vm42, %v36, 0.0
  %56 = vadd.xlane.f32.xlu0 %v55
  %v57 = vpop.xlane.xlu0 %56
  %v58 = vsel %vm42, %v37, 0.0
  %59 = vadd.xlane.f32.xlu0 %v58
  %v60 = vpop.xlane.xlu0 %59
  %v61 = vsel %vm42, %v38, 0.0
  %62 = vadd.xlane.f32.xlu0 %v61
  %v63 = vpop.xlane.xlu0 %62
  %v64 = vsel %vm42, %v39, 0.0
  %65 = vadd.xlane.f32.xlu0 %v64
  %v66 = vpop.xlane.xlu0 %65
  %v67 = vrcp.pop 32.0
  %v68 = vmul.f32 %v45, %v67
  %v69 = vmul.f32 %v48, %v67
  %v70 = vmul.f32 %v51, %v67
  %v71 = vmul.f32 %v54, %v67
  %v72 = vmul.f32 %v57, %v67
  %v73 = vmul.f32 %v60, %v67
  %v74 = vmul.f32 %v63, %v67
  %v75 = vmul.f32 %v66, %v67
  %v76 = vsub.f32 %v32, %v68
  %v77 = vsub.f32 %v33, %v69
  %v78 = vsub.f32 %v34, %v70
  %v79 = vsub.f32 %v35, %v71
  %v80 = vsub.f32 %v36, %v72
  %v81 = vsub.f32 %v37, %v73
  %v82 = vsub.f32 %v38, %v74
  %v83 = vsub.f32 %v39, %v75
  %v84 = vmul.f32 %v76, %v76
  %v85 = vmul.f32 %v77, %v77
  %v86 = vmul.f32 %v78, %v78
  %v87 = vmul.f32 %v79, %v79
  %v88 = vmul.f32 %v80, %v80
  %v89 = vmul.f32 %v81, %v81
  %v90 = vmul.f32 %v82, %v82
  %v91 = vmul.f32 %v83, %v83
  %v92 = vsel %vm42, %v84, 0.0
  %93 = vadd.xlane.f32.xlu0 %v92
  %v94 = vpop.xlane.xlu0 %93
  %v95 = vsel %vm42, %v85, 0.0
  %96 = vadd.xlane.f32.xlu0 %v95
  %v97 = vpop.xlane.xlu0 %96
  %v98 = vsel %vm42, %v86, 0.0
  %99 = vadd.xlane.f32.xlu0 %v98
  %v100 = vpop.xlane.xlu0 %99
  %v101 = vsel %vm42, %v87, 0.0
  %102 = vadd.xlane.f32.xlu0 %v101
  %v103 = vpop.xlane.xlu0 %102
  %v104 = vsel %vm42, %v88, 0.0
  %105 = vadd.xlane.f32.xlu0 %v104
  %v106 = vpop.xlane.xlu0 %105
  %v107 = vsel %vm42, %v89, 0.0
  %108 = vadd.xlane.f32.xlu0 %v107
  %v109 = vpop.xlane.xlu0 %108
  %v110 = vsel %vm42, %v90, 0.0
  %111 = vadd.xlane.f32.xlu0 %v110
  %v112 = vpop.xlane.xlu0 %111
  %v113 = vsel %vm42, %v91, 0.0
  %114 = vadd.xlane.f32.xlu0 %v113
  %v115 = vpop.xlane.xlu0 %114
  %v116 = vmul.f32 %v94, %v67
  %v117 = vmul.f32 %v97, %v67
  %v118 = vmul.f32 %v100, %v67
  %v119 = vmul.f32 %v103, %v67
  %v120 = vmul.f32 %v106, %v67
  %v121 = vmul.f32 %v109, %v67
  %v122 = vmul.f32 %v112, %v67
  %v123 = vmul.f32 %v115, %v67
  %v124 = vadd.f32 %v116, 1e-05
  %v125 = vadd.f32 %v117, 1e-05
  %v126 = vadd.f32 %v118, 1e-05
  %v127 = vadd.f32 %v119, 1e-05
  %v128 = vadd.f32 %v120, 1e-05
  %v129 = vadd.f32 %v121, 1e-05
  %v130 = vadd.f32 %v122, 1e-05
  %v131 = vadd.f32 %v123, 1e-05
  %v132 = vrsqrt.pop %v124
  %v133 = vrsqrt.pop %v125
  %v134 = vrsqrt.pop %v126
  %v135 = vrsqrt.pop %v127
  %v136 = vrsqrt.pop %v128
  %v137 = vrsqrt.pop %v129
  %v138 = vrsqrt.pop %v130
  %v139 = vrsqrt.pop %v131
  %v140 = vmul.f32 %v76, %v132
  %v141 = vmul.f32 %v77, %v133
  %v142 = vmul.f32 %v78, %v134
  %v143 = vmul.f32 %v79, %v135
  %v144 = vmul.f32 %v80, %v136
  %v145 = vmul.f32 %v81, %v137
  %v146 = vmul.f32 %v82, %v138
  %v147 = vmul.f32 %v83, %v139
  %v148 = vlaneseq
  %v149 = vshrl.u32 %v148, 7
  %v150 = vsub.s32 0, %v149
  %v151 = vrot.slane %v40, %v150
  %v152 = vmul.f32 %v140, %v151
  %v153 = vmul.f32 %v141, %v151
  %v154 = vmul.f32 %v142, %v151
  %v155 = vmul.f32 %v143, %v151
  %v156 = vmul.f32 %v144, %v151
  %v157 = vmul.f32 %v145, %v151
  %v158 = vmul.f32 %v146, %v151
  %v159 = vmul.f32 %v147, %v151
  %v160 = vlaneseq
  %v161 = vshrl.u32 %v160, 7
  %v162 = vsub.s32 1, %v161
  %v163 = vrot.slane %v40, %v162
  %v164 = vadd.f32 %v152, %v163
  %v165 = vadd.f32 %v153, %v163
  %v166 = vadd.f32 %v154, %v163
  %v167 = vadd.f32 %v155, %v163
  %v168 = vadd.f32 %v156, %v163
  %v169 = vadd.f32 %v157, %v163
  %v170 = vadd.f32 %v158, %v163
  %v171 = vadd.f32 %v159, %v163
  %v172 = vld [vmem:[%s1] sm:$0xff]
  %v173 = vld [vmem:[%s1 + $0x8] sm:$0xff]
  %v174 = vld [vmem:[%s1 + $0x10] sm:$0xff]
  %v175 = vld [vmem:[%s1 + $0x18] sm:$0xff]
  %v177 = vsel %vm42, %v164, 0
  %v180 = vsel %vm42, %v165, 0
  %v183 = vsel %vm42, %v166, 0
  %v186 = vsel %vm42, %v167, 0
  %v189 = vsel %vm42, %v168, 0
  %v192 = vsel %vm42, %v169, 0
  %v195 = vsel %vm42, %v170, 0
  %v198 = vsel %vm42, %v171, 0
  %200 = vmatprep.subr.mxu0 0.0
  %201 = vmatpush1.msra.mxu0 0.0
  %202 = vmatprep.subr.mxu0 0.0
  %203 = vmatpush1.msra.mxu0 0.0
  %204 = vmatprep.subr.mxu0 0.0
  %205 = vmatpush1.msra.mxu0 0.0
  %206 = vmatprep.subr.mxu0 0.0
  %207 = vmatpush1.msra.mxu0 0.0
  %208 = vmatprep.subr.mxu0 0.0
  %209 = vmatpush1.msra.mxu0 0.0
  %210 = vmatprep.subr.mxu0 0.0
  %211 = vmatpush1.msra.mxu0 0.0
  %212 = vmatprep.subr.mxu0 0.0
  %213 = vmatpush1.msra.mxu0 0.0
  %214 = vmatprep.subr.mxu0 0.0
  %215 = vmatpush1.msra.mxu0 0.0
  %216 = vmatprep.subr.mxu0 0.0
  %217 = vmatpush1.msra.mxu0 0.0
  %218 = vmatprep.subr.mxu0 0.0
  %219 = vmatpush1.msra.mxu0 0.0
  %220 = vmatprep.subr.mxu0 0.0
  %221 = vmatpush1.msra.mxu0 0.0
  %222 = vmatprep.subr.mxu0 0.0
  %223 = vmatpush1.msra.mxu0 0.0
  %224 = vmatprep.subr.mxu0 0.0
  %225 = vmatpush1.msra.mxu0 %v175
  %226 = vmatprep.subr.mxu0 0.0
  %227 = vmatpush1.msra.mxu0 %v174
  %228 = vmatprep.subr.mxu0 0.0
  %229 = vmatpush1.msra.mxu0 %v173
  %230 = vmatprep.subr.mxu0 0.0
  %231 = vmatpush1.msra.mxu0 %v172
  %232 = vmatprep.subr.mxu0 0.0
  %233 = vmatpush2.msra.mxu0 0.0
  %234 = vmatprep.subr.mxu0 0.0
  %235 = vmatpush2.msra.mxu0 0.0
  %236 = vmatprep.subr.mxu0 0.0
  %237 = vmatpush2.msra.mxu0 0.0
  %238 = vmatprep.subr.mxu0 0.0
  %239 = vmatpush2.msra.mxu0 0.0
  %240 = vmatprep.subr.mxu0 0.0
  %241 = vmatpush2.msra.mxu0 0.0
  %242 = vmatprep.subr.mxu0 0.0
  %243 = vmatpush2.msra.mxu0 0.0
  %244 = vmatprep.subr.mxu0 0.0
  %245 = vmatpush2.msra.mxu0 0.0
  %246 = vmatprep.subr.mxu0 0.0
  %247 = vmatpush2.msra.mxu0 0.0
  %248 = vmatprep.subr.mxu0 0.0
  %249 = vmatpush2.msra.mxu0 0.0
  %250 = vmatprep.subr.mxu0 0.0
  %251 = vmatpush2.msra.mxu0 0.0
  %252 = vmatprep.subr.mxu0 0.0
  %253 = vmatpush2.msra.mxu0 0.0
  %254 = vmatprep.subr.mxu0 0.0
  %255 = vmatpush2.msra.mxu0 0.0
  %256 = vmatprep.subr.mxu0 0.0
  %257 = vmatpush2.msra.mxu0 0.0
  %258 = vmatprep.subr.mxu0 0.0
  %259 = vmatpush2.msra.mxu0 0.0
  %260 = vmatprep.subr.mxu0 0.0
  %261 = vmatpush2.msra.mxu0 0.0
  %262 = vmatprep.subr.mxu0 0.0
  %263 = vmatpush2.msra.mxu0 0.0
  %264 = vmatprep.mubr.f32.mxu0 0.0
  %265 = vmatmul.mubr.f32.gmra.mxu0 %v177
  %v266 = vpop.f32.mrf.mxu0
  %v267 = vadd.f32 0.0, %v266
  %v268 = vpop.f32.mrf.mxu0
  %269 = vmatprep.mubr.f32.mxu0 0.0
  %270 = vmatmul.mubr.f32.gmra.mxu0 %v180
  %v271 = vpop.f32.mrf.mxu0
  %v272 = vadd.f32 0.0, %v271
  %v273 = vpop.f32.mrf.mxu0
  %274 = vmatprep.mubr.f32.mxu0 0.0
  %275 = vmatmul.mubr.f32.gmra.mxu0 %v183
  %v276 = vpop.f32.mrf.mxu0
  %v277 = vadd.f32 0.0, %v276
  %v278 = vpop.f32.mrf.mxu0
  %279 = vmatprep.mubr.f32.mxu0 0.0
  %280 = vmatmul.mubr.f32.gmra.mxu0 %v186
  %v281 = vpop.f32.mrf.mxu0
  %v282 = vadd.f32 0.0, %v281
  %v283 = vpop.f32.mrf.mxu0
  %284 = vmatprep.mubr.f32.mxu0 0.0
  %285 = vmatmul.mubr.f32.gmra.mxu0 %v189
  %v286 = vpop.f32.mrf.mxu0
  %v287 = vadd.f32 0.0, %v286
  %v288 = vpop.f32.mrf.mxu0
  %289 = vmatprep.mubr.f32.mxu0 0.0
  %290 = vmatmul.mubr.f32.gmra.mxu0 %v192
  %v291 = vpop.f32.mrf.mxu0
  %v292 = vadd.f32 0.0, %v291
  %v293 = vpop.f32.mrf.mxu0
  %294 = vmatprep.mubr.f32.mxu0 0.0
  %295 = vmatmul.mubr.f32.gmra.mxu0 %v195
  %v296 = vpop.f32.mrf.mxu0
  %v297 = vadd.f32 0.0, %v296
  %v298 = vpop.f32.mrf.mxu0
  %299 = vmatprep.mubr.f32.mxu0 0.0
  %300 = vmatmul.mubr.f32.gmra.mxu0 %v198
  %v301 = vpop.f32.mrf.mxu0
  %v302 = vadd.f32 0.0, %v301
  %v303 = vpop.f32.mrf.mxu0
  %304 = vdwg.mxu0
  %v305 = vld [vmem:[%s2] sm:$0xff]
  %v306 = vld [vmem:[%s2 + $0x8] sm:$0xff]
  %v307 = vld [vmem:[%s2 + $0x10] sm:$0xff]
  %v308 = vld [vmem:[%s2 + $0x18] sm:$0xff]
  %309 = vmatprep.subr.mxu0 0.0
  %310 = vmatpush1.msra.mxu0 0.0
  %311 = vmatprep.subr.mxu0 0.0
  %312 = vmatpush1.msra.mxu0 0.0
  %313 = vmatprep.subr.mxu0 0.0
  %314 = vmatpush1.msra.mxu0 0.0
  %315 = vmatprep.subr.mxu0 0.0
  %316 = vmatpush1.msra.mxu0 0.0
  %317 = vmatprep.subr.mxu0 0.0
  %318 = vmatpush1.msra.mxu0 0.0
  %319 = vmatprep.subr.mxu0 0.0
  %320 = vmatpush1.msra.mxu0 0.0
  %321 = vmatprep.subr.mxu0 0.0
  %322 = vmatpush1.msra.mxu0 0.0
  %323 = vmatprep.subr.mxu0 0.0
  %324 = vmatpush1.msra.mxu0 0.0
  %325 = vmatprep.subr.mxu0 0.0
  %326 = vmatpush1.msra.mxu0 0.0
  %327 = vmatprep.subr.mxu0 0.0
  %328 = vmatpush1.msra.mxu0 0.0
  %329 = vmatprep.subr.mxu0 0.0
  %330 = vmatpush1.msra.mxu0 0.0
  %331 = vmatprep.subr.mxu0 0.0
  %332 = vmatpush1.msra.mxu0 0.0
  %333 = vmatprep.subr.mxu0 0.0
  %334 = vmatpush1.msra.mxu0 %v308
  %335 = vmatprep.subr.mxu0 0.0
  %336 = vmatpush1.msra.mxu0 %v307
  %337 = vmatprep.subr.mxu0 0.0
  %338 = vmatpush1.msra.mxu0 %v306
  %339 = vmatprep.subr.mxu0 0.0
  %340 = vmatpush1.msra.mxu0 %v305
  %341 = vmatprep.subr.mxu0 0.0
  %342 = vmatpush2.msra.mxu0 0.0
  %343 = vmatprep.subr.mxu0 0.0
  %344 = vmatpush2.msra.mxu0 0.0
  %345 = vmatprep.subr.mxu0 0.0
  %346 = vmatpush2.msra.mxu0 0.0
  %347 = vmatprep.subr.mxu0 0.0
  %348 = vmatpush2.msra.mxu0 0.0
  %349 = vmatprep.subr.mxu0 0.0
  %350 = vmatpush2.msra.mxu0 0.0
  %351 = vmatprep.subr.mxu0 0.0
  %352 = vmatpush2.msra.mxu0 0.0
  %353 = vmatprep.subr.mxu0 0.0
  %354 = vmatpush2.msra.mxu0 0.0
  %355 = vmatprep.subr.mxu0 0.0
  %356 = vmatpush2.msra.mxu0 0.0
  %357 = vmatprep.subr.mxu0 0.0
  %358 = vmatpush2.msra.mxu0 0.0
  %359 = vmatprep.subr.mxu0 0.0
  %360 = vmatpush2.msra.mxu0 0.0
  %361 = vmatprep.subr.mxu0 0.0
  %362 = vmatpush2.msra.mxu0 0.0
  %363 = vmatprep.subr.mxu0 0.0
  %364 = vmatpush2.msra.mxu0 0.0
  %365 = vmatprep.subr.mxu0 0.0
  %366 = vmatpush2.msra.mxu0 0.0
  %367 = vmatprep.subr.mxu0 0.0
  %368 = vmatpush2.msra.mxu0 0.0
  %369 = vmatprep.subr.mxu0 0.0
  %370 = vmatpush2.msra.mxu0 0.0
  %371 = vmatprep.subr.mxu0 0.0
  %372 = vmatpush2.msra.mxu0 0.0
  %373 = vmatprep.mubr.f32.mxu0 0.0
  %374 = vmatmul.mubr.f32.gmra.mxu0 %v177
  %v375 = vpop.f32.mrf.mxu0
  %v376 = vadd.f32 0.0, %v375
  %v377 = vpop.f32.mrf.mxu0
  %378 = vmatprep.mubr.f32.mxu0 0.0
  %379 = vmatmul.mubr.f32.gmra.mxu0 %v180
  %v380 = vpop.f32.mrf.mxu0
  %v381 = vadd.f32 0.0, %v380
  %v382 = vpop.f32.mrf.mxu0
  %383 = vmatprep.mubr.f32.mxu0 0.0
  %384 = vmatmul.mubr.f32.gmra.mxu0 %v183
  %v385 = vpop.f32.mrf.mxu0
  %v386 = vadd.f32 0.0, %v385
  %v387 = vpop.f32.mrf.mxu0
  %388 = vmatprep.mubr.f32.mxu0 0.0
  %389 = vmatmul.mubr.f32.gmra.mxu0 %v186
  %v390 = vpop.f32.mrf.mxu0
  %v391 = vadd.f32 0.0, %v390
  %v392 = vpop.f32.mrf.mxu0
  %393 = vmatprep.mubr.f32.mxu0 0.0
  %394 = vmatmul.mubr.f32.gmra.mxu0 %v189
  %v395 = vpop.f32.mrf.mxu0
  %v396 = vadd.f32 0.0, %v395
  %v397 = vpop.f32.mrf.mxu0
  %398 = vmatprep.mubr.f32.mxu0 0.0
  %399 = vmatmul.mubr.f32.gmra.mxu0 %v192
  %v400 = vpop.f32.mrf.mxu0
  %v401 = vadd.f32 0.0, %v400
  %v402 = vpop.f32.mrf.mxu0
  %403 = vmatprep.mubr.f32.mxu0 0.0
  %404 = vmatmul.mubr.f32.gmra.mxu0 %v195
  %v405 = vpop.f32.mrf.mxu0
  %v406 = vadd.f32 0.0, %v405
  %v407 = vpop.f32.mrf.mxu0
  %408 = vmatprep.mubr.f32.mxu0 0.0
  %409 = vmatmul.mubr.f32.gmra.mxu0 %v198
  %v410 = vpop.f32.mrf.mxu0
  %v411 = vadd.f32 0.0, %v410
  %v412 = vpop.f32.mrf.mxu0
  %413 = vdwg.mxu0
  %v414 = vld [vmem:[%s3] sm:$0xff]
  %v415 = vld [vmem:[%s3 + $0x8] sm:$0xff]
  %v416 = vld [vmem:[%s3 + $0x10] sm:$0xff]
  %v417 = vld [vmem:[%s3 + $0x18] sm:$0xff]
  %418 = vmatprep.subr.mxu0 0.0
  %419 = vmatpush1.msra.mxu0 0.0
  %420 = vmatprep.subr.mxu0 0.0
  %421 = vmatpush1.msra.mxu0 0.0
  %422 = vmatprep.subr.mxu0 0.0
  %423 = vmatpush1.msra.mxu0 0.0
  %424 = vmatprep.subr.mxu0 0.0
  %425 = vmatpush1.msra.mxu0 0.0
  %426 = vmatprep.subr.mxu0 0.0
  %427 = vmatpush1.msra.mxu0 0.0
  %428 = vmatprep.subr.mxu0 0.0
  %429 = vmatpush1.msra.mxu0 0.0
  %430 = vmatprep.subr.mxu0 0.0
  %431 = vmatpush1.msra.mxu0 0.0
  %432 = vmatprep.subr.mxu0 0.0
  %433 = vmatpush1.msra.mxu0 0.0
  %434 = vmatprep.subr.mxu0 0.0
  %435 = vmatpush1.msra.mxu0 0.0
  %436 = vmatprep.subr.mxu0 0.0
  %437 = vmatpush1.msra.mxu0 0.0
  %438 = vmatprep.subr.mxu0 0.0
  %439 = vmatpush1.msra.mxu0 0.0
  %440 = vmatprep.subr.mxu0 0.0
  %441 = vmatpush1.msra.mxu0 0.0
  %442 = vmatprep.subr.mxu0 0.0
  %443 = vmatpush1.msra.mxu0 %v417
  %444 = vmatprep.subr.mxu0 0.0
  %445 = vmatpush1.msra.mxu0 %v416
  %446 = vmatprep.subr.mxu0 0.0
  %447 = vmatpush1.msra.mxu0 %v415
  %448 = vmatprep.subr.mxu0 0.0
  %449 = vmatpush1.msra.mxu0 %v414
  %450 = vmatprep.subr.mxu0 0.0
  %451 = vmatpush2.msra.mxu0 0.0
  %452 = vmatprep.subr.mxu0 0.0
  %453 = vmatpush2.msra.mxu0 0.0
  %454 = vmatprep.subr.mxu0 0.0
  %455 = vmatpush2.msra.mxu0 0.0
  %456 = vmatprep.subr.mxu0 0.0
  %457 = vmatpush2.msra.mxu0 0.0
  %458 = vmatprep.subr.mxu0 0.0
  %459 = vmatpush2.msra.mxu0 0.0
  %460 = vmatprep.subr.mxu0 0.0
  %461 = vmatpush2.msra.mxu0 0.0
  %462 = vmatprep.subr.mxu0 0.0
  %463 = vmatpush2.msra.mxu0 0.0
  %464 = vmatprep.subr.mxu0 0.0
  %465 = vmatpush2.msra.mxu0 0.0
  %466 = vmatprep.subr.mxu0 0.0
  %467 = vmatpush2.msra.mxu0 0.0
  %468 = vmatprep.subr.mxu0 0.0
  %469 = vmatpush2.msra.mxu0 0.0
  %470 = vmatprep.subr.mxu0 0.0
  %471 = vmatpush2.msra.mxu0 0.0
  %472 = vmatprep.subr.mxu0 0.0
  %473 = vmatpush2.msra.mxu0 0.0
  %474 = vmatprep.subr.mxu0 0.0
  %475 = vmatpush2.msra.mxu0 0.0
  %476 = vmatprep.subr.mxu0 0.0
  %477 = vmatpush2.msra.mxu0 0.0
  %478 = vmatprep.subr.mxu0 0.0
  %479 = vmatpush2.msra.mxu0 0.0
  %480 = vmatprep.subr.mxu0 0.0
  %481 = vmatpush2.msra.mxu0 0.0
  %482 = vmatprep.mubr.f32.mxu0 0.0
  %483 = vmatmul.mubr.f32.gmra.mxu0 %v177
  %v484 = vpop.f32.mrf.mxu0
  %v485 = vadd.f32 0.0, %v484
  %v486 = vpop.f32.mrf.mxu0
  %487 = vmatprep.mubr.f32.mxu0 0.0
  %488 = vmatmul.mubr.f32.gmra.mxu0 %v180
  %v489 = vpop.f32.mrf.mxu0
  %v490 = vadd.f32 0.0, %v489
  %v491 = vpop.f32.mrf.mxu0
  %492 = vmatprep.mubr.f32.mxu0 0.0
  %493 = vmatmul.mubr.f32.gmra.mxu0 %v183
  %v494 = vpop.f32.mrf.mxu0
  %v495 = vadd.f32 0.0, %v494
  %v496 = vpop.f32.mrf.mxu0
  %497 = vmatprep.mubr.f32.mxu0 0.0
  %498 = vmatmul.mubr.f32.gmra.mxu0 %v186
  %v499 = vpop.f32.mrf.mxu0
  %v500 = vadd.f32 0.0, %v499
  %v501 = vpop.f32.mrf.mxu0
  %502 = vmatprep.mubr.f32.mxu0 0.0
  %503 = vmatmul.mubr.f32.gmra.mxu0 %v189
  %v504 = vpop.f32.mrf.mxu0
  %v505 = vadd.f32 0.0, %v504
  %v506 = vpop.f32.mrf.mxu0
  %507 = vmatprep.mubr.f32.mxu0 0.0
  %508 = vmatmul.mubr.f32.gmra.mxu0 %v192
  %v509 = vpop.f32.mrf.mxu0
  %v510 = vadd.f32 0.0, %v509
  %v511 = vpop.f32.mrf.mxu0
  %512 = vmatprep.mubr.f32.mxu0 0.0
  %513 = vmatmul.mubr.f32.gmra.mxu0 %v195
  %v514 = vpop.f32.mrf.mxu0
  %v515 = vadd.f32 0.0, %v514
  %v516 = vpop.f32.mrf.mxu0
  %517 = vmatprep.mubr.f32.mxu0 0.0
  %518 = vmatmul.mubr.f32.gmra.mxu0 %v198
  %v519 = vpop.f32.mrf.mxu0
  %v520 = vadd.f32 0.0, %v519
  %v521 = vpop.f32.mrf.mxu0
  %522 = vdwg.mxu0
  %vm523 = vcmask 130048
  %v525 = vsel %vm523, %v267, 0
  %v528 = vsel %vm523, %v376, 0
  %530 = vmatprep.subr.mxu0 0.0
  %531 = vmatpush1.xpose.msra.mxu0 0.0
  %532 = vmatprep.subr.mxu0 0.0
  %533 = vmatpush1.xpose.msra.mxu0 0.0
  %534 = vmatprep.subr.mxu0 0.0
  %535 = vmatpush1.xpose.msra.mxu0 0.0
  %536 = vmatprep.subr.mxu0 0.0
  %537 = vmatpush1.xpose.msra.mxu0 0.0
  %538 = vmatprep.subr.mxu0 0.0
  %539 = vmatpush1.xpose.msra.mxu0 0.0
  %540 = vmatprep.subr.mxu0 0.0
  %541 = vmatpush1.xpose.msra.mxu0 0.0
  %542 = vmatprep.subr.mxu0 0.0
  %543 = vmatpush1.xpose.msra.mxu0 0.0
  %544 = vmatprep.subr.mxu0 0.0
  %545 = vmatpush1.xpose.msra.mxu0 0.0
  %546 = vmatprep.subr.mxu0 0.0
  %547 = vmatpush1.xpose.msra.mxu0 0.0
  %548 = vmatprep.subr.mxu0 0.0
  %549 = vmatpush1.xpose.msra.mxu0 0.0
  %550 = vmatprep.subr.mxu0 0.0
  %551 = vmatpush1.xpose.msra.mxu0 0.0
  %552 = vmatprep.subr.mxu0 0.0
  %553 = vmatpush1.xpose.msra.mxu0 0.0
  %554 = vmatprep.subr.mxu0 0.0
  %555 = vmatpush1.xpose.msra.mxu0 0.0
  %556 = vmatprep.subr.mxu0 0.0
  %557 = vmatpush1.xpose.msra.mxu0 0.0
  %558 = vmatprep.subr.mxu0 0.0
  %559 = vmatpush1.xpose.msra.mxu0 0.0
  %560 = vmatprep.subr.mxu0 0.0
  %561 = vmatpush1.xpose.msra.mxu0 %v528
  %562 = vmatprep.subr.mxu0 0.0
  %563 = vmatpush2.xpose.msra.mxu0 0.0
  %564 = vmatprep.subr.mxu0 0.0
  %565 = vmatpush2.xpose.msra.mxu0 0.0
  %566 = vmatprep.subr.mxu0 0.0
  %567 = vmatpush2.xpose.msra.mxu0 0.0
  %568 = vmatprep.subr.mxu0 0.0
  %569 = vmatpush2.xpose.msra.mxu0 0.0
  %570 = vmatprep.subr.mxu0 0.0
  %571 = vmatpush2.xpose.msra.mxu0 0.0
  %572 = vmatprep.subr.mxu0 0.0
  %573 = vmatpush2.xpose.msra.mxu0 0.0
  %574 = vmatprep.subr.mxu0 0.0
  %575 = vmatpush2.xpose.msra.mxu0 0.0
  %576 = vmatprep.subr.mxu0 0.0
  %577 = vmatpush2.xpose.msra.mxu0 0.0
  %578 = vmatprep.subr.mxu0 0.0
  %579 = vmatpush2.xpose.msra.mxu0 0.0
  %580 = vmatprep.subr.mxu0 0.0
  %581 = vmatpush2.xpose.msra.mxu0 0.0
  %582 = vmatprep.subr.mxu0 0.0
  %583 = vmatpush2.xpose.msra.mxu0 0.0
  %584 = vmatprep.subr.mxu0 0.0
  %585 = vmatpush2.xpose.msra.mxu0 0.0
  %586 = vmatprep.subr.mxu0 0.0
  %587 = vmatpush2.xpose.msra.mxu0 0.0
  %588 = vmatprep.subr.mxu0 0.0
  %589 = vmatpush2.xpose.msra.mxu0 0.0
  %590 = vmatprep.subr.mxu0 0.0
  %591 = vmatpush2.xpose.msra.mxu0 0.0
  %592 = vmatprep.subr.mxu0 0.0
  %593 = vmatpush2.xpose.msra.mxu0 0.0
  %594 = vmatprep.mubr.f32.mxu0 0.0
  %595 = vmatmul.mubr.f32.gmra.mxu0 %v525
  %v596 = vpop.f32.mrf.mxu0
  %v597 = vadd.f32 0.0, %v596
  %v598 = vpop.f32.mrf.mxu0
  %599 = vdwg.mxu0
  %v601 = vsel %vm523, %v272, 0
  %v604 = vsel %vm523, %v381, 0
  %606 = vmatprep.subr.mxu0 0.0
  %607 = vmatpush1.xpose.msra.mxu0 0.0
  %608 = vmatprep.subr.mxu0 0.0
  %609 = vmatpush1.xpose.msra.mxu0 0.0
  %610 = vmatprep.subr.mxu0 0.0
  %611 = vmatpush1.xpose.msra.mxu0 0.0
  %612 = vmatprep.subr.mxu0 0.0
  %613 = vmatpush1.xpose.msra.mxu0 0.0
  %614 = vmatprep.subr.mxu0 0.0
  %615 = vmatpush1.xpose.msra.mxu0 0.0
  %616 = vmatprep.subr.mxu0 0.0
  %617 = vmatpush1.xpose.msra.mxu0 0.0
  %618 = vmatprep.subr.mxu0 0.0
  %619 = vmatpush1.xpose.msra.mxu0 0.0
  %620 = vmatprep.subr.mxu0 0.0
  %621 = vmatpush1.xpose.msra.mxu0 0.0
  %622 = vmatprep.subr.mxu0 0.0
  %623 = vmatpush1.xpose.msra.mxu0 0.0
  %624 = vmatprep.subr.mxu0 0.0
  %625 = vmatpush1.xpose.msra.mxu0 0.0
  %626 = vmatprep.subr.mxu0 0.0
  %627 = vmatpush1.xpose.msra.mxu0 0.0
  %628 = vmatprep.subr.mxu0 0.0
  %629 = vmatpush1.xpose.msra.mxu0 0.0
  %630 = vmatprep.subr.mxu0 0.0
  %631 = vmatpush1.xpose.msra.mxu0 0.0
  %632 = vmatprep.subr.mxu0 0.0
  %633 = vmatpush1.xpose.msra.mxu0 0.0
  %634 = vmatprep.subr.mxu0 0.0
  %635 = vmatpush1.xpose.msra.mxu0 0.0
  %636 = vmatprep.subr.mxu0 0.0
  %637 = vmatpush1.xpose.msra.mxu0 %v604
  %638 = vmatprep.subr.mxu0 0.0
  %639 = vmatpush2.xpose.msra.mxu0 0.0
  %640 = vmatprep.subr.mxu0 0.0
  %641 = vmatpush2.xpose.msra.mxu0 0.0
  %642 = vmatprep.subr.mxu0 0.0
  %643 = vmatpush2.xpose.msra.mxu0 0.0
  %644 = vmatprep.subr.mxu0 0.0
  %645 = vmatpush2.xpose.msra.mxu0 0.0
  %646 = vmatprep.subr.mxu0 0.0
  %647 = vmatpush2.xpose.msra.mxu0 0.0
  %648 = vmatprep.subr.mxu0 0.0
  %649 = vmatpush2.xpose.msra.mxu0 0.0
  %650 = vmatprep.subr.mxu0 0.0
  %651 = vmatpush2.xpose.msra.mxu0 0.0
  %652 = vmatprep.subr.mxu0 0.0
  %653 = vmatpush2.xpose.msra.mxu0 0.0
  %654 = vmatprep.subr.mxu0 0.0
  %655 = vmatpush2.xpose.msra.mxu0 0.0
  %656 = vmatprep.subr.mxu0 0.0
  %657 = vmatpush2.xpose.msra.mxu0 0.0
  %658 = vmatprep.subr.mxu0 0.0
  %659 = vmatpush2.xpose.msra.mxu0 0.0
  %660 = vmatprep.subr.mxu0 0.0
  %661 = vmatpush2.xpose.msra.mxu0 0.0
  %662 = vmatprep.subr.mxu0 0.0
  %663 = vmatpush2.xpose.msra.mxu0 0.0
  %664 = vmatprep.subr.mxu0 0.0
  %665 = vmatpush2.xpose.msra.mxu0 0.0
  %666 = vmatprep.subr.mxu0 0.0
  %667 = vmatpush2.xpose.msra.mxu0 0.0
  %668 = vmatprep.subr.mxu0 0.0
  %669 = vmatpush2.xpose.msra.mxu0 0.0
  %670 = vmatprep.mubr.f32.mxu0 0.0
  %671 = vmatmul.mubr.f32.gmra.mxu0 %v601
  %v672 = vpop.f32.mrf.mxu0
  %v673 = vadd.f32 0.0, %v672
  %v674 = vpop.f32.mrf.mxu0
  %675 = vdwg.mxu0
  %v677 = vsel %vm523, %v277, 0
  %v680 = vsel %vm523, %v386, 0
  %682 = vmatprep.subr.mxu0 0.0
  %683 = vmatpush1.xpose.msra.mxu0 0.0
  %684 = vmatprep.subr.mxu0 0.0
  %685 = vmatpush1.xpose.msra.mxu0 0.0
  %686 = vmatprep.subr.mxu0 0.0
  %687 = vmatpush1.xpose.msra.mxu0 0.0
  %688 = vmatprep.subr.mxu0 0.0
  %689 = vmatpush1.xpose.msra.mxu0 0.0
  %690 = vmatprep.subr.mxu0 0.0
  %691 = vmatpush1.xpose.msra.mxu0 0.0
  %692 = vmatprep.subr.mxu0 0.0
  %693 = vmatpush1.xpose.msra.mxu0 0.0
  %694 = vmatprep.subr.mxu0 0.0
  %695 = vmatpush1.xpose.msra.mxu0 0.0
  %696 = vmatprep.subr.mxu0 0.0
  %697 = vmatpush1.xpose.msra.mxu0 0.0
  %698 = vmatprep.subr.mxu0 0.0
  %699 = vmatpush1.xpose.msra.mxu0 0.0
  %700 = vmatprep.subr.mxu0 0.0
  %701 = vmatpush1.xpose.msra.mxu0 0.0
  %702 = vmatprep.subr.mxu0 0.0
  %703 = vmatpush1.xpose.msra.mxu0 0.0
  %704 = vmatprep.subr.mxu0 0.0
  %705 = vmatpush1.xpose.msra.mxu0 0.0
  %706 = vmatprep.subr.mxu0 0.0
  %707 = vmatpush1.xpose.msra.mxu0 0.0
  %708 = vmatprep.subr.mxu0 0.0
  %709 = vmatpush1.xpose.msra.mxu0 0.0
  %710 = vmatprep.subr.mxu0 0.0
  %711 = vmatpush1.xpose.msra.mxu0 0.0
  %712 = vmatprep.subr.mxu0 0.0
  %713 = vmatpush1.xpose.msra.mxu0 %v680
  %714 = vmatprep.subr.mxu0 0.0
  %715 = vmatpush2.xpose.msra.mxu0 0.0
  %716 = vmatprep.subr.mxu0 0.0
  %717 = vmatpush2.xpose.msra.mxu0 0.0
  %718 = vmatprep.subr.mxu0 0.0
  %719 = vmatpush2.xpose.msra.mxu0 0.0
  %720 = vmatprep.subr.mxu0 0.0
  %721 = vmatpush2.xpose.msra.mxu0 0.0
  %722 = vmatprep.subr.mxu0 0.0
  %723 = vmatpush2.xpose.msra.mxu0 0.0
  %724 = vmatprep.subr.mxu0 0.0
  %725 = vmatpush2.xpose.msra.mxu0 0.0
  %726 = vmatprep.subr.mxu0 0.0
  %727 = vmatpush2.xpose.msra.mxu0 0.0
  %728 = vmatprep.subr.mxu0 0.0
  %729 = vmatpush2.xpose.msra.mxu0 0.0
  %730 = vmatprep.subr.mxu0 0.0
  %731 = vmatpush2.xpose.msra.mxu0 0.0
  %732 = vmatprep.subr.mxu0 0.0
  %733 = vmatpush2.xpose.msra.mxu0 0.0
  %734 = vmatprep.subr.mxu0 0.0
  %735 = vmatpush2.xpose.msra.mxu0 0.0
  %736 = vmatprep.subr.mxu0 0.0
  %737 = vmatpush2.xpose.msra.mxu0 0.0
  %738 = vmatprep.subr.mxu0 0.0
  %739 = vmatpush2.xpose.msra.mxu0 0.0
  %740 = vmatprep.subr.mxu0 0.0
  %741 = vmatpush2.xpose.msra.mxu0 0.0
  %742 = vmatprep.subr.mxu0 0.0
  %743 = vmatpush2.xpose.msra.mxu0 0.0
  %744 = vmatprep.subr.mxu0 0.0
  %745 = vmatpush2.xpose.msra.mxu0 0.0
  %746 = vmatprep.mubr.f32.mxu0 0.0
  %747 = vmatmul.mubr.f32.gmra.mxu0 %v677
  %v748 = vpop.f32.mrf.mxu0
  %v749 = vadd.f32 0.0, %v748
  %v750 = vpop.f32.mrf.mxu0
  %751 = vdwg.mxu0
  %v753 = vsel %vm523, %v282, 0
  %v756 = vsel %vm523, %v391, 0
  %758 = vmatprep.subr.mxu0 0.0
  %759 = vmatpush1.xpose.msra.mxu0 0.0
  %760 = vmatprep.subr.mxu0 0.0
  %761 = vmatpush1.xpose.msra.mxu0 0.0
  %762 = vmatprep.subr.mxu0 0.0
  %763 = vmatpush1.xpose.msra.mxu0 0.0
  %764 = vmatprep.subr.mxu0 0.0
  %765 = vmatpush1.xpose.msra.mxu0 0.0
  %766 = vmatprep.subr.mxu0 0.0
  %767 = vmatpush1.xpose.msra.mxu0 0.0
  %768 = vmatprep.subr.mxu0 0.0
  %769 = vmatpush1.xpose.msra.mxu0 0.0
  %770 = vmatprep.subr.mxu0 0.0
  %771 = vmatpush1.xpose.msra.mxu0 0.0
  %772 = vmatprep.subr.mxu0 0.0
  %773 = vmatpush1.xpose.msra.mxu0 0.0
  %774 = vmatprep.subr.mxu0 0.0
  %775 = vmatpush1.xpose.msra.mxu0 0.0
  %776 = vmatprep.subr.mxu0 0.0
  %777 = vmatpush1.xpose.msra.mxu0 0.0
  %778 = vmatprep.subr.mxu0 0.0
  %779 = vmatpush1.xpose.msra.mxu0 0.0
  %780 = vmatprep.subr.mxu0 0.0
  %781 = vmatpush1.xpose.msra.mxu0 0.0
  %782 = vmatprep.subr.mxu0 0.0
  %783 = vmatpush1.xpose.msra.mxu0 0.0
  %784 = vmatprep.subr.mxu0 0.0
  %785 = vmatpush1.xpose.msra.mxu0 0.0
  %786 = vmatprep.subr.mxu0 0.0
  %787 = vmatpush1.xpose.msra.mxu0 0.0
  %788 = vmatprep.subr.mxu0 0.0
  %789 = vmatpush1.xpose.msra.mxu0 %v756
  %790 = vmatprep.subr.mxu0 0.0
  %791 = vmatpush2.xpose.msra.mxu0 0.0
  %792 = vmatprep.subr.mxu0 0.0
  %793 = vmatpush2.xpose.msra.mxu0 0.0
  %794 = vmatprep.subr.mxu0 0.0
  %795 = vmatpush2.xpose.msra.mxu0 0.0
  %796 = vmatprep.subr.mxu0 0.0
  %797 = vmatpush2.xpose.msra.mxu0 0.0
  %798 = vmatprep.subr.mxu0 0.0
  %799 = vmatpush2.xpose.msra.mxu0 0.0
  %800 = vmatprep.subr.mxu0 0.0
  %801 = vmatpush2.xpose.msra.mxu0 0.0
  %802 = vmatprep.subr.mxu0 0.0
  %803 = vmatpush2.xpose.msra.mxu0 0.0
  %804 = vmatprep.subr.mxu0 0.0
  %805 = vmatpush2.xpose.msra.mxu0 0.0
  %806 = vmatprep.subr.mxu0 0.0
  %807 = vmatpush2.xpose.msra.mxu0 0.0
  %808 = vmatprep.subr.mxu0 0.0
  %809 = vmatpush2.xpose.msra.mxu0 0.0
  %810 = vmatprep.subr.mxu0 0.0
  %811 = vmatpush2.xpose.msra.mxu0 0.0
  %812 = vmatprep.subr.mxu0 0.0
  %813 = vmatpush2.xpose.msra.mxu0 0.0
  %814 = vmatprep.subr.mxu0 0.0
  %815 = vmatpush2.xpose.msra.mxu0 0.0
  %816 = vmatprep.subr.mxu0 0.0
  %817 = vmatpush2.xpose.msra.mxu0 0.0
  %818 = vmatprep.subr.mxu0 0.0
  %819 = vmatpush2.xpose.msra.mxu0 0.0
  %820 = vmatprep.subr.mxu0 0.0
  %821 = vmatpush2.xpose.msra.mxu0 0.0
  %822 = vmatprep.mubr.f32.mxu0 0.0
  %823 = vmatmul.mubr.f32.gmra.mxu0 %v753
  %v824 = vpop.f32.mrf.mxu0
  %v825 = vadd.f32 0.0, %v824
  %v826 = vpop.f32.mrf.mxu0
  %827 = vdwg.mxu0
  %v829 = vsel %vm523, %v287, 0
  %v832 = vsel %vm523, %v396, 0
  %834 = vmatprep.subr.mxu0 0.0
  %835 = vmatpush1.xpose.msra.mxu0 0.0
  %836 = vmatprep.subr.mxu0 0.0
  %837 = vmatpush1.xpose.msra.mxu0 0.0
  %838 = vmatprep.subr.mxu0 0.0
  %839 = vmatpush1.xpose.msra.mxu0 0.0
  %840 = vmatprep.subr.mxu0 0.0
  %841 = vmatpush1.xpose.msra.mxu0 0.0
  %842 = vmatprep.subr.mxu0 0.0
  %843 = vmatpush1.xpose.msra.mxu0 0.0
  %844 = vmatprep.subr.mxu0 0.0
  %845 = vmatpush1.xpose.msra.mxu0 0.0
  %846 = vmatprep.subr.mxu0 0.0
  %847 = vmatpush1.xpose.msra.mxu0 0.0
  %848 = vmatprep.subr.mxu0 0.0
  %849 = vmatpush1.xpose.msra.mxu0 0.0
  %850 = vmatprep.subr.mxu0 0.0
  %851 = vmatpush1.xpose.msra.mxu0 0.0
  %852 = vmatprep.subr.mxu0 0.0
  %853 = vmatpush1.xpose.msra.mxu0 0.0
  %854 = vmatprep.subr.mxu0 0.0
  %855 = vmatpush1.xpose.msra.mxu0 0.0
  %856 = vmatprep.subr.mxu0 0.0
  %857 = vmatpush1.xpose.msra.mxu0 0.0
  %858 = vmatprep.subr.mxu0 0.0
  %859 = vmatpush1.xpose.msra.mxu0 0.0
  %860 = vmatprep.subr.mxu0 0.0
  %861 = vmatpush1.xpose.msra.mxu0 0.0
  %862 = vmatprep.subr.mxu0 0.0
  %863 = vmatpush1.xpose.msra.mxu0 0.0
  %864 = vmatprep.subr.mxu0 0.0
  %865 = vmatpush1.xpose.msra.mxu0 %v832
  %866 = vmatprep.subr.mxu0 0.0
  %867 = vmatpush2.xpose.msra.mxu0 0.0
  %868 = vmatprep.subr.mxu0 0.0
  %869 = vmatpush2.xpose.msra.mxu0 0.0
  %870 = vmatprep.subr.mxu0 0.0
  %871 = vmatpush2.xpose.msra.mxu0 0.0
  %872 = vmatprep.subr.mxu0 0.0
  %873 = vmatpush2.xpose.msra.mxu0 0.0
  %874 = vmatprep.subr.mxu0 0.0
  %875 = vmatpush2.xpose.msra.mxu0 0.0
  %876 = vmatprep.subr.mxu0 0.0
  %877 = vmatpush2.xpose.msra.mxu0 0.0
  %878 = vmatprep.subr.mxu0 0.0
  %879 = vmatpush2.xpose.msra.mxu0 0.0
  %880 = vmatprep.subr.mxu0 0.0
  %881 = vmatpush2.xpose.msra.mxu0 0.0
  %882 = vmatprep.subr.mxu0 0.0
  %883 = vmatpush2.xpose.msra.mxu0 0.0
  %884 = vmatprep.subr.mxu0 0.0
  %885 = vmatpush2.xpose.msra.mxu0 0.0
  %886 = vmatprep.subr.mxu0 0.0
  %887 = vmatpush2.xpose.msra.mxu0 0.0
  %888 = vmatprep.subr.mxu0 0.0
  %889 = vmatpush2.xpose.msra.mxu0 0.0
  %890 = vmatprep.subr.mxu0 0.0
  %891 = vmatpush2.xpose.msra.mxu0 0.0
  %892 = vmatprep.subr.mxu0 0.0
  %893 = vmatpush2.xpose.msra.mxu0 0.0
  %894 = vmatprep.subr.mxu0 0.0
  %895 = vmatpush2.xpose.msra.mxu0 0.0
  %896 = vmatprep.subr.mxu0 0.0
  %897 = vmatpush2.xpose.msra.mxu0 0.0
  %898 = vmatprep.mubr.f32.mxu0 0.0
  %899 = vmatmul.mubr.f32.gmra.mxu0 %v829
  %v900 = vpop.f32.mrf.mxu0
  %v901 = vadd.f32 0.0, %v900
  %v902 = vpop.f32.mrf.mxu0
  %903 = vdwg.mxu0
  %v905 = vsel %vm523, %v292, 0
  %v908 = vsel %vm523, %v401, 0
  %910 = vmatprep.subr.mxu0 0.0
  %911 = vmatpush1.xpose.msra.mxu0 0.0
  %912 = vmatprep.subr.mxu0 0.0
  %913 = vmatpush1.xpose.msra.mxu0 0.0
  %914 = vmatprep.subr.mxu0 0.0
  %915 = vmatpush1.xpose.msra.mxu0 0.0
  %916 = vmatprep.subr.mxu0 0.0
  %917 = vmatpush1.xpose.msra.mxu0 0.0
  %918 = vmatprep.subr.mxu0 0.0
  %919 = vmatpush1.xpose.msra.mxu0 0.0
  %920 = vmatprep.subr.mxu0 0.0
  %921 = vmatpush1.xpose.msra.mxu0 0.0
  %922 = vmatprep.subr.mxu0 0.0
  %923 = vmatpush1.xpose.msra.mxu0 0.0
  %924 = vmatprep.subr.mxu0 0.0
  %925 = vmatpush1.xpose.msra.mxu0 0.0
  %926 = vmatprep.subr.mxu0 0.0
  %927 = vmatpush1.xpose.msra.mxu0 0.0
  %928 = vmatprep.subr.mxu0 0.0
  %929 = vmatpush1.xpose.msra.mxu0 0.0
  %930 = vmatprep.subr.mxu0 0.0
  %931 = vmatpush1.xpose.msra.mxu0 0.0
  %932 = vmatprep.subr.mxu0 0.0
  %933 = vmatpush1.xpose.msra.mxu0 0.0
  %934 = vmatprep.subr.mxu0 0.0
  %935 = vmatpush1.xpose.msra.mxu0 0.0
  %936 = vmatprep.subr.mxu0 0.0
  %937 = vmatpush1.xpose.msra.mxu0 0.0
  %938 = vmatprep.subr.mxu0 0.0
  %939 = vmatpush1.xpose.msra.mxu0 0.0
  %940 = vmatprep.subr.mxu0 0.0
  %941 = vmatpush1.xpose.msra.mxu0 %v908
  %942 = vmatprep.subr.mxu0 0.0
  %943 = vmatpush2.xpose.msra.mxu0 0.0
  %944 = vmatprep.subr.mxu0 0.0
  %945 = vmatpush2.xpose.msra.mxu0 0.0
  %946 = vmatprep.subr.mxu0 0.0
  %947 = vmatpush2.xpose.msra.mxu0 0.0
  %948 = vmatprep.subr.mxu0 0.0
  %949 = vmatpush2.xpose.msra.mxu0 0.0
  %950 = vmatprep.subr.mxu0 0.0
  %951 = vmatpush2.xpose.msra.mxu0 0.0
  %952 = vmatprep.subr.mxu0 0.0
  %953 = vmatpush2.xpose.msra.mxu0 0.0
  %954 = vmatprep.subr.mxu0 0.0
  %955 = vmatpush2.xpose.msra.mxu0 0.0
  %956 = vmatprep.subr.mxu0 0.0
  %957 = vmatpush2.xpose.msra.mxu0 0.0
  %958 = vmatprep.subr.mxu0 0.0
  %959 = vmatpush2.xpose.msra.mxu0 0.0
  %960 = vmatprep.subr.mxu0 0.0
  %961 = vmatpush2.xpose.msra.mxu0 0.0
  %962 = vmatprep.subr.mxu0 0.0
  %963 = vmatpush2.xpose.msra.mxu0 0.0
  %964 = vmatprep.subr.mxu0 0.0
  %965 = vmatpush2.xpose.msra.mxu0 0.0
  %966 = vmatprep.subr.mxu0 0.0
  %967 = vmatpush2.xpose.msra.mxu0 0.0
  %968 = vmatprep.subr.mxu0 0.0
  %969 = vmatpush2.xpose.msra.mxu0 0.0
  %970 = vmatprep.subr.mxu0 0.0
  %971 = vmatpush2.xpose.msra.mxu0 0.0
  %972 = vmatprep.subr.mxu0 0.0
  %973 = vmatpush2.xpose.msra.mxu0 0.0
  %974 = vmatprep.mubr.f32.mxu0 0.0
  %975 = vmatmul.mubr.f32.gmra.mxu0 %v905
  %v976 = vpop.f32.mrf.mxu0
  %v977 = vadd.f32 0.0, %v976
  %v978 = vpop.f32.mrf.mxu0
  %979 = vdwg.mxu0
  %v981 = vsel %vm523, %v297, 0
  %v984 = vsel %vm523, %v406, 0
  %986 = vmatprep.subr.mxu0 0.0
  %987 = vmatpush1.xpose.msra.mxu0 0.0
  %988 = vmatprep.subr.mxu0 0.0
  %989 = vmatpush1.xpose.msra.mxu0 0.0
  %990 = vmatprep.subr.mxu0 0.0
  %991 = vmatpush1.xpose.msra.mxu0 0.0
  %992 = vmatprep.subr.mxu0 0.0
  %993 = vmatpush1.xpose.msra.mxu0 0.0
  %994 = vmatprep.subr.mxu0 0.0
  %995 = vmatpush1.xpose.msra.mxu0 0.0
  %996 = vmatprep.subr.mxu0 0.0
  %997 = vmatpush1.xpose.msra.mxu0 0.0
  %998 = vmatprep.subr.mxu0 0.0
  %999 = vmatpush1.xpose.msra.mxu0 0.0
  %1000 = vmatprep.subr.mxu0 0.0
  %1001 = vmatpush1.xpose.msra.mxu0 0.0
  %1002 = vmatprep.subr.mxu0 0.0
  %1003 = vmatpush1.xpose.msra.mxu0 0.0
  %1004 = vmatprep.subr.mxu0 0.0
  %1005 = vmatpush1.xpose.msra.mxu0 0.0
  %1006 = vmatprep.subr.mxu0 0.0
  %1007 = vmatpush1.xpose.msra.mxu0 0.0
  %1008 = vmatprep.subr.mxu0 0.0
  %1009 = vmatpush1.xpose.msra.mxu0 0.0
  %1010 = vmatprep.subr.mxu0 0.0
  %1011 = vmatpush1.xpose.msra.mxu0 0.0
  %1012 = vmatprep.subr.mxu0 0.0
  %1013 = vmatpush1.xpose.msra.mxu0 0.0
  %1014 = vmatprep.subr.mxu0 0.0
  %1015 = vmatpush1.xpose.msra.mxu0 0.0
  %1016 = vmatprep.subr.mxu0 0.0
  %1017 = vmatpush1.xpose.msra.mxu0 %v984
  %1018 = vmatprep.subr.mxu0 0.0
  %1019 = vmatpush2.xpose.msra.mxu0 0.0
  %1020 = vmatprep.subr.mxu0 0.0
  %1021 = vmatpush2.xpose.msra.mxu0 0.0
  %1022 = vmatprep.subr.mxu0 0.0
  %1023 = vmatpush2.xpose.msra.mxu0 0.0
  %1024 = vmatprep.subr.mxu0 0.0
  %1025 = vmatpush2.xpose.msra.mxu0 0.0
  %1026 = vmatprep.subr.mxu0 0.0
  %1027 = vmatpush2.xpose.msra.mxu0 0.0
  %1028 = vmatprep.subr.mxu0 0.0
  %1029 = vmatpush2.xpose.msra.mxu0 0.0
  %1030 = vmatprep.subr.mxu0 0.0
  %1031 = vmatpush2.xpose.msra.mxu0 0.0
  %1032 = vmatprep.subr.mxu0 0.0
  %1033 = vmatpush2.xpose.msra.mxu0 0.0
  %1034 = vmatprep.subr.mxu0 0.0
  %1035 = vmatpush2.xpose.msra.mxu0 0.0
  %1036 = vmatprep.subr.mxu0 0.0
  %1037 = vmatpush2.xpose.msra.mxu0 0.0
  %1038 = vmatprep.subr.mxu0 0.0
  %1039 = vmatpush2.xpose.msra.mxu0 0.0
  %1040 = vmatprep.subr.mxu0 0.0
  %1041 = vmatpush2.xpose.msra.mxu0 0.0
  %1042 = vmatprep.subr.mxu0 0.0
  %1043 = vmatpush2.xpose.msra.mxu0 0.0
  %1044 = vmatprep.subr.mxu0 0.0
  %1045 = vmatpush2.xpose.msra.mxu0 0.0
  %1046 = vmatprep.subr.mxu0 0.0
  %1047 = vmatpush2.xpose.msra.mxu0 0.0
  %1048 = vmatprep.subr.mxu0 0.0
  %1049 = vmatpush2.xpose.msra.mxu0 0.0
  %1050 = vmatprep.mubr.f32.mxu0 0.0
  %1051 = vmatmul.mubr.f32.gmra.mxu0 %v981
  %v1052 = vpop.f32.mrf.mxu0
  %v1053 = vadd.f32 0.0, %v1052
  %v1054 = vpop.f32.mrf.mxu0
  %1055 = vdwg.mxu0
  %v1057 = vsel %vm523, %v302, 0
  %v1060 = vsel %vm523, %v411, 0
  %1062 = vmatprep.subr.mxu0 0.0
  %1063 = vmatpush1.xpose.msra.mxu0 0.0
  %1064 = vmatprep.subr.mxu0 0.0
  %1065 = vmatpush1.xpose.msra.mxu0 0.0
  %1066 = vmatprep.subr.mxu0 0.0
  %1067 = vmatpush1.xpose.msra.mxu0 0.0
  %1068 = vmatprep.subr.mxu0 0.0
  %1069 = vmatpush1.xpose.msra.mxu0 0.0
  %1070 = vmatprep.subr.mxu0 0.0
  %1071 = vmatpush1.xpose.msra.mxu0 0.0
  %1072 = vmatprep.subr.mxu0 0.0
  %1073 = vmatpush1.xpose.msra.mxu0 0.0
  %1074 = vmatprep.subr.mxu0 0.0
  %1075 = vmatpush1.xpose.msra.mxu0 0.0
  %1076 = vmatprep.subr.mxu0 0.0
  %1077 = vmatpush1.xpose.msra.mxu0 0.0
  %1078 = vmatprep.subr.mxu0 0.0
  %1079 = vmatpush1.xpose.msra.mxu0 0.0
  %1080 = vmatprep.subr.mxu0 0.0
  %1081 = vmatpush1.xpose.msra.mxu0 0.0
  %1082 = vmatprep.subr.mxu0 0.0
  %1083 = vmatpush1.xpose.msra.mxu0 0.0
  %1084 = vmatprep.subr.mxu0 0.0
  %1085 = vmatpush1.xpose.msra.mxu0 0.0
  %1086 = vmatprep.subr.mxu0 0.0
  %1087 = vmatpush1.xpose.msra.mxu0 0.0
  %1088 = vmatprep.subr.mxu0 0.0
  %1089 = vmatpush1.xpose.msra.mxu0 0.0
  %1090 = vmatprep.subr.mxu0 0.0
  %1091 = vmatpush1.xpose.msra.mxu0 0.0
  %1092 = vmatprep.subr.mxu0 0.0
  %1093 = vmatpush1.xpose.msra.mxu0 %v1060
  %1094 = vmatprep.subr.mxu0 0.0
  %1095 = vmatpush2.xpose.msra.mxu0 0.0
  %1096 = vmatprep.subr.mxu0 0.0
  %1097 = vmatpush2.xpose.msra.mxu0 0.0
  %1098 = vmatprep.subr.mxu0 0.0
  %1099 = vmatpush2.xpose.msra.mxu0 0.0
  %1100 = vmatprep.subr.mxu0 0.0
  %1101 = vmatpush2.xpose.msra.mxu0 0.0
  %1102 = vmatprep.subr.mxu0 0.0
  %1103 = vmatpush2.xpose.msra.mxu0 0.0
  %1104 = vmatprep.subr.mxu0 0.0
  %1105 = vmatpush2.xpose.msra.mxu0 0.0
  %1106 = vmatprep.subr.mxu0 0.0
  %1107 = vmatpush2.xpose.msra.mxu0 0.0
  %1108 = vmatprep.subr.mxu0 0.0
  %1109 = vmatpush2.xpose.msra.mxu0 0.0
  %1110 = vmatprep.subr.mxu0 0.0
  %1111 = vmatpush2.xpose.msra.mxu0 0.0
  %1112 = vmatprep.subr.mxu0 0.0
  %1113 = vmatpush2.xpose.msra.mxu0 0.0
  %1114 = vmatprep.subr.mxu0 0.0
  %1115 = vmatpush2.xpose.msra.mxu0 0.0
  %1116 = vmatprep.subr.mxu0 0.0
  %1117 = vmatpush2.xpose.msra.mxu0 0.0
  %1118 = vmatprep.subr.mxu0 0.0
  %1119 = vmatpush2.xpose.msra.mxu0 0.0
  %1120 = vmatprep.subr.mxu0 0.0
  %1121 = vmatpush2.xpose.msra.mxu0 0.0
  %1122 = vmatprep.subr.mxu0 0.0
  %1123 = vmatpush2.xpose.msra.mxu0 0.0
  %1124 = vmatprep.subr.mxu0 0.0
  %1125 = vmatpush2.xpose.msra.mxu0 0.0
  %1126 = vmatprep.mubr.f32.mxu0 0.0
  %1127 = vmatmul.mubr.f32.gmra.mxu0 %v1057
  %v1128 = vpop.f32.mrf.mxu0
  %v1129 = vadd.f32 0.0, %v1128
  %v1130 = vpop.f32.mrf.mxu0
  %1131 = vdwg.mxu0
  %v1132 = vmul.f32 %v597, 0.25
  %v1133 = vmul.f32 %v673, 0.25
  %v1134 = vmul.f32 %v749, 0.25
  %v1135 = vmul.f32 %v825, 0.25
  %v1136 = vmul.f32 %v901, 0.25
  %v1137 = vmul.f32 %v977, 0.25
  %v1138 = vmul.f32 %v1053, 0.25
  %v1139 = vmul.f32 %v1129, 0.25
  %vm1140 = vcmask 64512
  %v1141 = vsel %vm1140, %v1132, -inf
  %1142 = vmax.xlane.f32.xlu0 %v1141
  %v1143 = vpop.xlane.xlu0 %1142
  %v1144 = vsel %vm1140, %v1133, -inf
  %1145 = vmax.xlane.f32.xlu0 %v1144
  %v1146 = vpop.xlane.xlu0 %1145
  %v1147 = vsel %vm1140, %v1134, -inf
  %1148 = vmax.xlane.f32.xlu0 %v1147
  %v1149 = vpop.xlane.xlu0 %1148
  %v1150 = vsel %vm1140, %v1135, -inf
  %1151 = vmax.xlane.f32.xlu0 %v1150
  %v1152 = vpop.xlane.xlu0 %1151
  %v1153 = vsel %vm1140, %v1136, -inf
  %1154 = vmax.xlane.f32.xlu0 %v1153
  %v1155 = vpop.xlane.xlu0 %1154
  %v1156 = vsel %vm1140, %v1137, -inf
  %1157 = vmax.xlane.f32.xlu0 %v1156
  %v1158 = vpop.xlane.xlu0 %1157
  %v1159 = vsel %vm1140, %v1138, -inf
  %1160 = vmax.xlane.f32.xlu0 %v1159
  %v1161 = vpop.xlane.xlu0 %1160
  %v1162 = vsel %vm1140, %v1139, -inf
  %1163 = vmax.xlane.f32.xlu0 %v1162
  %v1164 = vpop.xlane.xlu0 %1163
  %v1165 = vsub.f32 %v1132, %v1143
  %v1166 = vsub.f32 %v1133, %v1146
  %v1167 = vsub.f32 %v1134, %v1149
  %v1168 = vsub.f32 %v1135, %v1152
  %v1169 = vsub.f32 %v1136, %v1155
  %v1170 = vsub.f32 %v1137, %v1158
  %v1171 = vsub.f32 %v1138, %v1161
  %v1172 = vsub.f32 %v1139, %v1164
  %v1173 = vmul.f32 %v1165, 1.442695
  %v1174 = vpow.pop %v1173
  %v1175 = vmul.f32 %v1166, 1.442695
  %v1176 = vpow.pop %v1175
  %v1177 = vmul.f32 %v1167, 1.442695
  %v1178 = vpow.pop %v1177
  %v1179 = vmul.f32 %v1168, 1.442695
  %v1180 = vpow.pop %v1179
  %v1181 = vmul.f32 %v1169, 1.442695
  %v1182 = vpow.pop %v1181
  %v1183 = vmul.f32 %v1170, 1.442695
  %v1184 = vpow.pop %v1183
  %v1185 = vmul.f32 %v1171, 1.442695
  %v1186 = vpow.pop %v1185
  %v1187 = vmul.f32 %v1172, 1.442695
  %v1188 = vpow.pop %v1187
  %v1189 = vsel %vm1140, %v1174, 0.0
  %1190 = vadd.xlane.f32.xlu0 %v1189
  %v1191 = vpop.xlane.xlu0 %1190
  %v1192 = vsel %vm1140, %v1176, 0.0
  %1193 = vadd.xlane.f32.xlu0 %v1192
  %v1194 = vpop.xlane.xlu0 %1193
  %v1195 = vsel %vm1140, %v1178, 0.0
  %1196 = vadd.xlane.f32.xlu0 %v1195
  %v1197 = vpop.xlane.xlu0 %1196
  %v1198 = vsel %vm1140, %v1180, 0.0
  %1199 = vadd.xlane.f32.xlu0 %v1198
  %v1200 = vpop.xlane.xlu0 %1199
  %v1201 = vsel %vm1140, %v1182, 0.0
  %1202 = vadd.xlane.f32.xlu0 %v1201
  %v1203 = vpop.xlane.xlu0 %1202
  %v1204 = vsel %vm1140, %v1184, 0.0
  %1205 = vadd.xlane.f32.xlu0 %v1204
  %v1206 = vpop.xlane.xlu0 %1205
  %v1207 = vsel %vm1140, %v1186, 0.0
  %1208 = vadd.xlane.f32.xlu0 %v1207
  %v1209 = vpop.xlane.xlu0 %1208
  %v1210 = vsel %vm1140, %v1188, 0.0
  %1211 = vadd.xlane.f32.xlu0 %v1210
  %v1212 = vpop.xlane.xlu0 %1211
  %v1213 = vrcp.pop %v1191
  %v1214 = vmul.f32 %v1174, %v1213
  %v1215 = vrcp.pop %v1194
  %v1216 = vmul.f32 %v1176, %v1215
  %v1217 = vrcp.pop %v1197
  %v1218 = vmul.f32 %v1178, %v1217
  %v1219 = vrcp.pop %v1200
  %v1220 = vmul.f32 %v1180, %v1219
  %v1221 = vrcp.pop %v1203
  %v1222 = vmul.f32 %v1182, %v1221
  %v1223 = vrcp.pop %v1206
  %v1224 = vmul.f32 %v1184, %v1223
  %v1225 = vrcp.pop %v1209
  %v1226 = vmul.f32 %v1186, %v1225
  %v1227 = vrcp.pop %v1212
  %v1228 = vmul.f32 %v1188, %v1227
  %v1230 = vsel %vm1140, %v1214, 0
  %1232 = vmatprep.subr.mxu0 0.0
  %1233 = vmatpush1.msra.mxu0 0.0
  %1234 = vmatprep.subr.mxu0 0.0
  %1235 = vmatpush1.msra.mxu0 0.0
  %1236 = vmatprep.subr.mxu0 0.0
  %1237 = vmatpush1.msra.mxu0 0.0
  %1238 = vmatprep.subr.mxu0 0.0
  %1239 = vmatpush1.msra.mxu0 0.0
  %1240 = vmatprep.subr.mxu0 0.0
  %1241 = vmatpush1.msra.mxu0 0.0
  %1242 = vmatprep.subr.mxu0 0.0
  %1243 = vmatpush1.msra.mxu0 0.0
  %1244 = vmatprep.subr.mxu0 0.0
  %1245 = vmatpush1.msra.mxu0 0.0
  %1246 = vmatprep.subr.mxu0 0.0
  %1247 = vmatpush1.msra.mxu0 0.0
  %1248 = vmatprep.subr.mxu0 0.0
  %1249 = vmatpush1.msra.mxu0 0.0
  %1250 = vmatprep.subr.mxu0 0.0
  %1251 = vmatpush1.msra.mxu0 0.0
  %1252 = vmatprep.subr.mxu0 0.0
  %1253 = vmatpush1.msra.mxu0 0.0
  %1254 = vmatprep.subr.mxu0 0.0
  %1255 = vmatpush1.msra.mxu0 0.0
  %1256 = vmatprep.subr.mxu0 0.0
  %1257 = vmatpush1.msra.mxu0 0.0
  %1258 = vmatprep.subr.mxu0 0.0
  %1259 = vmatpush1.msra.mxu0 0.0
  %1260 = vmatprep.subr.mxu0 0.0
  %1261 = vmatpush1.msra.mxu0 0.0
  %1262 = vmatprep.subr.mxu0 0.0
  %1263 = vmatpush1.msra.mxu0 %v485
  %1264 = vmatprep.subr.mxu0 0.0
  %1265 = vmatpush2.msra.mxu0 0.0
  %1266 = vmatprep.subr.mxu0 0.0
  %1267 = vmatpush2.msra.mxu0 0.0
  %1268 = vmatprep.subr.mxu0 0.0
  %1269 = vmatpush2.msra.mxu0 0.0
  %1270 = vmatprep.subr.mxu0 0.0
  %1271 = vmatpush2.msra.mxu0 0.0
  %1272 = vmatprep.subr.mxu0 0.0
  %1273 = vmatpush2.msra.mxu0 0.0
  %1274 = vmatprep.subr.mxu0 0.0
  %1275 = vmatpush2.msra.mxu0 0.0
  %1276 = vmatprep.subr.mxu0 0.0
  %1277 = vmatpush2.msra.mxu0 0.0
  %1278 = vmatprep.subr.mxu0 0.0
  %1279 = vmatpush2.msra.mxu0 0.0
  %1280 = vmatprep.subr.mxu0 0.0
  %1281 = vmatpush2.msra.mxu0 0.0
  %1282 = vmatprep.subr.mxu0 0.0
  %1283 = vmatpush2.msra.mxu0 0.0
  %1284 = vmatprep.subr.mxu0 0.0
  %1285 = vmatpush2.msra.mxu0 0.0
  %1286 = vmatprep.subr.mxu0 0.0
  %1287 = vmatpush2.msra.mxu0 0.0
  %1288 = vmatprep.subr.mxu0 0.0
  %1289 = vmatpush2.msra.mxu0 0.0
  %1290 = vmatprep.subr.mxu0 0.0
  %1291 = vmatpush2.msra.mxu0 0.0
  %1292 = vmatprep.subr.mxu0 0.0
  %1293 = vmatpush2.msra.mxu0 0.0
  %1294 = vmatprep.subr.mxu0 0.0
  %1295 = vmatpush2.msra.mxu0 0.0
  %1296 = vmatprep.mubr.f32.mxu0 0.0
  %1297 = vmatmul.mubr.f32.gmra.mxu0 %v1230
  %v1298 = vpop.f32.mrf.mxu0
  %v1299 = vadd.f32 0.0, %v1298
  %v1300 = vpop.f32.mrf.mxu0
  %1301 = vdwg.mxu0
  %v1303 = vsel %vm1140, %v1216, 0
  %1305 = vmatprep.subr.mxu0 0.0
  %1306 = vmatpush1.msra.mxu0 0.0
  %1307 = vmatprep.subr.mxu0 0.0
  %1308 = vmatpush1.msra.mxu0 0.0
  %1309 = vmatprep.subr.mxu0 0.0
  %1310 = vmatpush1.msra.mxu0 0.0
  %1311 = vmatprep.subr.mxu0 0.0
  %1312 = vmatpush1.msra.mxu0 0.0
  %1313 = vmatprep.subr.mxu0 0.0
  %1314 = vmatpush1.msra.mxu0 0.0
  %1315 = vmatprep.subr.mxu0 0.0
  %1316 = vmatpush1.msra.mxu0 0.0
  %1317 = vmatprep.subr.mxu0 0.0
  %1318 = vmatpush1.msra.mxu0 0.0
  %1319 = vmatprep.subr.mxu0 0.0
  %1320 = vmatpush1.msra.mxu0 0.0
  %1321 = vmatprep.subr.mxu0 0.0
  %1322 = vmatpush1.msra.mxu0 0.0
  %1323 = vmatprep.subr.mxu0 0.0
  %1324 = vmatpush1.msra.mxu0 0.0
  %1325 = vmatprep.subr.mxu0 0.0
  %1326 = vmatpush1.msra.mxu0 0.0
  %1327 = vmatprep.subr.mxu0 0.0
  %1328 = vmatpush1.msra.mxu0 0.0
  %1329 = vmatprep.subr.mxu0 0.0
  %1330 = vmatpush1.msra.mxu0 0.0
  %1331 = vmatprep.subr.mxu0 0.0
  %1332 = vmatpush1.msra.mxu0 0.0
  %1333 = vmatprep.subr.mxu0 0.0
  %1334 = vmatpush1.msra.mxu0 0.0
  %1335 = vmatprep.subr.mxu0 0.0
  %1336 = vmatpush1.msra.mxu0 %v490
  %1337 = vmatprep.subr.mxu0 0.0
  %1338 = vmatpush2.msra.mxu0 0.0
  %1339 = vmatprep.subr.mxu0 0.0
  %1340 = vmatpush2.msra.mxu0 0.0
  %1341 = vmatprep.subr.mxu0 0.0
  %1342 = vmatpush2.msra.mxu0 0.0
  %1343 = vmatprep.subr.mxu0 0.0
  %1344 = vmatpush2.msra.mxu0 0.0
  %1345 = vmatprep.subr.mxu0 0.0
  %1346 = vmatpush2.msra.mxu0 0.0
  %1347 = vmatprep.subr.mxu0 0.0
  %1348 = vmatpush2.msra.mxu0 0.0
  %1349 = vmatprep.subr.mxu0 0.0
  %1350 = vmatpush2.msra.mxu0 0.0
  %1351 = vmatprep.subr.mxu0 0.0
  %1352 = vmatpush2.msra.mxu0 0.0
  %1353 = vmatprep.subr.mxu0 0.0
  %1354 = vmatpush2.msra.mxu0 0.0
  %1355 = vmatprep.subr.mxu0 0.0
  %1356 = vmatpush2.msra.mxu0 0.0
  %1357 = vmatprep.subr.mxu0 0.0
  %1358 = vmatpush2.msra.mxu0 0.0
  %1359 = vmatprep.subr.mxu0 0.0
  %1360 = vmatpush2.msra.mxu0 0.0
  %1361 = vmatprep.subr.mxu0 0.0
  %1362 = vmatpush2.msra.mxu0 0.0
  %1363 = vmatprep.subr.mxu0 0.0
  %1364 = vmatpush2.msra.mxu0 0.0
  %1365 = vmatprep.subr.mxu0 0.0
  %1366 = vmatpush2.msra.mxu0 0.0
  %1367 = vmatprep.subr.mxu0 0.0
  %1368 = vmatpush2.msra.mxu0 0.0
  %1369 = vmatprep.mubr.f32.mxu0 0.0
  %1370 = vmatmul.mubr.f32.gmra.mxu0 %v1303
  %v1371 = vpop.f32.mrf.mxu0
  %v1372 = vadd.f32 0.0, %v1371
  %v1373 = vpop.f32.mrf.mxu0
  %1374 = vdwg.mxu0
  %v1376 = vsel %vm1140, %v1218, 0
  %1378 = vmatprep.subr.mxu0 0.0
  %1379 = vmatpush1.msra.mxu0 0.0
  %1380 = vmatprep.subr.mxu0 0.0
  %1381 = vmatpush1.msra.mxu0 0.0
  %1382 = vmatprep.subr.mxu0 0.0
  %1383 = vmatpush1.msra.mxu0 0.0
  %1384 = vmatprep.subr.mxu0 0.0
  %1385 = vmatpush1.msra.mxu0 0.0
  %1386 = vmatprep.subr.mxu0 0.0
  %1387 = vmatpush1.msra.mxu0 0.0
  %1388 = vmatprep.subr.mxu0 0.0
  %1389 = vmatpush1.msra.mxu0 0.0
  %1390 = vmatprep.subr.mxu0 0.0
  %1391 = vmatpush1.msra.mxu0 0.0
  %1392 = vmatprep.subr.mxu0 0.0
  %1393 = vmatpush1.msra.mxu0 0.0
  %1394 = vmatprep.subr.mxu0 0.0
  %1395 = vmatpush1.msra.mxu0 0.0
  %1396 = vmatprep.subr.mxu0 0.0
  %1397 = vmatpush1.msra.mxu0 0.0
  %1398 = vmatprep.subr.mxu0 0.0
  %1399 = vmatpush1.msra.mxu0 0.0
  %1400 = vmatprep.subr.mxu0 0.0
  %1401 = vmatpush1.msra.mxu0 0.0
  %1402 = vmatprep.subr.mxu0 0.0
  %1403 = vmatpush1.msra.mxu0 0.0
  %1404 = vmatprep.subr.mxu0 0.0
  %1405 = vmatpush1.msra.mxu0 0.0
  %1406 = vmatprep.subr.mxu0 0.0
  %1407 = vmatpush1.msra.mxu0 0.0
  %1408 = vmatprep.subr.mxu0 0.0
  %1409 = vmatpush1.msra.mxu0 %v495
  %1410 = vmatprep.subr.mxu0 0.0
  %1411 = vmatpush2.msra.mxu0 0.0
  %1412 = vmatprep.subr.mxu0 0.0
  %1413 = vmatpush2.msra.mxu0 0.0
  %1414 = vmatprep.subr.mxu0 0.0
  %1415 = vmatpush2.msra.mxu0 0.0
  %1416 = vmatprep.subr.mxu0 0.0
  %1417 = vmatpush2.msra.mxu0 0.0
  %1418 = vmatprep.subr.mxu0 0.0
  %1419 = vmatpush2.msra.mxu0 0.0
  %1420 = vmatprep.subr.mxu0 0.0
  %1421 = vmatpush2.msra.mxu0 0.0
  %1422 = vmatprep.subr.mxu0 0.0
  %1423 = vmatpush2.msra.mxu0 0.0
  %1424 = vmatprep.subr.mxu0 0.0
  %1425 = vmatpush2.msra.mxu0 0.0
  %1426 = vmatprep.subr.mxu0 0.0
  %1427 = vmatpush2.msra.mxu0 0.0
  %1428 = vmatprep.subr.mxu0 0.0
  %1429 = vmatpush2.msra.mxu0 0.0
  %1430 = vmatprep.subr.mxu0 0.0
  %1431 = vmatpush2.msra.mxu0 0.0
  %1432 = vmatprep.subr.mxu0 0.0
  %1433 = vmatpush2.msra.mxu0 0.0
  %1434 = vmatprep.subr.mxu0 0.0
  %1435 = vmatpush2.msra.mxu0 0.0
  %1436 = vmatprep.subr.mxu0 0.0
  %1437 = vmatpush2.msra.mxu0 0.0
  %1438 = vmatprep.subr.mxu0 0.0
  %1439 = vmatpush2.msra.mxu0 0.0
  %1440 = vmatprep.subr.mxu0 0.0
  %1441 = vmatpush2.msra.mxu0 0.0
  %1442 = vmatprep.mubr.f32.mxu0 0.0
  %1443 = vmatmul.mubr.f32.gmra.mxu0 %v1376
  %v1444 = vpop.f32.mrf.mxu0
  %v1445 = vadd.f32 0.0, %v1444
  %v1446 = vpop.f32.mrf.mxu0
  %1447 = vdwg.mxu0
  %v1449 = vsel %vm1140, %v1220, 0
  %1451 = vmatprep.subr.mxu0 0.0
  %1452 = vmatpush1.msra.mxu0 0.0
  %1453 = vmatprep.subr.mxu0 0.0
  %1454 = vmatpush1.msra.mxu0 0.0
  %1455 = vmatprep.subr.mxu0 0.0
  %1456 = vmatpush1.msra.mxu0 0.0
  %1457 = vmatprep.subr.mxu0 0.0
  %1458 = vmatpush1.msra.mxu0 0.0
  %1459 = vmatprep.subr.mxu0 0.0
  %1460 = vmatpush1.msra.mxu0 0.0
  %1461 = vmatprep.subr.mxu0 0.0
  %1462 = vmatpush1.msra.mxu0 0.0
  %1463 = vmatprep.subr.mxu0 0.0
  %1464 = vmatpush1.msra.mxu0 0.0
  %1465 = vmatprep.subr.mxu0 0.0
  %1466 = vmatpush1.msra.mxu0 0.0
  %1467 = vmatprep.subr.mxu0 0.0
  %1468 = vmatpush1.msra.mxu0 0.0
  %1469 = vmatprep.subr.mxu0 0.0
  %1470 = vmatpush1.msra.mxu0 0.0
  %1471 = vmatprep.subr.mxu0 0.0
  %1472 = vmatpush1.msra.mxu0 0.0
  %1473 = vmatprep.subr.mxu0 0.0
  %1474 = vmatpush1.msra.mxu0 0.0
  %1475 = vmatprep.subr.mxu0 0.0
  %1476 = vmatpush1.msra.mxu0 0.0
  %1477 = vmatprep.subr.mxu0 0.0
  %1478 = vmatpush1.msra.mxu0 0.0
  %1479 = vmatprep.subr.mxu0 0.0
  %1480 = vmatpush1.msra.mxu0 0.0
  %1481 = vmatprep.subr.mxu0 0.0
  %1482 = vmatpush1.msra.mxu0 %v500
  %1483 = vmatprep.subr.mxu0 0.0
  %1484 = vmatpush2.msra.mxu0 0.0
  %1485 = vmatprep.subr.mxu0 0.0
  %1486 = vmatpush2.msra.mxu0 0.0
  %1487 = vmatprep.subr.mxu0 0.0
  %1488 = vmatpush2.msra.mxu0 0.0
  %1489 = vmatprep.subr.mxu0 0.0
  %1490 = vmatpush2.msra.mxu0 0.0
  %1491 = vmatprep.subr.mxu0 0.0
  %1492 = vmatpush2.msra.mxu0 0.0
  %1493 = vmatprep.subr.mxu0 0.0
  %1494 = vmatpush2.msra.mxu0 0.0
  %1495 = vmatprep.subr.mxu0 0.0
  %1496 = vmatpush2.msra.mxu0 0.0
  %1497 = vmatprep.subr.mxu0 0.0
  %1498 = vmatpush2.msra.mxu0 0.0
  %1499 = vmatprep.subr.mxu0 0.0
  %1500 = vmatpush2.msra.mxu0 0.0
  %1501 = vmatprep.subr.mxu0 0.0
  %1502 = vmatpush2.msra.mxu0 0.0
  %1503 = vmatprep.subr.mxu0 0.0
  %1504 = vmatpush2.msra.mxu0 0.0
  %1505 = vmatprep.subr.mxu0 0.0
  %1506 = vmatpush2.msra.mxu0 0.0
  %1507 = vmatprep.subr.mxu0 0.0
  %1508 = vmatpush2.msra.mxu0 0.0
  %1509 = vmatprep.subr.mxu0 0.0
  %1510 = vmatpush2.msra.mxu0 0.0
  %1511 = vmatprep.subr.mxu0 0.0
  %1512 = vmatpush2.msra.mxu0 0.0
  %1513 = vmatprep.subr.mxu0 0.0
  %1514 = vmatpush2.msra.mxu0 0.0
  %1515 = vmatprep.mubr.f32.mxu0 0.0
  %1516 = vmatmul.mubr.f32.gmra.mxu0 %v1449
  %v1517 = vpop.f32.mrf.mxu0
  %v1518 = vadd.f32 0.0, %v1517
  %v1519 = vpop.f32.mrf.mxu0
  %1520 = vdwg.mxu0
  %v1522 = vsel %vm1140, %v1222, 0
  %1524 = vmatprep.subr.mxu0 0.0
  %1525 = vmatpush1.msra.mxu0 0.0
  %1526 = vmatprep.subr.mxu0 0.0
  %1527 = vmatpush1.msra.mxu0 0.0
  %1528 = vmatprep.subr.mxu0 0.0
  %1529 = vmatpush1.msra.mxu0 0.0
  %1530 = vmatprep.subr.mxu0 0.0
  %1531 = vmatpush1.msra.mxu0 0.0
  %1532 = vmatprep.subr.mxu0 0.0
  %1533 = vmatpush1.msra.mxu0 0.0
  %1534 = vmatprep.subr.mxu0 0.0
  %1535 = vmatpush1.msra.mxu0 0.0
  %1536 = vmatprep.subr.mxu0 0.0
  %1537 = vmatpush1.msra.mxu0 0.0
  %1538 = vmatprep.subr.mxu0 0.0
  %1539 = vmatpush1.msra.mxu0 0.0
  %1540 = vmatprep.subr.mxu0 0.0
  %1541 = vmatpush1.msra.mxu0 0.0
  %1542 = vmatprep.subr.mxu0 0.0
  %1543 = vmatpush1.msra.mxu0 0.0
  %1544 = vmatprep.subr.mxu0 0.0
  %1545 = vmatpush1.msra.mxu0 0.0
  %1546 = vmatprep.subr.mxu0 0.0
  %1547 = vmatpush1.msra.mxu0 0.0
  %1548 = vmatprep.subr.mxu0 0.0
  %1549 = vmatpush1.msra.mxu0 0.0
  %1550 = vmatprep.subr.mxu0 0.0
  %1551 = vmatpush1.msra.mxu0 0.0
  %1552 = vmatprep.subr.mxu0 0.0
  %1553 = vmatpush1.msra.mxu0 0.0
  %1554 = vmatprep.subr.mxu0 0.0
  %1555 = vmatpush1.msra.mxu0 %v505
  %1556 = vmatprep.subr.mxu0 0.0
  %1557 = vmatpush2.msra.mxu0 0.0
  %1558 = vmatprep.subr.mxu0 0.0
  %1559 = vmatpush2.msra.mxu0 0.0
  %1560 = vmatprep.subr.mxu0 0.0
  %1561 = vmatpush2.msra.mxu0 0.0
  %1562 = vmatprep.subr.mxu0 0.0
  %1563 = vmatpush2.msra.mxu0 0.0
  %1564 = vmatprep.subr.mxu0 0.0
  %1565 = vmatpush2.msra.mxu0 0.0
  %1566 = vmatprep.subr.mxu0 0.0
  %1567 = vmatpush2.msra.mxu0 0.0
  %1568 = vmatprep.subr.mxu0 0.0
  %1569 = vmatpush2.msra.mxu0 0.0
  %1570 = vmatprep.subr.mxu0 0.0
  %1571 = vmatpush2.msra.mxu0 0.0
  %1572 = vmatprep.subr.mxu0 0.0
  %1573 = vmatpush2.msra.mxu0 0.0
  %1574 = vmatprep.subr.mxu0 0.0
  %1575 = vmatpush2.msra.mxu0 0.0
  %1576 = vmatprep.subr.mxu0 0.0
  %1577 = vmatpush2.msra.mxu0 0.0
  %1578 = vmatprep.subr.mxu0 0.0
  %1579 = vmatpush2.msra.mxu0 0.0
  %1580 = vmatprep.subr.mxu0 0.0
  %1581 = vmatpush2.msra.mxu0 0.0
  %1582 = vmatprep.subr.mxu0 0.0
  %1583 = vmatpush2.msra.mxu0 0.0
  %1584 = vmatprep.subr.mxu0 0.0
  %1585 = vmatpush2.msra.mxu0 0.0
  %1586 = vmatprep.subr.mxu0 0.0
  %1587 = vmatpush2.msra.mxu0 0.0
  %1588 = vmatprep.mubr.f32.mxu0 0.0
  %1589 = vmatmul.mubr.f32.gmra.mxu0 %v1522
  %v1590 = vpop.f32.mrf.mxu0
  %v1591 = vadd.f32 0.0, %v1590
  %v1592 = vpop.f32.mrf.mxu0
  %1593 = vdwg.mxu0
  %v1595 = vsel %vm1140, %v1224, 0
  %1597 = vmatprep.subr.mxu0 0.0
  %1598 = vmatpush1.msra.mxu0 0.0
  %1599 = vmatprep.subr.mxu0 0.0
  %1600 = vmatpush1.msra.mxu0 0.0
  %1601 = vmatprep.subr.mxu0 0.0
  %1602 = vmatpush1.msra.mxu0 0.0
  %1603 = vmatprep.subr.mxu0 0.0
  %1604 = vmatpush1.msra.mxu0 0.0
  %1605 = vmatprep.subr.mxu0 0.0
  %1606 = vmatpush1.msra.mxu0 0.0
  %1607 = vmatprep.subr.mxu0 0.0
  %1608 = vmatpush1.msra.mxu0 0.0
  %1609 = vmatprep.subr.mxu0 0.0
  %1610 = vmatpush1.msra.mxu0 0.0
  %1611 = vmatprep.subr.mxu0 0.0
  %1612 = vmatpush1.msra.mxu0 0.0
  %1613 = vmatprep.subr.mxu0 0.0
  %1614 = vmatpush1.msra.mxu0 0.0
  %1615 = vmatprep.subr.mxu0 0.0
  %1616 = vmatpush1.msra.mxu0 0.0
  %1617 = vmatprep.subr.mxu0 0.0
  %1618 = vmatpush1.msra.mxu0 0.0
  %1619 = vmatprep.subr.mxu0 0.0
  %1620 = vmatpush1.msra.mxu0 0.0
  %1621 = vmatprep.subr.mxu0 0.0
  %1622 = vmatpush1.msra.mxu0 0.0
  %1623 = vmatprep.subr.mxu0 0.0
  %1624 = vmatpush1.msra.mxu0 0.0
  %1625 = vmatprep.subr.mxu0 0.0
  %1626 = vmatpush1.msra.mxu0 0.0
  %1627 = vmatprep.subr.mxu0 0.0
  %1628 = vmatpush1.msra.mxu0 %v510
  %1629 = vmatprep.subr.mxu0 0.0
  %1630 = vmatpush2.msra.mxu0 0.0
  %1631 = vmatprep.subr.mxu0 0.0
  %1632 = vmatpush2.msra.mxu0 0.0
  %1633 = vmatprep.subr.mxu0 0.0
  %1634 = vmatpush2.msra.mxu0 0.0
  %1635 = vmatprep.subr.mxu0 0.0
  %1636 = vmatpush2.msra.mxu0 0.0
  %1637 = vmatprep.subr.mxu0 0.0
  %1638 = vmatpush2.msra.mxu0 0.0
  %1639 = vmatprep.subr.mxu0 0.0
  %1640 = vmatpush2.msra.mxu0 0.0
  %1641 = vmatprep.subr.mxu0 0.0
  %1642 = vmatpush2.msra.mxu0 0.0
  %1643 = vmatprep.subr.mxu0 0.0
  %1644 = vmatpush2.msra.mxu0 0.0
  %1645 = vmatprep.subr.mxu0 0.0
  %1646 = vmatpush2.msra.mxu0 0.0
  %1647 = vmatprep.subr.mxu0 0.0
  %1648 = vmatpush2.msra.mxu0 0.0
  %1649 = vmatprep.subr.mxu0 0.0
  %1650 = vmatpush2.msra.mxu0 0.0
  %1651 = vmatprep.subr.mxu0 0.0
  %1652 = vmatpush2.msra.mxu0 0.0
  %1653 = vmatprep.subr.mxu0 0.0
  %1654 = vmatpush2.msra.mxu0 0.0
  %1655 = vmatprep.subr.mxu0 0.0
  %1656 = vmatpush2.msra.mxu0 0.0
  %1657 = vmatprep.subr.mxu0 0.0
  %1658 = vmatpush2.msra.mxu0 0.0
  %1659 = vmatprep.subr.mxu0 0.0
  %1660 = vmatpush2.msra.mxu0 0.0
  %1661 = vmatprep.mubr.f32.mxu0 0.0
  %1662 = vmatmul.mubr.f32.gmra.mxu0 %v1595
  %v1663 = vpop.f32.mrf.mxu0
  %v1664 = vadd.f32 0.0, %v1663
  %v1665 = vpop.f32.mrf.mxu0
  %1666 = vdwg.mxu0
  %v1668 = vsel %vm1140, %v1226, 0
  %1670 = vmatprep.subr.mxu0 0.0
  %1671 = vmatpush1.msra.mxu0 0.0
  %1672 = vmatprep.subr.mxu0 0.0
  %1673 = vmatpush1.msra.mxu0 0.0
  %1674 = vmatprep.subr.mxu0 0.0
  %1675 = vmatpush1.msra.mxu0 0.0
  %1676 = vmatprep.subr.mxu0 0.0
  %1677 = vmatpush1.msra.mxu0 0.0
  %1678 = vmatprep.subr.mxu0 0.0
  %1679 = vmatpush1.msra.mxu0 0.0
  %1680 = vmatprep.subr.mxu0 0.0
  %1681 = vmatpush1.msra.mxu0 0.0
  %1682 = vmatprep.subr.mxu0 0.0
  %1683 = vmatpush1.msra.mxu0 0.0
  %1684 = vmatprep.subr.mxu0 0.0
  %1685 = vmatpush1.msra.mxu0 0.0
  %1686 = vmatprep.subr.mxu0 0.0
  %1687 = vmatpush1.msra.mxu0 0.0
  %1688 = vmatprep.subr.mxu0 0.0
  %1689 = vmatpush1.msra.mxu0 0.0
  %1690 = vmatprep.subr.mxu0 0.0
  %1691 = vmatpush1.msra.mxu0 0.0
  %1692 = vmatprep.subr.mxu0 0.0
  %1693 = vmatpush1.msra.mxu0 0.0
  %1694 = vmatprep.subr.mxu0 0.0
  %1695 = vmatpush1.msra.mxu0 0.0
  %1696 = vmatprep.subr.mxu0 0.0
  %1697 = vmatpush1.msra.mxu0 0.0
  %1698 = vmatprep.subr.mxu0 0.0
  %1699 = vmatpush1.msra.mxu0 0.0
  %1700 = vmatprep.subr.mxu0 0.0
  %1701 = vmatpush1.msra.mxu0 %v515
  %1702 = vmatprep.subr.mxu0 0.0
  %1703 = vmatpush2.msra.mxu0 0.0
  %1704 = vmatprep.subr.mxu0 0.0
  %1705 = vmatpush2.msra.mxu0 0.0
  %1706 = vmatprep.subr.mxu0 0.0
  %1707 = vmatpush2.msra.mxu0 0.0
  %1708 = vmatprep.subr.mxu0 0.0
  %1709 = vmatpush2.msra.mxu0 0.0
  %1710 = vmatprep.subr.mxu0 0.0
  %1711 = vmatpush2.msra.mxu0 0.0
  %1712 = vmatprep.subr.mxu0 0.0
  %1713 = vmatpush2.msra.mxu0 0.0
  %1714 = vmatprep.subr.mxu0 0.0
  %1715 = vmatpush2.msra.mxu0 0.0
  %1716 = vmatprep.subr.mxu0 0.0
  %1717 = vmatpush2.msra.mxu0 0.0
  %1718 = vmatprep.subr.mxu0 0.0
  %1719 = vmatpush2.msra.mxu0 0.0
  %1720 = vmatprep.subr.mxu0 0.0
  %1721 = vmatpush2.msra.mxu0 0.0
  %1722 = vmatprep.subr.mxu0 0.0
  %1723 = vmatpush2.msra.mxu0 0.0
  %1724 = vmatprep.subr.mxu0 0.0
  %1725 = vmatpush2.msra.mxu0 0.0
  %1726 = vmatprep.subr.mxu0 0.0
  %1727 = vmatpush2.msra.mxu0 0.0
  %1728 = vmatprep.subr.mxu0 0.0
  %1729 = vmatpush2.msra.mxu0 0.0
  %1730 = vmatprep.subr.mxu0 0.0
  %1731 = vmatpush2.msra.mxu0 0.0
  %1732 = vmatprep.subr.mxu0 0.0
  %1733 = vmatpush2.msra.mxu0 0.0
  %1734 = vmatprep.mubr.f32.mxu0 0.0
  %1735 = vmatmul.mubr.f32.gmra.mxu0 %v1668
  %v1736 = vpop.f32.mrf.mxu0
  %v1737 = vadd.f32 0.0, %v1736
  %v1738 = vpop.f32.mrf.mxu0
  %1739 = vdwg.mxu0
  %v1741 = vsel %vm1140, %v1228, 0
  %1743 = vmatprep.subr.mxu0 0.0
  %1744 = vmatpush1.msra.mxu0 0.0
  %1745 = vmatprep.subr.mxu0 0.0
  %1746 = vmatpush1.msra.mxu0 0.0
  %1747 = vmatprep.subr.mxu0 0.0
  %1748 = vmatpush1.msra.mxu0 0.0
  %1749 = vmatprep.subr.mxu0 0.0
  %1750 = vmatpush1.msra.mxu0 0.0
  %1751 = vmatprep.subr.mxu0 0.0
  %1752 = vmatpush1.msra.mxu0 0.0
  %1753 = vmatprep.subr.mxu0 0.0
  %1754 = vmatpush1.msra.mxu0 0.0
  %1755 = vmatprep.subr.mxu0 0.0
  %1756 = vmatpush1.msra.mxu0 0.0
  %1757 = vmatprep.subr.mxu0 0.0
  %1758 = vmatpush1.msra.mxu0 0.0
  %1759 = vmatprep.subr.mxu0 0.0
  %1760 = vmatpush1.msra.mxu0 0.0
  %1761 = vmatprep.subr.mxu0 0.0
  %1762 = vmatpush1.msra.mxu0 0.0
  %1763 = vmatprep.subr.mxu0 0.0
  %1764 = vmatpush1.msra.mxu0 0.0
  %1765 = vmatprep.subr.mxu0 0.0
  %1766 = vmatpush1.msra.mxu0 0.0
  %1767 = vmatprep.subr.mxu0 0.0
  %1768 = vmatpush1.msra.mxu0 0.0
  %1769 = vmatprep.subr.mxu0 0.0
  %1770 = vmatpush1.msra.mxu0 0.0
  %1771 = vmatprep.subr.mxu0 0.0
  %1772 = vmatpush1.msra.mxu0 0.0
  %1773 = vmatprep.subr.mxu0 0.0
  %1774 = vmatpush1.msra.mxu0 %v520
  %1775 = vmatprep.subr.mxu0 0.0
  %1776 = vmatpush2.msra.mxu0 0.0
  %1777 = vmatprep.subr.mxu0 0.0
  %1778 = vmatpush2.msra.mxu0 0.0
  %1779 = vmatprep.subr.mxu0 0.0
  %1780 = vmatpush2.msra.mxu0 0.0
  %1781 = vmatprep.subr.mxu0 0.0
  %1782 = vmatpush2.msra.mxu0 0.0
  %1783 = vmatprep.subr.mxu0 0.0
  %1784 = vmatpush2.msra.mxu0 0.0
  %1785 = vmatprep.subr.mxu0 0.0
  %1786 = vmatpush2.msra.mxu0 0.0
  %1787 = vmatprep.subr.mxu0 0.0
  %1788 = vmatpush2.msra.mxu0 0.0
  %1789 = vmatprep.subr.mxu0 0.0
  %1790 = vmatpush2.msra.mxu0 0.0
  %1791 = vmatprep.subr.mxu0 0.0
  %1792 = vmatpush2.msra.mxu0 0.0
  %1793 = vmatprep.subr.mxu0 0.0
  %1794 = vmatpush2.msra.mxu0 0.0
  %1795 = vmatprep.subr.mxu0 0.0
  %1796 = vmatpush2.msra.mxu0 0.0
  %1797 = vmatprep.subr.mxu0 0.0
  %1798 = vmatpush2.msra.mxu0 0.0
  %1799 = vmatprep.subr.mxu0 0.0
  %1800 = vmatpush2.msra.mxu0 0.0
  %1801 = vmatprep.subr.mxu0 0.0
  %1802 = vmatpush2.msra.mxu0 0.0
  %1803 = vmatprep.subr.mxu0 0.0
  %1804 = vmatpush2.msra.mxu0 0.0
  %1805 = vmatprep.subr.mxu0 0.0
  %1806 = vmatpush2.msra.mxu0 0.0
  %1807 = vmatprep.mubr.f32.mxu0 0.0
  %1808 = vmatmul.mubr.f32.gmra.mxu0 %v1741
  %v1809 = vpop.f32.mrf.mxu0
  %v1810 = vadd.f32 0.0, %v1809
  %v1811 = vpop.f32.mrf.mxu0
  %1812 = vdwg.mxu0
  %v1813 = vld [vmem:[%s4] sm:$0xff]
  %v1814 = vld [vmem:[%s4 + $0x8] sm:$0xff]
  %s1815 = scalar_lea.vmem %s1, 32
  %v1816 = vld [vmem:[%s1815] sm:$0xff]
  %v1817 = vld [vmem:[%s1815 + $0x8] sm:$0xff]
  %v1818 = vld [vmem:[%s1815 + $0x10] sm:$0xff]
  %v1819 = vld [vmem:[%s1815 + $0x18] sm:$0xff]
  %1820 = vmatprep.subr.mxu0 0.0
  %1821 = vmatpush1.msra.mxu0 0.0
  %1822 = vmatprep.subr.mxu0 0.0
  %1823 = vmatpush1.msra.mxu0 0.0
  %1824 = vmatprep.subr.mxu0 0.0
  %1825 = vmatpush1.msra.mxu0 0.0
  %1826 = vmatprep.subr.mxu0 0.0
  %1827 = vmatpush1.msra.mxu0 0.0
  %1828 = vmatprep.subr.mxu0 0.0
  %1829 = vmatpush1.msra.mxu0 0.0
  %1830 = vmatprep.subr.mxu0 0.0
  %1831 = vmatpush1.msra.mxu0 0.0
  %1832 = vmatprep.subr.mxu0 0.0
  %1833 = vmatpush1.msra.mxu0 0.0
  %1834 = vmatprep.subr.mxu0 0.0
  %1835 = vmatpush1.msra.mxu0 0.0
  %1836 = vmatprep.subr.mxu0 0.0
  %1837 = vmatpush1.msra.mxu0 0.0
  %1838 = vmatprep.subr.mxu0 0.0
  %1839 = vmatpush1.msra.mxu0 0.0
  %1840 = vmatprep.subr.mxu0 0.0
  %1841 = vmatpush1.msra.mxu0 0.0
  %1842 = vmatprep.subr.mxu0 0.0
  %1843 = vmatpush1.msra.mxu0 0.0
  %1844 = vmatprep.subr.mxu0 0.0
  %1845 = vmatpush1.msra.mxu0 %v1819
  %1846 = vmatprep.subr.mxu0 0.0
  %1847 = vmatpush1.msra.mxu0 %v1818
  %1848 = vmatprep.subr.mxu0 0.0
  %1849 = vmatpush1.msra.mxu0 %v1817
  %1850 = vmatprep.subr.mxu0 0.0
  %1851 = vmatpush1.msra.mxu0 %v1816
  %1852 = vmatprep.subr.mxu0 0.0
  %1853 = vmatpush2.msra.mxu0 0.0
  %1854 = vmatprep.subr.mxu0 0.0
  %1855 = vmatpush2.msra.mxu0 0.0
  %1856 = vmatprep.subr.mxu0 0.0
  %1857 = vmatpush2.msra.mxu0 0.0
  %1858 = vmatprep.subr.mxu0 0.0
  %1859 = vmatpush2.msra.mxu0 0.0
  %1860 = vmatprep.subr.mxu0 0.0
  %1861 = vmatpush2.msra.mxu0 0.0
  %1862 = vmatprep.subr.mxu0 0.0
  %1863 = vmatpush2.msra.mxu0 0.0
  %1864 = vmatprep.subr.mxu0 0.0
  %1865 = vmatpush2.msra.mxu0 0.0
  %1866 = vmatprep.subr.mxu0 0.0
  %1867 = vmatpush2.msra.mxu0 0.0
  %1868 = vmatprep.subr.mxu0 0.0
  %1869 = vmatpush2.msra.mxu0 0.0
  %1870 = vmatprep.subr.mxu0 0.0
  %1871 = vmatpush2.msra.mxu0 0.0
  %1872 = vmatprep.subr.mxu0 0.0
  %1873 = vmatpush2.msra.mxu0 0.0
  %1874 = vmatprep.subr.mxu0 0.0
  %1875 = vmatpush2.msra.mxu0 0.0
  %1876 = vmatprep.subr.mxu0 0.0
  %1877 = vmatpush2.msra.mxu0 0.0
  %1878 = vmatprep.subr.mxu0 0.0
  %1879 = vmatpush2.msra.mxu0 0.0
  %1880 = vmatprep.subr.mxu0 0.0
  %1881 = vmatpush2.msra.mxu0 0.0
  %1882 = vmatprep.subr.mxu0 0.0
  %1883 = vmatpush2.msra.mxu0 0.0
  %1884 = vmatprep.mubr.f32.mxu0 0.0
  %1885 = vmatmul.mubr.f32.gmra.mxu0 %v177
  %v1886 = vpop.f32.mrf.mxu0
  %v1887 = vadd.f32 0.0, %v1886
  %v1888 = vpop.f32.mrf.mxu0
  %1889 = vmatprep.mubr.f32.mxu0 0.0
  %1890 = vmatmul.mubr.f32.gmra.mxu0 %v180
  %v1891 = vpop.f32.mrf.mxu0
  %v1892 = vadd.f32 0.0, %v1891
  %v1893 = vpop.f32.mrf.mxu0
  %1894 = vmatprep.mubr.f32.mxu0 0.0
  %1895 = vmatmul.mubr.f32.gmra.mxu0 %v183
  %v1896 = vpop.f32.mrf.mxu0
  %v1897 = vadd.f32 0.0, %v1896
  %v1898 = vpop.f32.mrf.mxu0
  %1899 = vmatprep.mubr.f32.mxu0 0.0
  %1900 = vmatmul.mubr.f32.gmra.mxu0 %v186
  %v1901 = vpop.f32.mrf.mxu0
  %v1902 = vadd.f32 0.0, %v1901
  %v1903 = vpop.f32.mrf.mxu0
  %1904 = vmatprep.mubr.f32.mxu0 0.0
  %1905 = vmatmul.mubr.f32.gmra.mxu0 %v189
  %v1906 = vpop.f32.mrf.mxu0
  %v1907 = vadd.f32 0.0, %v1906
  %v1908 = vpop.f32.mrf.mxu0
  %1909 = vmatprep.mubr.f32.mxu0 0.0
  %1910 = vmatmul.mubr.f32.gmra.mxu0 %v192
  %v1911 = vpop.f32.mrf.mxu0
  %v1912 = vadd.f32 0.0, %v1911
  %v1913 = vpop.f32.mrf.mxu0
  %1914 = vmatprep.mubr.f32.mxu0 0.0
  %1915 = vmatmul.mubr.f32.gmra.mxu0 %v195
  %v1916 = vpop.f32.mrf.mxu0
  %v1917 = vadd.f32 0.0, %v1916
  %v1918 = vpop.f32.mrf.mxu0
  %1919 = vmatprep.mubr.f32.mxu0 0.0
  %1920 = vmatmul.mubr.f32.gmra.mxu0 %v198
  %v1921 = vpop.f32.mrf.mxu0
  %v1922 = vadd.f32 0.0, %v1921
  %v1923 = vpop.f32.mrf.mxu0
  %1924 = vdwg.mxu0
  %s1925 = scalar_lea.vmem %s2, 32
  %v1926 = vld [vmem:[%s1925] sm:$0xff]
  %v1927 = vld [vmem:[%s1925 + $0x8] sm:$0xff]
  %v1928 = vld [vmem:[%s1925 + $0x10] sm:$0xff]
  %v1929 = vld [vmem:[%s1925 + $0x18] sm:$0xff]
  %1930 = vmatprep.subr.mxu0 0.0
  %1931 = vmatpush1.msra.mxu0 0.0
  %1932 = vmatprep.subr.mxu0 0.0
  %1933 = vmatpush1.msra.mxu0 0.0
  %1934 = vmatprep.subr.mxu0 0.0
  %1935 = vmatpush1.msra.mxu0 0.0
  %1936 = vmatprep.subr.mxu0 0.0
  %1937 = vmatpush1.msra.mxu0 0.0
  %1938 = vmatprep.subr.mxu0 0.0
  %1939 = vmatpush1.msra.mxu0 0.0
  %1940 = vmatprep.subr.mxu0 0.0
  %1941 = vmatpush1.msra.mxu0 0.0
  %1942 = vmatprep.subr.mxu0 0.0
  %1943 = vmatpush1.msra.mxu0 0.0
  %1944 = vmatprep.subr.mxu0 0.0
  %1945 = vmatpush1.msra.mxu0 0.0
  %1946 = vmatprep.subr.mxu0 0.0
  %1947 = vmatpush1.msra.mxu0 0.0
  %1948 = vmatprep.subr.mxu0 0.0
  %1949 = vmatpush1.msra.mxu0 0.0
  %1950 = vmatprep.subr.mxu0 0.0
  %1951 = vmatpush1.msra.mxu0 0.0
  %1952 = vmatprep.subr.mxu0 0.0
  %1953 = vmatpush1.msra.mxu0 0.0
  %1954 = vmatprep.subr.mxu0 0.0
  %1955 = vmatpush1.msra.mxu0 %v1929
  %1956 = vmatprep.subr.mxu0 0.0
  %1957 = vmatpush1.msra.mxu0 %v1928
  %1958 = vmatprep.subr.mxu0 0.0
  %1959 = vmatpush1.msra.mxu0 %v1927
  %1960 = vmatprep.subr.mxu0 0.0
  %1961 = vmatpush1.msra.mxu0 %v1926
  %1962 = vmatprep.subr.mxu0 0.0
  %1963 = vmatpush2.msra.mxu0 0.0
  %1964 = vmatprep.subr.mxu0 0.0
  %1965 = vmatpush2.msra.mxu0 0.0
  %1966 = vmatprep.subr.mxu0 0.0
  %1967 = vmatpush2.msra.mxu0 0.0
  %1968 = vmatprep.subr.mxu0 0.0
  %1969 = vmatpush2.msra.mxu0 0.0
  %1970 = vmatprep.subr.mxu0 0.0
  %1971 = vmatpush2.msra.mxu0 0.0
  %1972 = vmatprep.subr.mxu0 0.0
  %1973 = vmatpush2.msra.mxu0 0.0
  %1974 = vmatprep.subr.mxu0 0.0
  %1975 = vmatpush2.msra.mxu0 0.0
  %1976 = vmatprep.subr.mxu0 0.0
  %1977 = vmatpush2.msra.mxu0 0.0
  %1978 = vmatprep.subr.mxu0 0.0
  %1979 = vmatpush2.msra.mxu0 0.0
  %1980 = vmatprep.subr.mxu0 0.0
  %1981 = vmatpush2.msra.mxu0 0.0
  %1982 = vmatprep.subr.mxu0 0.0
  %1983 = vmatpush2.msra.mxu0 0.0
  %1984 = vmatprep.subr.mxu0 0.0
  %1985 = vmatpush2.msra.mxu0 0.0
  %1986 = vmatprep.subr.mxu0 0.0
  %1987 = vmatpush2.msra.mxu0 0.0
  %1988 = vmatprep.subr.mxu0 0.0
  %1989 = vmatpush2.msra.mxu0 0.0
  %1990 = vmatprep.subr.mxu0 0.0
  %1991 = vmatpush2.msra.mxu0 0.0
  %1992 = vmatprep.subr.mxu0 0.0
  %1993 = vmatpush2.msra.mxu0 0.0
  %1994 = vmatprep.mubr.f32.mxu0 0.0
  %1995 = vmatmul.mubr.f32.gmra.mxu0 %v177
  %v1996 = vpop.f32.mrf.mxu0
  %v1997 = vadd.f32 0.0, %v1996
  %v1998 = vpop.f32.mrf.mxu0
  %1999 = vmatprep.mubr.f32.mxu0 0.0
  %2000 = vmatmul.mubr.f32.gmra.mxu0 %v180
  %v2001 = vpop.f32.mrf.mxu0
  %v2002 = vadd.f32 0.0, %v2001
  %v2003 = vpop.f32.mrf.mxu0
  %2004 = vmatprep.mubr.f32.mxu0 0.0
  %2005 = vmatmul.mubr.f32.gmra.mxu0 %v183
  %v2006 = vpop.f32.mrf.mxu0
  %v2007 = vadd.f32 0.0, %v2006
  %v2008 = vpop.f32.mrf.mxu0
  %2009 = vmatprep.mubr.f32.mxu0 0.0
  %2010 = vmatmul.mubr.f32.gmra.mxu0 %v186
  %v2011 = vpop.f32.mrf.mxu0
  %v2012 = vadd.f32 0.0, %v2011
  %v2013 = vpop.f32.mrf.mxu0
  %2014 = vmatprep.mubr.f32.mxu0 0.0
  %2015 = vmatmul.mubr.f32.gmra.mxu0 %v189
  %v2016 = vpop.f32.mrf.mxu0
  %v2017 = vadd.f32 0.0, %v2016
  %v2018 = vpop.f32.mrf.mxu0
  %2019 = vmatprep.mubr.f32.mxu0 0.0
  %2020 = vmatmul.mubr.f32.gmra.mxu0 %v192
  %v2021 = vpop.f32.mrf.mxu0
  %v2022 = vadd.f32 0.0, %v2021
  %v2023 = vpop.f32.mrf.mxu0
  %2024 = vmatprep.mubr.f32.mxu0 0.0
  %2025 = vmatmul.mubr.f32.gmra.mxu0 %v195
  %v2026 = vpop.f32.mrf.mxu0
  %v2027 = vadd.f32 0.0, %v2026
  %v2028 = vpop.f32.mrf.mxu0
  %2029 = vmatprep.mubr.f32.mxu0 0.0
  %2030 = vmatmul.mubr.f32.gmra.mxu0 %v198
  %v2031 = vpop.f32.mrf.mxu0
  %v2032 = vadd.f32 0.0, %v2031
  %v2033 = vpop.f32.mrf.mxu0
  %2034 = vdwg.mxu0
  %s2035 = scalar_lea.vmem %s3, 32
  %v2036 = vld [vmem:[%s2035] sm:$0xff]
  %v2037 = vld [vmem:[%s2035 + $0x8] sm:$0xff]
  %v2038 = vld [vmem:[%s2035 + $0x10] sm:$0xff]
  %v2039 = vld [vmem:[%s2035 + $0x18] sm:$0xff]
  %2040 = vmatprep.subr.mxu0 0.0
  %2041 = vmatpush1.msra.mxu0 0.0
  %2042 = vmatprep.subr.mxu0 0.0
  %2043 = vmatpush1.msra.mxu0 0.0
  %2044 = vmatprep.subr.mxu0 0.0
  %2045 = vmatpush1.msra.mxu0 0.0
  %2046 = vmatprep.subr.mxu0 0.0
  %2047 = vmatpush1.msra.mxu0 0.0
  %2048 = vmatprep.subr.mxu0 0.0
  %2049 = vmatpush1.msra.mxu0 0.0
  %2050 = vmatprep.subr.mxu0 0.0
  %2051 = vmatpush1.msra.mxu0 0.0
  %2052 = vmatprep.subr.mxu0 0.0
  %2053 = vmatpush1.msra.mxu0 0.0
  %2054 = vmatprep.subr.mxu0 0.0
  %2055 = vmatpush1.msra.mxu0 0.0
  %2056 = vmatprep.subr.mxu0 0.0
  %2057 = vmatpush1.msra.mxu0 0.0
  %2058 = vmatprep.subr.mxu0 0.0
  %2059 = vmatpush1.msra.mxu0 0.0
  %2060 = vmatprep.subr.mxu0 0.0
  %2061 = vmatpush1.msra.mxu0 0.0
  %2062 = vmatprep.subr.mxu0 0.0
  %2063 = vmatpush1.msra.mxu0 0.0
  %2064 = vmatprep.subr.mxu0 0.0
  %2065 = vmatpush1.msra.mxu0 %v2039
  %2066 = vmatprep.subr.mxu0 0.0
  %2067 = vmatpush1.msra.mxu0 %v2038
  %2068 = vmatprep.subr.mxu0 0.0
  %2069 = vmatpush1.msra.mxu0 %v2037
  %2070 = vmatprep.subr.mxu0 0.0
  %2071 = vmatpush1.msra.mxu0 %v2036
  %2072 = vmatprep.subr.mxu0 0.0
  %2073 = vmatpush2.msra.mxu0 0.0
  %2074 = vmatprep.subr.mxu0 0.0
  %2075 = vmatpush2.msra.mxu0 0.0
  %2076 = vmatprep.subr.mxu0 0.0
  %2077 = vmatpush2.msra.mxu0 0.0
  %2078 = vmatprep.subr.mxu0 0.0
  %2079 = vmatpush2.msra.mxu0 0.0
  %2080 = vmatprep.subr.mxu0 0.0
  %2081 = vmatpush2.msra.mxu0 0.0
  %2082 = vmatprep.subr.mxu0 0.0
  %2083 = vmatpush2.msra.mxu0 0.0
  %2084 = vmatprep.subr.mxu0 0.0
  %2085 = vmatpush2.msra.mxu0 0.0
  %2086 = vmatprep.subr.mxu0 0.0
  %2087 = vmatpush2.msra.mxu0 0.0
  %2088 = vmatprep.subr.mxu0 0.0
  %2089 = vmatpush2.msra.mxu0 0.0
  %2090 = vmatprep.subr.mxu0 0.0
  %2091 = vmatpush2.msra.mxu0 0.0
  %2092 = vmatprep.subr.mxu0 0.0
  %2093 = vmatpush2.msra.mxu0 0.0
  %2094 = vmatprep.subr.mxu0 0.0
  %2095 = vmatpush2.msra.mxu0 0.0
  %2096 = vmatprep.subr.mxu0 0.0
  %2097 = vmatpush2.msra.mxu0 0.0
  %2098 = vmatprep.subr.mxu0 0.0
  %2099 = vmatpush2.msra.mxu0 0.0
  %2100 = vmatprep.subr.mxu0 0.0
  %2101 = vmatpush2.msra.mxu0 0.0
  %2102 = vmatprep.subr.mxu0 0.0
  %2103 = vmatpush2.msra.mxu0 0.0
  %2104 = vmatprep.mubr.f32.mxu0 0.0
  %2105 = vmatmul.mubr.f32.gmra.mxu0 %v177
  %v2106 = vpop.f32.mrf.mxu0
  %v2107 = vadd.f32 0.0, %v2106
  %v2108 = vpop.f32.mrf.mxu0
  %2109 = vmatprep.mubr.f32.mxu0 0.0
  %2110 = vmatmul.mubr.f32.gmra.mxu0 %v180
  %v2111 = vpop.f32.mrf.mxu0
  %v2112 = vadd.f32 0.0, %v2111
  %v2113 = vpop.f32.mrf.mxu0
  %2114 = vmatprep.mubr.f32.mxu0 0.0
  %2115 = vmatmul.mubr.f32.gmra.mxu0 %v183
  %v2116 = vpop.f32.mrf.mxu0
  %v2117 = vadd.f32 0.0, %v2116
  %v2118 = vpop.f32.mrf.mxu0
  %2119 = vmatprep.mubr.f32.mxu0 0.0
  %2120 = vmatmul.mubr.f32.gmra.mxu0 %v186
  %v2121 = vpop.f32.mrf.mxu0
  %v2122 = vadd.f32 0.0, %v2121
  %v2123 = vpop.f32.mrf.mxu0
  %2124 = vmatprep.mubr.f32.mxu0 0.0
  %2125 = vmatmul.mubr.f32.gmra.mxu0 %v189
  %v2126 = vpop.f32.mrf.mxu0
  %v2127 = vadd.f32 0.0, %v2126
  %v2128 = vpop.f32.mrf.mxu0
  %2129 = vmatprep.mubr.f32.mxu0 0.0
  %2130 = vmatmul.mubr.f32.gmra.mxu0 %v192
  %v2131 = vpop.f32.mrf.mxu0
  %v2132 = vadd.f32 0.0, %v2131
  %v2133 = vpop.f32.mrf.mxu0
  %2134 = vmatprep.mubr.f32.mxu0 0.0
  %2135 = vmatmul.mubr.f32.gmra.mxu0 %v195
  %v2136 = vpop.f32.mrf.mxu0
  %v2137 = vadd.f32 0.0, %v2136
  %v2138 = vpop.f32.mrf.mxu0
  %2139 = vmatprep.mubr.f32.mxu0 0.0
  %2140 = vmatmul.mubr.f32.gmra.mxu0 %v198
  %v2141 = vpop.f32.mrf.mxu0
  %v2142 = vadd.f32 0.0, %v2141
  %v2143 = vpop.f32.mrf.mxu0
  %2144 = vdwg.mxu0
  %v2146 = vsel %vm523, %v1887, 0
  %v2149 = vsel %vm523, %v1997, 0
  %2151 = vmatprep.subr.mxu0 0.0
  %2152 = vmatpush1.xpose.msra.mxu0 0.0
  %2153 = vmatprep.subr.mxu0 0.0
  %2154 = vmatpush1.xpose.msra.mxu0 0.0
  %2155 = vmatprep.subr.mxu0 0.0
  %2156 = vmatpush1.xpose.msra.mxu0 0.0
  %2157 = vmatprep.subr.mxu0 0.0
  %2158 = vmatpush1.xpose.msra.mxu0 0.0
  %2159 = vmatprep.subr.mxu0 0.0
  %2160 = vmatpush1.xpose.msra.mxu0 0.0
  %2161 = vmatprep.subr.mxu0 0.0
  %2162 = vmatpush1.xpose.msra.mxu0 0.0
  %2163 = vmatprep.subr.mxu0 0.0
  %2164 = vmatpush1.xpose.msra.mxu0 0.0
  %2165 = vmatprep.subr.mxu0 0.0
  %2166 = vmatpush1.xpose.msra.mxu0 0.0
  %2167 = vmatprep.subr.mxu0 0.0
  %2168 = vmatpush1.xpose.msra.mxu0 0.0
  %2169 = vmatprep.subr.mxu0 0.0
  %2170 = vmatpush1.xpose.msra.mxu0 0.0
  %2171 = vmatprep.subr.mxu0 0.0
  %2172 = vmatpush1.xpose.msra.mxu0 0.0
  %2173 = vmatprep.subr.mxu0 0.0
  %2174 = vmatpush1.xpose.msra.mxu0 0.0
  %2175 = vmatprep.subr.mxu0 0.0
  %2176 = vmatpush1.xpose.msra.mxu0 0.0
  %2177 = vmatprep.subr.mxu0 0.0
  %2178 = vmatpush1.xpose.msra.mxu0 0.0
  %2179 = vmatprep.subr.mxu0 0.0
  %2180 = vmatpush1.xpose.msra.mxu0 0.0
  %2181 = vmatprep.subr.mxu0 0.0
  %2182 = vmatpush1.xpose.msra.mxu0 %v2149
  %2183 = vmatprep.subr.mxu0 0.0
  %2184 = vmatpush2.xpose.msra.mxu0 0.0
  %2185 = vmatprep.subr.mxu0 0.0
  %2186 = vmatpush2.xpose.msra.mxu0 0.0
  %2187 = vmatprep.subr.mxu0 0.0
  %2188 = vmatpush2.xpose.msra.mxu0 0.0
  %2189 = vmatprep.subr.mxu0 0.0
  %2190 = vmatpush2.xpose.msra.mxu0 0.0
  %2191 = vmatprep.subr.mxu0 0.0
  %2192 = vmatpush2.xpose.msra.mxu0 0.0
  %2193 = vmatprep.subr.mxu0 0.0
  %2194 = vmatpush2.xpose.msra.mxu0 0.0
  %2195 = vmatprep.subr.mxu0 0.0
  %2196 = vmatpush2.xpose.msra.mxu0 0.0
  %2197 = vmatprep.subr.mxu0 0.0
  %2198 = vmatpush2.xpose.msra.mxu0 0.0
  %2199 = vmatprep.subr.mxu0 0.0
  %2200 = vmatpush2.xpose.msra.mxu0 0.0
  %2201 = vmatprep.subr.mxu0 0.0
  %2202 = vmatpush2.xpose.msra.mxu0 0.0
  %2203 = vmatprep.subr.mxu0 0.0
  %2204 = vmatpush2.xpose.msra.mxu0 0.0
  %2205 = vmatprep.subr.mxu0 0.0
  %2206 = vmatpush2.xpose.msra.mxu0 0.0
  %2207 = vmatprep.subr.mxu0 0.0
  %2208 = vmatpush2.xpose.msra.mxu0 0.0
  %2209 = vmatprep.subr.mxu0 0.0
  %2210 = vmatpush2.xpose.msra.mxu0 0.0
  %2211 = vmatprep.subr.mxu0 0.0
  %2212 = vmatpush2.xpose.msra.mxu0 0.0
  %2213 = vmatprep.subr.mxu0 0.0
  %2214 = vmatpush2.xpose.msra.mxu0 0.0
  %2215 = vmatprep.mubr.f32.mxu0 0.0
  %2216 = vmatmul.mubr.f32.gmra.mxu0 %v2146
  %v2217 = vpop.f32.mrf.mxu0
  %v2218 = vadd.f32 0.0, %v2217
  %v2219 = vpop.f32.mrf.mxu0
  %2220 = vdwg.mxu0
  %v2222 = vsel %vm523, %v1892, 0
  %v2225 = vsel %vm523, %v2002, 0
  %2227 = vmatprep.subr.mxu0 0.0
  %2228 = vmatpush1.xpose.msra.mxu0 0.0
  %2229 = vmatprep.subr.mxu0 0.0
  %2230 = vmatpush1.xpose.msra.mxu0 0.0
  %2231 = vmatprep.subr.mxu0 0.0
  %2232 = vmatpush1.xpose.msra.mxu0 0.0
  %2233 = vmatprep.subr.mxu0 0.0
  %2234 = vmatpush1.xpose.msra.mxu0 0.0
  %2235 = vmatprep.subr.mxu0 0.0
  %2236 = vmatpush1.xpose.msra.mxu0 0.0
  %2237 = vmatprep.subr.mxu0 0.0
  %2238 = vmatpush1.xpose.msra.mxu0 0.0
  %2239 = vmatprep.subr.mxu0 0.0
  %2240 = vmatpush1.xpose.msra.mxu0 0.0
  %2241 = vmatprep.subr.mxu0 0.0
  %2242 = vmatpush1.xpose.msra.mxu0 0.0
  %2243 = vmatprep.subr.mxu0 0.0
  %2244 = vmatpush1.xpose.msra.mxu0 0.0
  %2245 = vmatprep.subr.mxu0 0.0
  %2246 = vmatpush1.xpose.msra.mxu0 0.0
  %2247 = vmatprep.subr.mxu0 0.0
  %2248 = vmatpush1.xpose.msra.mxu0 0.0
  %2249 = vmatprep.subr.mxu0 0.0
  %2250 = vmatpush1.xpose.msra.mxu0 0.0
  %2251 = vmatprep.subr.mxu0 0.0
  %2252 = vmatpush1.xpose.msra.mxu0 0.0
  %2253 = vmatprep.subr.mxu0 0.0
  %2254 = vmatpush1.xpose.msra.mxu0 0.0
  %2255 = vmatprep.subr.mxu0 0.0
  %2256 = vmatpush1.xpose.msra.mxu0 0.0
  %2257 = vmatprep.subr.mxu0 0.0
  %2258 = vmatpush1.xpose.msra.mxu0 %v2225
  %2259 = vmatprep.subr.mxu0 0.0
  %2260 = vmatpush2.xpose.msra.mxu0 0.0
  %2261 = vmatprep.subr.mxu0 0.0
  %2262 = vmatpush2.xpose.msra.mxu0 0.0
  %2263 = vmatprep.subr.mxu0 0.0
  %2264 = vmatpush2.xpose.msra.mxu0 0.0
  %2265 = vmatprep.subr.mxu0 0.0
  %2266 = vmatpush2.xpose.msra.mxu0 0.0
  %2267 = vmatprep.subr.mxu0 0.0
  %2268 = vmatpush2.xpose.msra.mxu0 0.0
  %2269 = vmatprep.subr.mxu0 0.0
  %2270 = vmatpush2.xpose.msra.mxu0 0.0
  %2271 = vmatprep.subr.mxu0 0.0
  %2272 = vmatpush2.xpose.msra.mxu0 0.0
  %2273 = vmatprep.subr.mxu0 0.0
  %2274 = vmatpush2.xpose.msra.mxu0 0.0
  %2275 = vmatprep.subr.mxu0 0.0
  %2276 = vmatpush2.xpose.msra.mxu0 0.0
  %2277 = vmatprep.subr.mxu0 0.0
  %2278 = vmatpush2.xpose.msra.mxu0 0.0
  %2279 = vmatprep.subr.mxu0 0.0
  %2280 = vmatpush2.xpose.msra.mxu0 0.0
  %2281 = vmatprep.subr.mxu0 0.0
  %2282 = vmatpush2.xpose.msra.mxu0 0.0
  %2283 = vmatprep.subr.mxu0 0.0
  %2284 = vmatpush2.xpose.msra.mxu0 0.0
  %2285 = vmatprep.subr.mxu0 0.0
  %2286 = vmatpush2.xpose.msra.mxu0 0.0
  %2287 = vmatprep.subr.mxu0 0.0
  %2288 = vmatpush2.xpose.msra.mxu0 0.0
  %2289 = vmatprep.subr.mxu0 0.0
  %2290 = vmatpush2.xpose.msra.mxu0 0.0
  %2291 = vmatprep.mubr.f32.mxu0 0.0
  %2292 = vmatmul.mubr.f32.gmra.mxu0 %v2222
  %v2293 = vpop.f32.mrf.mxu0
  %v2294 = vadd.f32 0.0, %v2293
  %v2295 = vpop.f32.mrf.mxu0
  %2296 = vdwg.mxu0
  %v2298 = vsel %vm523, %v1897, 0
  %v2301 = vsel %vm523, %v2007, 0
  %2303 = vmatprep.subr.mxu0 0.0
  %2304 = vmatpush1.xpose.msra.mxu0 0.0
  %2305 = vmatprep.subr.mxu0 0.0
  %2306 = vmatpush1.xpose.msra.mxu0 0.0
  %2307 = vmatprep.subr.mxu0 0.0
  %2308 = vmatpush1.xpose.msra.mxu0 0.0
  %2309 = vmatprep.subr.mxu0 0.0
  %2310 = vmatpush1.xpose.msra.mxu0 0.0
  %2311 = vmatprep.subr.mxu0 0.0
  %2312 = vmatpush1.xpose.msra.mxu0 0.0
  %2313 = vmatprep.subr.mxu0 0.0
  %2314 = vmatpush1.xpose.msra.mxu0 0.0
  %2315 = vmatprep.subr.mxu0 0.0
  %2316 = vmatpush1.xpose.msra.mxu0 0.0
  %2317 = vmatprep.subr.mxu0 0.0
  %2318 = vmatpush1.xpose.msra.mxu0 0.0
  %2319 = vmatprep.subr.mxu0 0.0
  %2320 = vmatpush1.xpose.msra.mxu0 0.0
  %2321 = vmatprep.subr.mxu0 0.0
  %2322 = vmatpush1.xpose.msra.mxu0 0.0
  %2323 = vmatprep.subr.mxu0 0.0
  %2324 = vmatpush1.xpose.msra.mxu0 0.0
  %2325 = vmatprep.subr.mxu0 0.0
  %2326 = vmatpush1.xpose.msra.mxu0 0.0
  %2327 = vmatprep.subr.mxu0 0.0
  %2328 = vmatpush1.xpose.msra.mxu0 0.0
  %2329 = vmatprep.subr.mxu0 0.0
  %2330 = vmatpush1.xpose.msra.mxu0 0.0
  %2331 = vmatprep.subr.mxu0 0.0
  %2332 = vmatpush1.xpose.msra.mxu0 0.0
  %2333 = vmatprep.subr.mxu0 0.0
  %2334 = vmatpush1.xpose.msra.mxu0 %v2301
  %2335 = vmatprep.subr.mxu0 0.0
  %2336 = vmatpush2.xpose.msra.mxu0 0.0
  %2337 = vmatprep.subr.mxu0 0.0
  %2338 = vmatpush2.xpose.msra.mxu0 0.0
  %2339 = vmatprep.subr.mxu0 0.0
  %2340 = vmatpush2.xpose.msra.mxu0 0.0
  %2341 = vmatprep.subr.mxu0 0.0
  %2342 = vmatpush2.xpose.msra.mxu0 0.0
  %2343 = vmatprep.subr.mxu0 0.0
  %2344 = vmatpush2.xpose.msra.mxu0 0.0
  %2345 = vmatprep.subr.mxu0 0.0
  %2346 = vmatpush2.xpose.msra.mxu0 0.0
  %2347 = vmatprep.subr.mxu0 0.0
  %2348 = vmatpush2.xpose.msra.mxu0 0.0
  %2349 = vmatprep.subr.mxu0 0.0
  %2350 = vmatpush2.xpose.msra.mxu0 0.0
  %2351 = vmatprep.subr.mxu0 0.0
  %2352 = vmatpush2.xpose.msra.mxu0 0.0
  %2353 = vmatprep.subr.mxu0 0.0
  %2354 = vmatpush2.xpose.msra.mxu0 0.0
  %2355 = vmatprep.subr.mxu0 0.0
  %2356 = vmatpush2.xpose.msra.mxu0 0.0
  %2357 = vmatprep.subr.mxu0 0.0
  %2358 = vmatpush2.xpose.msra.mxu0 0.0
  %2359 = vmatprep.subr.mxu0 0.0
  %2360 = vmatpush2.xpose.msra.mxu0 0.0
  %2361 = vmatprep.subr.mxu0 0.0
  %2362 = vmatpush2.xpose.msra.mxu0 0.0
  %2363 = vmatprep.subr.mxu0 0.0
  %2364 = vmatpush2.xpose.msra.mxu0 0.0
  %2365 = vmatprep.subr.mxu0 0.0
  %2366 = vmatpush2.xpose.msra.mxu0 0.0
  %2367 = vmatprep.mubr.f32.mxu0 0.0
  %2368 = vmatmul.mubr.f32.gmra.mxu0 %v2298
  %v2369 = vpop.f32.mrf.mxu0
  %v2370 = vadd.f32 0.0, %v2369
  %v2371 = vpop.f32.mrf.mxu0
  %2372 = vdwg.mxu0
  %v2374 = vsel %vm523, %v1902, 0
  %v2377 = vsel %vm523, %v2012, 0
  %2379 = vmatprep.subr.mxu0 0.0
  %2380 = vmatpush1.xpose.msra.mxu0 0.0
  %2381 = vmatprep.subr.mxu0 0.0
  %2382 = vmatpush1.xpose.msra.mxu0 0.0
  %2383 = vmatprep.subr.mxu0 0.0
  %2384 = vmatpush1.xpose.msra.mxu0 0.0
  %2385 = vmatprep.subr.mxu0 0.0
  %2386 = vmatpush1.xpose.msra.mxu0 0.0
  %2387 = vmatprep.subr.mxu0 0.0
  %2388 = vmatpush1.xpose.msra.mxu0 0.0
  %2389 = vmatprep.subr.mxu0 0.0
  %2390 = vmatpush1.xpose.msra.mxu0 0.0
  %2391 = vmatprep.subr.mxu0 0.0
  %2392 = vmatpush1.xpose.msra.mxu0 0.0
  %2393 = vmatprep.subr.mxu0 0.0
  %2394 = vmatpush1.xpose.msra.mxu0 0.0
  %2395 = vmatprep.subr.mxu0 0.0
  %2396 = vmatpush1.xpose.msra.mxu0 0.0
  %2397 = vmatprep.subr.mxu0 0.0
  %2398 = vmatpush1.xpose.msra.mxu0 0.0
  %2399 = vmatprep.subr.mxu0 0.0
  %2400 = vmatpush1.xpose.msra.mxu0 0.0
  %2401 = vmatprep.subr.mxu0 0.0
  %2402 = vmatpush1.xpose.msra.mxu0 0.0
  %2403 = vmatprep.subr.mxu0 0.0
  %2404 = vmatpush1.xpose.msra.mxu0 0.0
  %2405 = vmatprep.subr.mxu0 0.0
  %2406 = vmatpush1.xpose.msra.mxu0 0.0
  %2407 = vmatprep.subr.mxu0 0.0
  %2408 = vmatpush1.xpose.msra.mxu0 0.0
  %2409 = vmatprep.subr.mxu0 0.0
  %2410 = vmatpush1.xpose.msra.mxu0 %v2377
  %2411 = vmatprep.subr.mxu0 0.0
  %2412 = vmatpush2.xpose.msra.mxu0 0.0
  %2413 = vmatprep.subr.mxu0 0.0
  %2414 = vmatpush2.xpose.msra.mxu0 0.0
  %2415 = vmatprep.subr.mxu0 0.0
  %2416 = vmatpush2.xpose.msra.mxu0 0.0
  %2417 = vmatprep.subr.mxu0 0.0
  %2418 = vmatpush2.xpose.msra.mxu0 0.0
  %2419 = vmatprep.subr.mxu0 0.0
  %2420 = vmatpush2.xpose.msra.mxu0 0.0
  %2421 = vmatprep.subr.mxu0 0.0
  %2422 = vmatpush2.xpose.msra.mxu0 0.0
  %2423 = vmatprep.subr.mxu0 0.0
  %2424 = vmatpush2.xpose.msra.mxu0 0.0
  %2425 = vmatprep.subr.mxu0 0.0
  %2426 = vmatpush2.xpose.msra.mxu0 0.0
  %2427 = vmatprep.subr.mxu0 0.0
  %2428 = vmatpush2.xpose.msra.mxu0 0.0
  %2429 = vmatprep.subr.mxu0 0.0
  %2430 = vmatpush2.xpose.msra.mxu0 0.0
  %2431 = vmatprep.subr.mxu0 0.0
  %2432 = vmatpush2.xpose.msra.mxu0 0.0
  %2433 = vmatprep.subr.mxu0 0.0
  %2434 = vmatpush2.xpose.msra.mxu0 0.0
  %2435 = vmatprep.subr.mxu0 0.0
  %2436 = vmatpush2.xpose.msra.mxu0 0.0
  %2437 = vmatprep.subr.mxu0 0.0
  %2438 = vmatpush2.xpose.msra.mxu0 0.0
  %2439 = vmatprep.subr.mxu0 0.0
  %2440 = vmatpush2.xpose.msra.mxu0 0.0
  %2441 = vmatprep.subr.mxu0 0.0
  %2442 = vmatpush2.xpose.msra.mxu0 0.0
  %2443 = vmatprep.mubr.f32.mxu0 0.0
  %2444 = vmatmul.mubr.f32.gmra.mxu0 %v2374
  %v2445 = vpop.f32.mrf.mxu0
  %v2446 = vadd.f32 0.0, %v2445
  %v2447 = vpop.f32.mrf.mxu0
  %2448 = vdwg.mxu0
  %v2450 = vsel %vm523, %v1907, 0
  %v2453 = vsel %vm523, %v2017, 0
  %2455 = vmatprep.subr.mxu0 0.0
  %2456 = vmatpush1.xpose.msra.mxu0 0.0
  %2457 = vmatprep.subr.mxu0 0.0
  %2458 = vmatpush1.xpose.msra.mxu0 0.0
  %2459 = vmatprep.subr.mxu0 0.0
  %2460 = vmatpush1.xpose.msra.mxu0 0.0
  %2461 = vmatprep.subr.mxu0 0.0
  %2462 = vmatpush1.xpose.msra.mxu0 0.0
  %2463 = vmatprep.subr.mxu0 0.0
  %2464 = vmatpush1.xpose.msra.mxu0 0.0
  %2465 = vmatprep.subr.mxu0 0.0
  %2466 = vmatpush1.xpose.msra.mxu0 0.0
  %2467 = vmatprep.subr.mxu0 0.0
  %2468 = vmatpush1.xpose.msra.mxu0 0.0
  %2469 = vmatprep.subr.mxu0 0.0
  %2470 = vmatpush1.xpose.msra.mxu0 0.0
  %2471 = vmatprep.subr.mxu0 0.0
  %2472 = vmatpush1.xpose.msra.mxu0 0.0
  %2473 = vmatprep.subr.mxu0 0.0
  %2474 = vmatpush1.xpose.msra.mxu0 0.0
  %2475 = vmatprep.subr.mxu0 0.0
  %2476 = vmatpush1.xpose.msra.mxu0 0.0
  %2477 = vmatprep.subr.mxu0 0.0
  %2478 = vmatpush1.xpose.msra.mxu0 0.0
  %2479 = vmatprep.subr.mxu0 0.0
  %2480 = vmatpush1.xpose.msra.mxu0 0.0
  %2481 = vmatprep.subr.mxu0 0.0
  %2482 = vmatpush1.xpose.msra.mxu0 0.0
  %2483 = vmatprep.subr.mxu0 0.0
  %2484 = vmatpush1.xpose.msra.mxu0 0.0
  %2485 = vmatprep.subr.mxu0 0.0
  %2486 = vmatpush1.xpose.msra.mxu0 %v2453
  %2487 = vmatprep.subr.mxu0 0.0
  %2488 = vmatpush2.xpose.msra.mxu0 0.0
  %2489 = vmatprep.subr.mxu0 0.0
  %2490 = vmatpush2.xpose.msra.mxu0 0.0
  %2491 = vmatprep.subr.mxu0 0.0
  %2492 = vmatpush2.xpose.msra.mxu0 0.0
  %2493 = vmatprep.subr.mxu0 0.0
  %2494 = vmatpush2.xpose.msra.mxu0 0.0
  %2495 = vmatprep.subr.mxu0 0.0
  %2496 = vmatpush2.xpose.msra.mxu0 0.0
  %2497 = vmatprep.subr.mxu0 0.0
  %2498 = vmatpush2.xpose.msra.mxu0 0.0
  %2499 = vmatprep.subr.mxu0 0.0
  %2500 = vmatpush2.xpose.msra.mxu0 0.0
  %2501 = vmatprep.subr.mxu0 0.0
  %2502 = vmatpush2.xpose.msra.mxu0 0.0
  %2503 = vmatprep.subr.mxu0 0.0
  %2504 = vmatpush2.xpose.msra.mxu0 0.0
  %2505 = vmatprep.subr.mxu0 0.0
  %2506 = vmatpush2.xpose.msra.mxu0 0.0
  %2507 = vmatprep.subr.mxu0 0.0
  %2508 = vmatpush2.xpose.msra.mxu0 0.0
  %2509 = vmatprep.subr.mxu0 0.0
  %2510 = vmatpush2.xpose.msra.mxu0 0.0
  %2511 = vmatprep.subr.mxu0 0.0
  %2512 = vmatpush2.xpose.msra.mxu0 0.0
  %2513 = vmatprep.subr.mxu0 0.0
  %2514 = vmatpush2.xpose.msra.mxu0 0.0
  %2515 = vmatprep.subr.mxu0 0.0
  %2516 = vmatpush2.xpose.msra.mxu0 0.0
  %2517 = vmatprep.subr.mxu0 0.0
  %2518 = vmatpush2.xpose.msra.mxu0 0.0
  %2519 = vmatprep.mubr.f32.mxu0 0.0
  %2520 = vmatmul.mubr.f32.gmra.mxu0 %v2450
  %v2521 = vpop.f32.mrf.mxu0
  %v2522 = vadd.f32 0.0, %v2521
  %v2523 = vpop.f32.mrf.mxu0
  %2524 = vdwg.mxu0
  %v2526 = vsel %vm523, %v1912, 0
  %v2529 = vsel %vm523, %v2022, 0
  %2531 = vmatprep.subr.mxu0 0.0
  %2532 = vmatpush1.xpose.msra.mxu0 0.0
  %2533 = vmatprep.subr.mxu0 0.0
  %2534 = vmatpush1.xpose.msra.mxu0 0.0
  %2535 = vmatprep.subr.mxu0 0.0
  %2536 = vmatpush1.xpose.msra.mxu0 0.0
  %2537 = vmatprep.subr.mxu0 0.0
  %2538 = vmatpush1.xpose.msra.mxu0 0.0
  %2539 = vmatprep.subr.mxu0 0.0
  %2540 = vmatpush1.xpose.msra.mxu0 0.0
  %2541 = vmatprep.subr.mxu0 0.0
  %2542 = vmatpush1.xpose.msra.mxu0 0.0
  %2543 = vmatprep.subr.mxu0 0.0
  %2544 = vmatpush1.xpose.msra.mxu0 0.0
  %2545 = vmatprep.subr.mxu0 0.0
  %2546 = vmatpush1.xpose.msra.mxu0 0.0
  %2547 = vmatprep.subr.mxu0 0.0
  %2548 = vmatpush1.xpose.msra.mxu0 0.0
  %2549 = vmatprep.subr.mxu0 0.0
  %2550 = vmatpush1.xpose.msra.mxu0 0.0
  %2551 = vmatprep.subr.mxu0 0.0
  %2552 = vmatpush1.xpose.msra.mxu0 0.0
  %2553 = vmatprep.subr.mxu0 0.0
  %2554 = vmatpush1.xpose.msra.mxu0 0.0
  %2555 = vmatprep.subr.mxu0 0.0
  %2556 = vmatpush1.xpose.msra.mxu0 0.0
  %2557 = vmatprep.subr.mxu0 0.0
  %2558 = vmatpush1.xpose.msra.mxu0 0.0
  %2559 = vmatprep.subr.mxu0 0.0
  %2560 = vmatpush1.xpose.msra.mxu0 0.0
  %2561 = vmatprep.subr.mxu0 0.0
  %2562 = vmatpush1.xpose.msra.mxu0 %v2529
  %2563 = vmatprep.subr.mxu0 0.0
  %2564 = vmatpush2.xpose.msra.mxu0 0.0
  %2565 = vmatprep.subr.mxu0 0.0
  %2566 = vmatpush2.xpose.msra.mxu0 0.0
  %2567 = vmatprep.subr.mxu0 0.0
  %2568 = vmatpush2.xpose.msra.mxu0 0.0
  %2569 = vmatprep.subr.mxu0 0.0
  %2570 = vmatpush2.xpose.msra.mxu0 0.0
  %2571 = vmatprep.subr.mxu0 0.0
  %2572 = vmatpush2.xpose.msra.mxu0 0.0
  %2573 = vmatprep.subr.mxu0 0.0
  %2574 = vmatpush2.xpose.msra.mxu0 0.0
  %2575 = vmatprep.subr.mxu0 0.0
  %2576 = vmatpush2.xpose.msra.mxu0 0.0
  %2577 = vmatprep.subr.mxu0 0.0
  %2578 = vmatpush2.xpose.msra.mxu0 0.0
  %2579 = vmatprep.subr.mxu0 0.0
  %2580 = vmatpush2.xpose.msra.mxu0 0.0
  %2581 = vmatprep.subr.mxu0 0.0
  %2582 = vmatpush2.xpose.msra.mxu0 0.0
  %2583 = vmatprep.subr.mxu0 0.0
  %2584 = vmatpush2.xpose.msra.mxu0 0.0
  %2585 = vmatprep.subr.mxu0 0.0
  %2586 = vmatpush2.xpose.msra.mxu0 0.0
  %2587 = vmatprep.subr.mxu0 0.0
  %2588 = vmatpush2.xpose.msra.mxu0 0.0
  %2589 = vmatprep.subr.mxu0 0.0
  %2590 = vmatpush2.xpose.msra.mxu0 0.0
  %2591 = vmatprep.subr.mxu0 0.0
  %2592 = vmatpush2.xpose.msra.mxu0 0.0
  %2593 = vmatprep.subr.mxu0 0.0
  %2594 = vmatpush2.xpose.msra.mxu0 0.0
  %2595 = vmatprep.mubr.f32.mxu0 0.0
  %2596 = vmatmul.mubr.f32.gmra.mxu0 %v2526
  %v2597 = vpop.f32.mrf.mxu0
  %v2598 = vadd.f32 0.0, %v2597
  %v2599 = vpop.f32.mrf.mxu0
  %2600 = vdwg.mxu0
  %v2602 = vsel %vm523, %v1917, 0
  %v2605 = vsel %vm523, %v2027, 0
  %2607 = vmatprep.subr.mxu0 0.0
  %2608 = vmatpush1.xpose.msra.mxu0 0.0
  %2609 = vmatprep.subr.mxu0 0.0
  %2610 = vmatpush1.xpose.msra.mxu0 0.0
  %2611 = vmatprep.subr.mxu0 0.0
  %2612 = vmatpush1.xpose.msra.mxu0 0.0
  %2613 = vmatprep.subr.mxu0 0.0
  %2614 = vmatpush1.xpose.msra.mxu0 0.0
  %2615 = vmatprep.subr.mxu0 0.0
  %2616 = vmatpush1.xpose.msra.mxu0 0.0
  %2617 = vmatprep.subr.mxu0 0.0
  %2618 = vmatpush1.xpose.msra.mxu0 0.0
  %2619 = vmatprep.subr.mxu0 0.0
  %2620 = vmatpush1.xpose.msra.mxu0 0.0
  %2621 = vmatprep.subr.mxu0 0.0
  %2622 = vmatpush1.xpose.msra.mxu0 0.0
  %2623 = vmatprep.subr.mxu0 0.0
  %2624 = vmatpush1.xpose.msra.mxu0 0.0
  %2625 = vmatprep.subr.mxu0 0.0
  %2626 = vmatpush1.xpose.msra.mxu0 0.0
  %2627 = vmatprep.subr.mxu0 0.0
  %2628 = vmatpush1.xpose.msra.mxu0 0.0
  %2629 = vmatprep.subr.mxu0 0.0
  %2630 = vmatpush1.xpose.msra.mxu0 0.0
  %2631 = vmatprep.subr.mxu0 0.0
  %2632 = vmatpush1.xpose.msra.mxu0 0.0
  %2633 = vmatprep.subr.mxu0 0.0
  %2634 = vmatpush1.xpose.msra.mxu0 0.0
  %2635 = vmatprep.subr.mxu0 0.0
  %2636 = vmatpush1.xpose.msra.mxu0 0.0
  %2637 = vmatprep.subr.mxu0 0.0
  %2638 = vmatpush1.xpose.msra.mxu0 %v2605
  %2639 = vmatprep.subr.mxu0 0.0
  %2640 = vmatpush2.xpose.msra.mxu0 0.0
  %2641 = vmatprep.subr.mxu0 0.0
  %2642 = vmatpush2.xpose.msra.mxu0 0.0
  %2643 = vmatprep.subr.mxu0 0.0
  %2644 = vmatpush2.xpose.msra.mxu0 0.0
  %2645 = vmatprep.subr.mxu0 0.0
  %2646 = vmatpush2.xpose.msra.mxu0 0.0
  %2647 = vmatprep.subr.mxu0 0.0
  %2648 = vmatpush2.xpose.msra.mxu0 0.0
  %2649 = vmatprep.subr.mxu0 0.0
  %2650 = vmatpush2.xpose.msra.mxu0 0.0
  %2651 = vmatprep.subr.mxu0 0.0
  %2652 = vmatpush2.xpose.msra.mxu0 0.0
  %2653 = vmatprep.subr.mxu0 0.0
  %2654 = vmatpush2.xpose.msra.mxu0 0.0
  %2655 = vmatprep.subr.mxu0 0.0
  %2656 = vmatpush2.xpose.msra.mxu0 0.0
  %2657 = vmatprep.subr.mxu0 0.0
  %2658 = vmatpush2.xpose.msra.mxu0 0.0
  %2659 = vmatprep.subr.mxu0 0.0
  %2660 = vmatpush2.xpose.msra.mxu0 0.0
  %2661 = vmatprep.subr.mxu0 0.0
  %2662 = vmatpush2.xpose.msra.mxu0 0.0
  %2663 = vmatprep.subr.mxu0 0.0
  %2664 = vmatpush2.xpose.msra.mxu0 0.0
  %2665 = vmatprep.subr.mxu0 0.0
  %2666 = vmatpush2.xpose.msra.mxu0 0.0
  %2667 = vmatprep.subr.mxu0 0.0
  %2668 = vmatpush2.xpose.msra.mxu0 0.0
  %2669 = vmatprep.subr.mxu0 0.0
  %2670 = vmatpush2.xpose.msra.mxu0 0.0
  %2671 = vmatprep.mubr.f32.mxu0 0.0
  %2672 = vmatmul.mubr.f32.gmra.mxu0 %v2602
  %v2673 = vpop.f32.mrf.mxu0
  %v2674 = vadd.f32 0.0, %v2673
  %v2675 = vpop.f32.mrf.mxu0
  %2676 = vdwg.mxu0
  %v2678 = vsel %vm523, %v1922, 0
  %v2681 = vsel %vm523, %v2032, 0
  %2683 = vmatprep.subr.mxu0 0.0
  %2684 = vmatpush1.xpose.msra.mxu0 0.0
  %2685 = vmatprep.subr.mxu0 0.0
  %2686 = vmatpush1.xpose.msra.mxu0 0.0
  %2687 = vmatprep.subr.mxu0 0.0
  %2688 = vmatpush1.xpose.msra.mxu0 0.0
  %2689 = vmatprep.subr.mxu0 0.0
  %2690 = vmatpush1.xpose.msra.mxu0 0.0
  %2691 = vmatprep.subr.mxu0 0.0
  %2692 = vmatpush1.xpose.msra.mxu0 0.0
  %2693 = vmatprep.subr.mxu0 0.0
  %2694 = vmatpush1.xpose.msra.mxu0 0.0
  %2695 = vmatprep.subr.mxu0 0.0
  %2696 = vmatpush1.xpose.msra.mxu0 0.0
  %2697 = vmatprep.subr.mxu0 0.0
  %2698 = vmatpush1.xpose.msra.mxu0 0.0
  %2699 = vmatprep.subr.mxu0 0.0
  %2700 = vmatpush1.xpose.msra.mxu0 0.0
  %2701 = vmatprep.subr.mxu0 0.0
  %2702 = vmatpush1.xpose.msra.mxu0 0.0
  %2703 = vmatprep.subr.mxu0 0.0
  %2704 = vmatpush1.xpose.msra.mxu0 0.0
  %2705 = vmatprep.subr.mxu0 0.0
  %2706 = vmatpush1.xpose.msra.mxu0 0.0
  %2707 = vmatprep.subr.mxu0 0.0
  %2708 = vmatpush1.xpose.msra.mxu0 0.0
  %2709 = vmatprep.subr.mxu0 0.0
  %2710 = vmatpush1.xpose.msra.mxu0 0.0
  %2711 = vmatprep.subr.mxu0 0.0
  %2712 = vmatpush1.xpose.msra.mxu0 0.0
  %2713 = vmatprep.subr.mxu0 0.0
  %2714 = vmatpush1.xpose.msra.mxu0 %v2681
  %2715 = vmatprep.subr.mxu0 0.0
  %2716 = vmatpush2.xpose.msra.mxu0 0.0
  %2717 = vmatprep.subr.mxu0 0.0
  %2718 = vmatpush2.xpose.msra.mxu0 0.0
  %2719 = vmatprep.subr.mxu0 0.0
  %2720 = vmatpush2.xpose.msra.mxu0 0.0
  %2721 = vmatprep.subr.mxu0 0.0
  %2722 = vmatpush2.xpose.msra.mxu0 0.0
  %2723 = vmatprep.subr.mxu0 0.0
  %2724 = vmatpush2.xpose.msra.mxu0 0.0
  %2725 = vmatprep.subr.mxu0 0.0
  %2726 = vmatpush2.xpose.msra.mxu0 0.0
  %2727 = vmatprep.subr.mxu0 0.0
  %2728 = vmatpush2.xpose.msra.mxu0 0.0
  %2729 = vmatprep.subr.mxu0 0.0
  %2730 = vmatpush2.xpose.msra.mxu0 0.0
  %2731 = vmatprep.subr.mxu0 0.0
  %2732 = vmatpush2.xpose.msra.mxu0 0.0
  %2733 = vmatprep.subr.mxu0 0.0
  %2734 = vmatpush2.xpose.msra.mxu0 0.0
  %2735 = vmatprep.subr.mxu0 0.0
  %2736 = vmatpush2.xpose.msra.mxu0 0.0
  %2737 = vmatprep.subr.mxu0 0.0
  %2738 = vmatpush2.xpose.msra.mxu0 0.0
  %2739 = vmatprep.subr.mxu0 0.0
  %2740 = vmatpush2.xpose.msra.mxu0 0.0
  %2741 = vmatprep.subr.mxu0 0.0
  %2742 = vmatpush2.xpose.msra.mxu0 0.0
  %2743 = vmatprep.subr.mxu0 0.0
  %2744 = vmatpush2.xpose.msra.mxu0 0.0
  %2745 = vmatprep.subr.mxu0 0.0
  %2746 = vmatpush2.xpose.msra.mxu0 0.0
  %2747 = vmatprep.mubr.f32.mxu0 0.0
  %2748 = vmatmul.mubr.f32.gmra.mxu0 %v2678
  %v2749 = vpop.f32.mrf.mxu0
  %v2750 = vadd.f32 0.0, %v2749
  %v2751 = vpop.f32.mrf.mxu0
  %2752 = vdwg.mxu0
  %v2753 = vmul.f32 %v2218, 0.25
  %v2754 = vmul.f32 %v2294, 0.25
  %v2755 = vmul.f32 %v2370, 0.25
  %v2756 = vmul.f32 %v2446, 0.25
  %v2757 = vmul.f32 %v2522, 0.25
  %v2758 = vmul.f32 %v2598, 0.25
  %v2759 = vmul.f32 %v2674, 0.25
  %v2760 = vmul.f32 %v2750, 0.25
  %v2761 = vsel %vm1140, %v2753, -inf
  %2762 = vmax.xlane.f32.xlu0 %v2761
  %v2763 = vpop.xlane.xlu0 %2762
  %v2764 = vsel %vm1140, %v2754, -inf
  %2765 = vmax.xlane.f32.xlu0 %v2764
  %v2766 = vpop.xlane.xlu0 %2765
  %v2767 = vsel %vm1140, %v2755, -inf
  %2768 = vmax.xlane.f32.xlu0 %v2767
  %v2769 = vpop.xlane.xlu0 %2768
  %v2770 = vsel %vm1140, %v2756, -inf
  %2771 = vmax.xlane.f32.xlu0 %v2770
  %v2772 = vpop.xlane.xlu0 %2771
  %v2773 = vsel %vm1140, %v2757, -inf
  %2774 = vmax.xlane.f32.xlu0 %v2773
  %v2775 = vpop.xlane.xlu0 %2774
  %v2776 = vsel %vm1140, %v2758, -inf
  %2777 = vmax.xlane.f32.xlu0 %v2776
  %v2778 = vpop.xlane.xlu0 %2777
  %v2779 = vsel %vm1140, %v2759, -inf
  %2780 = vmax.xlane.f32.xlu0 %v2779
  %v2781 = vpop.xlane.xlu0 %2780
  %v2782 = vsel %vm1140, %v2760, -inf
  %2783 = vmax.xlane.f32.xlu0 %v2782
  %v2784 = vpop.xlane.xlu0 %2783
  %v2785 = vsub.f32 %v2753, %v2763
  %v2786 = vsub.f32 %v2754, %v2766
  %v2787 = vsub.f32 %v2755, %v2769
  %v2788 = vsub.f32 %v2756, %v2772
  %v2789 = vsub.f32 %v2757, %v2775
  %v2790 = vsub.f32 %v2758, %v2778
  %v2791 = vsub.f32 %v2759, %v2781
  %v2792 = vsub.f32 %v2760, %v2784
  %v2793 = vmul.f32 %v2785, 1.442695
  %v2794 = vpow.pop %v2793
  %v2795 = vmul.f32 %v2786, 1.442695
  %v2796 = vpow.pop %v2795
  %v2797 = vmul.f32 %v2787, 1.442695
  %v2798 = vpow.pop %v2797
  %v2799 = vmul.f32 %v2788, 1.442695
  %v2800 = vpow.pop %v2799
  %v2801 = vmul.f32 %v2789, 1.442695
  %v2802 = vpow.pop %v2801
  %v2803 = vmul.f32 %v2790, 1.442695
  %v2804 = vpow.pop %v2803
  %v2805 = vmul.f32 %v2791, 1.442695
  %v2806 = vpow.pop %v2805
  %v2807 = vmul.f32 %v2792, 1.442695
  %v2808 = vpow.pop %v2807
  %v2809 = vsel %vm1140, %v2794, 0.0
  %2810 = vadd.xlane.f32.xlu0 %v2809
  %v2811 = vpop.xlane.xlu0 %2810
  %v2812 = vsel %vm1140, %v2796, 0.0
  %2813 = vadd.xlane.f32.xlu0 %v2812
  %v2814 = vpop.xlane.xlu0 %2813
  %v2815 = vsel %vm1140, %v2798, 0.0
  %2816 = vadd.xlane.f32.xlu0 %v2815
  %v2817 = vpop.xlane.xlu0 %2816
  %v2818 = vsel %vm1140, %v2800, 0.0
  %2819 = vadd.xlane.f32.xlu0 %v2818
  %v2820 = vpop.xlane.xlu0 %2819
  %v2821 = vsel %vm1140, %v2802, 0.0
  %2822 = vadd.xlane.f32.xlu0 %v2821
  %v2823 = vpop.xlane.xlu0 %2822
  %v2824 = vsel %vm1140, %v2804, 0.0
  %2825 = vadd.xlane.f32.xlu0 %v2824
  %v2826 = vpop.xlane.xlu0 %2825
  %v2827 = vsel %vm1140, %v2806, 0.0
  %2828 = vadd.xlane.f32.xlu0 %v2827
  %v2829 = vpop.xlane.xlu0 %2828
  %v2830 = vsel %vm1140, %v2808, 0.0
  %2831 = vadd.xlane.f32.xlu0 %v2830
  %v2832 = vpop.xlane.xlu0 %2831
  %v2833 = vrcp.pop %v2811
  %v2834 = vmul.f32 %v2794, %v2833
  %v2835 = vrcp.pop %v2814
  %v2836 = vmul.f32 %v2796, %v2835
  %v2837 = vrcp.pop %v2817
  %v2838 = vmul.f32 %v2798, %v2837
  %v2839 = vrcp.pop %v2820
  %v2840 = vmul.f32 %v2800, %v2839
  %v2841 = vrcp.pop %v2823
  %v2842 = vmul.f32 %v2802, %v2841
  %v2843 = vrcp.pop %v2826
  %v2844 = vmul.f32 %v2804, %v2843
  %v2845 = vrcp.pop %v2829
  %v2846 = vmul.f32 %v2806, %v2845
  %v2847 = vrcp.pop %v2832
  %v2848 = vmul.f32 %v2808, %v2847
  %v2850 = vsel %vm1140, %v2834, 0
  %2852 = vmatprep.subr.mxu0 0.0
  %2853 = vmatpush1.msra.mxu0 0.0
  %2854 = vmatprep.subr.mxu0 0.0
  %2855 = vmatpush1.msra.mxu0 0.0
  %2856 = vmatprep.subr.mxu0 0.0
  %2857 = vmatpush1.msra.mxu0 0.0
  %2858 = vmatprep.subr.mxu0 0.0
  %2859 = vmatpush1.msra.mxu0 0.0
  %2860 = vmatprep.subr.mxu0 0.0
  %2861 = vmatpush1.msra.mxu0 0.0
  %2862 = vmatprep.subr.mxu0 0.0
  %2863 = vmatpush1.msra.mxu0 0.0
  %2864 = vmatprep.subr.mxu0 0.0
  %2865 = vmatpush1.msra.mxu0 0.0
  %2866 = vmatprep.subr.mxu0 0.0
  %2867 = vmatpush1.msra.mxu0 0.0
  %2868 = vmatprep.subr.mxu0 0.0
  %2869 = vmatpush1.msra.mxu0 0.0
  %2870 = vmatprep.subr.mxu0 0.0
  %2871 = vmatpush1.msra.mxu0 0.0
  %2872 = vmatprep.subr.mxu0 0.0
  %2873 = vmatpush1.msra.mxu0 0.0
  %2874 = vmatprep.subr.mxu0 0.0
  %2875 = vmatpush1.msra.mxu0 0.0
  %2876 = vmatprep.subr.mxu0 0.0
  %2877 = vmatpush1.msra.mxu0 0.0
  %2878 = vmatprep.subr.mxu0 0.0
  %2879 = vmatpush1.msra.mxu0 0.0
  %2880 = vmatprep.subr.mxu0 0.0
  %2881 = vmatpush1.msra.mxu0 0.0
  %2882 = vmatprep.subr.mxu0 0.0
  %2883 = vmatpush1.msra.mxu0 %v2107
  %2884 = vmatprep.subr.mxu0 0.0
  %2885 = vmatpush2.msra.mxu0 0.0
  %2886 = vmatprep.subr.mxu0 0.0
  %2887 = vmatpush2.msra.mxu0 0.0
  %2888 = vmatprep.subr.mxu0 0.0
  %2889 = vmatpush2.msra.mxu0 0.0
  %2890 = vmatprep.subr.mxu0 0.0
  %2891 = vmatpush2.msra.mxu0 0.0
  %2892 = vmatprep.subr.mxu0 0.0
  %2893 = vmatpush2.msra.mxu0 0.0
  %2894 = vmatprep.subr.mxu0 0.0
  %2895 = vmatpush2.msra.mxu0 0.0
  %2896 = vmatprep.subr.mxu0 0.0
  %2897 = vmatpush2.msra.mxu0 0.0
  %2898 = vmatprep.subr.mxu0 0.0
  %2899 = vmatpush2.msra.mxu0 0.0
  %2900 = vmatprep.subr.mxu0 0.0
  %2901 = vmatpush2.msra.mxu0 0.0
  %2902 = vmatprep.subr.mxu0 0.0
  %2903 = vmatpush2.msra.mxu0 0.0
  %2904 = vmatprep.subr.mxu0 0.0
  %2905 = vmatpush2.msra.mxu0 0.0
  %2906 = vmatprep.subr.mxu0 0.0
  %2907 = vmatpush2.msra.mxu0 0.0
  %2908 = vmatprep.subr.mxu0 0.0
  %2909 = vmatpush2.msra.mxu0 0.0
  %2910 = vmatprep.subr.mxu0 0.0
  %2911 = vmatpush2.msra.mxu0 0.0
  %2912 = vmatprep.subr.mxu0 0.0
  %2913 = vmatpush2.msra.mxu0 0.0
  %2914 = vmatprep.subr.mxu0 0.0
  %2915 = vmatpush2.msra.mxu0 0.0
  %2916 = vmatprep.mubr.f32.mxu0 0.0
  %2917 = vmatmul.mubr.f32.gmra.mxu0 %v2850
  %v2918 = vpop.f32.mrf.mxu0
  %v2919 = vadd.f32 0.0, %v2918
  %v2920 = vpop.f32.mrf.mxu0
  %2921 = vdwg.mxu0
  %v2923 = vsel %vm1140, %v2836, 0
  %2925 = vmatprep.subr.mxu0 0.0
  %2926 = vmatpush1.msra.mxu0 0.0
  %2927 = vmatprep.subr.mxu0 0.0
  %2928 = vmatpush1.msra.mxu0 0.0
  %2929 = vmatprep.subr.mxu0 0.0
  %2930 = vmatpush1.msra.mxu0 0.0
  %2931 = vmatprep.subr.mxu0 0.0
  %2932 = vmatpush1.msra.mxu0 0.0
  %2933 = vmatprep.subr.mxu0 0.0
  %2934 = vmatpush1.msra.mxu0 0.0
  %2935 = vmatprep.subr.mxu0 0.0
  %2936 = vmatpush1.msra.mxu0 0.0
  %2937 = vmatprep.subr.mxu0 0.0
  %2938 = vmatpush1.msra.mxu0 0.0
  %2939 = vmatprep.subr.mxu0 0.0
  %2940 = vmatpush1.msra.mxu0 0.0
  %2941 = vmatprep.subr.mxu0 0.0
  %2942 = vmatpush1.msra.mxu0 0.0
  %2943 = vmatprep.subr.mxu0 0.0
  %2944 = vmatpush1.msra.mxu0 0.0
  %2945 = vmatprep.subr.mxu0 0.0
  %2946 = vmatpush1.msra.mxu0 0.0
  %2947 = vmatprep.subr.mxu0 0.0
  %2948 = vmatpush1.msra.mxu0 0.0
  %2949 = vmatprep.subr.mxu0 0.0
  %2950 = vmatpush1.msra.mxu0 0.0
  %2951 = vmatprep.subr.mxu0 0.0
  %2952 = vmatpush1.msra.mxu0 0.0
  %2953 = vmatprep.subr.mxu0 0.0
  %2954 = vmatpush1.msra.mxu0 0.0
  %2955 = vmatprep.subr.mxu0 0.0
  %2956 = vmatpush1.msra.mxu0 %v2112
  %2957 = vmatprep.subr.mxu0 0.0
  %2958 = vmatpush2.msra.mxu0 0.0
  %2959 = vmatprep.subr.mxu0 0.0
  %2960 = vmatpush2.msra.mxu0 0.0
  %2961 = vmatprep.subr.mxu0 0.0
  %2962 = vmatpush2.msra.mxu0 0.0
  %2963 = vmatprep.subr.mxu0 0.0
  %2964 = vmatpush2.msra.mxu0 0.0
  %2965 = vmatprep.subr.mxu0 0.0
  %2966 = vmatpush2.msra.mxu0 0.0
  %2967 = vmatprep.subr.mxu0 0.0
  %2968 = vmatpush2.msra.mxu0 0.0
  %2969 = vmatprep.subr.mxu0 0.0
  %2970 = vmatpush2.msra.mxu0 0.0
  %2971 = vmatprep.subr.mxu0 0.0
  %2972 = vmatpush2.msra.mxu0 0.0
  %2973 = vmatprep.subr.mxu0 0.0
  %2974 = vmatpush2.msra.mxu0 0.0
  %2975 = vmatprep.subr.mxu0 0.0
  %2976 = vmatpush2.msra.mxu0 0.0
  %2977 = vmatprep.subr.mxu0 0.0
  %2978 = vmatpush2.msra.mxu0 0.0
  %2979 = vmatprep.subr.mxu0 0.0
  %2980 = vmatpush2.msra.mxu0 0.0
  %2981 = vmatprep.subr.mxu0 0.0
  %2982 = vmatpush2.msra.mxu0 0.0
  %2983 = vmatprep.subr.mxu0 0.0
  %2984 = vmatpush2.msra.mxu0 0.0
  %2985 = vmatprep.subr.mxu0 0.0
  %2986 = vmatpush2.msra.mxu0 0.0
  %2987 = vmatprep.subr.mxu0 0.0
  %2988 = vmatpush2.msra.mxu0 0.0
  %2989 = vmatprep.mubr.f32.mxu0 0.0
  %2990 = vmatmul.mubr.f32.gmra.mxu0 %v2923
  %v2991 = vpop.f32.mrf.mxu0
  %v2992 = vadd.f32 0.0, %v2991
  %v2993 = vpop.f32.mrf.mxu0
  %2994 = vdwg.mxu0
  %v2996 = vsel %vm1140, %v2838, 0
  %2998 = vmatprep.subr.mxu0 0.0
  %2999 = vmatpush1.msra.mxu0 0.0
  %3000 = vmatprep.subr.mxu0 0.0
  %3001 = vmatpush1.msra.mxu0 0.0
  %3002 = vmatprep.subr.mxu0 0.0
  %3003 = vmatpush1.msra.mxu0 0.0
  %3004 = vmatprep.subr.mxu0 0.0
  %3005 = vmatpush1.msra.mxu0 0.0
  %3006 = vmatprep.subr.mxu0 0.0
  %3007 = vmatpush1.msra.mxu0 0.0
  %3008 = vmatprep.subr.mxu0 0.0
  %3009 = vmatpush1.msra.mxu0 0.0
  %3010 = vmatprep.subr.mxu0 0.0
  %3011 = vmatpush1.msra.mxu0 0.0
  %3012 = vmatprep.subr.mxu0 0.0
  %3013 = vmatpush1.msra.mxu0 0.0
  %3014 = vmatprep.subr.mxu0 0.0
  %3015 = vmatpush1.msra.mxu0 0.0
  %3016 = vmatprep.subr.mxu0 0.0
  %3017 = vmatpush1.msra.mxu0 0.0
  %3018 = vmatprep.subr.mxu0 0.0
  %3019 = vmatpush1.msra.mxu0 0.0
  %3020 = vmatprep.subr.mxu0 0.0
  %3021 = vmatpush1.msra.mxu0 0.0
  %3022 = vmatprep.subr.mxu0 0.0
  %3023 = vmatpush1.msra.mxu0 0.0
  %3024 = vmatprep.subr.mxu0 0.0
  %3025 = vmatpush1.msra.mxu0 0.0
  %3026 = vmatprep.subr.mxu0 0.0
  %3027 = vmatpush1.msra.mxu0 0.0
  %3028 = vmatprep.subr.mxu0 0.0
  %3029 = vmatpush1.msra.mxu0 %v2117
  %3030 = vmatprep.subr.mxu0 0.0
  %3031 = vmatpush2.msra.mxu0 0.0
  %3032 = vmatprep.subr.mxu0 0.0
  %3033 = vmatpush2.msra.mxu0 0.0
  %3034 = vmatprep.subr.mxu0 0.0
  %3035 = vmatpush2.msra.mxu0 0.0
  %3036 = vmatprep.subr.mxu0 0.0
  %3037 = vmatpush2.msra.mxu0 0.0
  %3038 = vmatprep.subr.mxu0 0.0
  %3039 = vmatpush2.msra.mxu0 0.0
  %3040 = vmatprep.subr.mxu0 0.0
  %3041 = vmatpush2.msra.mxu0 0.0
  %3042 = vmatprep.subr.mxu0 0.0
  %3043 = vmatpush2.msra.mxu0 0.0
  %3044 = vmatprep.subr.mxu0 0.0
  %3045 = vmatpush2.msra.mxu0 0.0
  %3046 = vmatprep.subr.mxu0 0.0
  %3047 = vmatpush2.msra.mxu0 0.0
  %3048 = vmatprep.subr.mxu0 0.0
  %3049 = vmatpush2.msra.mxu0 0.0
  %3050 = vmatprep.subr.mxu0 0.0
  %3051 = vmatpush2.msra.mxu0 0.0
  %3052 = vmatprep.subr.mxu0 0.0
  %3053 = vmatpush2.msra.mxu0 0.0
  %3054 = vmatprep.subr.mxu0 0.0
  %3055 = vmatpush2.msra.mxu0 0.0
  %3056 = vmatprep.subr.mxu0 0.0
  %3057 = vmatpush2.msra.mxu0 0.0
  %3058 = vmatprep.subr.mxu0 0.0
  %3059 = vmatpush2.msra.mxu0 0.0
  %3060 = vmatprep.subr.mxu0 0.0
  %3061 = vmatpush2.msra.mxu0 0.0
  %3062 = vmatprep.mubr.f32.mxu0 0.0
  %3063 = vmatmul.mubr.f32.gmra.mxu0 %v2996
  %v3064 = vpop.f32.mrf.mxu0
  %v3065 = vadd.f32 0.0, %v3064
  %v3066 = vpop.f32.mrf.mxu0
  %3067 = vdwg.mxu0
  %v3069 = vsel %vm1140, %v2840, 0
  %3071 = vmatprep.subr.mxu0 0.0
  %3072 = vmatpush1.msra.mxu0 0.0
  %3073 = vmatprep.subr.mxu0 0.0
  %3074 = vmatpush1.msra.mxu0 0.0
  %3075 = vmatprep.subr.mxu0 0.0
  %3076 = vmatpush1.msra.mxu0 0.0
  %3077 = vmatprep.subr.mxu0 0.0
  %3078 = vmatpush1.msra.mxu0 0.0
  %3079 = vmatprep.subr.mxu0 0.0
  %3080 = vmatpush1.msra.mxu0 0.0
  %3081 = vmatprep.subr.mxu0 0.0
  %3082 = vmatpush1.msra.mxu0 0.0
  %3083 = vmatprep.subr.mxu0 0.0
  %3084 = vmatpush1.msra.mxu0 0.0
  %3085 = vmatprep.subr.mxu0 0.0
  %3086 = vmatpush1.msra.mxu0 0.0
  %3087 = vmatprep.subr.mxu0 0.0
  %3088 = vmatpush1.msra.mxu0 0.0
  %3089 = vmatprep.subr.mxu0 0.0
  %3090 = vmatpush1.msra.mxu0 0.0
  %3091 = vmatprep.subr.mxu0 0.0
  %3092 = vmatpush1.msra.mxu0 0.0
  %3093 = vmatprep.subr.mxu0 0.0
  %3094 = vmatpush1.msra.mxu0 0.0
  %3095 = vmatprep.subr.mxu0 0.0
  %3096 = vmatpush1.msra.mxu0 0.0
  %3097 = vmatprep.subr.mxu0 0.0
  %3098 = vmatpush1.msra.mxu0 0.0
  %3099 = vmatprep.subr.mxu0 0.0
  %3100 = vmatpush1.msra.mxu0 0.0
  %3101 = vmatprep.subr.mxu0 0.0
  %3102 = vmatpush1.msra.mxu0 %v2122
  %3103 = vmatprep.subr.mxu0 0.0
  %3104 = vmatpush2.msra.mxu0 0.0
  %3105 = vmatprep.subr.mxu0 0.0
  %3106 = vmatpush2.msra.mxu0 0.0
  %3107 = vmatprep.subr.mxu0 0.0
  %3108 = vmatpush2.msra.mxu0 0.0
  %3109 = vmatprep.subr.mxu0 0.0
  %3110 = vmatpush2.msra.mxu0 0.0
  %3111 = vmatprep.subr.mxu0 0.0
  %3112 = vmatpush2.msra.mxu0 0.0
  %3113 = vmatprep.subr.mxu0 0.0
  %3114 = vmatpush2.msra.mxu0 0.0
  %3115 = vmatprep.subr.mxu0 0.0
  %3116 = vmatpush2.msra.mxu0 0.0
  %3117 = vmatprep.subr.mxu0 0.0
  %3118 = vmatpush2.msra.mxu0 0.0
  %3119 = vmatprep.subr.mxu0 0.0
  %3120 = vmatpush2.msra.mxu0 0.0
  %3121 = vmatprep.subr.mxu0 0.0
  %3122 = vmatpush2.msra.mxu0 0.0
  %3123 = vmatprep.subr.mxu0 0.0
  %3124 = vmatpush2.msra.mxu0 0.0
  %3125 = vmatprep.subr.mxu0 0.0
  %3126 = vmatpush2.msra.mxu0 0.0
  %3127 = vmatprep.subr.mxu0 0.0
  %3128 = vmatpush2.msra.mxu0 0.0
  %3129 = vmatprep.subr.mxu0 0.0
  %3130 = vmatpush2.msra.mxu0 0.0
  %3131 = vmatprep.subr.mxu0 0.0
  %3132 = vmatpush2.msra.mxu0 0.0
  %3133 = vmatprep.subr.mxu0 0.0
  %3134 = vmatpush2.msra.mxu0 0.0
  %3135 = vmatprep.mubr.f32.mxu0 0.0
  %3136 = vmatmul.mubr.f32.gmra.mxu0 %v3069
  %v3137 = vpop.f32.mrf.mxu0
  %v3138 = vadd.f32 0.0, %v3137
  %v3139 = vpop.f32.mrf.mxu0
  %3140 = vdwg.mxu0
  %v3142 = vsel %vm1140, %v2842, 0
  %3144 = vmatprep.subr.mxu0 0.0
  %3145 = vmatpush1.msra.mxu0 0.0
  %3146 = vmatprep.subr.mxu0 0.0
  %3147 = vmatpush1.msra.mxu0 0.0
  %3148 = vmatprep.subr.mxu0 0.0
  %3149 = vmatpush1.msra.mxu0 0.0
  %3150 = vmatprep.subr.mxu0 0.0
  %3151 = vmatpush1.msra.mxu0 0.0
  %3152 = vmatprep.subr.mxu0 0.0
  %3153 = vmatpush1.msra.mxu0 0.0
  %3154 = vmatprep.subr.mxu0 0.0
  %3155 = vmatpush1.msra.mxu0 0.0
  %3156 = vmatprep.subr.mxu0 0.0
  %3157 = vmatpush1.msra.mxu0 0.0
  %3158 = vmatprep.subr.mxu0 0.0
  %3159 = vmatpush1.msra.mxu0 0.0
  %3160 = vmatprep.subr.mxu0 0.0
  %3161 = vmatpush1.msra.mxu0 0.0
  %3162 = vmatprep.subr.mxu0 0.0
  %3163 = vmatpush1.msra.mxu0 0.0
  %3164 = vmatprep.subr.mxu0 0.0
  %3165 = vmatpush1.msra.mxu0 0.0
  %3166 = vmatprep.subr.mxu0 0.0
  %3167 = vmatpush1.msra.mxu0 0.0
  %3168 = vmatprep.subr.mxu0 0.0
  %3169 = vmatpush1.msra.mxu0 0.0
  %3170 = vmatprep.subr.mxu0 0.0
  %3171 = vmatpush1.msra.mxu0 0.0
  %3172 = vmatprep.subr.mxu0 0.0
  %3173 = vmatpush1.msra.mxu0 0.0
  %3174 = vmatprep.subr.mxu0 0.0
  %3175 = vmatpush1.msra.mxu0 %v2127
  %3176 = vmatprep.subr.mxu0 0.0
  %3177 = vmatpush2.msra.mxu0 0.0
  %3178 = vmatprep.subr.mxu0 0.0
  %3179 = vmatpush2.msra.mxu0 0.0
  %3180 = vmatprep.subr.mxu0 0.0
  %3181 = vmatpush2.msra.mxu0 0.0
  %3182 = vmatprep.subr.mxu0 0.0
  %3183 = vmatpush2.msra.mxu0 0.0
  %3184 = vmatprep.subr.mxu0 0.0
  %3185 = vmatpush2.msra.mxu0 0.0
  %3186 = vmatprep.subr.mxu0 0.0
  %3187 = vmatpush2.msra.mxu0 0.0
  %3188 = vmatprep.subr.mxu0 0.0
  %3189 = vmatpush2.msra.mxu0 0.0
  %3190 = vmatprep.subr.mxu0 0.0
  %3191 = vmatpush2.msra.mxu0 0.0
  %3192 = vmatprep.subr.mxu0 0.0
  %3193 = vmatpush2.msra.mxu0 0.0
  %3194 = vmatprep.subr.mxu0 0.0
  %3195 = vmatpush2.msra.mxu0 0.0
  %3196 = vmatprep.subr.mxu0 0.0
  %3197 = vmatpush2.msra.mxu0 0.0
  %3198 = vmatprep.subr.mxu0 0.0
  %3199 = vmatpush2.msra.mxu0 0.0
  %3200 = vmatprep.subr.mxu0 0.0
  %3201 = vmatpush2.msra.mxu0 0.0
  %3202 = vmatprep.subr.mxu0 0.0
  %3203 = vmatpush2.msra.mxu0 0.0
  %3204 = vmatprep.subr.mxu0 0.0
  %3205 = vmatpush2.msra.mxu0 0.0
  %3206 = vmatprep.subr.mxu0 0.0
  %3207 = vmatpush2.msra.mxu0 0.0
  %3208 = vmatprep.mubr.f32.mxu0 0.0
  %3209 = vmatmul.mubr.f32.gmra.mxu0 %v3142
  %v3210 = vpop.f32.mrf.mxu0
  %v3211 = vadd.f32 0.0, %v3210
  %v3212 = vpop.f32.mrf.mxu0
  %3213 = vdwg.mxu0
  %v3215 = vsel %vm1140, %v2844, 0
  %3217 = vmatprep.subr.mxu0 0.0
  %3218 = vmatpush1.msra.mxu0 0.0
  %3219 = vmatprep.subr.mxu0 0.0
  %3220 = vmatpush1.msra.mxu0 0.0
  %3221 = vmatprep.subr.mxu0 0.0
  %3222 = vmatpush1.msra.mxu0 0.0
  %3223 = vmatprep.subr.mxu0 0.0
  %3224 = vmatpush1.msra.mxu0 0.0
  %3225 = vmatprep.subr.mxu0 0.0
  %3226 = vmatpush1.msra.mxu0 0.0
  %3227 = vmatprep.subr.mxu0 0.0
  %3228 = vmatpush1.msra.mxu0 0.0
  %3229 = vmatprep.subr.mxu0 0.0
  %3230 = vmatpush1.msra.mxu0 0.0
  %3231 = vmatprep.subr.mxu0 0.0
  %3232 = vmatpush1.msra.mxu0 0.0
  %3233 = vmatprep.subr.mxu0 0.0
  %3234 = vmatpush1.msra.mxu0 0.0
  %3235 = vmatprep.subr.mxu0 0.0
  %3236 = vmatpush1.msra.mxu0 0.0
  %3237 = vmatprep.subr.mxu0 0.0
  %3238 = vmatpush1.msra.mxu0 0.0
  %3239 = vmatprep.subr.mxu0 0.0
  %3240 = vmatpush1.msra.mxu0 0.0
  %3241 = vmatprep.subr.mxu0 0.0
  %3242 = vmatpush1.msra.mxu0 0.0
  %3243 = vmatprep.subr.mxu0 0.0
  %3244 = vmatpush1.msra.mxu0 0.0
  %3245 = vmatprep.subr.mxu0 0.0
  %3246 = vmatpush1.msra.mxu0 0.0
  %3247 = vmatprep.subr.mxu0 0.0
  %3248 = vmatpush1.msra.mxu0 %v2132
  %3249 = vmatprep.subr.mxu0 0.0
  %3250 = vmatpush2.msra.mxu0 0.0
  %3251 = vmatprep.subr.mxu0 0.0
  %3252 = vmatpush2.msra.mxu0 0.0
  %3253 = vmatprep.subr.mxu0 0.0
  %3254 = vmatpush2.msra.mxu0 0.0
  %3255 = vmatprep.subr.mxu0 0.0
  %3256 = vmatpush2.msra.mxu0 0.0
  %3257 = vmatprep.subr.mxu0 0.0
  %3258 = vmatpush2.msra.mxu0 0.0
  %3259 = vmatprep.subr.mxu0 0.0
  %3260 = vmatpush2.msra.mxu0 0.0
  %3261 = vmatprep.subr.mxu0 0.0
  %3262 = vmatpush2.msra.mxu0 0.0
  %3263 = vmatprep.subr.mxu0 0.0
  %3264 = vmatpush2.msra.mxu0 0.0
  %3265 = vmatprep.subr.mxu0 0.0
  %3266 = vmatpush2.msra.mxu0 0.0
  %3267 = vmatprep.subr.mxu0 0.0
  %3268 = vmatpush2.msra.mxu0 0.0
  %3269 = vmatprep.subr.mxu0 0.0
  %3270 = vmatpush2.msra.mxu0 0.0
  %3271 = vmatprep.subr.mxu0 0.0
  %3272 = vmatpush2.msra.mxu0 0.0
  %3273 = vmatprep.subr.mxu0 0.0
  %3274 = vmatpush2.msra.mxu0 0.0
  %3275 = vmatprep.subr.mxu0 0.0
  %3276 = vmatpush2.msra.mxu0 0.0
  %3277 = vmatprep.subr.mxu0 0.0
  %3278 = vmatpush2.msra.mxu0 0.0
  %3279 = vmatprep.subr.mxu0 0.0
  %3280 = vmatpush2.msra.mxu0 0.0
  %3281 = vmatprep.mubr.f32.mxu0 0.0
  %3282 = vmatmul.mubr.f32.gmra.mxu0 %v3215
  %v3283 = vpop.f32.mrf.mxu0
  %v3284 = vadd.f32 0.0, %v3283
  %v3285 = vpop.f32.mrf.mxu0
  %3286 = vdwg.mxu0
  %v3288 = vsel %vm1140, %v2846, 0
  %3290 = vmatprep.subr.mxu0 0.0
  %3291 = vmatpush1.msra.mxu0 0.0
  %3292 = vmatprep.subr.mxu0 0.0
  %3293 = vmatpush1.msra.mxu0 0.0
  %3294 = vmatprep.subr.mxu0 0.0
  %3295 = vmatpush1.msra.mxu0 0.0
  %3296 = vmatprep.subr.mxu0 0.0
  %3297 = vmatpush1.msra.mxu0 0.0
  %3298 = vmatprep.subr.mxu0 0.0
  %3299 = vmatpush1.msra.mxu0 0.0
  %3300 = vmatprep.subr.mxu0 0.0
  %3301 = vmatpush1.msra.mxu0 0.0
  %3302 = vmatprep.subr.mxu0 0.0
  %3303 = vmatpush1.msra.mxu0 0.0
  %3304 = vmatprep.subr.mxu0 0.0
  %3305 = vmatpush1.msra.mxu0 0.0
  %3306 = vmatprep.subr.mxu0 0.0
  %3307 = vmatpush1.msra.mxu0 0.0
  %3308 = vmatprep.subr.mxu0 0.0
  %3309 = vmatpush1.msra.mxu0 0.0
  %3310 = vmatprep.subr.mxu0 0.0
  %3311 = vmatpush1.msra.mxu0 0.0
  %3312 = vmatprep.subr.mxu0 0.0
  %3313 = vmatpush1.msra.mxu0 0.0
  %3314 = vmatprep.subr.mxu0 0.0
  %3315 = vmatpush1.msra.mxu0 0.0
  %3316 = vmatprep.subr.mxu0 0.0
  %3317 = vmatpush1.msra.mxu0 0.0
  %3318 = vmatprep.subr.mxu0 0.0
  %3319 = vmatpush1.msra.mxu0 0.0
  %3320 = vmatprep.subr.mxu0 0.0
  %3321 = vmatpush1.msra.mxu0 %v2137
  %3322 = vmatprep.subr.mxu0 0.0
  %3323 = vmatpush2.msra.mxu0 0.0
  %3324 = vmatprep.subr.mxu0 0.0
  %3325 = vmatpush2.msra.mxu0 0.0
  %3326 = vmatprep.subr.mxu0 0.0
  %3327 = vmatpush2.msra.mxu0 0.0
  %3328 = vmatprep.subr.mxu0 0.0
  %3329 = vmatpush2.msra.mxu0 0.0
  %3330 = vmatprep.subr.mxu0 0.0
  %3331 = vmatpush2.msra.mxu0 0.0
  %3332 = vmatprep.subr.mxu0 0.0
  %3333 = vmatpush2.msra.mxu0 0.0
  %3334 = vmatprep.subr.mxu0 0.0
  %3335 = vmatpush2.msra.mxu0 0.0
  %3336 = vmatprep.subr.mxu0 0.0
  %3337 = vmatpush2.msra.mxu0 0.0
  %3338 = vmatprep.subr.mxu0 0.0
  %3339 = vmatpush2.msra.mxu0 0.0
  %3340 = vmatprep.subr.mxu0 0.0
  %3341 = vmatpush2.msra.mxu0 0.0
  %3342 = vmatprep.subr.mxu0 0.0
  %3343 = vmatpush2.msra.mxu0 0.0
  %3344 = vmatprep.subr.mxu0 0.0
  %3345 = vmatpush2.msra.mxu0 0.0
  %3346 = vmatprep.subr.mxu0 0.0
  %3347 = vmatpush2.msra.mxu0 0.0
  %3348 = vmatprep.subr.mxu0 0.0
  %3349 = vmatpush2.msra.mxu0 0.0
  %3350 = vmatprep.subr.mxu0 0.0
  %3351 = vmatpush2.msra.mxu0 0.0
  %3352 = vmatprep.subr.mxu0 0.0
  %3353 = vmatpush2.msra.mxu0 0.0
  %3354 = vmatprep.mubr.f32.mxu0 0.0
  %3355 = vmatmul.mubr.f32.gmra.mxu0 %v3288
  %v3356 = vpop.f32.mrf.mxu0
  %v3357 = vadd.f32 0.0, %v3356
  %v3358 = vpop.f32.mrf.mxu0
  %3359 = vdwg.mxu0
  %v3361 = vsel %vm1140, %v2848, 0
  %3363 = vmatprep.subr.mxu0 0.0
  %3364 = vmatpush1.msra.mxu0 0.0
  %3365 = vmatprep.subr.mxu0 0.0
  %3366 = vmatpush1.msra.mxu0 0.0
  %3367 = vmatprep.subr.mxu0 0.0
  %3368 = vmatpush1.msra.mxu0 0.0
  %3369 = vmatprep.subr.mxu0 0.0
  %3370 = vmatpush1.msra.mxu0 0.0
  %3371 = vmatprep.subr.mxu0 0.0
  %3372 = vmatpush1.msra.mxu0 0.0
  %3373 = vmatprep.subr.mxu0 0.0
  %3374 = vmatpush1.msra.mxu0 0.0
  %3375 = vmatprep.subr.mxu0 0.0
  %3376 = vmatpush1.msra.mxu0 0.0
  %3377 = vmatprep.subr.mxu0 0.0
  %3378 = vmatpush1.msra.mxu0 0.0
  %3379 = vmatprep.subr.mxu0 0.0
  %3380 = vmatpush1.msra.mxu0 0.0
  %3381 = vmatprep.subr.mxu0 0.0
  %3382 = vmatpush1.msra.mxu0 0.0
  %3383 = vmatprep.subr.mxu0 0.0
  %3384 = vmatpush1.msra.mxu0 0.0
  %3385 = vmatprep.subr.mxu0 0.0
  %3386 = vmatpush1.msra.mxu0 0.0
  %3387 = vmatprep.subr.mxu0 0.0
  %3388 = vmatpush1.msra.mxu0 0.0
  %3389 = vmatprep.subr.mxu0 0.0
  %3390 = vmatpush1.msra.mxu0 0.0
  %3391 = vmatprep.subr.mxu0 0.0
  %3392 = vmatpush1.msra.mxu0 0.0
  %3393 = vmatprep.subr.mxu0 0.0
  %3394 = vmatpush1.msra.mxu0 %v2142
  %3395 = vmatprep.subr.mxu0 0.0
  %3396 = vmatpush2.msra.mxu0 0.0
  %3397 = vmatprep.subr.mxu0 0.0
  %3398 = vmatpush2.msra.mxu0 0.0
  %3399 = vmatprep.subr.mxu0 0.0
  %3400 = vmatpush2.msra.mxu0 0.0
  %3401 = vmatprep.subr.mxu0 0.0
  %3402 = vmatpush2.msra.mxu0 0.0
  %3403 = vmatprep.subr.mxu0 0.0
  %3404 = vmatpush2.msra.mxu0 0.0
  %3405 = vmatprep.subr.mxu0 0.0
  %3406 = vmatpush2.msra.mxu0 0.0
  %3407 = vmatprep.subr.mxu0 0.0
  %3408 = vmatpush2.msra.mxu0 0.0
  %3409 = vmatprep.subr.mxu0 0.0
  %3410 = vmatpush2.msra.mxu0 0.0
  %3411 = vmatprep.subr.mxu0 0.0
  %3412 = vmatpush2.msra.mxu0 0.0
  %3413 = vmatprep.subr.mxu0 0.0
  %3414 = vmatpush2.msra.mxu0 0.0
  %3415 = vmatprep.subr.mxu0 0.0
  %3416 = vmatpush2.msra.mxu0 0.0
  %3417 = vmatprep.subr.mxu0 0.0
  %3418 = vmatpush2.msra.mxu0 0.0
  %3419 = vmatprep.subr.mxu0 0.0
  %3420 = vmatpush2.msra.mxu0 0.0
  %3421 = vmatprep.subr.mxu0 0.0
  %3422 = vmatpush2.msra.mxu0 0.0
  %3423 = vmatprep.subr.mxu0 0.0
  %3424 = vmatpush2.msra.mxu0 0.0
  %3425 = vmatprep.subr.mxu0 0.0
  %3426 = vmatpush2.msra.mxu0 0.0
  %3427 = vmatprep.mubr.f32.mxu0 0.0
  %3428 = vmatmul.mubr.f32.gmra.mxu0 %v3361
  %v3429 = vpop.f32.mrf.mxu0
  %v3430 = vadd.f32 0.0, %v3429
  %v3431 = vpop.f32.mrf.mxu0
  %3432 = vdwg.mxu0
  %s3433 = scalar_lea.vmem %s4, 16
  %v3434 = vld [vmem:[%s3433] sm:$0xff]
  %v3435 = vld [vmem:[%s3433 + $0x8] sm:$0xff]
  %v3437 = vsel %vm523, %v2919, 0
  %v3440 = vsel %vm523, %v2992, 0
  %v3443 = vsel %vm523, %v3065, 0
  %v3446 = vsel %vm523, %v3138, 0
  %v3449 = vsel %vm523, %v3211, 0
  %v3452 = vsel %vm523, %v3284, 0
  %v3455 = vsel %vm523, %v3357, 0
  %v3458 = vsel %vm523, %v3430, 0
  %3460 = vmatprep.subr.mxu0 0.0
  %3461 = vmatpush1.msra.mxu0 0.0
  %3462 = vmatprep.subr.mxu0 0.0
  %3463 = vmatpush1.msra.mxu0 0.0
  %3464 = vmatprep.subr.mxu0 0.0
  %3465 = vmatpush1.msra.mxu0 0.0
  %3466 = vmatprep.subr.mxu0 0.0
  %3467 = vmatpush1.msra.mxu0 0.0
  %3468 = vmatprep.subr.mxu0 0.0
  %3469 = vmatpush1.msra.mxu0 0.0
  %3470 = vmatprep.subr.mxu0 0.0
  %3471 = vmatpush1.msra.mxu0 0.0
  %3472 = vmatprep.subr.mxu0 0.0
  %3473 = vmatpush1.msra.mxu0 0.0
  %3474 = vmatprep.subr.mxu0 0.0
  %3475 = vmatpush1.msra.mxu0 0.0
  %3476 = vmatprep.subr.mxu0 0.0
  %3477 = vmatpush1.msra.mxu0 0.0
  %3478 = vmatprep.subr.mxu0 0.0
  %3479 = vmatpush1.msra.mxu0 0.0
  %3480 = vmatprep.subr.mxu0 0.0
  %3481 = vmatpush1.msra.mxu0 0.0
  %3482 = vmatprep.subr.mxu0 0.0
  %3483 = vmatpush1.msra.mxu0 0.0
  %3484 = vmatprep.subr.mxu0 0.0
  %3485 = vmatpush1.msra.mxu0 0.0
  %3486 = vmatprep.subr.mxu0 0.0
  %3487 = vmatpush1.msra.mxu0 0.0
  %3488 = vmatprep.subr.mxu0 0.0
  %3489 = vmatpush1.msra.mxu0 %v3435
  %3490 = vmatprep.subr.mxu0 0.0
  %3491 = vmatpush1.msra.mxu0 %v3434
  %3492 = vmatprep.subr.mxu0 0.0
  %3493 = vmatpush2.msra.mxu0 0.0
  %3494 = vmatprep.subr.mxu0 0.0
  %3495 = vmatpush2.msra.mxu0 0.0
  %3496 = vmatprep.subr.mxu0 0.0
  %3497 = vmatpush2.msra.mxu0 0.0
  %3498 = vmatprep.subr.mxu0 0.0
  %3499 = vmatpush2.msra.mxu0 0.0
  %3500 = vmatprep.subr.mxu0 0.0
  %3501 = vmatpush2.msra.mxu0 0.0
  %3502 = vmatprep.subr.mxu0 0.0
  %3503 = vmatpush2.msra.mxu0 0.0
  %3504 = vmatprep.subr.mxu0 0.0
  %3505 = vmatpush2.msra.mxu0 0.0
  %3506 = vmatprep.subr.mxu0 0.0
  %3507 = vmatpush2.msra.mxu0 0.0
  %3508 = vmatprep.subr.mxu0 0.0
  %3509 = vmatpush2.msra.mxu0 0.0
  %3510 = vmatprep.subr.mxu0 0.0
  %3511 = vmatpush2.msra.mxu0 0.0
  %3512 = vmatprep.subr.mxu0 0.0
  %3513 = vmatpush2.msra.mxu0 0.0
  %3514 = vmatprep.subr.mxu0 0.0
  %3515 = vmatpush2.msra.mxu0 0.0
  %3516 = vmatprep.subr.mxu0 0.0
  %3517 = vmatpush2.msra.mxu0 0.0
  %3518 = vmatprep.subr.mxu0 0.0
  %3519 = vmatpush2.msra.mxu0 0.0
  %3520 = vmatprep.subr.mxu0 0.0
  %3521 = vmatpush2.msra.mxu0 0.0
  %3522 = vmatprep.subr.mxu0 0.0
  %3523 = vmatpush2.msra.mxu0 0.0
  %3524 = vmatprep.mubr.f32.mxu0 0.0
  %3525 = vmatmul.mubr.f32.gmra.mxu0 %v3437
  %v3526 = vpop.f32.mrf.mxu0
  %v3527 = vadd.f32 0.0, %v3526
  %v3528 = vpop.f32.mrf.mxu0
  %3529 = vmatprep.mubr.f32.mxu0 0.0
  %3530 = vmatmul.mubr.f32.gmra.mxu0 %v3440
  %v3531 = vpop.f32.mrf.mxu0
  %v3532 = vadd.f32 0.0, %v3531
  %v3533 = vpop.f32.mrf.mxu0
  %3534 = vmatprep.mubr.f32.mxu0 0.0
  %3535 = vmatmul.mubr.f32.gmra.mxu0 %v3443
  %v3536 = vpop.f32.mrf.mxu0
  %v3537 = vadd.f32 0.0, %v3536
  %v3538 = vpop.f32.mrf.mxu0
  %3539 = vmatprep.mubr.f32.mxu0 0.0
  %3540 = vmatmul.mubr.f32.gmra.mxu0 %v3446
  %v3541 = vpop.f32.mrf.mxu0
  %v3542 = vadd.f32 0.0, %v3541
  %v3543 = vpop.f32.mrf.mxu0
  %3544 = vmatprep.mubr.f32.mxu0 0.0
  %3545 = vmatmul.mubr.f32.gmra.mxu0 %v3449
  %v3546 = vpop.f32.mrf.mxu0
  %v3547 = vadd.f32 0.0, %v3546
  %v3548 = vpop.f32.mrf.mxu0
  %3549 = vmatprep.mubr.f32.mxu0 0.0
  %3550 = vmatmul.mubr.f32.gmra.mxu0 %v3452
  %v3551 = vpop.f32.mrf.mxu0
  %v3552 = vadd.f32 0.0, %v3551
  %v3553 = vpop.f32.mrf.mxu0
  %3554 = vmatprep.mubr.f32.mxu0 0.0
  %3555 = vmatmul.mubr.f32.gmra.mxu0 %v3455
  %v3556 = vpop.f32.mrf.mxu0
  %v3557 = vadd.f32 0.0, %v3556
  %v3558 = vpop.f32.mrf.mxu0
  %3559 = vmatprep.mubr.f32.mxu0 0.0
  %3560 = vmatmul.mubr.f32.gmra.mxu0 %v3458
  %v3561 = vpop.f32.mrf.mxu0
  %v3562 = vadd.f32 0.0, %v3561
  %v3563 = vpop.f32.mrf.mxu0
  %3564 = vdwg.mxu0
  %v3566 = vsel %vm523, %v1299, 0
  %v3569 = vsel %vm523, %v1372, 0
  %v3572 = vsel %vm523, %v1445, 0
  %v3575 = vsel %vm523, %v1518, 0
  %v3578 = vsel %vm523, %v1591, 0
  %v3581 = vsel %vm523, %v1664, 0
  %v3584 = vsel %vm523, %v1737, 0
  %v3587 = vsel %vm523, %v1810, 0
  %3589 = vmatprep.subr.mxu0 0.0
  %3590 = vmatpush1.msra.mxu0 0.0
  %3591 = vmatprep.subr.mxu0 0.0
  %3592 = vmatpush1.msra.mxu0 0.0
  %3593 = vmatprep.subr.mxu0 0.0
  %3594 = vmatpush1.msra.mxu0 0.0
  %3595 = vmatprep.subr.mxu0 0.0
  %3596 = vmatpush1.msra.mxu0 0.0
  %3597 = vmatprep.subr.mxu0 0.0
  %3598 = vmatpush1.msra.mxu0 0.0
  %3599 = vmatprep.subr.mxu0 0.0
  %3600 = vmatpush1.msra.mxu0 0.0
  %3601 = vmatprep.subr.mxu0 0.0
  %3602 = vmatpush1.msra.mxu0 0.0
  %3603 = vmatprep.subr.mxu0 0.0
  %3604 = vmatpush1.msra.mxu0 0.0
  %3605 = vmatprep.subr.mxu0 0.0
  %3606 = vmatpush1.msra.mxu0 0.0
  %3607 = vmatprep.subr.mxu0 0.0
  %3608 = vmatpush1.msra.mxu0 0.0
  %3609 = vmatprep.subr.mxu0 0.0
  %3610 = vmatpush1.msra.mxu0 0.0
  %3611 = vmatprep.subr.mxu0 0.0
  %3612 = vmatpush1.msra.mxu0 0.0
  %3613 = vmatprep.subr.mxu0 0.0
  %3614 = vmatpush1.msra.mxu0 0.0
  %3615 = vmatprep.subr.mxu0 0.0
  %3616 = vmatpush1.msra.mxu0 0.0
  %3617 = vmatprep.subr.mxu0 0.0
  %3618 = vmatpush1.msra.mxu0 %v1814
  %3619 = vmatprep.subr.mxu0 0.0
  %3620 = vmatpush1.msra.mxu0 %v1813
  %3621 = vmatprep.subr.mxu0 0.0
  %3622 = vmatpush2.msra.mxu0 0.0
  %3623 = vmatprep.subr.mxu0 0.0
  %3624 = vmatpush2.msra.mxu0 0.0
  %3625 = vmatprep.subr.mxu0 0.0
  %3626 = vmatpush2.msra.mxu0 0.0
  %3627 = vmatprep.subr.mxu0 0.0
  %3628 = vmatpush2.msra.mxu0 0.0
  %3629 = vmatprep.subr.mxu0 0.0
  %3630 = vmatpush2.msra.mxu0 0.0
  %3631 = vmatprep.subr.mxu0 0.0
  %3632 = vmatpush2.msra.mxu0 0.0
  %3633 = vmatprep.subr.mxu0 0.0
  %3634 = vmatpush2.msra.mxu0 0.0
  %3635 = vmatprep.subr.mxu0 0.0
  %3636 = vmatpush2.msra.mxu0 0.0
  %3637 = vmatprep.subr.mxu0 0.0
  %3638 = vmatpush2.msra.mxu0 0.0
  %3639 = vmatprep.subr.mxu0 0.0
  %3640 = vmatpush2.msra.mxu0 0.0
  %3641 = vmatprep.subr.mxu0 0.0
  %3642 = vmatpush2.msra.mxu0 0.0
  %3643 = vmatprep.subr.mxu0 0.0
  %3644 = vmatpush2.msra.mxu0 0.0
  %3645 = vmatprep.subr.mxu0 0.0
  %3646 = vmatpush2.msra.mxu0 0.0
  %3647 = vmatprep.subr.mxu0 0.0
  %3648 = vmatpush2.msra.mxu0 0.0
  %3649 = vmatprep.subr.mxu0 0.0
  %3650 = vmatpush2.msra.mxu0 0.0
  %3651 = vmatprep.subr.mxu0 0.0
  %3652 = vmatpush2.msra.mxu0 0.0
  %3653 = vmatprep.mubr.f32.mxu0 0.0
  %3654 = vmatmul.mubr.f32.gmra.mxu0 %v3566
  %v3655 = vpop.f32.mrf.mxu0
  %v3656 = vadd.f32 %v3527, %v3655
  %v3657 = vpop.f32.mrf.mxu0
  %3658 = vmatprep.mubr.f32.mxu0 0.0
  %3659 = vmatmul.mubr.f32.gmra.mxu0 %v3569
  %v3660 = vpop.f32.mrf.mxu0
  %v3661 = vadd.f32 %v3532, %v3660
  %v3662 = vpop.f32.mrf.mxu0
  %3663 = vmatprep.mubr.f32.mxu0 0.0
  %3664 = vmatmul.mubr.f32.gmra.mxu0 %v3572
  %v3665 = vpop.f32.mrf.mxu0
  %v3666 = vadd.f32 %v3537, %v3665
  %v3667 = vpop.f32.mrf.mxu0
  %3668 = vmatprep.mubr.f32.mxu0 0.0
  %3669 = vmatmul.mubr.f32.gmra.mxu0 %v3575
  %v3670 = vpop.f32.mrf.mxu0
  %v3671 = vadd.f32 %v3542, %v3670
  %v3672 = vpop.f32.mrf.mxu0
  %3673 = vmatprep.mubr.f32.mxu0 0.0
  %3674 = vmatmul.mubr.f32.gmra.mxu0 %v3578
  %v3675 = vpop.f32.mrf.mxu0
  %v3676 = vadd.f32 %v3547, %v3675
  %v3677 = vpop.f32.mrf.mxu0
  %3678 = vmatprep.mubr.f32.mxu0 0.0
  %3679 = vmatmul.mubr.f32.gmra.mxu0 %v3581
  %v3680 = vpop.f32.mrf.mxu0
  %v3681 = vadd.f32 %v3552, %v3680
  %v3682 = vpop.f32.mrf.mxu0
  %3683 = vmatprep.mubr.f32.mxu0 0.0
  %3684 = vmatmul.mubr.f32.gmra.mxu0 %v3584
  %v3685 = vpop.f32.mrf.mxu0
  %v3686 = vadd.f32 %v3557, %v3685
  %v3687 = vpop.f32.mrf.mxu0
  %3688 = vmatprep.mubr.f32.mxu0 0.0
  %3689 = vmatmul.mubr.f32.gmra.mxu0 %v3587
  %v3690 = vpop.f32.mrf.mxu0
  %v3691 = vadd.f32 %v3562, %v3690
  %v3692 = vpop.f32.mrf.mxu0
  %3693 = vdwg.mxu0
  %v3694 = vadd.f32 %v32, %v3656
  %v3695 = vadd.f32 %v33, %v3661
  %v3696 = vadd.f32 %v34, %v3666
  %v3697 = vadd.f32 %v35, %v3671
  %v3698 = vadd.f32 %v36, %v3676
  %v3699 = vadd.f32 %v37, %v3681
  %v3700 = vadd.f32 %v38, %v3686
  %v3701 = vadd.f32 %v39, %v3691
  %v3702 = vlaneseq
  %v3703 = vshrl.u32 %v3702, 7
  %v3704 = vsub.s32 2, %v3703
  %v3705 = vrot.slane %v40, %v3704
  %v3706 = vadd.f32 %v3694, %v3705
  %v3707 = vadd.f32 %v3695, %v3705
  %v3708 = vadd.f32 %v3696, %v3705
  %v3709 = vadd.f32 %v3697, %v3705
  %v3710 = vadd.f32 %v3698, %v3705
  %v3711 = vadd.f32 %v3699, %v3705
  %v3712 = vadd.f32 %v3700, %v3705
  %v3713 = vadd.f32 %v3701, %v3705
  %v3714 = vsel %vm42, %v3706, 0.0
  %3715 = vadd.xlane.f32.xlu0 %v3714
  %v3716 = vpop.xlane.xlu0 %3715
  %v3717 = vsel %vm42, %v3707, 0.0
  %3718 = vadd.xlane.f32.xlu0 %v3717
  %v3719 = vpop.xlane.xlu0 %3718
  %v3720 = vsel %vm42, %v3708, 0.0
  %3721 = vadd.xlane.f32.xlu0 %v3720
  %v3722 = vpop.xlane.xlu0 %3721
  %v3723 = vsel %vm42, %v3709, 0.0
  %3724 = vadd.xlane.f32.xlu0 %v3723
  %v3725 = vpop.xlane.xlu0 %3724
  %v3726 = vsel %vm42, %v3710, 0.0
  %3727 = vadd.xlane.f32.xlu0 %v3726
  %v3728 = vpop.xlane.xlu0 %3727
  %v3729 = vsel %vm42, %v3711, 0.0
  %3730 = vadd.xlane.f32.xlu0 %v3729
  %v3731 = vpop.xlane.xlu0 %3730
  %v3732 = vsel %vm42, %v3712, 0.0
  %3733 = vadd.xlane.f32.xlu0 %v3732
  %v3734 = vpop.xlane.xlu0 %3733
  %v3735 = vsel %vm42, %v3713, 0.0
  %3736 = vadd.xlane.f32.xlu0 %v3735
  %v3737 = vpop.xlane.xlu0 %3736
  %v3738 = vmul.f32 %v3716, %v67
  %v3739 = vmul.f32 %v3719, %v67
  %v3740 = vmul.f32 %v3722, %v67
  %v3741 = vmul.f32 %v3725, %v67
  %v3742 = vmul.f32 %v3728, %v67
  %v3743 = vmul.f32 %v3731, %v67
  %v3744 = vmul.f32 %v3734, %v67
  %v3745 = vmul.f32 %v3737, %v67
  %v3746 = vsub.f32 %v3706, %v3738
  %v3747 = vsub.f32 %v3707, %v3739
  %v3748 = vsub.f32 %v3708, %v3740
  %v3749 = vsub.f32 %v3709, %v3741
  %v3750 = vsub.f32 %v3710, %v3742
  %v3751 = vsub.f32 %v3711, %v3743
  %v3752 = vsub.f32 %v3712, %v3744
  %v3753 = vsub.f32 %v3713, %v3745
  %v3754 = vmul.f32 %v3746, %v3746
  %v3755 = vmul.f32 %v3747, %v3747
  %v3756 = vmul.f32 %v3748, %v3748
  %v3757 = vmul.f32 %v3749, %v3749
  %v3758 = vmul.f32 %v3750, %v3750
  %v3759 = vmul.f32 %v3751, %v3751
  %v3760 = vmul.f32 %v3752, %v3752
  %v3761 = vmul.f32 %v3753, %v3753
  %v3762 = vsel %vm42, %v3754, 0.0
  %3763 = vadd.xlane.f32.xlu0 %v3762
  %v3764 = vpop.xlane.xlu0 %3763
  %v3765 = vsel %vm42, %v3755, 0.0
  %3766 = vadd.xlane.f32.xlu0 %v3765
  %v3767 = vpop.xlane.xlu0 %3766
  %v3768 = vsel %vm42, %v3756, 0.0
  %3769 = vadd.xlane.f32.xlu0 %v3768
  %v3770 = vpop.xlane.xlu0 %3769
  %v3771 = vsel %vm42, %v3757, 0.0
  %3772 = vadd.xlane.f32.xlu0 %v3771
  %v3773 = vpop.xlane.xlu0 %3772
  %v3774 = vsel %vm42, %v3758, 0.0
  %3775 = vadd.xlane.f32.xlu0 %v3774
  %v3776 = vpop.xlane.xlu0 %3775
  %v3777 = vsel %vm42, %v3759, 0.0
  %3778 = vadd.xlane.f32.xlu0 %v3777
  %v3779 = vpop.xlane.xlu0 %3778
  %v3780 = vsel %vm42, %v3760, 0.0
  %3781 = vadd.xlane.f32.xlu0 %v3780
  %v3782 = vpop.xlane.xlu0 %3781
  %v3783 = vsel %vm42, %v3761, 0.0
  %3784 = vadd.xlane.f32.xlu0 %v3783
  %v3785 = vpop.xlane.xlu0 %3784
  %v3786 = vmul.f32 %v3764, %v67
  %v3787 = vmul.f32 %v3767, %v67
  %v3788 = vmul.f32 %v3770, %v67
  %v3789 = vmul.f32 %v3773, %v67
  %v3790 = vmul.f32 %v3776, %v67
  %v3791 = vmul.f32 %v3779, %v67
  %v3792 = vmul.f32 %v3782, %v67
  %v3793 = vmul.f32 %v3785, %v67
  %v3794 = vadd.f32 %v3786, 1e-05
  %v3795 = vadd.f32 %v3787, 1e-05
  %v3796 = vadd.f32 %v3788, 1e-05
  %v3797 = vadd.f32 %v3789, 1e-05
  %v3798 = vadd.f32 %v3790, 1e-05
  %v3799 = vadd.f32 %v3791, 1e-05
  %v3800 = vadd.f32 %v3792, 1e-05
  %v3801 = vadd.f32 %v3793, 1e-05
  %v3802 = vrsqrt.pop %v3794
  %v3803 = vrsqrt.pop %v3795
  %v3804 = vrsqrt.pop %v3796
  %v3805 = vrsqrt.pop %v3797
  %v3806 = vrsqrt.pop %v3798
  %v3807 = vrsqrt.pop %v3799
  %v3808 = vrsqrt.pop %v3800
  %v3809 = vrsqrt.pop %v3801
  %v3810 = vmul.f32 %v3746, %v3802
  %v3811 = vmul.f32 %v3747, %v3803
  %v3812 = vmul.f32 %v3748, %v3804
  %v3813 = vmul.f32 %v3749, %v3805
  %v3814 = vmul.f32 %v3750, %v3806
  %v3815 = vmul.f32 %v3751, %v3807
  %v3816 = vmul.f32 %v3752, %v3808
  %v3817 = vmul.f32 %v3753, %v3809
  %v3818 = vlaneseq
  %v3819 = vshrl.u32 %v3818, 7
  %v3820 = vsub.s32 3, %v3819
  %v3821 = vrot.slane %v40, %v3820
  %v3822 = vmul.f32 %v3810, %v3821
  %v3823 = vmul.f32 %v3811, %v3821
  %v3824 = vmul.f32 %v3812, %v3821
  %v3825 = vmul.f32 %v3813, %v3821
  %v3826 = vmul.f32 %v3814, %v3821
  %v3827 = vmul.f32 %v3815, %v3821
  %v3828 = vmul.f32 %v3816, %v3821
  %v3829 = vmul.f32 %v3817, %v3821
  %v3830 = vlaneseq
  %v3831 = vshrl.u32 %v3830, 7
  %v3832 = vsub.s32 4, %v3831
  %v3833 = vrot.slane %v40, %v3832
  %v3834 = vadd.f32 %v3822, %v3833
  %v3835 = vadd.f32 %v3823, %v3833
  %v3836 = vadd.f32 %v3824, %v3833
  %v3837 = vadd.f32 %v3825, %v3833
  %v3838 = vadd.f32 %v3826, %v3833
  %v3839 = vadd.f32 %v3827, %v3833
  %v3840 = vadd.f32 %v3828, %v3833
  %v3841 = vadd.f32 %v3829, %v3833
  %v3842 = vld [vmem:[%s5] sm:$0xff]
  %v3843 = vld [vmem:[%s5 + $0x8] sm:$0xff]
  %v3844 = vld [vmem:[%s5 + $0x10] sm:$0xff]
  %v3845 = vld [vmem:[%s5 + $0x18] sm:$0xff]
  %v3847 = vlaneseq
  %v3848 = vshrl.u32 %v3847, 7
  %v3849 = vsub.s32 0, %v3848
  %v3850 = vrot.slane %v41, %v3849
  %v3853 = vsel %vm42, %v3834, 0
  %v3856 = vsel %vm42, %v3835, 0
  %v3859 = vsel %vm42, %v3836, 0
  %v3862 = vsel %vm42, %v3837, 0
  %v3865 = vsel %vm42, %v3838, 0
  %v3868 = vsel %vm42, %v3839, 0
  %v3871 = vsel %vm42, %v3840, 0
  %v3874 = vsel %vm42, %v3841, 0
  %3876 = vmatprep.subr.mxu0 0.0
  %3877 = vmatpush1.msra.mxu0 0.0
  %3878 = vmatprep.subr.mxu0 0.0
  %3879 = vmatpush1.msra.mxu0 0.0
  %3880 = vmatprep.subr.mxu0 0.0
  %3881 = vmatpush1.msra.mxu0 0.0
  %3882 = vmatprep.subr.mxu0 0.0
  %3883 = vmatpush1.msra.mxu0 0.0
  %3884 = vmatprep.subr.mxu0 0.0
  %3885 = vmatpush1.msra.mxu0 0.0
  %3886 = vmatprep.subr.mxu0 0.0
  %3887 = vmatpush1.msra.mxu0 0.0
  %3888 = vmatprep.subr.mxu0 0.0
  %3889 = vmatpush1.msra.mxu0 0.0
  %3890 = vmatprep.subr.mxu0 0.0
  %3891 = vmatpush1.msra.mxu0 0.0
  %3892 = vmatprep.subr.mxu0 0.0
  %3893 = vmatpush1.msra.mxu0 0.0
  %3894 = vmatprep.subr.mxu0 0.0
  %3895 = vmatpush1.msra.mxu0 0.0
  %3896 = vmatprep.subr.mxu0 0.0
  %3897 = vmatpush1.msra.mxu0 0.0
  %3898 = vmatprep.subr.mxu0 0.0
  %3899 = vmatpush1.msra.mxu0 0.0
  %3900 = vmatprep.subr.mxu0 0.0
  %3901 = vmatpush1.msra.mxu0 %v3845
  %3902 = vmatprep.subr.mxu0 0.0
  %3903 = vmatpush1.msra.mxu0 %v3844
  %3904 = vmatprep.subr.mxu0 0.0
  %3905 = vmatpush1.msra.mxu0 %v3843
  %3906 = vmatprep.subr.mxu0 0.0
  %3907 = vmatpush1.msra.mxu0 %v3842
  %3908 = vmatprep.subr.mxu0 0.0
  %3909 = vmatpush2.msra.mxu0 0.0
  %3910 = vmatprep.subr.mxu0 0.0
  %3911 = vmatpush2.msra.mxu0 0.0
  %3912 = vmatprep.subr.mxu0 0.0
  %3913 = vmatpush2.msra.mxu0 0.0
  %3914 = vmatprep.subr.mxu0 0.0
  %3915 = vmatpush2.msra.mxu0 0.0
  %3916 = vmatprep.subr.mxu0 0.0
  %3917 = vmatpush2.msra.mxu0 0.0
  %3918 = vmatprep.subr.mxu0 0.0
  %3919 = vmatpush2.msra.mxu0 0.0
  %3920 = vmatprep.subr.mxu0 0.0
  %3921 = vmatpush2.msra.mxu0 0.0
  %3922 = vmatprep.subr.mxu0 0.0
  %3923 = vmatpush2.msra.mxu0 0.0
  %3924 = vmatprep.subr.mxu0 0.0
  %3925 = vmatpush2.msra.mxu0 0.0
  %3926 = vmatprep.subr.mxu0 0.0
  %3927 = vmatpush2.msra.mxu0 0.0
  %3928 = vmatprep.subr.mxu0 0.0
  %3929 = vmatpush2.msra.mxu0 0.0
  %3930 = vmatprep.subr.mxu0 0.0
  %3931 = vmatpush2.msra.mxu0 0.0
  %3932 = vmatprep.subr.mxu0 0.0
  %3933 = vmatpush2.msra.mxu0 0.0
  %3934 = vmatprep.subr.mxu0 0.0
  %3935 = vmatpush2.msra.mxu0 0.0
  %3936 = vmatprep.subr.mxu0 0.0
  %3937 = vmatpush2.msra.mxu0 0.0
  %3938 = vmatprep.subr.mxu0 0.0
  %3939 = vmatpush2.msra.mxu0 0.0
  %3940 = vmatprep.mubr.f32.mxu0 0.0
  %3941 = vmatmul.mubr.f32.gmra.mxu0 %v3853
  %v3942 = vpop.f32.mrf.mxu0
  %v3943 = vadd.f32 %v3850, %v3942
  %v3944 = vpop.f32.mrf.mxu0
  %3945 = vmatprep.mubr.f32.mxu0 0.0
  %3946 = vmatmul.mubr.f32.gmra.mxu0 %v3856
  %v3947 = vpop.f32.mrf.mxu0
  %v3948 = vadd.f32 %v3850, %v3947
  %v3949 = vpop.f32.mrf.mxu0
  %3950 = vmatprep.mubr.f32.mxu0 0.0
  %3951 = vmatmul.mubr.f32.gmra.mxu0 %v3859
  %v3952 = vpop.f32.mrf.mxu0
  %v3953 = vadd.f32 %v3850, %v3952
  %v3954 = vpop.f32.mrf.mxu0
  %3955 = vmatprep.mubr.f32.mxu0 0.0
  %3956 = vmatmul.mubr.f32.gmra.mxu0 %v3862
  %v3957 = vpop.f32.mrf.mxu0
  %v3958 = vadd.f32 %v3850, %v3957
  %v3959 = vpop.f32.mrf.mxu0
  %3960 = vmatprep.mubr.f32.mxu0 0.0
  %3961 = vmatmul.mubr.f32.gmra.mxu0 %v3865
  %v3962 = vpop.f32.mrf.mxu0
  %v3963 = vadd.f32 %v3850, %v3962
  %v3964 = vpop.f32.mrf.mxu0
  %3965 = vmatprep.mubr.f32.mxu0 0.0
  %3966 = vmatmul.mubr.f32.gmra.mxu0 %v3868
  %v3967 = vpop.f32.mrf.mxu0
  %v3968 = vadd.f32 %v3850, %v3967
  %v3969 = vpop.f32.mrf.mxu0
  %3970 = vmatprep.mubr.f32.mxu0 0.0
  %3971 = vmatmul.mubr.f32.gmra.mxu0 %v3871
  %v3972 = vpop.f32.mrf.mxu0
  %v3973 = vadd.f32 %v3850, %v3972
  %v3974 = vpop.f32.mrf.mxu0
  %3975 = vmatprep.mubr.f32.mxu0 0.0
  %3976 = vmatmul.mubr.f32.gmra.mxu0 %v3874
  %v3977 = vpop.f32.mrf.mxu0
  %v3978 = vadd.f32 %v3850, %v3977
  %v3979 = vpop.f32.mrf.mxu0
  %3980 = vdwg.mxu0
  %v3981 = vxor.u32 %v3943, 2147483648
  %v3982 = vxor.u32 %v3948, 2147483648
  %v3983 = vxor.u32 %v3953, 2147483648
  %v3984 = vxor.u32 %v3958, 2147483648
  %v3985 = vxor.u32 %v3963, 2147483648
  %v3986 = vxor.u32 %v3968, 2147483648
  %v3987 = vxor.u32 %v3973, 2147483648
  %v3988 = vxor.u32 %v3978, 2147483648
  %v3989 = vmul.f32 %v3981, 1.442695
  %v3990 = vpow.pop %v3989
  %v3991 = vmul.f32 %v3982, 1.442695
  %v3992 = vpow.pop %v3991
  %v3993 = vmul.f32 %v3983, 1.442695
  %v3994 = vpow.pop %v3993
  %v3995 = vmul.f32 %v3984, 1.442695
  %v3996 = vpow.pop %v3995
  %v3997 = vmul.f32 %v3985, 1.442695
  %v3998 = vpow.pop %v3997
  %v3999 = vmul.f32 %v3986, 1.442695
  %v4000 = vpow.pop %v3999
  %v4001 = vmul.f32 %v3987, 1.442695
  %v4002 = vpow.pop %v4001
  %v4003 = vmul.f32 %v3988, 1.442695
  %v4004 = vpow.pop %v4003
  %v4005 = vadd.f32 %v3990, 1.0
  %v4006 = vadd.f32 %v3992, 1.0
  %v4007 = vadd.f32 %v3994, 1.0
  %v4008 = vadd.f32 %v3996, 1.0
  %v4009 = vadd.f32 %v3998, 1.0
  %v4010 = vadd.f32 %v4000, 1.0
  %v4011 = vadd.f32 %v4002, 1.0
  %v4012 = vadd.f32 %v4004, 1.0
  %v4013 = vrcp.pop %v4005
  %v4014 = vmul.f32 1.0, %v4013
  %v4015 = vrcp.pop %v4006
  %v4016 = vmul.f32 1.0, %v4015
  %v4017 = vrcp.pop %v4007
  %v4018 = vmul.f32 1.0, %v4017
  %v4019 = vrcp.pop %v4008
  %v4020 = vmul.f32 1.0, %v4019
  %v4021 = vrcp.pop %v4009
  %v4022 = vmul.f32 1.0, %v4021
  %v4023 = vrcp.pop %v4010
  %v4024 = vmul.f32 1.0, %v4023
  %v4025 = vrcp.pop %v4011
  %v4026 = vmul.f32 1.0, %v4025
  %v4027 = vrcp.pop %v4012
  %v4028 = vmul.f32 1.0, %v4027
  %v4029 = vmul.f32 %v3943, %v4014
  %v4030 = vmul.f32 %v3948, %v4016
  %v4031 = vmul.f32 %v3953, %v4018
  %v4032 = vmul.f32 %v3958, %v4020
  %v4033 = vmul.f32 %v3963, %v4022
  %v4034 = vmul.f32 %v3968, %v4024
  %v4035 = vmul.f32 %v3973, %v4026
  %v4036 = vmul.f32 %v3978, %v4028
  %v4037 = vld [vmem:[%s6] sm:$0xff]
  %v4038 = vld [vmem:[%s6 + $0x8] sm:$0xff]
  %v4039 = vld [vmem:[%s6 + $0x10] sm:$0xff]
  %v4040 = vld [vmem:[%s6 + $0x18] sm:$0xff]
  %v4041 = vld [vmem:[%s6 + $0x20] sm:$0xff]
  %v4042 = vld [vmem:[%s6 + $0x28] sm:$0xff]
  %v4043 = vld [vmem:[%s6 + $0x30] sm:$0xff]
  %v4044 = vld [vmem:[%s6 + $0x38] sm:$0xff]
  %vm4045 = vcmask 523264
  %v4047 = vsel %vm4045, %v4029, 0
  %v4050 = vsel %vm4045, %v4030, 0
  %v4053 = vsel %vm4045, %v4031, 0
  %v4056 = vsel %vm4045, %v4032, 0
  %v4059 = vsel %vm4045, %v4033, 0
  %v4062 = vsel %vm4045, %v4034, 0
  %v4065 = vsel %vm4045, %v4035, 0
  %v4068 = vsel %vm4045, %v4036, 0
  %4070 = vmatprep.subr.mxu0 0.0
  %4071 = vmatpush1.msra.mxu0 0.0
  %4072 = vmatprep.subr.mxu0 0.0
  %4073 = vmatpush1.msra.mxu0 0.0
  %4074 = vmatprep.subr.mxu0 0.0
  %4075 = vmatpush1.msra.mxu0 0.0
  %4076 = vmatprep.subr.mxu0 0.0
  %4077 = vmatpush1.msra.mxu0 0.0
  %4078 = vmatprep.subr.mxu0 0.0
  %4079 = vmatpush1.msra.mxu0 0.0
  %4080 = vmatprep.subr.mxu0 0.0
  %4081 = vmatpush1.msra.mxu0 0.0
  %4082 = vmatprep.subr.mxu0 0.0
  %4083 = vmatpush1.msra.mxu0 0.0
  %4084 = vmatprep.subr.mxu0 0.0
  %4085 = vmatpush1.msra.mxu0 0.0
  %4086 = vmatprep.subr.mxu0 0.0
  %4087 = vmatpush1.msra.mxu0 %v4044
  %4088 = vmatprep.subr.mxu0 0.0
  %4089 = vmatpush1.msra.mxu0 %v4043
  %4090 = vmatprep.subr.mxu0 0.0
  %4091 = vmatpush1.msra.mxu0 %v4042
  %4092 = vmatprep.subr.mxu0 0.0
  %4093 = vmatpush1.msra.mxu0 %v4041
  %4094 = vmatprep.subr.mxu0 0.0
  %4095 = vmatpush1.msra.mxu0 %v4040
  %4096 = vmatprep.subr.mxu0 0.0
  %4097 = vmatpush1.msra.mxu0 %v4039
  %4098 = vmatprep.subr.mxu0 0.0
  %4099 = vmatpush1.msra.mxu0 %v4038
  %4100 = vmatprep.subr.mxu0 0.0
  %4101 = vmatpush1.msra.mxu0 %v4037
  %4102 = vmatprep.subr.mxu0 0.0
  %4103 = vmatpush2.msra.mxu0 0.0
  %4104 = vmatprep.subr.mxu0 0.0
  %4105 = vmatpush2.msra.mxu0 0.0
  %4106 = vmatprep.subr.mxu0 0.0
  %4107 = vmatpush2.msra.mxu0 0.0
  %4108 = vmatprep.subr.mxu0 0.0
  %4109 = vmatpush2.msra.mxu0 0.0
  %4110 = vmatprep.subr.mxu0 0.0
  %4111 = vmatpush2.msra.mxu0 0.0
  %4112 = vmatprep.subr.mxu0 0.0
  %4113 = vmatpush2.msra.mxu0 0.0
  %4114 = vmatprep.subr.mxu0 0.0
  %4115 = vmatpush2.msra.mxu0 0.0
  %4116 = vmatprep.subr.mxu0 0.0
  %4117 = vmatpush2.msra.mxu0 0.0
  %4118 = vmatprep.subr.mxu0 0.0
  %4119 = vmatpush2.msra.mxu0 0.0
  %4120 = vmatprep.subr.mxu0 0.0
  %4121 = vmatpush2.msra.mxu0 0.0
  %4122 = vmatprep.subr.mxu0 0.0
  %4123 = vmatpush2.msra.mxu0 0.0
  %4124 = vmatprep.subr.mxu0 0.0
  %4125 = vmatpush2.msra.mxu0 0.0
  %4126 = vmatprep.subr.mxu0 0.0
  %4127 = vmatpush2.msra.mxu0 0.0
  %4128 = vmatprep.subr.mxu0 0.0
  %4129 = vmatpush2.msra.mxu0 0.0
  %4130 = vmatprep.subr.mxu0 0.0
  %4131 = vmatpush2.msra.mxu0 0.0
  %4132 = vmatprep.subr.mxu0 0.0
  %4133 = vmatpush2.msra.mxu0 0.0
  %4134 = vmatprep.mubr.f32.mxu0 0.0
  %4135 = vmatmul.mubr.f32.gmra.mxu0 %v4047
  %v4136 = vpop.f32.mrf.mxu0
  %v4137 = vadd.f32 0.0, %v4136
  %v4138 = vpop.f32.mrf.mxu0
  %4139 = vmatprep.mubr.f32.mxu0 0.0
  %4140 = vmatmul.mubr.f32.gmra.mxu0 %v4050
  %v4141 = vpop.f32.mrf.mxu0
  %v4142 = vadd.f32 0.0, %v4141
  %v4143 = vpop.f32.mrf.mxu0
  %4144 = vmatprep.mubr.f32.mxu0 0.0
  %4145 = vmatmul.mubr.f32.gmra.mxu0 %v4053
  %v4146 = vpop.f32.mrf.mxu0
  %v4147 = vadd.f32 0.0, %v4146
  %v4148 = vpop.f32.mrf.mxu0
  %4149 = vmatprep.mubr.f32.mxu0 0.0
  %4150 = vmatmul.mubr.f32.gmra.mxu0 %v4056
  %v4151 = vpop.f32.mrf.mxu0
  %v4152 = vadd.f32 0.0, %v4151
  %v4153 = vpop.f32.mrf.mxu0
  %4154 = vmatprep.mubr.f32.mxu0 0.0
  %4155 = vmatmul.mubr.f32.gmra.mxu0 %v4059
  %v4156 = vpop.f32.mrf.mxu0
  %v4157 = vadd.f32 0.0, %v4156
  %v4158 = vpop.f32.mrf.mxu0
  %4159 = vmatprep.mubr.f32.mxu0 0.0
  %4160 = vmatmul.mubr.f32.gmra.mxu0 %v4062
  %v4161 = vpop.f32.mrf.mxu0
  %v4162 = vadd.f32 0.0, %v4161
  %v4163 = vpop.f32.mrf.mxu0
  %4164 = vmatprep.mubr.f32.mxu0 0.0
  %4165 = vmatmul.mubr.f32.gmra.mxu0 %v4065
  %v4166 = vpop.f32.mrf.mxu0
  %v4167 = vadd.f32 0.0, %v4166
  %v4168 = vpop.f32.mrf.mxu0
  %4169 = vmatprep.mubr.f32.mxu0 0.0
  %4170 = vmatmul.mubr.f32.gmra.mxu0 %v4068
  %v4171 = vpop.f32.mrf.mxu0
  %v4172 = vadd.f32 0.0, %v4171
  %v4173 = vpop.f32.mrf.mxu0
  %4174 = vdwg.mxu0
  %v4175 = vadd.f32 %v3706, %v4137
  %v4176 = vadd.f32 %v3707, %v4142
  %v4177 = vadd.f32 %v3708, %v4147
  %v4178 = vadd.f32 %v3709, %v4152
  %v4179 = vadd.f32 %v3710, %v4157
  %v4180 = vadd.f32 %v3711, %v4162
  %v4181 = vadd.f32 %v3712, %v4167
  %v4182 = vadd.f32 %v3713, %v4172
  %v4183 = vlaneseq
  %v4184 = vshrl.u32 %v4183, 7
  %v4185 = vsub.s32 5, %v4184
  %v4186 = vrot.slane %v40, %v4185
  %v4187 = vadd.f32 %v4175, %v4186
  %v4188 = vadd.f32 %v4176, %v4186
  %v4189 = vadd.f32 %v4177, %v4186
  %v4190 = vadd.f32 %v4178, %v4186
  %v4191 = vadd.f32 %v4179, %v4186
  %v4192 = vadd.f32 %v4180, %v4186
  %v4193 = vadd.f32 %v4181, %v4186
  %v4194 = vadd.f32 %v4182, %v4186
  %s4195 = scalar_lea.vmem %s7, 8
  %v4196 = vld [vmem:[%s4195] sm:$0xff]
  %s4197 = scalar_lea.vmem %s8, 1
  %v4198 = vld [vmem:[%s4197] sm:$0x1]
  %v4199 = vsel %vm42, %v4187, 0.0
  %4200 = vadd.xlane.f32.xlu0 %v4199
  %v4201 = vpop.xlane.xlu0 %4200
  %v4202 = vsel %vm42, %v4188, 0.0
  %4203 = vadd.xlane.f32.xlu0 %v4202
  %v4204 = vpop.xlane.xlu0 %4203
  %v4205 = vsel %vm42, %v4189, 0.0
  %4206 = vadd.xlane.f32.xlu0 %v4205
  %v4207 = vpop.xlane.xlu0 %4206
  %v4208 = vsel %vm42, %v4190, 0.0
  %4209 = vadd.xlane.f32.xlu0 %v4208
  %v4210 = vpop.xlane.xlu0 %4209
  %v4211 = vsel %vm42, %v4191, 0.0
  %4212 = vadd.xlane.f32.xlu0 %v4211
  %v4213 = vpop.xlane.xlu0 %4212
  %v4214 = vsel %vm42, %v4192, 0.0
  %4215 = vadd.xlane.f32.xlu0 %v4214
  %v4216 = vpop.xlane.xlu0 %4215
  %v4217 = vsel %vm42, %v4193, 0.0
  %4218 = vadd.xlane.f32.xlu0 %v4217
  %v4219 = vpop.xlane.xlu0 %4218
  %v4220 = vsel %vm42, %v4194, 0.0
  %4221 = vadd.xlane.f32.xlu0 %v4220
  %v4222 = vpop.xlane.xlu0 %4221
  %v4223 = vmul.f32 %v4201, %v67
  %v4224 = vmul.f32 %v4204, %v67
  %v4225 = vmul.f32 %v4207, %v67
  %v4226 = vmul.f32 %v4210, %v67
  %v4227 = vmul.f32 %v4213, %v67
  %v4228 = vmul.f32 %v4216, %v67
  %v4229 = vmul.f32 %v4219, %v67
  %v4230 = vmul.f32 %v4222, %v67
  %v4231 = vsub.f32 %v4187, %v4223
  %v4232 = vsub.f32 %v4188, %v4224
  %v4233 = vsub.f32 %v4189, %v4225
  %v4234 = vsub.f32 %v4190, %v4226
  %v4235 = vsub.f32 %v4191, %v4227
  %v4236 = vsub.f32 %v4192, %v4228
  %v4237 = vsub.f32 %v4193, %v4229
  %v4238 = vsub.f32 %v4194, %v4230
  %v4239 = vmul.f32 %v4231, %v4231
  %v4240 = vmul.f32 %v4232, %v4232
  %v4241 = vmul.f32 %v4233, %v4233
  %v4242 = vmul.f32 %v4234, %v4234
  %v4243 = vmul.f32 %v4235, %v4235
  %v4244 = vmul.f32 %v4236, %v4236
  %v4245 = vmul.f32 %v4237, %v4237
  %v4246 = vmul.f32 %v4238, %v4238
  %v4247 = vsel %vm42, %v4239, 0.0
  %4248 = vadd.xlane.f32.xlu0 %v4247
  %v4249 = vpop.xlane.xlu0 %4248
  %v4250 = vsel %vm42, %v4240, 0.0
  %4251 = vadd.xlane.f32.xlu0 %v4250
  %v4252 = vpop.xlane.xlu0 %4251
  %v4253 = vsel %vm42, %v4241, 0.0
  %4254 = vadd.xlane.f32.xlu0 %v4253
  %v4255 = vpop.xlane.xlu0 %4254
  %v4256 = vsel %vm42, %v4242, 0.0
  %4257 = vadd.xlane.f32.xlu0 %v4256
  %v4258 = vpop.xlane.xlu0 %4257
  %v4259 = vsel %vm42, %v4243, 0.0
  %4260 = vadd.xlane.f32.xlu0 %v4259
  %v4261 = vpop.xlane.xlu0 %4260
  %v4262 = vsel %vm42, %v4244, 0.0
  %4263 = vadd.xlane.f32.xlu0 %v4262
  %v4264 = vpop.xlane.xlu0 %4263
  %v4265 = vsel %vm42, %v4245, 0.0
  %4266 = vadd.xlane.f32.xlu0 %v4265
  %v4267 = vpop.xlane.xlu0 %4266
  %v4268 = vsel %vm42, %v4246, 0.0
  %4269 = vadd.xlane.f32.xlu0 %v4268
  %v4270 = vpop.xlane.xlu0 %4269
  %v4271 = vmul.f32 %v4249, %v67
  %v4272 = vmul.f32 %v4252, %v67
  %v4273 = vmul.f32 %v4255, %v67
  %v4274 = vmul.f32 %v4258, %v67
  %v4275 = vmul.f32 %v4261, %v67
  %v4276 = vmul.f32 %v4264, %v67
  %v4277 = vmul.f32 %v4267, %v67
  %v4278 = vmul.f32 %v4270, %v67
  %v4279 = vadd.f32 %v4271, 1e-05
  %v4280 = vadd.f32 %v4272, 1e-05
  %v4281 = vadd.f32 %v4273, 1e-05
  %v4282 = vadd.f32 %v4274, 1e-05
  %v4283 = vadd.f32 %v4275, 1e-05
  %v4284 = vadd.f32 %v4276, 1e-05
  %v4285 = vadd.f32 %v4277, 1e-05
  %v4286 = vadd.f32 %v4278, 1e-05
  %v4287 = vrsqrt.pop %v4279
  %v4288 = vrsqrt.pop %v4280
  %v4289 = vrsqrt.pop %v4281
  %v4290 = vrsqrt.pop %v4282
  %v4291 = vrsqrt.pop %v4283
  %v4292 = vrsqrt.pop %v4284
  %v4293 = vrsqrt.pop %v4285
  %v4294 = vrsqrt.pop %v4286
  %v4295 = vmul.f32 %v4231, %v4287
  %v4296 = vmul.f32 %v4232, %v4288
  %v4297 = vmul.f32 %v4233, %v4289
  %v4298 = vmul.f32 %v4234, %v4290
  %v4299 = vmul.f32 %v4235, %v4291
  %v4300 = vmul.f32 %v4236, %v4292
  %v4301 = vmul.f32 %v4237, %v4293
  %v4302 = vmul.f32 %v4238, %v4294
  %v4303 = vlaneseq
  %v4304 = vshrl.u32 %v4303, 7
  %v4305 = vsub.s32 0, %v4304
  %v4306 = vrot.slane %v4196, %v4305
  %v4307 = vmul.f32 %v4295, %v4306
  %v4308 = vmul.f32 %v4296, %v4306
  %v4309 = vmul.f32 %v4297, %v4306
  %v4310 = vmul.f32 %v4298, %v4306
  %v4311 = vmul.f32 %v4299, %v4306
  %v4312 = vmul.f32 %v4300, %v4306
  %v4313 = vmul.f32 %v4301, %v4306
  %v4314 = vmul.f32 %v4302, %v4306
  %v4315 = vlaneseq
  %v4316 = vshrl.u32 %v4315, 7
  %v4317 = vsub.s32 1, %v4316
  %v4318 = vrot.slane %v4196, %v4317
  %v4319 = vadd.f32 %v4307, %v4318
  %v4320 = vadd.f32 %v4308, %v4318
  %v4321 = vadd.f32 %v4309, %v4318
  %v4322 = vadd.f32 %v4310, %v4318
  %v4323 = vadd.f32 %v4311, %v4318
  %v4324 = vadd.f32 %v4312, %v4318
  %v4325 = vadd.f32 %v4313, %v4318
  %v4326 = vadd.f32 %v4314, %v4318
  %s4327 = scalar_lea.vmem %s1, 64
  %v4328 = vld [vmem:[%s4327] sm:$0xff]
  %v4329 = vld [vmem:[%s4327 + $0x8] sm:$0xff]
  %v4330 = vld [vmem:[%s4327 + $0x10] sm:$0xff]
  %v4331 = vld [vmem:[%s4327 + $0x18] sm:$0xff]
  %v4333 = vsel %vm42, %v4319, 0
  %v4336 = vsel %vm42, %v4320, 0
  %v4339 = vsel %vm42, %v4321, 0
  %v4342 = vsel %vm42, %v4322, 0
  %v4345 = vsel %vm42, %v4323, 0
  %v4348 = vsel %vm42, %v4324, 0
  %v4351 = vsel %vm42, %v4325, 0
  %v4354 = vsel %vm42, %v4326, 0
  %4356 = vmatprep.subr.mxu0 0.0
  %4357 = vmatpush1.msra.mxu0 0.0
  %4358 = vmatprep.subr.mxu0 0.0
  %4359 = vmatpush1.msra.mxu0 0.0
  %4360 = vmatprep.subr.mxu0 0.0
  %4361 = vmatpush1.msra.mxu0 0.0
  %4362 = vmatprep.subr.mxu0 0.0
  %4363 = vmatpush1.msra.mxu0 0.0
  %4364 = vmatprep.subr.mxu0 0.0
  %4365 = vmatpush1.msra.mxu0 0.0
  %4366 = vmatprep.subr.mxu0 0.0
  %4367 = vmatpush1.msra.mxu0 0.0
  %4368 = vmatprep.subr.mxu0 0.0
  %4369 = vmatpush1.msra.mxu0 0.0
  %4370 = vmatprep.subr.mxu0 0.0
  %4371 = vmatpush1.msra.mxu0 0.0
  %4372 = vmatprep.subr.mxu0 0.0
  %4373 = vmatpush1.msra.mxu0 0.0
  %4374 = vmatprep.subr.mxu0 0.0
  %4375 = vmatpush1.msra.mxu0 0.0
  %4376 = vmatprep.subr.mxu0 0.0
  %4377 = vmatpush1.msra.mxu0 0.0
  %4378 = vmatprep.subr.mxu0 0.0
  %4379 = vmatpush1.msra.mxu0 0.0
  %4380 = vmatprep.subr.mxu0 0.0
  %4381 = vmatpush1.msra.mxu0 %v4331
  %4382 = vmatprep.subr.mxu0 0.0
  %4383 = vmatpush1.msra.mxu0 %v4330
  %4384 = vmatprep.subr.mxu0 0.0
  %4385 = vmatpush1.msra.mxu0 %v4329
  %4386 = vmatprep.subr.mxu0 0.0
  %4387 = vmatpush1.msra.mxu0 %v4328
  %4388 = vmatprep.subr.mxu0 0.0
  %4389 = vmatpush2.msra.mxu0 0.0
  %4390 = vmatprep.subr.mxu0 0.0
  %4391 = vmatpush2.msra.mxu0 0.0
  %4392 = vmatprep.subr.mxu0 0.0
  %4393 = vmatpush2.msra.mxu0 0.0
  %4394 = vmatprep.subr.mxu0 0.0
  %4395 = vmatpush2.msra.mxu0 0.0
  %4396 = vmatprep.subr.mxu0 0.0
  %4397 = vmatpush2.msra.mxu0 0.0
  %4398 = vmatprep.subr.mxu0 0.0
  %4399 = vmatpush2.msra.mxu0 0.0
  %4400 = vmatprep.subr.mxu0 0.0
  %4401 = vmatpush2.msra.mxu0 0.0
  %4402 = vmatprep.subr.mxu0 0.0
  %4403 = vmatpush2.msra.mxu0 0.0
  %4404 = vmatprep.subr.mxu0 0.0
  %4405 = vmatpush2.msra.mxu0 0.0
  %4406 = vmatprep.subr.mxu0 0.0
  %4407 = vmatpush2.msra.mxu0 0.0
  %4408 = vmatprep.subr.mxu0 0.0
  %4409 = vmatpush2.msra.mxu0 0.0
  %4410 = vmatprep.subr.mxu0 0.0
  %4411 = vmatpush2.msra.mxu0 0.0
  %4412 = vmatprep.subr.mxu0 0.0
  %4413 = vmatpush2.msra.mxu0 0.0
  %4414 = vmatprep.subr.mxu0 0.0
  %4415 = vmatpush2.msra.mxu0 0.0
  %4416 = vmatprep.subr.mxu0 0.0
  %4417 = vmatpush2.msra.mxu0 0.0
  %4418 = vmatprep.subr.mxu0 0.0
  %4419 = vmatpush2.msra.mxu0 0.0
  %4420 = vmatprep.mubr.f32.mxu0 0.0
  %4421 = vmatmul.mubr.f32.gmra.mxu0 %v4333
  %v4422 = vpop.f32.mrf.mxu0
  %v4423 = vadd.f32 0.0, %v4422
  %v4424 = vpop.f32.mrf.mxu0
  %4425 = vmatprep.mubr.f32.mxu0 0.0
  %4426 = vmatmul.mubr.f32.gmra.mxu0 %v4336
  %v4427 = vpop.f32.mrf.mxu0
  %v4428 = vadd.f32 0.0, %v4427
  %v4429 = vpop.f32.mrf.mxu0
  %4430 = vmatprep.mubr.f32.mxu0 0.0
  %4431 = vmatmul.mubr.f32.gmra.mxu0 %v4339
  %v4432 = vpop.f32.mrf.mxu0
  %v4433 = vadd.f32 0.0, %v4432
  %v4434 = vpop.f32.mrf.mxu0
  %4435 = vmatprep.mubr.f32.mxu0 0.0
  %4436 = vmatmul.mubr.f32.gmra.mxu0 %v4342
  %v4437 = vpop.f32.mrf.mxu0
  %v4438 = vadd.f32 0.0, %v4437
  %v4439 = vpop.f32.mrf.mxu0
  %4440 = vmatprep.mubr.f32.mxu0 0.0
  %4441 = vmatmul.mubr.f32.gmra.mxu0 %v4345
  %v4442 = vpop.f32.mrf.mxu0
  %v4443 = vadd.f32 0.0, %v4442
  %v4444 = vpop.f32.mrf.mxu0
  %4445 = vmatprep.mubr.f32.mxu0 0.0
  %4446 = vmatmul.mubr.f32.gmra.mxu0 %v4348
  %v4447 = vpop.f32.mrf.mxu0
  %v4448 = vadd.f32 0.0, %v4447
  %v4449 = vpop.f32.mrf.mxu0
  %4450 = vmatprep.mubr.f32.mxu0 0.0
  %4451 = vmatmul.mubr.f32.gmra.mxu0 %v4351
  %v4452 = vpop.f32.mrf.mxu0
  %v4453 = vadd.f32 0.0, %v4452
  %v4454 = vpop.f32.mrf.mxu0
  %4455 = vmatprep.mubr.f32.mxu0 0.0
  %4456 = vmatmul.mubr.f32.gmra.mxu0 %v4354
  %v4457 = vpop.f32.mrf.mxu0
  %v4458 = vadd.f32 0.0, %v4457
  %v4459 = vpop.f32.mrf.mxu0
  %4460 = vdwg.mxu0
  %s4461 = scalar_lea.vmem %s2, 64
  %v4462 = vld [vmem:[%s4461] sm:$0xff]
  %v4463 = vld [vmem:[%s4461 + $0x8] sm:$0xff]
  %v4464 = vld [vmem:[%s4461 + $0x10] sm:$0xff]
  %v4465 = vld [vmem:[%s4461 + $0x18] sm:$0xff]
  %4466 = vmatprep.subr.mxu0 0.0
  %4467 = vmatpush1.msra.mxu0 0.0
  %4468 = vmatprep.subr.mxu0 0.0
  %4469 = vmatpush1.msra.mxu0 0.0
  %4470 = vmatprep.subr.mxu0 0.0
  %4471 = vmatpush1.msra.mxu0 0.0
  %4472 = vmatprep.subr.mxu0 0.0
  %4473 = vmatpush1.msra.mxu0 0.0
  %4474 = vmatprep.subr.mxu0 0.0
  %4475 = vmatpush1.msra.mxu0 0.0
  %4476 = vmatprep.subr.mxu0 0.0
  %4477 = vmatpush1.msra.mxu0 0.0
  %4478 = vmatprep.subr.mxu0 0.0
  %4479 = vmatpush1.msra.mxu0 0.0
  %4480 = vmatprep.subr.mxu0 0.0
  %4481 = vmatpush1.msra.mxu0 0.0
  %4482 = vmatprep.subr.mxu0 0.0
  %4483 = vmatpush1.msra.mxu0 0.0
  %4484 = vmatprep.subr.mxu0 0.0
  %4485 = vmatpush1.msra.mxu0 0.0
  %4486 = vmatprep.subr.mxu0 0.0
  %4487 = vmatpush1.msra.mxu0 0.0
  %4488 = vmatprep.subr.mxu0 0.0
  %4489 = vmatpush1.msra.mxu0 0.0
  %4490 = vmatprep.subr.mxu0 0.0
  %4491 = vmatpush1.msra.mxu0 %v4465
  %4492 = vmatprep.subr.mxu0 0.0
  %4493 = vmatpush1.msra.mxu0 %v4464
  %4494 = vmatprep.subr.mxu0 0.0
  %4495 = vmatpush1.msra.mxu0 %v4463
  %4496 = vmatprep.subr.mxu0 0.0
  %4497 = vmatpush1.msra.mxu0 %v4462
  %4498 = vmatprep.subr.mxu0 0.0
  %4499 = vmatpush2.msra.mxu0 0.0
  %4500 = vmatprep.subr.mxu0 0.0
  %4501 = vmatpush2.msra.mxu0 0.0
  %4502 = vmatprep.subr.mxu0 0.0
  %4503 = vmatpush2.msra.mxu0 0.0
  %4504 = vmatprep.subr.mxu0 0.0
  %4505 = vmatpush2.msra.mxu0 0.0
  %4506 = vmatprep.subr.mxu0 0.0
  %4507 = vmatpush2.msra.mxu0 0.0
  %4508 = vmatprep.subr.mxu0 0.0
  %4509 = vmatpush2.msra.mxu0 0.0
  %4510 = vmatprep.subr.mxu0 0.0
  %4511 = vmatpush2.msra.mxu0 0.0
  %4512 = vmatprep.subr.mxu0 0.0
  %4513 = vmatpush2.msra.mxu0 0.0
  %4514 = vmatprep.subr.mxu0 0.0
  %4515 = vmatpush2.msra.mxu0 0.0
  %4516 = vmatprep.subr.mxu0 0.0
  %4517 = vmatpush2.msra.mxu0 0.0
  %4518 = vmatprep.subr.mxu0 0.0
  %4519 = vmatpush2.msra.mxu0 0.0
  %4520 = vmatprep.subr.mxu0 0.0
  %4521 = vmatpush2.msra.mxu0 0.0
  %4522 = vmatprep.subr.mxu0 0.0
  %4523 = vmatpush2.msra.mxu0 0.0
  %4524 = vmatprep.subr.mxu0 0.0
  %4525 = vmatpush2.msra.mxu0 0.0
  %4526 = vmatprep.subr.mxu0 0.0
  %4527 = vmatpush2.msra.mxu0 0.0
  %4528 = vmatprep.subr.mxu0 0.0
  %4529 = vmatpush2.msra.mxu0 0.0
  %4530 = vmatprep.mubr.f32.mxu0 0.0
  %4531 = vmatmul.mubr.f32.gmra.mxu0 %v4333
  %v4532 = vpop.f32.mrf.mxu0
  %v4533 = vadd.f32 0.0, %v4532
  %v4534 = vpop.f32.mrf.mxu0
  %4535 = vmatprep.mubr.f32.mxu0 0.0
  %4536 = vmatmul.mubr.f32.gmra.mxu0 %v4336
  %v4537 = vpop.f32.mrf.mxu0
  %v4538 = vadd.f32 0.0, %v4537
  %v4539 = vpop.f32.mrf.mxu0
  %4540 = vmatprep.mubr.f32.mxu0 0.0
  %4541 = vmatmul.mubr.f32.gmra.mxu0 %v4339
  %v4542 = vpop.f32.mrf.mxu0
  %v4543 = vadd.f32 0.0, %v4542
  %v4544 = vpop.f32.mrf.mxu0
  %4545 = vmatprep.mubr.f32.mxu0 0.0
  %4546 = vmatmul.mubr.f32.gmra.mxu0 %v4342
  %v4547 = vpop.f32.mrf.mxu0
  %v4548 = vadd.f32 0.0, %v4547
  %v4549 = vpop.f32.mrf.mxu0
  %4550 = vmatprep.mubr.f32.mxu0 0.0
  %4551 = vmatmul.mubr.f32.gmra.mxu0 %v4345
  %v4552 = vpop.f32.mrf.mxu0
  %v4553 = vadd.f32 0.0, %v4552
  %v4554 = vpop.f32.mrf.mxu0
  %4555 = vmatprep.mubr.f32.mxu0 0.0
  %4556 = vmatmul.mubr.f32.gmra.mxu0 %v4348
  %v4557 = vpop.f32.mrf.mxu0
  %v4558 = vadd.f32 0.0, %v4557
  %v4559 = vpop.f32.mrf.mxu0
  %4560 = vmatprep.mubr.f32.mxu0 0.0
  %4561 = vmatmul.mubr.f32.gmra.mxu0 %v4351
  %v4562 = vpop.f32.mrf.mxu0
  %v4563 = vadd.f32 0.0, %v4562
  %v4564 = vpop.f32.mrf.mxu0
  %4565 = vmatprep.mubr.f32.mxu0 0.0
  %4566 = vmatmul.mubr.f32.gmra.mxu0 %v4354
  %v4567 = vpop.f32.mrf.mxu0
  %v4568 = vadd.f32 0.0, %v4567
  %v4569 = vpop.f32.mrf.mxu0
  %4570 = vdwg.mxu0
  %s4571 = scalar_lea.vmem %s3, 64
  %v4572 = vld [vmem:[%s4571] sm:$0xff]
  %v4573 = vld [vmem:[%s4571 + $0x8] sm:$0xff]
  %v4574 = vld [vmem:[%s4571 + $0x10] sm:$0xff]
  %v4575 = vld [vmem:[%s4571 + $0x18] sm:$0xff]
  %4576 = vmatprep.subr.mxu0 0.0
  %4577 = vmatpush1.msra.mxu0 0.0
  %4578 = vmatprep.subr.mxu0 0.0
  %4579 = vmatpush1.msra.mxu0 0.0
  %4580 = vmatprep.subr.mxu0 0.0
  %4581 = vmatpush1.msra.mxu0 0.0
  %4582 = vmatprep.subr.mxu0 0.0
  %4583 = vmatpush1.msra.mxu0 0.0
  %4584 = vmatprep.subr.mxu0 0.0
  %4585 = vmatpush1.msra.mxu0 0.0
  %4586 = vmatprep.subr.mxu0 0.0
  %4587 = vmatpush1.msra.mxu0 0.0
  %4588 = vmatprep.subr.mxu0 0.0
  %4589 = vmatpush1.msra.mxu0 0.0
  %4590 = vmatprep.subr.mxu0 0.0
  %4591 = vmatpush1.msra.mxu0 0.0
  %4592 = vmatprep.subr.mxu0 0.0
  %4593 = vmatpush1.msra.mxu0 0.0
  %4594 = vmatprep.subr.mxu0 0.0
  %4595 = vmatpush1.msra.mxu0 0.0
  %4596 = vmatprep.subr.mxu0 0.0
  %4597 = vmatpush1.msra.mxu0 0.0
  %4598 = vmatprep.subr.mxu0 0.0
  %4599 = vmatpush1.msra.mxu0 0.0
  %4600 = vmatprep.subr.mxu0 0.0
  %4601 = vmatpush1.msra.mxu0 %v4575
  %4602 = vmatprep.subr.mxu0 0.0
  %4603 = vmatpush1.msra.mxu0 %v4574
  %4604 = vmatprep.subr.mxu0 0.0
  %4605 = vmatpush1.msra.mxu0 %v4573
  %4606 = vmatprep.subr.mxu0 0.0
  %4607 = vmatpush1.msra.mxu0 %v4572
  %4608 = vmatprep.subr.mxu0 0.0
  %4609 = vmatpush2.msra.mxu0 0.0
  %4610 = vmatprep.subr.mxu0 0.0
  %4611 = vmatpush2.msra.mxu0 0.0
  %4612 = vmatprep.subr.mxu0 0.0
  %4613 = vmatpush2.msra.mxu0 0.0
  %4614 = vmatprep.subr.mxu0 0.0
  %4615 = vmatpush2.msra.mxu0 0.0
  %4616 = vmatprep.subr.mxu0 0.0
  %4617 = vmatpush2.msra.mxu0 0.0
  %4618 = vmatprep.subr.mxu0 0.0
  %4619 = vmatpush2.msra.mxu0 0.0
  %4620 = vmatprep.subr.mxu0 0.0
  %4621 = vmatpush2.msra.mxu0 0.0
  %4622 = vmatprep.subr.mxu0 0.0
  %4623 = vmatpush2.msra.mxu0 0.0
  %4624 = vmatprep.subr.mxu0 0.0
  %4625 = vmatpush2.msra.mxu0 0.0
  %4626 = vmatprep.subr.mxu0 0.0
  %4627 = vmatpush2.msra.mxu0 0.0
  %4628 = vmatprep.subr.mxu0 0.0
  %4629 = vmatpush2.msra.mxu0 0.0
  %4630 = vmatprep.subr.mxu0 0.0
  %4631 = vmatpush2.msra.mxu0 0.0
  %4632 = vmatprep.subr.mxu0 0.0
  %4633 = vmatpush2.msra.mxu0 0.0
  %4634 = vmatprep.subr.mxu0 0.0
  %4635 = vmatpush2.msra.mxu0 0.0
  %4636 = vmatprep.subr.mxu0 0.0
  %4637 = vmatpush2.msra.mxu0 0.0
  %4638 = vmatprep.subr.mxu0 0.0
  %4639 = vmatpush2.msra.mxu0 0.0
  %4640 = vmatprep.mubr.f32.mxu0 0.0
  %4641 = vmatmul.mubr.f32.gmra.mxu0 %v4333
  %v4642 = vpop.f32.mrf.mxu0
  %v4643 = vadd.f32 0.0, %v4642
  %v4644 = vpop.f32.mrf.mxu0
  %4645 = vmatprep.mubr.f32.mxu0 0.0
  %4646 = vmatmul.mubr.f32.gmra.mxu0 %v4336
  %v4647 = vpop.f32.mrf.mxu0
  %v4648 = vadd.f32 0.0, %v4647
  %v4649 = vpop.f32.mrf.mxu0
  %4650 = vmatprep.mubr.f32.mxu0 0.0
  %4651 = vmatmul.mubr.f32.gmra.mxu0 %v4339
  %v4652 = vpop.f32.mrf.mxu0
  %v4653 = vadd.f32 0.0, %v4652
  %v4654 = vpop.f32.mrf.mxu0
  %4655 = vmatprep.mubr.f32.mxu0 0.0
  %4656 = vmatmul.mubr.f32.gmra.mxu0 %v4342
  %v4657 = vpop.f32.mrf.mxu0
  %v4658 = vadd.f32 0.0, %v4657
  %v4659 = vpop.f32.mrf.mxu0
  %4660 = vmatprep.mubr.f32.mxu0 0.0
  %4661 = vmatmul.mubr.f32.gmra.mxu0 %v4345
  %v4662 = vpop.f32.mrf.mxu0
  %v4663 = vadd.f32 0.0, %v4662
  %v4664 = vpop.f32.mrf.mxu0
  %4665 = vmatprep.mubr.f32.mxu0 0.0
  %4666 = vmatmul.mubr.f32.gmra.mxu0 %v4348
  %v4667 = vpop.f32.mrf.mxu0
  %v4668 = vadd.f32 0.0, %v4667
  %v4669 = vpop.f32.mrf.mxu0
  %4670 = vmatprep.mubr.f32.mxu0 0.0
  %4671 = vmatmul.mubr.f32.gmra.mxu0 %v4351
  %v4672 = vpop.f32.mrf.mxu0
  %v4673 = vadd.f32 0.0, %v4672
  %v4674 = vpop.f32.mrf.mxu0
  %4675 = vmatprep.mubr.f32.mxu0 0.0
  %4676 = vmatmul.mubr.f32.gmra.mxu0 %v4354
  %v4677 = vpop.f32.mrf.mxu0
  %v4678 = vadd.f32 0.0, %v4677
  %v4679 = vpop.f32.mrf.mxu0
  %4680 = vdwg.mxu0
  %v4682 = vsel %vm523, %v4423, 0
  %v4685 = vsel %vm523, %v4533, 0
  %4687 = vmatprep.subr.mxu0 0.0
  %4688 = vmatpush1.xpose.msra.mxu0 0.0
  %4689 = vmatprep.subr.mxu0 0.0
  %4690 = vmatpush1.xpose.msra.mxu0 0.0
  %4691 = vmatprep.subr.mxu0 0.0
  %4692 = vmatpush1.xpose.msra.mxu0 0.0
  %4693 = vmatprep.subr.mxu0 0.0
  %4694 = vmatpush1.xpose.msra.mxu0 0.0
  %4695 = vmatprep.subr.mxu0 0.0
  %4696 = vmatpush1.xpose.msra.mxu0 0.0
  %4697 = vmatprep.subr.mxu0 0.0
  %4698 = vmatpush1.xpose.msra.mxu0 0.0
  %4699 = vmatprep.subr.mxu0 0.0
  %4700 = vmatpush1.xpose.msra.mxu0 0.0
  %4701 = vmatprep.subr.mxu0 0.0
  %4702 = vmatpush1.xpose.msra.mxu0 0.0
  %4703 = vmatprep.subr.mxu0 0.0
  %4704 = vmatpush1.xpose.msra.mxu0 0.0
  %4705 = vmatprep.subr.mxu0 0.0
  %4706 = vmatpush1.xpose.msra.mxu0 0.0
  %4707 = vmatprep.subr.mxu0 0.0
  %4708 = vmatpush1.xpose.msra.mxu0 0.0
  %4709 = vmatprep.subr.mxu0 0.0
  %4710 = vmatpush1.xpose.msra.mxu0 0.0
  %4711 = vmatprep.subr.mxu0 0.0
  %4712 = vmatpush1.xpose.msra.mxu0 0.0
  %4713 = vmatprep.subr.mxu0 0.0
  %4714 = vmatpush1.xpose.msra.mxu0 0.0
  %4715 = vmatprep.subr.mxu0 0.0
  %4716 = vmatpush1.xpose.msra.mxu0 0.0
  %4717 = vmatprep.subr.mxu0 0.0
  %4718 = vmatpush1.xpose.msra.mxu0 %v4685
  %4719 = vmatprep.subr.mxu0 0.0
  %4720 = vmatpush2.xpose.msra.mxu0 0.0
  %4721 = vmatprep.subr.mxu0 0.0
  %4722 = vmatpush2.xpose.msra.mxu0 0.0
  %4723 = vmatprep.subr.mxu0 0.0
  %4724 = vmatpush2.xpose.msra.mxu0 0.0
  %4725 = vmatprep.subr.mxu0 0.0
  %4726 = vmatpush2.xpose.msra.mxu0 0.0
  %4727 = vmatprep.subr.mxu0 0.0
  %4728 = vmatpush2.xpose.msra.mxu0 0.0
  %4729 = vmatprep.subr.mxu0 0.0
  %4730 = vmatpush2.xpose.msra.mxu0 0.0
  %4731 = vmatprep.subr.mxu0 0.0
  %4732 = vmatpush2.xpose.msra.mxu0 0.0
  %4733 = vmatprep.subr.mxu0 0.0
  %4734 = vmatpush2.xpose.msra.mxu0 0.0
  %4735 = vmatprep.subr.mxu0 0.0
  %4736 = vmatpush2.xpose.msra.mxu0 0.0
  %4737 = vmatprep.subr.mxu0 0.0
  %4738 = vmatpush2.xpose.msra.mxu0 0.0
  %4739 = vmatprep.subr.mxu0 0.0
  %4740 = vmatpush2.xpose.msra.mxu0 0.0
  %4741 = vmatprep.subr.mxu0 0.0
  %4742 = vmatpush2.xpose.msra.mxu0 0.0
  %4743 = vmatprep.subr.mxu0 0.0
  %4744 = vmatpush2.xpose.msra.mxu0 0.0
  %4745 = vmatprep.subr.mxu0 0.0
  %4746 = vmatpush2.xpose.msra.mxu0 0.0
  %4747 = vmatprep.subr.mxu0 0.0
  %4748 = vmatpush2.xpose.msra.mxu0 0.0
  %4749 = vmatprep.subr.mxu0 0.0
  %4750 = vmatpush2.xpose.msra.mxu0 0.0
  %4751 = vmatprep.mubr.f32.mxu0 0.0
  %4752 = vmatmul.mubr.f32.gmra.mxu0 %v4682
  %v4753 = vpop.f32.mrf.mxu0
  %v4754 = vadd.f32 0.0, %v4753
  %v4755 = vpop.f32.mrf.mxu0
  %4756 = vdwg.mxu0
  %v4758 = vsel %vm523, %v4428, 0
  %v4761 = vsel %vm523, %v4538, 0
  %4763 = vmatprep.subr.mxu0 0.0
  %4764 = vmatpush1.xpose.msra.mxu0 0.0
  %4765 = vmatprep.subr.mxu0 0.0
  %4766 = vmatpush1.xpose.msra.mxu0 0.0
  %4767 = vmatprep.subr.mxu0 0.0
  %4768 = vmatpush1.xpose.msra.mxu0 0.0
  %4769 = vmatprep.subr.mxu0 0.0
  %4770 = vmatpush1.xpose.msra.mxu0 0.0
  %4771 = vmatprep.subr.mxu0 0.0
  %4772 = vmatpush1.xpose.msra.mxu0 0.0
  %4773 = vmatprep.subr.mxu0 0.0
  %4774 = vmatpush1.xpose.msra.mxu0 0.0
  %4775 = vmatprep.subr.mxu0 0.0
  %4776 = vmatpush1.xpose.msra.mxu0 0.0
  %4777 = vmatprep.subr.mxu0 0.0
  %4778 = vmatpush1.xpose.msra.mxu0 0.0
  %4779 = vmatprep.subr.mxu0 0.0
  %4780 = vmatpush1.xpose.msra.mxu0 0.0
  %4781 = vmatprep.subr.mxu0 0.0
  %4782 = vmatpush1.xpose.msra.mxu0 0.0
  %4783 = vmatprep.subr.mxu0 0.0
  %4784 = vmatpush1.xpose.msra.mxu0 0.0
  %4785 = vmatprep.subr.mxu0 0.0
  %4786 = vmatpush1.xpose.msra.mxu0 0.0
  %4787 = vmatprep.subr.mxu0 0.0
  %4788 = vmatpush1.xpose.msra.mxu0 0.0
  %4789 = vmatprep.subr.mxu0 0.0
  %4790 = vmatpush1.xpose.msra.mxu0 0.0
  %4791 = vmatprep.subr.mxu0 0.0
  %4792 = vmatpush1.xpose.msra.mxu0 0.0
  %4793 = vmatprep.subr.mxu0 0.0
  %4794 = vmatpush1.xpose.msra.mxu0 %v4761
  %4795 = vmatprep.subr.mxu0 0.0
  %4796 = vmatpush2.xpose.msra.mxu0 0.0
  %4797 = vmatprep.subr.mxu0 0.0
  %4798 = vmatpush2.xpose.msra.mxu0 0.0
  %4799 = vmatprep.subr.mxu0 0.0
  %4800 = vmatpush2.xpose.msra.mxu0 0.0
  %4801 = vmatprep.subr.mxu0 0.0
  %4802 = vmatpush2.xpose.msra.mxu0 0.0
  %4803 = vmatprep.subr.mxu0 0.0
  %4804 = vmatpush2.xpose.msra.mxu0 0.0
  %4805 = vmatprep.subr.mxu0 0.0
  %4806 = vmatpush2.xpose.msra.mxu0 0.0
  %4807 = vmatprep.subr.mxu0 0.0
  %4808 = vmatpush2.xpose.msra.mxu0 0.0
  %4809 = vmatprep.subr.mxu0 0.0
  %4810 = vmatpush2.xpose.msra.mxu0 0.0
  %4811 = vmatprep.subr.mxu0 0.0
  %4812 = vmatpush2.xpose.msra.mxu0 0.0
  %4813 = vmatprep.subr.mxu0 0.0
  %4814 = vmatpush2.xpose.msra.mxu0 0.0
  %4815 = vmatprep.subr.mxu0 0.0
  %4816 = vmatpush2.xpose.msra.mxu0 0.0
  %4817 = vmatprep.subr.mxu0 0.0
  %4818 = vmatpush2.xpose.msra.mxu0 0.0
  %4819 = vmatprep.subr.mxu0 0.0
  %4820 = vmatpush2.xpose.msra.mxu0 0.0
  %4821 = vmatprep.subr.mxu0 0.0
  %4822 = vmatpush2.xpose.msra.mxu0 0.0
  %4823 = vmatprep.subr.mxu0 0.0
  %4824 = vmatpush2.xpose.msra.mxu0 0.0
  %4825 = vmatprep.subr.mxu0 0.0
  %4826 = vmatpush2.xpose.msra.mxu0 0.0
  %4827 = vmatprep.mubr.f32.mxu0 0.0
  %4828 = vmatmul.mubr.f32.gmra.mxu0 %v4758
  %v4829 = vpop.f32.mrf.mxu0
  %v4830 = vadd.f32 0.0, %v4829
  %v4831 = vpop.f32.mrf.mxu0
  %4832 = vdwg.mxu0
  %v4834 = vsel %vm523, %v4433, 0
  %v4837 = vsel %vm523, %v4543, 0
  %4839 = vmatprep.subr.mxu0 0.0
  %4840 = vmatpush1.xpose.msra.mxu0 0.0
  %4841 = vmatprep.subr.mxu0 0.0
  %4842 = vmatpush1.xpose.msra.mxu0 0.0
  %4843 = vmatprep.subr.mxu0 0.0
  %4844 = vmatpush1.xpose.msra.mxu0 0.0
  %4845 = vmatprep.subr.mxu0 0.0
  %4846 = vmatpush1.xpose.msra.mxu0 0.0
  %4847 = vmatprep.subr.mxu0 0.0
  %4848 = vmatpush1.xpose.msra.mxu0 0.0
  %4849 = vmatprep.subr.mxu0 0.0
  %4850 = vmatpush1.xpose.msra.mxu0 0.0
  %4851 = vmatprep.subr.mxu0 0.0
  %4852 = vmatpush1.xpose.msra.mxu0 0.0
  %4853 = vmatprep.subr.mxu0 0.0
  %4854 = vmatpush1.xpose.msra.mxu0 0.0
  %4855 = vmatprep.subr.mxu0 0.0
  %4856 = vmatpush1.xpose.msra.mxu0 0.0
  %4857 = vmatprep.subr.mxu0 0.0
  %4858 = vmatpush1.xpose.msra.mxu0 0.0
  %4859 = vmatprep.subr.mxu0 0.0
  %4860 = vmatpush1.xpose.msra.mxu0 0.0
  %4861 = vmatprep.subr.mxu0 0.0
  %4862 = vmatpush1.xpose.msra.mxu0 0.0
  %4863 = vmatprep.subr.mxu0 0.0
  %4864 = vmatpush1.xpose.msra.mxu0 0.0
  %4865 = vmatprep.subr.mxu0 0.0
  %4866 = vmatpush1.xpose.msra.mxu0 0.0
  %4867 = vmatprep.subr.mxu0 0.0
  %4868 = vmatpush1.xpose.msra.mxu0 0.0
  %4869 = vmatprep.subr.mxu0 0.0
  %4870 = vmatpush1.xpose.msra.mxu0 %v4837
  %4871 = vmatprep.subr.mxu0 0.0
  %4872 = vmatpush2.xpose.msra.mxu0 0.0
  %4873 = vmatprep.subr.mxu0 0.0
  %4874 = vmatpush2.xpose.msra.mxu0 0.0
  %4875 = vmatprep.subr.mxu0 0.0
  %4876 = vmatpush2.xpose.msra.mxu0 0.0
  %4877 = vmatprep.subr.mxu0 0.0
  %4878 = vmatpush2.xpose.msra.mxu0 0.0
  %4879 = vmatprep.subr.mxu0 0.0
  %4880 = vmatpush2.xpose.msra.mxu0 0.0
  %4881 = vmatprep.subr.mxu0 0.0
  %4882 = vmatpush2.xpose.msra.mxu0 0.0
  %4883 = vmatprep.subr.mxu0 0.0
  %4884 = vmatpush2.xpose.msra.mxu0 0.0
  %4885 = vmatprep.subr.mxu0 0.0
  %4886 = vmatpush2.xpose.msra.mxu0 0.0
  %4887 = vmatprep.subr.mxu0 0.0
  %4888 = vmatpush2.xpose.msra.mxu0 0.0
  %4889 = vmatprep.subr.mxu0 0.0
  %4890 = vmatpush2.xpose.msra.mxu0 0.0
  %4891 = vmatprep.subr.mxu0 0.0
  %4892 = vmatpush2.xpose.msra.mxu0 0.0
  %4893 = vmatprep.subr.mxu0 0.0
  %4894 = vmatpush2.xpose.msra.mxu0 0.0
  %4895 = vmatprep.subr.mxu0 0.0
  %4896 = vmatpush2.xpose.msra.mxu0 0.0
  %4897 = vmatprep.subr.mxu0 0.0
  %4898 = vmatpush2.xpose.msra.mxu0 0.0
  %4899 = vmatprep.subr.mxu0 0.0
  %4900 = vmatpush2.xpose.msra.mxu0 0.0
  %4901 = vmatprep.subr.mxu0 0.0
  %4902 = vmatpush2.xpose.msra.mxu0 0.0
  %4903 = vmatprep.mubr.f32.mxu0 0.0
  %4904 = vmatmul.mubr.f32.gmra.mxu0 %v4834
  %v4905 = vpop.f32.mrf.mxu0
  %v4906 = vadd.f32 0.0, %v4905
  %v4907 = vpop.f32.mrf.mxu0
  %4908 = vdwg.mxu0
  %v4910 = vsel %vm523, %v4438, 0
  %v4913 = vsel %vm523, %v4548, 0
  %4915 = vmatprep.subr.mxu0 0.0
  %4916 = vmatpush1.xpose.msra.mxu0 0.0
  %4917 = vmatprep.subr.mxu0 0.0
  %4918 = vmatpush1.xpose.msra.mxu0 0.0
  %4919 = vmatprep.subr.mxu0 0.0
  %4920 = vmatpush1.xpose.msra.mxu0 0.0
  %4921 = vmatprep.subr.mxu0 0.0
  %4922 = vmatpush1.xpose.msra.mxu0 0.0
  %4923 = vmatprep.subr.mxu0 0.0
  %4924 = vmatpush1.xpose.msra.mxu0 0.0
  %4925 = vmatprep.subr.mxu0 0.0
  %4926 = vmatpush1.xpose.msra.mxu0 0.0
  %4927 = vmatprep.subr.mxu0 0.0
  %4928 = vmatpush1.xpose.msra.mxu0 0.0
  %4929 = vmatprep.subr.mxu0 0.0
  %4930 = vmatpush1.xpose.msra.mxu0 0.0
  %4931 = vmatprep.subr.mxu0 0.0
  %4932 = vmatpush1.xpose.msra.mxu0 0.0
  %4933 = vmatprep.subr.mxu0 0.0
  %4934 = vmatpush1.xpose.msra.mxu0 0.0
  %4935 = vmatprep.subr.mxu0 0.0
  %4936 = vmatpush1.xpose.msra.mxu0 0.0
  %4937 = vmatprep.subr.mxu0 0.0
  %4938 = vmatpush1.xpose.msra.mxu0 0.0
  %4939 = vmatprep.subr.mxu0 0.0
  %4940 = vmatpush1.xpose.msra.mxu0 0.0
  %4941 = vmatprep.subr.mxu0 0.0
  %4942 = vmatpush1.xpose.msra.mxu0 0.0
  %4943 = vmatprep.subr.mxu0 0.0
  %4944 = vmatpush1.xpose.msra.mxu0 0.0
  %4945 = vmatprep.subr.mxu0 0.0
  %4946 = vmatpush1.xpose.msra.mxu0 %v4913
  %4947 = vmatprep.subr.mxu0 0.0
  %4948 = vmatpush2.xpose.msra.mxu0 0.0
  %4949 = vmatprep.subr.mxu0 0.0
  %4950 = vmatpush2.xpose.msra.mxu0 0.0
  %4951 = vmatprep.subr.mxu0 0.0
  %4952 = vmatpush2.xpose.msra.mxu0 0.0
  %4953 = vmatprep.subr.mxu0 0.0
  %4954 = vmatpush2.xpose.msra.mxu0 0.0
  %4955 = vmatprep.subr.mxu0 0.0
  %4956 = vmatpush2.xpose.msra.mxu0 0.0
  %4957 = vmatprep.subr.mxu0 0.0
  %4958 = vmatpush2.xpose.msra.mxu0 0.0
  %4959 = vmatprep.subr.mxu0 0.0
  %4960 = vmatpush2.xpose.msra.mxu0 0.0
  %4961 = vmatprep.subr.mxu0 0.0
  %4962 = vmatpush2.xpose.msra.mxu0 0.0
  %4963 = vmatprep.subr.mxu0 0.0
  %4964 = vmatpush2.xpose.msra.mxu0 0.0
  %4965 = vmatprep.subr.mxu0 0.0
  %4966 = vmatpush2.xpose.msra.mxu0 0.0
  %4967 = vmatprep.subr.mxu0 0.0
  %4968 = vmatpush2.xpose.msra.mxu0 0.0
  %4969 = vmatprep.subr.mxu0 0.0
  %4970 = vmatpush2.xpose.msra.mxu0 0.0
  %4971 = vmatprep.subr.mxu0 0.0
  %4972 = vmatpush2.xpose.msra.mxu0 0.0
  %4973 = vmatprep.subr.mxu0 0.0
  %4974 = vmatpush2.xpose.msra.mxu0 0.0
  %4975 = vmatprep.subr.mxu0 0.0
  %4976 = vmatpush2.xpose.msra.mxu0 0.0
  %4977 = vmatprep.subr.mxu0 0.0
  %4978 = vmatpush2.xpose.msra.mxu0 0.0
  %4979 = vmatprep.mubr.f32.mxu0 0.0
  %4980 = vmatmul.mubr.f32.gmra.mxu0 %v4910
  %v4981 = vpop.f32.mrf.mxu0
  %v4982 = vadd.f32 0.0, %v4981
  %v4983 = vpop.f32.mrf.mxu0
  %4984 = vdwg.mxu0
  %v4986 = vsel %vm523, %v4443, 0
  %v4989 = vsel %vm523, %v4553, 0
  %4991 = vmatprep.subr.mxu0 0.0
  %4992 = vmatpush1.xpose.msra.mxu0 0.0
  %4993 = vmatprep.subr.mxu0 0.0
  %4994 = vmatpush1.xpose.msra.mxu0 0.0
  %4995 = vmatprep.subr.mxu0 0.0
  %4996 = vmatpush1.xpose.msra.mxu0 0.0
  %4997 = vmatprep.subr.mxu0 0.0
  %4998 = vmatpush1.xpose.msra.mxu0 0.0
  %4999 = vmatprep.subr.mxu0 0.0
  %5000 = vmatpush1.xpose.msra.mxu0 0.0
  %5001 = vmatprep.subr.mxu0 0.0
  %5002 = vmatpush1.xpose.msra.mxu0 0.0
  %5003 = vmatprep.subr.mxu0 0.0
  %5004 = vmatpush1.xpose.msra.mxu0 0.0
  %5005 = vmatprep.subr.mxu0 0.0
  %5006 = vmatpush1.xpose.msra.mxu0 0.0
  %5007 = vmatprep.subr.mxu0 0.0
  %5008 = vmatpush1.xpose.msra.mxu0 0.0
  %5009 = vmatprep.subr.mxu0 0.0
  %5010 = vmatpush1.xpose.msra.mxu0 0.0
  %5011 = vmatprep.subr.mxu0 0.0
  %5012 = vmatpush1.xpose.msra.mxu0 0.0
  %5013 = vmatprep.subr.mxu0 0.0
  %5014 = vmatpush1.xpose.msra.mxu0 0.0
  %5015 = vmatprep.subr.mxu0 0.0
  %5016 = vmatpush1.xpose.msra.mxu0 0.0
  %5017 = vmatprep.subr.mxu0 0.0
  %5018 = vmatpush1.xpose.msra.mxu0 0.0
  %5019 = vmatprep.subr.mxu0 0.0
  %5020 = vmatpush1.xpose.msra.mxu0 0.0
  %5021 = vmatprep.subr.mxu0 0.0
  %5022 = vmatpush1.xpose.msra.mxu0 %v4989
  %5023 = vmatprep.subr.mxu0 0.0
  %5024 = vmatpush2.xpose.msra.mxu0 0.0
  %5025 = vmatprep.subr.mxu0 0.0
  %5026 = vmatpush2.xpose.msra.mxu0 0.0
  %5027 = vmatprep.subr.mxu0 0.0
  %5028 = vmatpush2.xpose.msra.mxu0 0.0
  %5029 = vmatprep.subr.mxu0 0.0
  %5030 = vmatpush2.xpose.msra.mxu0 0.0
  %5031 = vmatprep.subr.mxu0 0.0
  %5032 = vmatpush2.xpose.msra.mxu0 0.0
  %5033 = vmatprep.subr.mxu0 0.0
  %5034 = vmatpush2.xpose.msra.mxu0 0.0
  %5035 = vmatprep.subr.mxu0 0.0
  %5036 = vmatpush2.xpose.msra.mxu0 0.0
  %5037 = vmatprep.subr.mxu0 0.0
  %5038 = vmatpush2.xpose.msra.mxu0 0.0
  %5039 = vmatprep.subr.mxu0 0.0
  %5040 = vmatpush2.xpose.msra.mxu0 0.0
  %5041 = vmatprep.subr.mxu0 0.0
  %5042 = vmatpush2.xpose.msra.mxu0 0.0
  %5043 = vmatprep.subr.mxu0 0.0
  %5044 = vmatpush2.xpose.msra.mxu0 0.0
  %5045 = vmatprep.subr.mxu0 0.0
  %5046 = vmatpush2.xpose.msra.mxu0 0.0
  %5047 = vmatprep.subr.mxu0 0.0
  %5048 = vmatpush2.xpose.msra.mxu0 0.0
  %5049 = vmatprep.subr.mxu0 0.0
  %5050 = vmatpush2.xpose.msra.mxu0 0.0
  %5051 = vmatprep.subr.mxu0 0.0
  %5052 = vmatpush2.xpose.msra.mxu0 0.0
  %5053 = vmatprep.subr.mxu0 0.0
  %5054 = vmatpush2.xpose.msra.mxu0 0.0
  %5055 = vmatprep.mubr.f32.mxu0 0.0
  %5056 = vmatmul.mubr.f32.gmra.mxu0 %v4986
  %v5057 = vpop.f32.mrf.mxu0
  %v5058 = vadd.f32 0.0, %v5057
  %v5059 = vpop.f32.mrf.mxu0
  %5060 = vdwg.mxu0
  %v5062 = vsel %vm523, %v4448, 0
  %v5065 = vsel %vm523, %v4558, 0
  %5067 = vmatprep.subr.mxu0 0.0
  %5068 = vmatpush1.xpose.msra.mxu0 0.0
  %5069 = vmatprep.subr.mxu0 0.0
  %5070 = vmatpush1.xpose.msra.mxu0 0.0
  %5071 = vmatprep.subr.mxu0 0.0
  %5072 = vmatpush1.xpose.msra.mxu0 0.0
  %5073 = vmatprep.subr.mxu0 0.0
  %5074 = vmatpush1.xpose.msra.mxu0 0.0
  %5075 = vmatprep.subr.mxu0 0.0
  %5076 = vmatpush1.xpose.msra.mxu0 0.0
  %5077 = vmatprep.subr.mxu0 0.0
  %5078 = vmatpush1.xpose.msra.mxu0 0.0
  %5079 = vmatprep.subr.mxu0 0.0
  %5080 = vmatpush1.xpose.msra.mxu0 0.0
  %5081 = vmatprep.subr.mxu0 0.0
  %5082 = vmatpush1.xpose.msra.mxu0 0.0
  %5083 = vmatprep.subr.mxu0 0.0
  %5084 = vmatpush1.xpose.msra.mxu0 0.0
  %5085 = vmatprep.subr.mxu0 0.0
  %5086 = vmatpush1.xpose.msra.mxu0 0.0
  %5087 = vmatprep.subr.mxu0 0.0
  %5088 = vmatpush1.xpose.msra.mxu0 0.0
  %5089 = vmatprep.subr.mxu0 0.0
  %5090 = vmatpush1.xpose.msra.mxu0 0.0
  %5091 = vmatprep.subr.mxu0 0.0
  %5092 = vmatpush1.xpose.msra.mxu0 0.0
  %5093 = vmatprep.subr.mxu0 0.0
  %5094 = vmatpush1.xpose.msra.mxu0 0.0
  %5095 = vmatprep.subr.mxu0 0.0
  %5096 = vmatpush1.xpose.msra.mxu0 0.0
  %5097 = vmatprep.subr.mxu0 0.0
  %5098 = vmatpush1.xpose.msra.mxu0 %v5065
  %5099 = vmatprep.subr.mxu0 0.0
  %5100 = vmatpush2.xpose.msra.mxu0 0.0
  %5101 = vmatprep.subr.mxu0 0.0
  %5102 = vmatpush2.xpose.msra.mxu0 0.0
  %5103 = vmatprep.subr.mxu0 0.0
  %5104 = vmatpush2.xpose.msra.mxu0 0.0
  %5105 = vmatprep.subr.mxu0 0.0
  %5106 = vmatpush2.xpose.msra.mxu0 0.0
  %5107 = vmatprep.subr.mxu0 0.0
  %5108 = vmatpush2.xpose.msra.mxu0 0.0
  %5109 = vmatprep.subr.mxu0 0.0
  %5110 = vmatpush2.xpose.msra.mxu0 0.0
  %5111 = vmatprep.subr.mxu0 0.0
  %5112 = vmatpush2.xpose.msra.mxu0 0.0
  %5113 = vmatprep.subr.mxu0 0.0
  %5114 = vmatpush2.xpose.msra.mxu0 0.0
  %5115 = vmatprep.subr.mxu0 0.0
  %5116 = vmatpush2.xpose.msra.mxu0 0.0
  %5117 = vmatprep.subr.mxu0 0.0
  %5118 = vmatpush2.xpose.msra.mxu0 0.0
  %5119 = vmatprep.subr.mxu0 0.0
  %5120 = vmatpush2.xpose.msra.mxu0 0.0
  %5121 = vmatprep.subr.mxu0 0.0
  %5122 = vmatpush2.xpose.msra.mxu0 0.0
  %5123 = vmatprep.subr.mxu0 0.0
  %5124 = vmatpush2.xpose.msra.mxu0 0.0
  %5125 = vmatprep.subr.mxu0 0.0
  %5126 = vmatpush2.xpose.msra.mxu0 0.0
  %5127 = vmatprep.subr.mxu0 0.0
  %5128 = vmatpush2.xpose.msra.mxu0 0.0
  %5129 = vmatprep.subr.mxu0 0.0
  %5130 = vmatpush2.xpose.msra.mxu0 0.0
  %5131 = vmatprep.mubr.f32.mxu0 0.0
  %5132 = vmatmul.mubr.f32.gmra.mxu0 %v5062
  %v5133 = vpop.f32.mrf.mxu0
  %v5134 = vadd.f32 0.0, %v5133
  %v5135 = vpop.f32.mrf.mxu0
  %5136 = vdwg.mxu0
  %v5138 = vsel %vm523, %v4453, 0
  %v5141 = vsel %vm523, %v4563, 0
  %5143 = vmatprep.subr.mxu0 0.0
  %5144 = vmatpush1.xpose.msra.mxu0 0.0
  %5145 = vmatprep.subr.mxu0 0.0
  %5146 = vmatpush1.xpose.msra.mxu0 0.0
  %5147 = vmatprep.subr.mxu0 0.0
  %5148 = vmatpush1.xpose.msra.mxu0 0.0
  %5149 = vmatprep.subr.mxu0 0.0
  %5150 = vmatpush1.xpose.msra.mxu0 0.0
  %5151 = vmatprep.subr.mxu0 0.0
  %5152 = vmatpush1.xpose.msra.mxu0 0.0
  %5153 = vmatprep.subr.mxu0 0.0
  %5154 = vmatpush1.xpose.msra.mxu0 0.0
  %5155 = vmatprep.subr.mxu0 0.0
  %5156 = vmatpush1.xpose.msra.mxu0 0.0
  %5157 = vmatprep.subr.mxu0 0.0
  %5158 = vmatpush1.xpose.msra.mxu0 0.0
  %5159 = vmatprep.subr.mxu0 0.0
  %5160 = vmatpush1.xpose.msra.mxu0 0.0
  %5161 = vmatprep.subr.mxu0 0.0
  %5162 = vmatpush1.xpose.msra.mxu0 0.0
  %5163 = vmatprep.subr.mxu0 0.0
  %5164 = vmatpush1.xpose.msra.mxu0 0.0
  %5165 = vmatprep.subr.mxu0 0.0
  %5166 = vmatpush1.xpose.msra.mxu0 0.0
  %5167 = vmatprep.subr.mxu0 0.0
  %5168 = vmatpush1.xpose.msra.mxu0 0.0
  %5169 = vmatprep.subr.mxu0 0.0
  %5170 = vmatpush1.xpose.msra.mxu0 0.0
  %5171 = vmatprep.subr.mxu0 0.0
  %5172 = vmatpush1.xpose.msra.mxu0 0.0
  %5173 = vmatprep.subr.mxu0 0.0
  %5174 = vmatpush1.xpose.msra.mxu0 %v5141
  %5175 = vmatprep.subr.mxu0 0.0
  %5176 = vmatpush2.xpose.msra.mxu0 0.0
  %5177 = vmatprep.subr.mxu0 0.0
  %5178 = vmatpush2.xpose.msra.mxu0 0.0
  %5179 = vmatprep.subr.mxu0 0.0
  %5180 = vmatpush2.xpose.msra.mxu0 0.0
  %5181 = vmatprep.subr.mxu0 0.0
  %5182 = vmatpush2.xpose.msra.mxu0 0.0
  %5183 = vmatprep.subr.mxu0 0.0
  %5184 = vmatpush2.xpose.msra.mxu0 0.0
  %5185 = vmatprep.subr.mxu0 0.0
  %5186 = vmatpush2.xpose.msra.mxu0 0.0
  %5187 = vmatprep.subr.mxu0 0.0
  %5188 = vmatpush2.xpose.msra.mxu0 0.0
  %5189 = vmatprep.subr.mxu0 0.0
  %5190 = vmatpush2.xpose.msra.mxu0 0.0
  %5191 = vmatprep.subr.mxu0 0.0
  %5192 = vmatpush2.xpose.msra.mxu0 0.0
  %5193 = vmatprep.subr.mxu0 0.0
  %5194 = vmatpush2.xpose.msra.mxu0 0.0
  %5195 = vmatprep.subr.mxu0 0.0
  %5196 = vmatpush2.xpose.msra.mxu0 0.0
  %5197 = vmatprep.subr.mxu0 0.0
  %5198 = vmatpush2.xpose.msra.mxu0 0.0
  %5199 = vmatprep.subr.mxu0 0.0
  %5200 = vmatpush2.xpose.msra.mxu0 0.0
  %5201 = vmatprep.subr.mxu0 0.0
  %5202 = vmatpush2.xpose.msra.mxu0 0.0
  %5203 = vmatprep.subr.mxu0 0.0
  %5204 = vmatpush2.xpose.msra.mxu0 0.0
  %5205 = vmatprep.subr.mxu0 0.0
  %5206 = vmatpush2.xpose.msra.mxu0 0.0
  %5207 = vmatprep.mubr.f32.mxu0 0.0
  %5208 = vmatmul.mubr.f32.gmra.mxu0 %v5138
  %v5209 = vpop.f32.mrf.mxu0
  %v5210 = vadd.f32 0.0, %v5209
  %v5211 = vpop.f32.mrf.mxu0
  %5212 = vdwg.mxu0
  %v5214 = vsel %vm523, %v4458, 0
  %v5217 = vsel %vm523, %v4568, 0
  %5219 = vmatprep.subr.mxu0 0.0
  %5220 = vmatpush1.xpose.msra.mxu0 0.0
  %5221 = vmatprep.subr.mxu0 0.0
  %5222 = vmatpush1.xpose.msra.mxu0 0.0
  %5223 = vmatprep.subr.mxu0 0.0
  %5224 = vmatpush1.xpose.msra.mxu0 0.0
  %5225 = vmatprep.subr.mxu0 0.0
  %5226 = vmatpush1.xpose.msra.mxu0 0.0
  %5227 = vmatprep.subr.mxu0 0.0
  %5228 = vmatpush1.xpose.msra.mxu0 0.0
  %5229 = vmatprep.subr.mxu0 0.0
  %5230 = vmatpush1.xpose.msra.mxu0 0.0
  %5231 = vmatprep.subr.mxu0 0.0
  %5232 = vmatpush1.xpose.msra.mxu0 0.0
  %5233 = vmatprep.subr.mxu0 0.0
  %5234 = vmatpush1.xpose.msra.mxu0 0.0
  %5235 = vmatprep.subr.mxu0 0.0
  %5236 = vmatpush1.xpose.msra.mxu0 0.0
  %5237 = vmatprep.subr.mxu0 0.0
  %5238 = vmatpush1.xpose.msra.mxu0 0.0
  %5239 = vmatprep.subr.mxu0 0.0
  %5240 = vmatpush1.xpose.msra.mxu0 0.0
  %5241 = vmatprep.subr.mxu0 0.0
  %5242 = vmatpush1.xpose.msra.mxu0 0.0
  %5243 = vmatprep.subr.mxu0 0.0
  %5244 = vmatpush1.xpose.msra.mxu0 0.0
  %5245 = vmatprep.subr.mxu0 0.0
  %5246 = vmatpush1.xpose.msra.mxu0 0.0
  %5247 = vmatprep.subr.mxu0 0.0
  %5248 = vmatpush1.xpose.msra.mxu0 0.0
  %5249 = vmatprep.subr.mxu0 0.0
  %5250 = vmatpush1.xpose.msra.mxu0 %v5217
  %5251 = vmatprep.subr.mxu0 0.0
  %5252 = vmatpush2.xpose.msra.mxu0 0.0
  %5253 = vmatprep.subr.mxu0 0.0
  %5254 = vmatpush2.xpose.msra.mxu0 0.0
  %5255 = vmatprep.subr.mxu0 0.0
  %5256 = vmatpush2.xpose.msra.mxu0 0.0
  %5257 = vmatprep.subr.mxu0 0.0
  %5258 = vmatpush2.xpose.msra.mxu0 0.0
  %5259 = vmatprep.subr.mxu0 0.0
  %5260 = vmatpush2.xpose.msra.mxu0 0.0
  %5261 = vmatprep.subr.mxu0 0.0
  %5262 = vmatpush2.xpose.msra.mxu0 0.0
  %5263 = vmatprep.subr.mxu0 0.0
  %5264 = vmatpush2.xpose.msra.mxu0 0.0
  %5265 = vmatprep.subr.mxu0 0.0
  %5266 = vmatpush2.xpose.msra.mxu0 0.0
  %5267 = vmatprep.subr.mxu0 0.0
  %5268 = vmatpush2.xpose.msra.mxu0 0.0
  %5269 = vmatprep.subr.mxu0 0.0
  %5270 = vmatpush2.xpose.msra.mxu0 0.0
  %5271 = vmatprep.subr.mxu0 0.0
  %5272 = vmatpush2.xpose.msra.mxu0 0.0
  %5273 = vmatprep.subr.mxu0 0.0
  %5274 = vmatpush2.xpose.msra.mxu0 0.0
  %5275 = vmatprep.subr.mxu0 0.0
  %5276 = vmatpush2.xpose.msra.mxu0 0.0
  %5277 = vmatprep.subr.mxu0 0.0
  %5278 = vmatpush2.xpose.msra.mxu0 0.0
  %5279 = vmatprep.subr.mxu0 0.0
  %5280 = vmatpush2.xpose.msra.mxu0 0.0
  %5281 = vmatprep.subr.mxu0 0.0
  %5282 = vmatpush2.xpose.msra.mxu0 0.0
  %5283 = vmatprep.mubr.f32.mxu0 0.0
  %5284 = vmatmul.mubr.f32.gmra.mxu0 %v5214
  %v5285 = vpop.f32.mrf.mxu0
  %v5286 = vadd.f32 0.0, %v5285
  %v5287 = vpop.f32.mrf.mxu0
  %5288 = vdwg.mxu0
  %v5289 = vmul.f32 %v4754, 0.25
  %v5290 = vmul.f32 %v4830, 0.25
  %v5291 = vmul.f32 %v4906, 0.25
  %v5292 = vmul.f32 %v4982, 0.25
  %v5293 = vmul.f32 %v5058, 0.25
  %v5294 = vmul.f32 %v5134, 0.25
  %v5295 = vmul.f32 %v5210, 0.25
  %v5296 = vmul.f32 %v5286, 0.25
  %v5297 = vsel %vm1140, %v5289, -inf
  %5298 = vmax.xlane.f32.xlu0 %v5297
  %v5299 = vpop.xlane.xlu0 %5298
  %v5300 = vsel %vm1140, %v5290, -inf
  %5301 = vmax.xlane.f32.xlu0 %v5300
  %v5302 = vpop.xlane.xlu0 %5301
  %v5303 = vsel %vm1140, %v5291, -inf
  %5304 = vmax.xlane.f32.xlu0 %v5303
  %v5305 = vpop.xlane.xlu0 %5304
  %v5306 = vsel %vm1140, %v5292, -inf
  %5307 = vmax.xlane.f32.xlu0 %v5306
  %v5308 = vpop.xlane.xlu0 %5307
  %v5309 = vsel %vm1140, %v5293, -inf
  %5310 = vmax.xlane.f32.xlu0 %v5309
  %v5311 = vpop.xlane.xlu0 %5310
  %v5312 = vsel %vm1140, %v5294, -inf
  %5313 = vmax.xlane.f32.xlu0 %v5312
  %v5314 = vpop.xlane.xlu0 %5313
  %v5315 = vsel %vm1140, %v5295, -inf
  %5316 = vmax.xlane.f32.xlu0 %v5315
  %v5317 = vpop.xlane.xlu0 %5316
  %v5318 = vsel %vm1140, %v5296, -inf
  %5319 = vmax.xlane.f32.xlu0 %v5318
  %v5320 = vpop.xlane.xlu0 %5319
  %v5321 = vsub.f32 %v5289, %v5299
  %v5322 = vsub.f32 %v5290, %v5302
  %v5323 = vsub.f32 %v5291, %v5305
  %v5324 = vsub.f32 %v5292, %v5308
  %v5325 = vsub.f32 %v5293, %v5311
  %v5326 = vsub.f32 %v5294, %v5314
  %v5327 = vsub.f32 %v5295, %v5317
  %v5328 = vsub.f32 %v5296, %v5320
  %v5329 = vmul.f32 %v5321, 1.442695
  %v5330 = vpow.pop %v5329
  %v5331 = vmul.f32 %v5322, 1.442695
  %v5332 = vpow.pop %v5331
  %v5333 = vmul.f32 %v5323, 1.442695
  %v5334 = vpow.pop %v5333
  %v5335 = vmul.f32 %v5324, 1.442695
  %v5336 = vpow.pop %v5335
  %v5337 = vmul.f32 %v5325, 1.442695
  %v5338 = vpow.pop %v5337
  %v5339 = vmul.f32 %v5326, 1.442695
  %v5340 = vpow.pop %v5339
  %v5341 = vmul.f32 %v5327, 1.442695
  %v5342 = vpow.pop %v5341
  %v5343 = vmul.f32 %v5328, 1.442695
  %v5344 = vpow.pop %v5343
  %v5345 = vsel %vm1140, %v5330, 0.0
  %5346 = vadd.xlane.f32.xlu0 %v5345
  %v5347 = vpop.xlane.xlu0 %5346
  %v5348 = vsel %vm1140, %v5332, 0.0
  %5349 = vadd.xlane.f32.xlu0 %v5348
  %v5350 = vpop.xlane.xlu0 %5349
  %v5351 = vsel %vm1140, %v5334, 0.0
  %5352 = vadd.xlane.f32.xlu0 %v5351
  %v5353 = vpop.xlane.xlu0 %5352
  %v5354 = vsel %vm1140, %v5336, 0.0
  %5355 = vadd.xlane.f32.xlu0 %v5354
  %v5356 = vpop.xlane.xlu0 %5355
  %v5357 = vsel %vm1140, %v5338, 0.0
  %5358 = vadd.xlane.f32.xlu0 %v5357
  %v5359 = vpop.xlane.xlu0 %5358
  %v5360 = vsel %vm1140, %v5340, 0.0
  %5361 = vadd.xlane.f32.xlu0 %v5360
  %v5362 = vpop.xlane.xlu0 %5361
  %v5363 = vsel %vm1140, %v5342, 0.0
  %5364 = vadd.xlane.f32.xlu0 %v5363
  %v5365 = vpop.xlane.xlu0 %5364
  %v5366 = vsel %vm1140, %v5344, 0.0
  %5367 = vadd.xlane.f32.xlu0 %v5366
  %v5368 = vpop.xlane.xlu0 %5367
  %v5369 = vrcp.pop %v5347
  %v5370 = vmul.f32 %v5330, %v5369
  %v5371 = vrcp.pop %v5350
  %v5372 = vmul.f32 %v5332, %v5371
  %v5373 = vrcp.pop %v5353
  %v5374 = vmul.f32 %v5334, %v5373
  %v5375 = vrcp.pop %v5356
  %v5376 = vmul.f32 %v5336, %v5375
  %v5377 = vrcp.pop %v5359
  %v5378 = vmul.f32 %v5338, %v5377
  %v5379 = vrcp.pop %v5362
  %v5380 = vmul.f32 %v5340, %v5379
  %v5381 = vrcp.pop %v5365
  %v5382 = vmul.f32 %v5342, %v5381
  %v5383 = vrcp.pop %v5368
  %v5384 = vmul.f32 %v5344, %v5383
  %v5386 = vsel %vm1140, %v5370, 0
  %5388 = vmatprep.subr.mxu0 0.0
  %5389 = vmatpush1.msra.mxu0 0.0
  %5390 = vmatprep.subr.mxu0 0.0
  %5391 = vmatpush1.msra.mxu0 0.0
  %5392 = vmatprep.subr.mxu0 0.0
  %5393 = vmatpush1.msra.mxu0 0.0
  %5394 = vmatprep.subr.mxu0 0.0
  %5395 = vmatpush1.msra.mxu0 0.0
  %5396 = vmatprep.subr.mxu0 0.0
  %5397 = vmatpush1.msra.mxu0 0.0
  %5398 = vmatprep.subr.mxu0 0.0
  %5399 = vmatpush1.msra.mxu0 0.0
  %5400 = vmatprep.subr.mxu0 0.0
  %5401 = vmatpush1.msra.mxu0 0.0
  %5402 = vmatprep.subr.mxu0 0.0
  %5403 = vmatpush1.msra.mxu0 0.0
  %5404 = vmatprep.subr.mxu0 0.0
  %5405 = vmatpush1.msra.mxu0 0.0
  %5406 = vmatprep.subr.mxu0 0.0
  %5407 = vmatpush1.msra.mxu0 0.0
  %5408 = vmatprep.subr.mxu0 0.0
  %5409 = vmatpush1.msra.mxu0 0.0
  %5410 = vmatprep.subr.mxu0 0.0
  %5411 = vmatpush1.msra.mxu0 0.0
  %5412 = vmatprep.subr.mxu0 0.0
  %5413 = vmatpush1.msra.mxu0 0.0
  %5414 = vmatprep.subr.mxu0 0.0
  %5415 = vmatpush1.msra.mxu0 0.0
  %5416 = vmatprep.subr.mxu0 0.0
  %5417 = vmatpush1.msra.mxu0 0.0
  %5418 = vmatprep.subr.mxu0 0.0
  %5419 = vmatpush1.msra.mxu0 %v4643
  %5420 = vmatprep.subr.mxu0 0.0
  %5421 = vmatpush2.msra.mxu0 0.0
  %5422 = vmatprep.subr.mxu0 0.0
  %5423 = vmatpush2.msra.mxu0 0.0
  %5424 = vmatprep.subr.mxu0 0.0
  %5425 = vmatpush2.msra.mxu0 0.0
  %5426 = vmatprep.subr.mxu0 0.0
  %5427 = vmatpush2.msra.mxu0 0.0
  %5428 = vmatprep.subr.mxu0 0.0
  %5429 = vmatpush2.msra.mxu0 0.0
  %5430 = vmatprep.subr.mxu0 0.0
  %5431 = vmatpush2.msra.mxu0 0.0
  %5432 = vmatprep.subr.mxu0 0.0
  %5433 = vmatpush2.msra.mxu0 0.0
  %5434 = vmatprep.subr.mxu0 0.0
  %5435 = vmatpush2.msra.mxu0 0.0
  %5436 = vmatprep.subr.mxu0 0.0
  %5437 = vmatpush2.msra.mxu0 0.0
  %5438 = vmatprep.subr.mxu0 0.0
  %5439 = vmatpush2.msra.mxu0 0.0
  %5440 = vmatprep.subr.mxu0 0.0
  %5441 = vmatpush2.msra.mxu0 0.0
  %5442 = vmatprep.subr.mxu0 0.0
  %5443 = vmatpush2.msra.mxu0 0.0
  %5444 = vmatprep.subr.mxu0 0.0
  %5445 = vmatpush2.msra.mxu0 0.0
  %5446 = vmatprep.subr.mxu0 0.0
  %5447 = vmatpush2.msra.mxu0 0.0
  %5448 = vmatprep.subr.mxu0 0.0
  %5449 = vmatpush2.msra.mxu0 0.0
  %5450 = vmatprep.subr.mxu0 0.0
  %5451 = vmatpush2.msra.mxu0 0.0
  %5452 = vmatprep.mubr.f32.mxu0 0.0
  %5453 = vmatmul.mubr.f32.gmra.mxu0 %v5386
  %v5454 = vpop.f32.mrf.mxu0
  %v5455 = vadd.f32 0.0, %v5454
  %v5456 = vpop.f32.mrf.mxu0
  %5457 = vdwg.mxu0
  %v5459 = vsel %vm1140, %v5372, 0
  %5461 = vmatprep.subr.mxu0 0.0
  %5462 = vmatpush1.msra.mxu0 0.0
  %5463 = vmatprep.subr.mxu0 0.0
  %5464 = vmatpush1.msra.mxu0 0.0
  %5465 = vmatprep.subr.mxu0 0.0
  %5466 = vmatpush1.msra.mxu0 0.0
  %5467 = vmatprep.subr.mxu0 0.0
  %5468 = vmatpush1.msra.mxu0 0.0
  %5469 = vmatprep.subr.mxu0 0.0
  %5470 = vmatpush1.msra.mxu0 0.0
  %5471 = vmatprep.subr.mxu0 0.0
  %5472 = vmatpush1.msra.mxu0 0.0
  %5473 = vmatprep.subr.mxu0 0.0
  %5474 = vmatpush1.msra.mxu0 0.0
  %5475 = vmatprep.subr.mxu0 0.0
  %5476 = vmatpush1.msra.mxu0 0.0
  %5477 = vmatprep.subr.mxu0 0.0
  %5478 = vmatpush1.msra.mxu0 0.0
  %5479 = vmatprep.subr.mxu0 0.0
  %5480 = vmatpush1.msra.mxu0 0.0
  %5481 = vmatprep.subr.mxu0 0.0
  %5482 = vmatpush1.msra.mxu0 0.0
  %5483 = vmatprep.subr.mxu0 0.0
  %5484 = vmatpush1.msra.mxu0 0.0
  %5485 = vmatprep.subr.mxu0 0.0
  %5486 = vmatpush1.msra.mxu0 0.0
  %5487 = vmatprep.subr.mxu0 0.0
  %5488 = vmatpush1.msra.mxu0 0.0
  %5489 = vmatprep.subr.mxu0 0.0
  %5490 = vmatpush1.msra.mxu0 0.0
  %5491 = vmatprep.subr.mxu0 0.0
  %5492 = vmatpush1.msra.mxu0 %v4648
  %5493 = vmatprep.subr.mxu0 0.0
  %5494 = vmatpush2.msra.mxu0 0.0
  %5495 = vmatprep.subr.mxu0 0.0
  %5496 = vmatpush2.msra.mxu0 0.0
  %5497 = vmatprep.subr.mxu0 0.0
  %5498 = vmatpush2.msra.mxu0 0.0
  %5499 = vmatprep.subr.mxu0 0.0
  %5500 = vmatpush2.msra.mxu0 0.0
  %5501 = vmatprep.subr.mxu0 0.0
  %5502 = vmatpush2.msra.mxu0 0.0
  %5503 = vmatprep.subr.mxu0 0.0
  %5504 = vmatpush2.msra.mxu0 0.0
  %5505 = vmatprep.subr.mxu0 0.0
  %5506 = vmatpush2.msra.mxu0 0.0
  %5507 = vmatprep.subr.mxu0 0.0
  %5508 = vmatpush2.msra.mxu0 0.0
  %5509 = vmatprep.subr.mxu0 0.0
  %5510 = vmatpush2.msra.mxu0 0.0
  %5511 = vmatprep.subr.mxu0 0.0
  %5512 = vmatpush2.msra.mxu0 0.0
  %5513 = vmatprep.subr.mxu0 0.0
  %5514 = vmatpush2.msra.mxu0 0.0
  %5515 = vmatprep.subr.mxu0 0.0
  %5516 = vmatpush2.msra.mxu0 0.0
  %5517 = vmatprep.subr.mxu0 0.0
  %5518 = vmatpush2.msra.mxu0 0.0
  %5519 = vmatprep.subr.mxu0 0.0
  %5520 = vmatpush2.msra.mxu0 0.0
  %5521 = vmatprep.subr.mxu0 0.0
  %5522 = vmatpush2.msra.mxu0 0.0
  %5523 = vmatprep.subr.mxu0 0.0
  %5524 = vmatpush2.msra.mxu0 0.0
  %5525 = vmatprep.mubr.f32.mxu0 0.0
  %5526 = vmatmul.mubr.f32.gmra.mxu0 %v5459
  %v5527 = vpop.f32.mrf.mxu0
  %v5528 = vadd.f32 0.0, %v5527
  %v5529 = vpop.f32.mrf.mxu0
  %5530 = vdwg.mxu0
  %v5532 = vsel %vm1140, %v5374, 0
  %5534 = vmatprep.subr.mxu0 0.0
  %5535 = vmatpush1.msra.mxu0 0.0
  %5536 = vmatprep.subr.mxu0 0.0
  %5537 = vmatpush1.msra.mxu0 0.0
  %5538 = vmatprep.subr.mxu0 0.0
  %5539 = vmatpush1.msra.mxu0 0.0
  %5540 = vmatprep.subr.mxu0 0.0
  %5541 = vmatpush1.msra.mxu0 0.0
  %5542 = vmatprep.subr.mxu0 0.0
  %5543 = vmatpush1.msra.mxu0 0.0
  %5544 = vmatprep.subr.mxu0 0.0
  %5545 = vmatpush1.msra.mxu0 0.0
  %5546 = vmatprep.subr.mxu0 0.0
  %5547 = vmatpush1.msra.mxu0 0.0
  %5548 = vmatprep.subr.mxu0 0.0
  %5549 = vmatpush1.msra.mxu0 0.0
  %5550 = vmatprep.subr.mxu0 0.0
  %5551 = vmatpush1.msra.mxu0 0.0
  %5552 = vmatprep.subr.mxu0 0.0
  %5553 = vmatpush1.msra.mxu0 0.0
  %5554 = vmatprep.subr.mxu0 0.0
  %5555 = vmatpush1.msra.mxu0 0.0
  %5556 = vmatprep.subr.mxu0 0.0
  %5557 = vmatpush1.msra.mxu0 0.0
  %5558 = vmatprep.subr.mxu0 0.0
  %5559 = vmatpush1.msra.mxu0 0.0
  %5560 = vmatprep.subr.mxu0 0.0
  %5561 = vmatpush1.msra.mxu0 0.0
  %5562 = vmatprep.subr.mxu0 0.0
  %5563 = vmatpush1.msra.mxu0 0.0
  %5564 = vmatprep.subr.mxu0 0.0
  %5565 = vmatpush1.msra.mxu0 %v4653
  %5566 = vmatprep.subr.mxu0 0.0
  %5567 = vmatpush2.msra.mxu0 0.0
  %5568 = vmatprep.subr.mxu0 0.0
  %5569 = vmatpush2.msra.mxu0 0.0
  %5570 = vmatprep.subr.mxu0 0.0
  %5571 = vmatpush2.msra.mxu0 0.0
  %5572 = vmatprep.subr.mxu0 0.0
  %5573 = vmatpush2.msra.mxu0 0.0
  %5574 = vmatprep.subr.mxu0 0.0
  %5575 = vmatpush2.msra.mxu0 0.0
  %5576 = vmatprep.subr.mxu0 0.0
  %5577 = vmatpush2.msra.mxu0 0.0
  %5578 = vmatprep.subr.mxu0 0.0
  %5579 = vmatpush2.msra.mxu0 0.0
  %5580 = vmatprep.subr.mxu0 0.0
  %5581 = vmatpush2.msra.mxu0 0.0
  %5582 = vmatprep.subr.mxu0 0.0
  %5583 = vmatpush2.msra.mxu0 0.0
  %5584 = vmatprep.subr.mxu0 0.0
  %5585 = vmatpush2.msra.mxu0 0.0
  %5586 = vmatprep.subr.mxu0 0.0
  %5587 = vmatpush2.msra.mxu0 0.0
  %5588 = vmatprep.subr.mxu0 0.0
  %5589 = vmatpush2.msra.mxu0 0.0
  %5590 = vmatprep.subr.mxu0 0.0
  %5591 = vmatpush2.msra.mxu0 0.0
  %5592 = vmatprep.subr.mxu0 0.0
  %5593 = vmatpush2.msra.mxu0 0.0
  %5594 = vmatprep.subr.mxu0 0.0
  %5595 = vmatpush2.msra.mxu0 0.0
  %5596 = vmatprep.subr.mxu0 0.0
  %5597 = vmatpush2.msra.mxu0 0.0
  %5598 = vmatprep.mubr.f32.mxu0 0.0
  %5599 = vmatmul.mubr.f32.gmra.mxu0 %v5532
  %v5600 = vpop.f32.mrf.mxu0
  %v5601 = vadd.f32 0.0, %v5600
  %v5602 = vpop.f32.mrf.mxu0
  %5603 = vdwg.mxu0
  %v5605 = vsel %vm1140, %v5376, 0
  %5607 = vmatprep.subr.mxu0 0.0
  %5608 = vmatpush1.msra.mxu0 0.0
  %5609 = vmatprep.subr.mxu0 0.0
  %5610 = vmatpush1.msra.mxu0 0.0
  %5611 = vmatprep.subr.mxu0 0.0
  %5612 = vmatpush1.msra.mxu0 0.0
  %5613 = vmatprep.subr.mxu0 0.0
  %5614 = vmatpush1.msra.mxu0 0.0
  %5615 = vmatprep.subr.mxu0 0.0
  %5616 = vmatpush1.msra.mxu0 0.0
  %5617 = vmatprep.subr.mxu0 0.0
  %5618 = vmatpush1.msra.mxu0 0.0
  %5619 = vmatprep.subr.mxu0 0.0
  %5620 = vmatpush1.msra.mxu0 0.0
  %5621 = vmatprep.subr.mxu0 0.0
  %5622 = vmatpush1.msra.mxu0 0.0
  %5623 = vmatprep.subr.mxu0 0.0
  %5624 = vmatpush1.msra.mxu0 0.0
  %5625 = vmatprep.subr.mxu0 0.0
  %5626 = vmatpush1.msra.mxu0 0.0
  %5627 = vmatprep.subr.mxu0 0.0
  %5628 = vmatpush1.msra.mxu0 0.0
  %5629 = vmatprep.subr.mxu0 0.0
  %5630 = vmatpush1.msra.mxu0 0.0
  %5631 = vmatprep.subr.mxu0 0.0
  %5632 = vmatpush1.msra.mxu0 0.0
  %5633 = vmatprep.subr.mxu0 0.0
  %5634 = vmatpush1.msra.mxu0 0.0
  %5635 = vmatprep.subr.mxu0 0.0
  %5636 = vmatpush1.msra.mxu0 0.0
  %5637 = vmatprep.subr.mxu0 0.0
  %5638 = vmatpush1.msra.mxu0 %v4658
  %5639 = vmatprep.subr.mxu0 0.0
  %5640 = vmatpush2.msra.mxu0 0.0
  %5641 = vmatprep.subr.mxu0 0.0
  %5642 = vmatpush2.msra.mxu0 0.0
  %5643 = vmatprep.subr.mxu0 0.0
  %5644 = vmatpush2.msra.mxu0 0.0
  %5645 = vmatprep.subr.mxu0 0.0
  %5646 = vmatpush2.msra.mxu0 0.0
  %5647 = vmatprep.subr.mxu0 0.0
  %5648 = vmatpush2.msra.mxu0 0.0
  %5649 = vmatprep.subr.mxu0 0.0
  %5650 = vmatpush2.msra.mxu0 0.0
  %5651 = vmatprep.subr.mxu0 0.0
  %5652 = vmatpush2.msra.mxu0 0.0
  %5653 = vmatprep.subr.mxu0 0.0
  %5654 = vmatpush2.msra.mxu0 0.0
  %5655 = vmatprep.subr.mxu0 0.0
  %5656 = vmatpush2.msra.mxu0 0.0
  %5657 = vmatprep.subr.mxu0 0.0
  %5658 = vmatpush2.msra.mxu0 0.0
  %5659 = vmatprep.subr.mxu0 0.0
  %5660 = vmatpush2.msra.mxu0 0.0
  %5661 = vmatprep.subr.mxu0 0.0
  %5662 = vmatpush2.msra.mxu0 0.0
  %5663 = vmatprep.subr.mxu0 0.0
  %5664 = vmatpush2.msra.mxu0 0.0
  %5665 = vmatprep.subr.mxu0 0.0
  %5666 = vmatpush2.msra.mxu0 0.0
  %5667 = vmatprep.subr.mxu0 0.0
  %5668 = vmatpush2.msra.mxu0 0.0
  %5669 = vmatprep.subr.mxu0 0.0
  %5670 = vmatpush2.msra.mxu0 0.0
  %5671 = vmatprep.mubr.f32.mxu0 0.0
  %5672 = vmatmul.mubr.f32.gmra.mxu0 %v5605
  %v5673 = vpop.f32.mrf.mxu0
  %v5674 = vadd.f32 0.0, %v5673
  %v5675 = vpop.f32.mrf.mxu0
  %5676 = vdwg.mxu0
  %v5678 = vsel %vm1140, %v5378, 0
  %5680 = vmatprep.subr.mxu0 0.0
  %5681 = vmatpush1.msra.mxu0 0.0
  %5682 = vmatprep.subr.mxu0 0.0
  %5683 = vmatpush1.msra.mxu0 0.0
  %5684 = vmatprep.subr.mxu0 0.0
  %5685 = vmatpush1.msra.mxu0 0.0
  %5686 = vmatprep.subr.mxu0 0.0
  %5687 = vmatpush1.msra.mxu0 0.0
  %5688 = vmatprep.subr.mxu0 0.0
  %5689 = vmatpush1.msra.mxu0 0.0
  %5690 = vmatprep.subr.mxu0 0.0
  %5691 = vmatpush1.msra.mxu0 0.0
  %5692 = vmatprep.subr.mxu0 0.0
  %5693 = vmatpush1.msra.mxu0 0.0
  %5694 = vmatprep.subr.mxu0 0.0
  %5695 = vmatpush1.msra.mxu0 0.0
  %5696 = vmatprep.subr.mxu0 0.0
  %5697 = vmatpush1.msra.mxu0 0.0
  %5698 = vmatprep.subr.mxu0 0.0
  %5699 = vmatpush1.msra.mxu0 0.0
  %5700 = vmatprep.subr.mxu0 0.0
  %5701 = vmatpush1.msra.mxu0 0.0
  %5702 = vmatprep.subr.mxu0 0.0
  %5703 = vmatpush1.msra.mxu0 0.0
  %5704 = vmatprep.subr.mxu0 0.0
  %5705 = vmatpush1.msra.mxu0 0.0
  %5706 = vmatprep.subr.mxu0 0.0
  %5707 = vmatpush1.msra.mxu0 0.0
  %5708 = vmatprep.subr.mxu0 0.0
  %5709 = vmatpush1.msra.mxu0 0.0
  %5710 = vmatprep.subr.mxu0 0.0
  %5711 = vmatpush1.msra.mxu0 %v4663
  %5712 = vmatprep.subr.mxu0 0.0
  %5713 = vmatpush2.msra.mxu0 0.0
  %5714 = vmatprep.subr.mxu0 0.0
  %5715 = vmatpush2.msra.mxu0 0.0
  %5716 = vmatprep.subr.mxu0 0.0
  %5717 = vmatpush2.msra.mxu0 0.0
  %5718 = vmatprep.subr.mxu0 0.0
  %5719 = vmatpush2.msra.mxu0 0.0
  %5720 = vmatprep.subr.mxu0 0.0
  %5721 = vmatpush2.msra.mxu0 0.0
  %5722 = vmatprep.subr.mxu0 0.0
  %5723 = vmatpush2.msra.mxu0 0.0
  %5724 = vmatprep.subr.mxu0 0.0
  %5725 = vmatpush2.msra.mxu0 0.0
  %5726 = vmatprep.subr.mxu0 0.0
  %5727 = vmatpush2.msra.mxu0 0.0
  %5728 = vmatprep.subr.mxu0 0.0
  %5729 = vmatpush2.msra.mxu0 0.0
  %5730 = vmatprep.subr.mxu0 0.0
  %5731 = vmatpush2.msra.mxu0 0.0
  %5732 = vmatprep.subr.mxu0 0.0
  %5733 = vmatpush2.msra.mxu0 0.0
  %5734 = vmatprep.subr.mxu0 0.0
  %5735 = vmatpush2.msra.mxu0 0.0
  %5736 = vmatprep.subr.mxu0 0.0
  %5737 = vmatpush2.msra.mxu0 0.0
  %5738 = vmatprep.subr.mxu0 0.0
  %5739 = vmatpush2.msra.mxu0 0.0
  %5740 = vmatprep.subr.mxu0 0.0
  %5741 = vmatpush2.msra.mxu0 0.0
  %5742 = vmatprep.subr.mxu0 0.0
  %5743 = vmatpush2.msra.mxu0 0.0
  %5744 = vmatprep.mubr.f32.mxu0 0.0
  %5745 = vmatmul.mubr.f32.gmra.mxu0 %v5678
  %v5746 = vpop.f32.mrf.mxu0
  %v5747 = vadd.f32 0.0, %v5746
  %v5748 = vpop.f32.mrf.mxu0
  %5749 = vdwg.mxu0
  %v5751 = vsel %vm1140, %v5380, 0
  %5753 = vmatprep.subr.mxu0 0.0
  %5754 = vmatpush1.msra.mxu0 0.0
  %5755 = vmatprep.subr.mxu0 0.0
  %5756 = vmatpush1.msra.mxu0 0.0
  %5757 = vmatprep.subr.mxu0 0.0
  %5758 = vmatpush1.msra.mxu0 0.0
  %5759 = vmatprep.subr.mxu0 0.0
  %5760 = vmatpush1.msra.mxu0 0.0
  %5761 = vmatprep.subr.mxu0 0.0
  %5762 = vmatpush1.msra.mxu0 0.0
  %5763 = vmatprep.subr.mxu0 0.0
  %5764 = vmatpush1.msra.mxu0 0.0
  %5765 = vmatprep.subr.mxu0 0.0
  %5766 = vmatpush1.msra.mxu0 0.0
  %5767 = vmatprep.subr.mxu0 0.0
  %5768 = vmatpush1.msra.mxu0 0.0
  %5769 = vmatprep.subr.mxu0 0.0
  %5770 = vmatpush1.msra.mxu0 0.0
  %5771 = vmatprep.subr.mxu0 0.0
  %5772 = vmatpush1.msra.mxu0 0.0
  %5773 = vmatprep.subr.mxu0 0.0
  %5774 = vmatpush1.msra.mxu0 0.0
  %5775 = vmatprep.subr.mxu0 0.0
  %5776 = vmatpush1.msra.mxu0 0.0
  %5777 = vmatprep.subr.mxu0 0.0
  %5778 = vmatpush1.msra.mxu0 0.0
  %5779 = vmatprep.subr.mxu0 0.0
  %5780 = vmatpush1.msra.mxu0 0.0
  %5781 = vmatprep.subr.mxu0 0.0
  %5782 = vmatpush1.msra.mxu0 0.0
  %5783 = vmatprep.subr.mxu0 0.0
  %5784 = vmatpush1.msra.mxu0 %v4668
  %5785 = vmatprep.subr.mxu0 0.0
  %5786 = vmatpush2.msra.mxu0 0.0
  %5787 = vmatprep.subr.mxu0 0.0
  %5788 = vmatpush2.msra.mxu0 0.0
  %5789 = vmatprep.subr.mxu0 0.0
  %5790 = vmatpush2.msra.mxu0 0.0
  %5791 = vmatprep.subr.mxu0 0.0
  %5792 = vmatpush2.msra.mxu0 0.0
  %5793 = vmatprep.subr.mxu0 0.0
  %5794 = vmatpush2.msra.mxu0 0.0
  %5795 = vmatprep.subr.mxu0 0.0
  %5796 = vmatpush2.msra.mxu0 0.0
  %5797 = vmatprep.subr.mxu0 0.0
  %5798 = vmatpush2.msra.mxu0 0.0
  %5799 = vmatprep.subr.mxu0 0.0
  %5800 = vmatpush2.msra.mxu0 0.0
  %5801 = vmatprep.subr.mxu0 0.0
  %5802 = vmatpush2.msra.mxu0 0.0
  %5803 = vmatprep.subr.mxu0 0.0
  %5804 = vmatpush2.msra.mxu0 0.0
  %5805 = vmatprep.subr.mxu0 0.0
  %5806 = vmatpush2.msra.mxu0 0.0
  %5807 = vmatprep.subr.mxu0 0.0
  %5808 = vmatpush2.msra.mxu0 0.0
  %5809 = vmatprep.subr.mxu0 0.0
  %5810 = vmatpush2.msra.mxu0 0.0
  %5811 = vmatprep.subr.mxu0 0.0
  %5812 = vmatpush2.msra.mxu0 0.0
  %5813 = vmatprep.subr.mxu0 0.0
  %5814 = vmatpush2.msra.mxu0 0.0
  %5815 = vmatprep.subr.mxu0 0.0
  %5816 = vmatpush2.msra.mxu0 0.0
  %5817 = vmatprep.mubr.f32.mxu0 0.0
  %5818 = vmatmul.mubr.f32.gmra.mxu0 %v5751
  %v5819 = vpop.f32.mrf.mxu0
  %v5820 = vadd.f32 0.0, %v5819
  %v5821 = vpop.f32.mrf.mxu0
  %5822 = vdwg.mxu0
  %v5824 = vsel %vm1140, %v5382, 0
  %5826 = vmatprep.subr.mxu0 0.0
  %5827 = vmatpush1.msra.mxu0 0.0
  %5828 = vmatprep.subr.mxu0 0.0
  %5829 = vmatpush1.msra.mxu0 0.0
  %5830 = vmatprep.subr.mxu0 0.0
  %5831 = vmatpush1.msra.mxu0 0.0
  %5832 = vmatprep.subr.mxu0 0.0
  %5833 = vmatpush1.msra.mxu0 0.0
  %5834 = vmatprep.subr.mxu0 0.0
  %5835 = vmatpush1.msra.mxu0 0.0
  %5836 = vmatprep.subr.mxu0 0.0
  %5837 = vmatpush1.msra.mxu0 0.0
  %5838 = vmatprep.subr.mxu0 0.0
  %5839 = vmatpush1.msra.mxu0 0.0
  %5840 = vmatprep.subr.mxu0 0.0
  %5841 = vmatpush1.msra.mxu0 0.0
  %5842 = vmatprep.subr.mxu0 0.0
  %5843 = vmatpush1.msra.mxu0 0.0
  %5844 = vmatprep.subr.mxu0 0.0
  %5845 = vmatpush1.msra.mxu0 0.0
  %5846 = vmatprep.subr.mxu0 0.0
  %5847 = vmatpush1.msra.mxu0 0.0
  %5848 = vmatprep.subr.mxu0 0.0
  %5849 = vmatpush1.msra.mxu0 0.0
  %5850 = vmatprep.subr.mxu0 0.0
  %5851 = vmatpush1.msra.mxu0 0.0
  %5852 = vmatprep.subr.mxu0 0.0
  %5853 = vmatpush1.msra.mxu0 0.0
  %5854 = vmatprep.subr.mxu0 0.0
  %5855 = vmatpush1.msra.mxu0 0.0
  %5856 = vmatprep.subr.mxu0 0.0
  %5857 = vmatpush1.msra.mxu0 %v4673
  %5858 = vmatprep.subr.mxu0 0.0
  %5859 = vmatpush2.msra.mxu0 0.0
  %5860 = vmatprep.subr.mxu0 0.0
  %5861 = vmatpush2.msra.mxu0 0.0
  %5862 = vmatprep.subr.mxu0 0.0
  %5863 = vmatpush2.msra.mxu0 0.0
  %5864 = vmatprep.subr.mxu0 0.0
  %5865 = vmatpush2.msra.mxu0 0.0
  %5866 = vmatprep.subr.mxu0 0.0
  %5867 = vmatpush2.msra.mxu0 0.0
  %5868 = vmatprep.subr.mxu0 0.0
  %5869 = vmatpush2.msra.mxu0 0.0
  %5870 = vmatprep.subr.mxu0 0.0
  %5871 = vmatpush2.msra.mxu0 0.0
  %5872 = vmatprep.subr.mxu0 0.0
  %5873 = vmatpush2.msra.mxu0 0.0
  %5874 = vmatprep.subr.mxu0 0.0
  %5875 = vmatpush2.msra.mxu0 0.0
  %5876 = vmatprep.subr.mxu0 0.0
  %5877 = vmatpush2.msra.mxu0 0.0
  %5878 = vmatprep.subr.mxu0 0.0
  %5879 = vmatpush2.msra.mxu0 0.0
  %5880 = vmatprep.subr.mxu0 0.0
  %5881 = vmatpush2.msra.mxu0 0.0
  %5882 = vmatprep.subr.mxu0 0.0
  %5883 = vmatpush2.msra.mxu0 0.0
  %5884 = vmatprep.subr.mxu0 0.0
  %5885 = vmatpush2.msra.mxu0 0.0
  %5886 = vmatprep.subr.mxu0 0.0
  %5887 = vmatpush2.msra.mxu0 0.0
  %5888 = vmatprep.subr.mxu0 0.0
  %5889 = vmatpush2.msra.mxu0 0.0
  %5890 = vmatprep.mubr.f32.mxu0 0.0
  %5891 = vmatmul.mubr.f32.gmra.mxu0 %v5824
  %v5892 = vpop.f32.mrf.mxu0
  %v5893 = vadd.f32 0.0, %v5892
  %v5894 = vpop.f32.mrf.mxu0
  %5895 = vdwg.mxu0
  %v5897 = vsel %vm1140, %v5384, 0
  %5899 = vmatprep.subr.mxu0 0.0
  %5900 = vmatpush1.msra.mxu0 0.0
  %5901 = vmatprep.subr.mxu0 0.0
  %5902 = vmatpush1.msra.mxu0 0.0
  %5903 = vmatprep.subr.mxu0 0.0
  %5904 = vmatpush1.msra.mxu0 0.0
  %5905 = vmatprep.subr.mxu0 0.0
  %5906 = vmatpush1.msra.mxu0 0.0
  %5907 = vmatprep.subr.mxu0 0.0
  %5908 = vmatpush1.msra.mxu0 0.0
  %5909 = vmatprep.subr.mxu0 0.0
  %5910 = vmatpush1.msra.mxu0 0.0
  %5911 = vmatprep.subr.mxu0 0.0
  %5912 = vmatpush1.msra.mxu0 0.0
  %5913 = vmatprep.subr.mxu0 0.0
  %5914 = vmatpush1.msra.mxu0 0.0
  %5915 = vmatprep.subr.mxu0 0.0
  %5916 = vmatpush1.msra.mxu0 0.0
  %5917 = vmatprep.subr.mxu0 0.0
  %5918 = vmatpush1.msra.mxu0 0.0
  %5919 = vmatprep.subr.mxu0 0.0
  %5920 = vmatpush1.msra.mxu0 0.0
  %5921 = vmatprep.subr.mxu0 0.0
  %5922 = vmatpush1.msra.mxu0 0.0
  %5923 = vmatprep.subr.mxu0 0.0
  %5924 = vmatpush1.msra.mxu0 0.0
  %5925 = vmatprep.subr.mxu0 0.0
  %5926 = vmatpush1.msra.mxu0 0.0
  %5927 = vmatprep.subr.mxu0 0.0
  %5928 = vmatpush1.msra.mxu0 0.0
  %5929 = vmatprep.subr.mxu0 0.0
  %5930 = vmatpush1.msra.mxu0 %v4678
  %5931 = vmatprep.subr.mxu0 0.0
  %5932 = vmatpush2.msra.mxu0 0.0
  %5933 = vmatprep.subr.mxu0 0.0
  %5934 = vmatpush2.msra.mxu0 0.0
  %5935 = vmatprep.subr.mxu0 0.0
  %5936 = vmatpush2.msra.mxu0 0.0
  %5937 = vmatprep.subr.mxu0 0.0
  %5938 = vmatpush2.msra.mxu0 0.0
  %5939 = vmatprep.subr.mxu0 0.0
  %5940 = vmatpush2.msra.mxu0 0.0
  %5941 = vmatprep.subr.mxu0 0.0
  %5942 = vmatpush2.msra.mxu0 0.0
  %5943 = vmatprep.subr.mxu0 0.0
  %5944 = vmatpush2.msra.mxu0 0.0
  %5945 = vmatprep.subr.mxu0 0.0
  %5946 = vmatpush2.msra.mxu0 0.0
  %5947 = vmatprep.subr.mxu0 0.0
  %5948 = vmatpush2.msra.mxu0 0.0
  %5949 = vmatprep.subr.mxu0 0.0
  %5950 = vmatpush2.msra.mxu0 0.0
  %5951 = vmatprep.subr.mxu0 0.0
  %5952 = vmatpush2.msra.mxu0 0.0
  %5953 = vmatprep.subr.mxu0 0.0
  %5954 = vmatpush2.msra.mxu0 0.0
  %5955 = vmatprep.subr.mxu0 0.0
  %5956 = vmatpush2.msra.mxu0 0.0
  %5957 = vmatprep.subr.mxu0 0.0
  %5958 = vmatpush2.msra.mxu0 0.0
  %5959 = vmatprep.subr.mxu0 0.0
  %5960 = vmatpush2.msra.mxu0 0.0
  %5961 = vmatprep.subr.mxu0 0.0
  %5962 = vmatpush2.msra.mxu0 0.0
  %5963 = vmatprep.mubr.f32.mxu0 0.0
  %5964 = vmatmul.mubr.f32.gmra.mxu0 %v5897
  %v5965 = vpop.f32.mrf.mxu0
  %v5966 = vadd.f32 0.0, %v5965
  %v5967 = vpop.f32.mrf.mxu0
  %5968 = vdwg.mxu0
  %s5969 = scalar_lea.vmem %s4, 32
  %v5970 = vld [vmem:[%s5969] sm:$0xff]
  %v5971 = vld [vmem:[%s5969 + $0x8] sm:$0xff]
  %s5972 = scalar_lea.vmem %s1, 96
  %v5973 = vld [vmem:[%s5972] sm:$0xff]
  %v5974 = vld [vmem:[%s5972 + $0x8] sm:$0xff]
  %v5975 = vld [vmem:[%s5972 + $0x10] sm:$0xff]
  %v5976 = vld [vmem:[%s5972 + $0x18] sm:$0xff]
  %5977 = vmatprep.subr.mxu0 0.0
  %5978 = vmatpush1.msra.mxu0 0.0
  %5979 = vmatprep.subr.mxu0 0.0
  %5980 = vmatpush1.msra.mxu0 0.0
  %5981 = vmatprep.subr.mxu0 0.0
  %5982 = vmatpush1.msra.mxu0 0.0
  %5983 = vmatprep.subr.mxu0 0.0
  %5984 = vmatpush1.msra.mxu0 0.0
  %5985 = vmatprep.subr.mxu0 0.0
  %5986 = vmatpush1.msra.mxu0 0.0
  %5987 = vmatprep.subr.mxu0 0.0
  %5988 = vmatpush1.msra.mxu0 0.0
  %5989 = vmatprep.subr.mxu0 0.0
  %5990 = vmatpush1.msra.mxu0 0.0
  %5991 = vmatprep.subr.mxu0 0.0
  %5992 = vmatpush1.msra.mxu0 0.0
  %5993 = vmatprep.subr.mxu0 0.0
  %5994 = vmatpush1.msra.mxu0 0.0
  %5995 = vmatprep.subr.mxu0 0.0
  %5996 = vmatpush1.msra.mxu0 0.0
  %5997 = vmatprep.subr.mxu0 0.0
  %5998 = vmatpush1.msra.mxu0 0.0
  %5999 = vmatprep.subr.mxu0 0.0
  %6000 = vmatpush1.msra.mxu0 0.0
  %6001 = vmatprep.subr.mxu0 0.0
  %6002 = vmatpush1.msra.mxu0 %v5976
  %6003 = vmatprep.subr.mxu0 0.0
  %6004 = vmatpush1.msra.mxu0 %v5975
  %6005 = vmatprep.subr.mxu0 0.0
  %6006 = vmatpush1.msra.mxu0 %v5974
  %6007 = vmatprep.subr.mxu0 0.0
  %6008 = vmatpush1.msra.mxu0 %v5973
  %6009 = vmatprep.subr.mxu0 0.0
  %6010 = vmatpush2.msra.mxu0 0.0
  %6011 = vmatprep.subr.mxu0 0.0
  %6012 = vmatpush2.msra.mxu0 0.0
  %6013 = vmatprep.subr.mxu0 0.0
  %6014 = vmatpush2.msra.mxu0 0.0
  %6015 = vmatprep.subr.mxu0 0.0
  %6016 = vmatpush2.msra.mxu0 0.0
  %6017 = vmatprep.subr.mxu0 0.0
  %6018 = vmatpush2.msra.mxu0 0.0
  %6019 = vmatprep.subr.mxu0 0.0
  %6020 = vmatpush2.msra.mxu0 0.0
  %6021 = vmatprep.subr.mxu0 0.0
  %6022 = vmatpush2.msra.mxu0 0.0
  %6023 = vmatprep.subr.mxu0 0.0
  %6024 = vmatpush2.msra.mxu0 0.0
  %6025 = vmatprep.subr.mxu0 0.0
  %6026 = vmatpush2.msra.mxu0 0.0
  %6027 = vmatprep.subr.mxu0 0.0
  %6028 = vmatpush2.msra.mxu0 0.0
  %6029 = vmatprep.subr.mxu0 0.0
  %6030 = vmatpush2.msra.mxu0 0.0
  %6031 = vmatprep.subr.mxu0 0.0
  %6032 = vmatpush2.msra.mxu0 0.0
  %6033 = vmatprep.subr.mxu0 0.0
  %6034 = vmatpush2.msra.mxu0 0.0
  %6035 = vmatprep.subr.mxu0 0.0
  %6036 = vmatpush2.msra.mxu0 0.0
  %6037 = vmatprep.subr.mxu0 0.0
  %6038 = vmatpush2.msra.mxu0 0.0
  %6039 = vmatprep.subr.mxu0 0.0
  %6040 = vmatpush2.msra.mxu0 0.0
  %6041 = vmatprep.mubr.f32.mxu0 0.0
  %6042 = vmatmul.mubr.f32.gmra.mxu0 %v4333
  %v6043 = vpop.f32.mrf.mxu0
  %v6044 = vadd.f32 0.0, %v6043
  %v6045 = vpop.f32.mrf.mxu0
  %6046 = vmatprep.mubr.f32.mxu0 0.0
  %6047 = vmatmul.mubr.f32.gmra.mxu0 %v4336
  %v6048 = vpop.f32.mrf.mxu0
  %v6049 = vadd.f32 0.0, %v6048
  %v6050 = vpop.f32.mrf.mxu0
  %6051 = vmatprep.mubr.f32.mxu0 0.0
  %6052 = vmatmul.mubr.f32.gmra.mxu0 %v4339
  %v6053 = vpop.f32.mrf.mxu0
  %v6054 = vadd.f32 0.0, %v6053
  %v6055 = vpop.f32.mrf.mxu0
  %6056 = vmatprep.mubr.f32.mxu0 0.0
  %6057 = vmatmul.mubr.f32.gmra.mxu0 %v4342
  %v6058 = vpop.f32.mrf.mxu0
  %v6059 = vadd.f32 0.0, %v6058
  %v6060 = vpop.f32.mrf.mxu0
  %6061 = vmatprep.mubr.f32.mxu0 0.0
  %6062 = vmatmul.mubr.f32.gmra.mxu0 %v4345
  %v6063 = vpop.f32.mrf.mxu0
  %v6064 = vadd.f32 0.0, %v6063
  %v6065 = vpop.f32.mrf.mxu0
  %6066 = vmatprep.mubr.f32.mxu0 0.0
  %6067 = vmatmul.mubr.f32.gmra.mxu0 %v4348
  %v6068 = vpop.f32.mrf.mxu0
  %v6069 = vadd.f32 0.0, %v6068
  %v6070 = vpop.f32.mrf.mxu0
  %6071 = vmatprep.mubr.f32.mxu0 0.0
  %6072 = vmatmul.mubr.f32.gmra.mxu0 %v4351
  %v6073 = vpop.f32.mrf.mxu0
  %v6074 = vadd.f32 0.0, %v6073
  %v6075 = vpop.f32.mrf.mxu0
  %6076 = vmatprep.mubr.f32.mxu0 0.0
  %6077 = vmatmul.mubr.f32.gmra.mxu0 %v4354
  %v6078 = vpop.f32.mrf.mxu0
  %v6079 = vadd.f32 0.0, %v6078
  %v6080 = vpop.f32.mrf.mxu0
  %6081 = vdwg.mxu0
  %s6082 = scalar_lea.vmem %s2, 96
  %v6083 = vld [vmem:[%s6082] sm:$0xff]
  %v6084 = vld [vmem:[%s6082 + $0x8] sm:$0xff]
  %v6085 = vld [vmem:[%s6082 + $0x10] sm:$0xff]
  %v6086 = vld [vmem:[%s6082 + $0x18] sm:$0xff]
  %6087 = vmatprep.subr.mxu0 0.0
  %6088 = vmatpush1.msra.mxu0 0.0
  %6089 = vmatprep.subr.mxu0 0.0
  %6090 = vmatpush1.msra.mxu0 0.0
  %6091 = vmatprep.subr.mxu0 0.0
  %6092 = vmatpush1.msra.mxu0 0.0
  %6093 = vmatprep.subr.mxu0 0.0
  %6094 = vmatpush1.msra.mxu0 0.0
  %6095 = vmatprep.subr.mxu0 0.0
  %6096 = vmatpush1.msra.mxu0 0.0
  %6097 = vmatprep.subr.mxu0 0.0
  %6098 = vmatpush1.msra.mxu0 0.0
  %6099 = vmatprep.subr.mxu0 0.0
  %6100 = vmatpush1.msra.mxu0 0.0
  %6101 = vmatprep.subr.mxu0 0.0
  %6102 = vmatpush1.msra.mxu0 0.0
  %6103 = vmatprep.subr.mxu0 0.0
  %6104 = vmatpush1.msra.mxu0 0.0
  %6105 = vmatprep.subr.mxu0 0.0
  %6106 = vmatpush1.msra.mxu0 0.0
  %6107 = vmatprep.subr.mxu0 0.0
  %6108 = vmatpush1.msra.mxu0 0.0
  %6109 = vmatprep.subr.mxu0 0.0
  %6110 = vmatpush1.msra.mxu0 0.0
  %6111 = vmatprep.subr.mxu0 0.0
  %6112 = vmatpush1.msra.mxu0 %v6086
  %6113 = vmatprep.subr.mxu0 0.0
  %6114 = vmatpush1.msra.mxu0 %v6085
  %6115 = vmatprep.subr.mxu0 0.0
  %6116 = vmatpush1.msra.mxu0 %v6084
  %6117 = vmatprep.subr.mxu0 0.0
  %6118 = vmatpush1.msra.mxu0 %v6083
  %6119 = vmatprep.subr.mxu0 0.0
  %6120 = vmatpush2.msra.mxu0 0.0
  %6121 = vmatprep.subr.mxu0 0.0
  %6122 = vmatpush2.msra.mxu0 0.0
  %6123 = vmatprep.subr.mxu0 0.0
  %6124 = vmatpush2.msra.mxu0 0.0
  %6125 = vmatprep.subr.mxu0 0.0
  %6126 = vmatpush2.msra.mxu0 0.0
  %6127 = vmatprep.subr.mxu0 0.0
  %6128 = vmatpush2.msra.mxu0 0.0
  %6129 = vmatprep.subr.mxu0 0.0
  %6130 = vmatpush2.msra.mxu0 0.0
  %6131 = vmatprep.subr.mxu0 0.0
  %6132 = vmatpush2.msra.mxu0 0.0
  %6133 = vmatprep.subr.mxu0 0.0
  %6134 = vmatpush2.msra.mxu0 0.0
  %6135 = vmatprep.subr.mxu0 0.0
  %6136 = vmatpush2.msra.mxu0 0.0
  %6137 = vmatprep.subr.mxu0 0.0
  %6138 = vmatpush2.msra.mxu0 0.0
  %6139 = vmatprep.subr.mxu0 0.0
  %6140 = vmatpush2.msra.mxu0 0.0
  %6141 = vmatprep.subr.mxu0 0.0
  %6142 = vmatpush2.msra.mxu0 0.0
  %6143 = vmatprep.subr.mxu0 0.0
  %6144 = vmatpush2.msra.mxu0 0.0
  %6145 = vmatprep.subr.mxu0 0.0
  %6146 = vmatpush2.msra.mxu0 0.0
  %6147 = vmatprep.subr.mxu0 0.0
  %6148 = vmatpush2.msra.mxu0 0.0
  %6149 = vmatprep.subr.mxu0 0.0
  %6150 = vmatpush2.msra.mxu0 0.0
  %6151 = vmatprep.mubr.f32.mxu0 0.0
  %6152 = vmatmul.mubr.f32.gmra.mxu0 %v4333
  %v6153 = vpop.f32.mrf.mxu0
  %v6154 = vadd.f32 0.0, %v6153
  %v6155 = vpop.f32.mrf.mxu0
  %6156 = vmatprep.mubr.f32.mxu0 0.0
  %6157 = vmatmul.mubr.f32.gmra.mxu0 %v4336
  %v6158 = vpop.f32.mrf.mxu0
  %v6159 = vadd.f32 0.0, %v6158
  %v6160 = vpop.f32.mrf.mxu0
  %6161 = vmatprep.mubr.f32.mxu0 0.0
  %6162 = vmatmul.mubr.f32.gmra.mxu0 %v4339
  %v6163 = vpop.f32.mrf.mxu0
  %v6164 = vadd.f32 0.0, %v6163
  %v6165 = vpop.f32.mrf.mxu0
  %6166 = vmatprep.mubr.f32.mxu0 0.0
  %6167 = vmatmul.mubr.f32.gmra.mxu0 %v4342
  %v6168 = vpop.f32.mrf.mxu0
  %v6169 = vadd.f32 0.0, %v6168
  %v6170 = vpop.f32.mrf.mxu0
  %6171 = vmatprep.mubr.f32.mxu0 0.0
  %6172 = vmatmul.mubr.f32.gmra.mxu0 %v4345
  %v6173 = vpop.f32.mrf.mxu0
  %v6174 = vadd.f32 0.0, %v6173
  %v6175 = vpop.f32.mrf.mxu0
  %6176 = vmatprep.mubr.f32.mxu0 0.0
  %6177 = vmatmul.mubr.f32.gmra.mxu0 %v4348
  %v6178 = vpop.f32.mrf.mxu0
  %v6179 = vadd.f32 0.0, %v6178
  %v6180 = vpop.f32.mrf.mxu0
  %6181 = vmatprep.mubr.f32.mxu0 0.0
  %6182 = vmatmul.mubr.f32.gmra.mxu0 %v4351
  %v6183 = vpop.f32.mrf.mxu0
  %v6184 = vadd.f32 0.0, %v6183
  %v6185 = vpop.f32.mrf.mxu0
  %6186 = vmatprep.mubr.f32.mxu0 0.0
  %6187 = vmatmul.mubr.f32.gmra.mxu0 %v4354
  %v6188 = vpop.f32.mrf.mxu0
  %v6189 = vadd.f32 0.0, %v6188
  %v6190 = vpop.f32.mrf.mxu0
  %6191 = vdwg.mxu0
  %s6192 = scalar_lea.vmem %s3, 96
  %v6193 = vld [vmem:[%s6192] sm:$0xff]
  %v6194 = vld [vmem:[%s6192 + $0x8] sm:$0xff]
  %v6195 = vld [vmem:[%s6192 + $0x10] sm:$0xff]
  %v6196 = vld [vmem:[%s6192 + $0x18] sm:$0xff]
  %6197 = vmatprep.subr.mxu0 0.0
  %6198 = vmatpush1.msra.mxu0 0.0
  %6199 = vmatprep.subr.mxu0 0.0
  %6200 = vmatpush1.msra.mxu0 0.0
  %6201 = vmatprep.subr.mxu0 0.0
  %6202 = vmatpush1.msra.mxu0 0.0
  %6203 = vmatprep.subr.mxu0 0.0
  %6204 = vmatpush1.msra.mxu0 0.0
  %6205 = vmatprep.subr.mxu0 0.0
  %6206 = vmatpush1.msra.mxu0 0.0
  %6207 = vmatprep.subr.mxu0 0.0
  %6208 = vmatpush1.msra.mxu0 0.0
  %6209 = vmatprep.subr.mxu0 0.0
  %6210 = vmatpush1.msra.mxu0 0.0
  %6211 = vmatprep.subr.mxu0 0.0
  %6212 = vmatpush1.msra.mxu0 0.0
  %6213 = vmatprep.subr.mxu0 0.0
  %6214 = vmatpush1.msra.mxu0 0.0
  %6215 = vmatprep.subr.mxu0 0.0
  %6216 = vmatpush1.msra.mxu0 0.0
  %6217 = vmatprep.subr.mxu0 0.0
  %6218 = vmatpush1.msra.mxu0 0.0
  %6219 = vmatprep.subr.mxu0 0.0
  %6220 = vmatpush1.msra.mxu0 0.0
  %6221 = vmatprep.subr.mxu0 0.0
  %6222 = vmatpush1.msra.mxu0 %v6196
  %6223 = vmatprep.subr.mxu0 0.0
  %6224 = vmatpush1.msra.mxu0 %v6195
  %6225 = vmatprep.subr.mxu0 0.0
  %6226 = vmatpush1.msra.mxu0 %v6194
  %6227 = vmatprep.subr.mxu0 0.0
  %6228 = vmatpush1.msra.mxu0 %v6193
  %6229 = vmatprep.subr.mxu0 0.0
  %6230 = vmatpush2.msra.mxu0 0.0
  %6231 = vmatprep.subr.mxu0 0.0
  %6232 = vmatpush2.msra.mxu0 0.0
  %6233 = vmatprep.subr.mxu0 0.0
  %6234 = vmatpush2.msra.mxu0 0.0
  %6235 = vmatprep.subr.mxu0 0.0
  %6236 = vmatpush2.msra.mxu0 0.0
  %6237 = vmatprep.subr.mxu0 0.0
  %6238 = vmatpush2.msra.mxu0 0.0
  %6239 = vmatprep.subr.mxu0 0.0
  %6240 = vmatpush2.msra.mxu0 0.0
  %6241 = vmatprep.subr.mxu0 0.0
  %6242 = vmatpush2.msra.mxu0 0.0
  %6243 = vmatprep.subr.mxu0 0.0
  %6244 = vmatpush2.msra.mxu0 0.0
  %6245 = vmatprep.subr.mxu0 0.0
  %6246 = vmatpush2.msra.mxu0 0.0
  %6247 = vmatprep.subr.mxu0 0.0
  %6248 = vmatpush2.msra.mxu0 0.0
  %6249 = vmatprep.subr.mxu0 0.0
  %6250 = vmatpush2.msra.mxu0 0.0
  %6251 = vmatprep.subr.mxu0 0.0
  %6252 = vmatpush2.msra.mxu0 0.0
  %6253 = vmatprep.subr.mxu0 0.0
  %6254 = vmatpush2.msra.mxu0 0.0
  %6255 = vmatprep.subr.mxu0 0.0
  %6256 = vmatpush2.msra.mxu0 0.0
  %6257 = vmatprep.subr.mxu0 0.0
  %6258 = vmatpush2.msra.mxu0 0.0
  %6259 = vmatprep.subr.mxu0 0.0
  %6260 = vmatpush2.msra.mxu0 0.0
  %6261 = vmatprep.mubr.f32.mxu0 0.0
  %6262 = vmatmul.mubr.f32.gmra.mxu0 %v4333
  %v6263 = vpop.f32.mrf.mxu0
  %v6264 = vadd.f32 0.0, %v6263
  %v6265 = vpop.f32.mrf.mxu0
  %6266 = vmatprep.mubr.f32.mxu0 0.0
  %6267 = vmatmul.mubr.f32.gmra.mxu0 %v4336
  %v6268 = vpop.f32.mrf.mxu0
  %v6269 = vadd.f32 0.0, %v6268
  %v6270 = vpop.f32.mrf.mxu0
  %6271 = vmatprep.mubr.f32.mxu0 0.0
  %6272 = vmatmul.mubr.f32.gmra.mxu0 %v4339
  %v6273 = vpop.f32.mrf.mxu0
  %v6274 = vadd.f32 0.0, %v6273
  %v6275 = vpop.f32.mrf.mxu0
  %6276 = vmatprep.mubr.f32.mxu0 0.0
  %6277 = vmatmul.mubr.f32.gmra.mxu0 %v4342
  %v6278 = vpop.f32.mrf.mxu0
  %v6279 = vadd.f32 0.0, %v6278
  %v6280 = vpop.f32.mrf.mxu0
  %6281 = vmatprep.mubr.f32.mxu0 0.0
  %6282 = vmatmul.mubr.f32.gmra.mxu0 %v4345
  %v6283 = vpop.f32.mrf.mxu0
  %v6284 = vadd.f32 0.0, %v6283
  %v6285 = vpop.f32.mrf.mxu0
  %6286 = vmatprep.mubr.f32.mxu0 0.0
  %6287 = vmatmul.mubr.f32.gmra.mxu0 %v4348
  %v6288 = vpop.f32.mrf.mxu0
  %v6289 = vadd.f32 0.0, %v6288
  %v6290 = vpop.f32.mrf.mxu0
  %6291 = vmatprep.mubr.f32.mxu0 0.0
  %6292 = vmatmul.mubr.f32.gmra.mxu0 %v4351
  %v6293 = vpop.f32.mrf.mxu0
  %v6294 = vadd.f32 0.0, %v6293
  %v6295 = vpop.f32.mrf.mxu0
  %6296 = vmatprep.mubr.f32.mxu0 0.0
  %6297 = vmatmul.mubr.f32.gmra.mxu0 %v4354
  %v6298 = vpop.f32.mrf.mxu0
  %v6299 = vadd.f32 0.0, %v6298
  %v6300 = vpop.f32.mrf.mxu0
  %6301 = vdwg.mxu0
  %v6303 = vsel %vm523, %v6044, 0
  %v6306 = vsel %vm523, %v6154, 0
  %6308 = vmatprep.subr.mxu0 0.0
  %6309 = vmatpush1.xpose.msra.mxu0 0.0
  %6310 = vmatprep.subr.mxu0 0.0
  %6311 = vmatpush1.xpose.msra.mxu0 0.0
  %6312 = vmatprep.subr.mxu0 0.0
  %6313 = vmatpush1.xpose.msra.mxu0 0.0
  %6314 = vmatprep.subr.mxu0 0.0
  %6315 = vmatpush1.xpose.msra.mxu0 0.0
  %6316 = vmatprep.subr.mxu0 0.0
  %6317 = vmatpush1.xpose.msra.mxu0 0.0
  %6318 = vmatprep.subr.mxu0 0.0
  %6319 = vmatpush1.xpose.msra.mxu0 0.0
  %6320 = vmatprep.subr.mxu0 0.0
  %6321 = vmatpush1.xpose.msra.mxu0 0.0
  %6322 = vmatprep.subr.mxu0 0.0
  %6323 = vmatpush1.xpose.msra.mxu0 0.0
  %6324 = vmatprep.subr.mxu0 0.0
  %6325 = vmatpush1.xpose.msra.mxu0 0.0
  %6326 = vmatprep.subr.mxu0 0.0
  %6327 = vmatpush1.xpose.msra.mxu0 0.0
  %6328 = vmatprep.subr.mxu0 0.0
  %6329 = vmatpush1.xpose.msra.mxu0 0.0
  %6330 = vmatprep.subr.mxu0 0.0
  %6331 = vmatpush1.xpose.msra.mxu0 0.0
  %6332 = vmatprep.subr.mxu0 0.0
  %6333 = vmatpush1.xpose.msra.mxu0 0.0
  %6334 = vmatprep.subr.mxu0 0.0
  %6335 = vmatpush1.xpose.msra.mxu0 0.0
  %6336 = vmatprep.subr.mxu0 0.0
  %6337 = vmatpush1.xpose.msra.mxu0 0.0
  %6338 = vmatprep.subr.mxu0 0.0
  %6339 = vmatpush1.xpose.msra.mxu0 %v6306
  %6340 = vmatprep.subr.mxu0 0.0
  %6341 = vmatpush2.xpose.msra.mxu0 0.0
  %6342 = vmatprep.subr.mxu0 0.0
  %6343 = vmatpush2.xpose.msra.mxu0 0.0
  %6344 = vmatprep.subr.mxu0 0.0
  %6345 = vmatpush2.xpose.msra.mxu0 0.0
  %6346 = vmatprep.subr.mxu0 0.0
  %6347 = vmatpush2.xpose.msra.mxu0 0.0
  %6348 = vmatprep.subr.mxu0 0.0
  %6349 = vmatpush2.xpose.msra.mxu0 0.0
  %6350 = vmatprep.subr.mxu0 0.0
  %6351 = vmatpush2.xpose.msra.mxu0 0.0
  %6352 = vmatprep.subr.mxu0 0.0
  %6353 = vmatpush2.xpose.msra.mxu0 0.0
  %6354 = vmatprep.subr.mxu0 0.0
  %6355 = vmatpush2.xpose.msra.mxu0 0.0
  %6356 = vmatprep.subr.mxu0 0.0
  %6357 = vmatpush2.xpose.msra.mxu0 0.0
  %6358 = vmatprep.subr.mxu0 0.0
  %6359 = vmatpush2.xpose.msra.mxu0 0.0
  %6360 = vmatprep.subr.mxu0 0.0
  %6361 = vmatpush2.xpose.msra.mxu0 0.0
  %6362 = vmatprep.subr.mxu0 0.0
  %6363 = vmatpush2.xpose.msra.mxu0 0.0
  %6364 = vmatprep.subr.mxu0 0.0
  %6365 = vmatpush2.xpose.msra.mxu0 0.0
  %6366 = vmatprep.subr.mxu0 0.0
  %6367 = vmatpush2.xpose.msra.mxu0 0.0
  %6368 = vmatprep.subr.mxu0 0.0
  %6369 = vmatpush2.xpose.msra.mxu0 0.0
  %6370 = vmatprep.subr.mxu0 0.0
  %6371 = vmatpush2.xpose.msra.mxu0 0.0
  %6372 = vmatprep.mubr.f32.mxu0 0.0
  %6373 = vmatmul.mubr.f32.gmra.mxu0 %v6303
  %v6374 = vpop.f32.mrf.mxu0
  %v6375 = vadd.f32 0.0, %v6374
  %v6376 = vpop.f32.mrf.mxu0
  %6377 = vdwg.mxu0
  %v6379 = vsel %vm523, %v6049, 0
  %v6382 = vsel %vm523, %v6159, 0
  %6384 = vmatprep.subr.mxu0 0.0
  %6385 = vmatpush1.xpose.msra.mxu0 0.0
  %6386 = vmatprep.subr.mxu0 0.0
  %6387 = vmatpush1.xpose.msra.mxu0 0.0
  %6388 = vmatprep.subr.mxu0 0.0
  %6389 = vmatpush1.xpose.msra.mxu0 0.0
  %6390 = vmatprep.subr.mxu0 0.0
  %6391 = vmatpush1.xpose.msra.mxu0 0.0
  %6392 = vmatprep.subr.mxu0 0.0
  %6393 = vmatpush1.xpose.msra.mxu0 0.0
  %6394 = vmatprep.subr.mxu0 0.0
  %6395 = vmatpush1.xpose.msra.mxu0 0.0
  %6396 = vmatprep.subr.mxu0 0.0
  %6397 = vmatpush1.xpose.msra.mxu0 0.0
  %6398 = vmatprep.subr.mxu0 0.0
  %6399 = vmatpush1.xpose.msra.mxu0 0.0
  %6400 = vmatprep.subr.mxu0 0.0
  %6401 = vmatpush1.xpose.msra.mxu0 0.0
  %6402 = vmatprep.subr.mxu0 0.0
  %6403 = vmatpush1.xpose.msra.mxu0 0.0
  %6404 = vmatprep.subr.mxu0 0.0
  %6405 = vmatpush1.xpose.msra.mxu0 0.0
  %6406 = vmatprep.subr.mxu0 0.0
  %6407 = vmatpush1.xpose.msra.mxu0 0.0
  %6408 = vmatprep.subr.mxu0 0.0
  %6409 = vmatpush1.xpose.msra.mxu0 0.0
  %6410 = vmatprep.subr.mxu0 0.0
  %6411 = vmatpush1.xpose.msra.mxu0 0.0
  %6412 = vmatprep.subr.mxu0 0.0
  %6413 = vmatpush1.xpose.msra.mxu0 0.0
  %6414 = vmatprep.subr.mxu0 0.0
  %6415 = vmatpush1.xpose.msra.mxu0 %v6382
  %6416 = vmatprep.subr.mxu0 0.0
  %6417 = vmatpush2.xpose.msra.mxu0 0.0
  %6418 = vmatprep.subr.mxu0 0.0
  %6419 = vmatpush2.xpose.msra.mxu0 0.0
  %6420 = vmatprep.subr.mxu0 0.0
  %6421 = vmatpush2.xpose.msra.mxu0 0.0
  %6422 = vmatprep.subr.mxu0 0.0
  %6423 = vmatpush2.xpose.msra.mxu0 0.0
  %6424 = vmatprep.subr.mxu0 0.0
  %6425 = vmatpush2.xpose.msra.mxu0 0.0
  %6426 = vmatprep.subr.mxu0 0.0
  %6427 = vmatpush2.xpose.msra.mxu0 0.0
  %6428 = vmatprep.subr.mxu0 0.0
  %6429 = vmatpush2.xpose.msra.mxu0 0.0
  %6430 = vmatprep.subr.mxu0 0.0
  %6431 = vmatpush2.xpose.msra.mxu0 0.0
  %6432 = vmatprep.subr.mxu0 0.0
  %6433 = vmatpush2.xpose.msra.mxu0 0.0
  %6434 = vmatprep.subr.mxu0 0.0
  %6435 = vmatpush2.xpose.msra.mxu0 0.0
  %6436 = vmatprep.subr.mxu0 0.0
  %6437 = vmatpush2.xpose.msra.mxu0 0.0
  %6438 = vmatprep.subr.mxu0 0.0
  %6439 = vmatpush2.xpose.msra.mxu0 0.0
  %6440 = vmatprep.subr.mxu0 0.0
  %6441 = vmatpush2.xpose.msra.mxu0 0.0
  %6442 = vmatprep.subr.mxu0 0.0
  %6443 = vmatpush2.xpose.msra.mxu0 0.0
  %6444 = vmatprep.subr.mxu0 0.0
  %6445 = vmatpush2.xpose.msra.mxu0 0.0
  %6446 = vmatprep.subr.mxu0 0.0
  %6447 = vmatpush2.xpose.msra.mxu0 0.0
  %6448 = vmatprep.mubr.f32.mxu0 0.0
  %6449 = vmatmul.mubr.f32.gmra.mxu0 %v6379
  %v6450 = vpop.f32.mrf.mxu0
  %v6451 = vadd.f32 0.0, %v6450
  %v6452 = vpop.f32.mrf.mxu0
  %6453 = vdwg.mxu0
  %v6455 = vsel %vm523, %v6054, 0
  %v6458 = vsel %vm523, %v6164, 0
  %6460 = vmatprep.subr.mxu0 0.0
  %6461 = vmatpush1.xpose.msra.mxu0 0.0
  %6462 = vmatprep.subr.mxu0 0.0
  %6463 = vmatpush1.xpose.msra.mxu0 0.0
  %6464 = vmatprep.subr.mxu0 0.0
  %6465 = vmatpush1.xpose.msra.mxu0 0.0
  %6466 = vmatprep.subr.mxu0 0.0
  %6467 = vmatpush1.xpose.msra.mxu0 0.0
  %6468 = vmatprep.subr.mxu0 0.0
  %6469 = vmatpush1.xpose.msra.mxu0 0.0
  %6470 = vmatprep.subr.mxu0 0.0
  %6471 = vmatpush1.xpose.msra.mxu0 0.0
  %6472 = vmatprep.subr.mxu0 0.0
  %6473 = vmatpush1.xpose.msra.mxu0 0.0
  %6474 = vmatprep.subr.mxu0 0.0
  %6475 = vmatpush1.xpose.msra.mxu0 0.0
  %6476 = vmatprep.subr.mxu0 0.0
  %6477 = vmatpush1.xpose.msra.mxu0 0.0
  %6478 = vmatprep.subr.mxu0 0.0
  %6479 = vmatpush1.xpose.msra.mxu0 0.0
  %6480 = vmatprep.subr.mxu0 0.0
  %6481 = vmatpush1.xpose.msra.mxu0 0.0
  %6482 = vmatprep.subr.mxu0 0.0
  %6483 = vmatpush1.xpose.msra.mxu0 0.0
  %6484 = vmatprep.subr.mxu0 0.0
  %6485 = vmatpush1.xpose.msra.mxu0 0.0
  %6486 = vmatprep.subr.mxu0 0.0
  %6487 = vmatpush1.xpose.msra.mxu0 0.0
  %6488 = vmatprep.subr.mxu0 0.0
  %6489 = vmatpush1.xpose.msra.mxu0 0.0
  %6490 = vmatprep.subr.mxu0 0.0
  %6491 = vmatpush1.xpose.msra.mxu0 %v6458
  %6492 = vmatprep.subr.mxu0 0.0
  %6493 = vmatpush2.xpose.msra.mxu0 0.0
  %6494 = vmatprep.subr.mxu0 0.0
  %6495 = vmatpush2.xpose.msra.mxu0 0.0
  %6496 = vmatprep.subr.mxu0 0.0
  %6497 = vmatpush2.xpose.msra.mxu0 0.0
  %6498 = vmatprep.subr.mxu0 0.0
  %6499 = vmatpush2.xpose.msra.mxu0 0.0
  %6500 = vmatprep.subr.mxu0 0.0
  %6501 = vmatpush2.xpose.msra.mxu0 0.0
  %6502 = vmatprep.subr.mxu0 0.0
  %6503 = vmatpush2.xpose.msra.mxu0 0.0
  %6504 = vmatprep.subr.mxu0 0.0
  %6505 = vmatpush2.xpose.msra.mxu0 0.0
  %6506 = vmatprep.subr.mxu0 0.0
  %6507 = vmatpush2.xpose.msra.mxu0 0.0
  %6508 = vmatprep.subr.mxu0 0.0
  %6509 = vmatpush2.xpose.msra.mxu0 0.0
  %6510 = vmatprep.subr.mxu0 0.0
  %6511 = vmatpush2.xpose.msra.mxu0 0.0
  %6512 = vmatprep.subr.mxu0 0.0
  %6513 = vmatpush2.xpose.msra.mxu0 0.0
  %6514 = vmatprep.subr.mxu0 0.0
  %6515 = vmatpush2.xpose.msra.mxu0 0.0
  %6516 = vmatprep.subr.mxu0 0.0
  %6517 = vmatpush2.xpose.msra.mxu0 0.0
  %6518 = vmatprep.subr.mxu0 0.0
  %6519 = vmatpush2.xpose.msra.mxu0 0.0
  %6520 = vmatprep.subr.mxu0 0.0
  %6521 = vmatpush2.xpose.msra.mxu0 0.0
  %6522 = vmatprep.subr.mxu0 0.0
  %6523 = vmatpush2.xpose.msra.mxu0 0.0
  %6524 = vmatprep.mubr.f32.mxu0 0.0
  %6525 = vmatmul.mubr.f32.gmra.mxu0 %v6455
  %v6526 = vpop.f32.mrf.mxu0
  %v6527 = vadd.f32 0.0, %v6526
  %v6528 = vpop.f32.mrf.mxu0
  %6529 = vdwg.mxu0
  %v6531 = vsel %vm523, %v6059, 0
  %v6534 = vsel %vm523, %v6169, 0
  %6536 = vmatprep.subr.mxu0 0.0
  %6537 = vmatpush1.xpose.msra.mxu0 0.0
  %6538 = vmatprep.subr.mxu0 0.0
  %6539 = vmatpush1.xpose.msra.mxu0 0.0
  %6540 = vmatprep.subr.mxu0 0.0
  %6541 = vmatpush1.xpose.msra.mxu0 0.0
  %6542 = vmatprep.subr.mxu0 0.0
  %6543 = vmatpush1.xpose.msra.mxu0 0.0
  %6544 = vmatprep.subr.mxu0 0.0
  %6545 = vmatpush1.xpose.msra.mxu0 0.0
  %6546 = vmatprep.subr.mxu0 0.0
  %6547 = vmatpush1.xpose.msra.mxu0 0.0
  %6548 = vmatprep.subr.mxu0 0.0
  %6549 = vmatpush1.xpose.msra.mxu0 0.0
  %6550 = vmatprep.subr.mxu0 0.0
  %6551 = vmatpush1.xpose.msra.mxu0 0.0
  %6552 = vmatprep.subr.mxu0 0.0
  %6553 = vmatpush1.xpose.msra.mxu0 0.0
  %6554 = vmatprep.subr.mxu0 0.0
  %6555 = vmatpush1.xpose.msra.mxu0 0.0
  %6556 = vmatprep.subr.mxu0 0.0
  %6557 = vmatpush1.xpose.msra.mxu0 0.0
  %6558 = vmatprep.subr.mxu0 0.0
  %6559 = vmatpush1.xpose.msra.mxu0 0.0
  %6560 = vmatprep.subr.mxu0 0.0
  %6561 = vmatpush1.xpose.msra.mxu0 0.0
  %6562 = vmatprep.subr.mxu0 0.0
  %6563 = vmatpush1.xpose.msra.mxu0 0.0
  %6564 = vmatprep.subr.mxu0 0.0
  %6565 = vmatpush1.xpose.msra.mxu0 0.0
  %6566 = vmatprep.subr.mxu0 0.0
  %6567 = vmatpush1.xpose.msra.mxu0 %v6534
  %6568 = vmatprep.subr.mxu0 0.0
  %6569 = vmatpush2.xpose.msra.mxu0 0.0
  %6570 = vmatprep.subr.mxu0 0.0
  %6571 = vmatpush2.xpose.msra.mxu0 0.0
  %6572 = vmatprep.subr.mxu0 0.0
  %6573 = vmatpush2.xpose.msra.mxu0 0.0
  %6574 = vmatprep.subr.mxu0 0.0
  %6575 = vmatpush2.xpose.msra.mxu0 0.0
  %6576 = vmatprep.subr.mxu0 0.0
  %6577 = vmatpush2.xpose.msra.mxu0 0.0
  %6578 = vmatprep.subr.mxu0 0.0
  %6579 = vmatpush2.xpose.msra.mxu0 0.0
  %6580 = vmatprep.subr.mxu0 0.0
  %6581 = vmatpush2.xpose.msra.mxu0 0.0
  %6582 = vmatprep.subr.mxu0 0.0
  %6583 = vmatpush2.xpose.msra.mxu0 0.0
  %6584 = vmatprep.subr.mxu0 0.0
  %6585 = vmatpush2.xpose.msra.mxu0 0.0
  %6586 = vmatprep.subr.mxu0 0.0
  %6587 = vmatpush2.xpose.msra.mxu0 0.0
  %6588 = vmatprep.subr.mxu0 0.0
  %6589 = vmatpush2.xpose.msra.mxu0 0.0
  %6590 = vmatprep.subr.mxu0 0.0
  %6591 = vmatpush2.xpose.msra.mxu0 0.0
  %6592 = vmatprep.subr.mxu0 0.0
  %6593 = vmatpush2.xpose.msra.mxu0 0.0
  %6594 = vmatprep.subr.mxu0 0.0
  %6595 = vmatpush2.xpose.msra.mxu0 0.0
  %6596 = vmatprep.subr.mxu0 0.0
  %6597 = vmatpush2.xpose.msra.mxu0 0.0
  %6598 = vmatprep.subr.mxu0 0.0
  %6599 = vmatpush2.xpose.msra.mxu0 0.0
  %6600 = vmatprep.mubr.f32.mxu0 0.0
  %6601 = vmatmul.mubr.f32.gmra.mxu0 %v6531
  %v6602 = vpop.f32.mrf.mxu0
  %v6603 = vadd.f32 0.0, %v6602
  %v6604 = vpop.f32.mrf.mxu0
  %6605 = vdwg.mxu0
  %v6607 = vsel %vm523, %v6064, 0
  %v6610 = vsel %vm523, %v6174, 0
  %6612 = vmatprep.subr.mxu0 0.0
  %6613 = vmatpush1.xpose.msra.mxu0 0.0
  %6614 = vmatprep.subr.mxu0 0.0
  %6615 = vmatpush1.xpose.msra.mxu0 0.0
  %6616 = vmatprep.subr.mxu0 0.0
  %6617 = vmatpush1.xpose.msra.mxu0 0.0
  %6618 = vmatprep.subr.mxu0 0.0
  %6619 = vmatpush1.xpose.msra.mxu0 0.0
  %6620 = vmatprep.subr.mxu0 0.0
  %6621 = vmatpush1.xpose.msra.mxu0 0.0
  %6622 = vmatprep.subr.mxu0 0.0
  %6623 = vmatpush1.xpose.msra.mxu0 0.0
  %6624 = vmatprep.subr.mxu0 0.0
  %6625 = vmatpush1.xpose.msra.mxu0 0.0
  %6626 = vmatprep.subr.mxu0 0.0
  %6627 = vmatpush1.xpose.msra.mxu0 0.0
  %6628 = vmatprep.subr.mxu0 0.0
  %6629 = vmatpush1.xpose.msra.mxu0 0.0
  %6630 = vmatprep.subr.mxu0 0.0
  %6631 = vmatpush1.xpose.msra.mxu0 0.0
  %6632 = vmatprep.subr.mxu0 0.0
  %6633 = vmatpush1.xpose.msra.mxu0 0.0
  %6634 = vmatprep.subr.mxu0 0.0
  %6635 = vmatpush1.xpose.msra.mxu0 0.0
  %6636 = vmatprep.subr.mxu0 0.0
  %6637 = vmatpush1.xpose.msra.mxu0 0.0
  %6638 = vmatprep.subr.mxu0 0.0
  %6639 = vmatpush1.xpose.msra.mxu0 0.0
  %6640 = vmatprep.subr.mxu0 0.0
  %6641 = vmatpush1.xpose.msra.mxu0 0.0
  %6642 = vmatprep.subr.mxu0 0.0
  %6643 = vmatpush1.xpose.msra.mxu0 %v6610
  %6644 = vmatprep.subr.mxu0 0.0
  %6645 = vmatpush2.xpose.msra.mxu0 0.0
  %6646 = vmatprep.subr.mxu0 0.0
  %6647 = vmatpush2.xpose.msra.mxu0 0.0
  %6648 = vmatprep.subr.mxu0 0.0
  %6649 = vmatpush2.xpose.msra.mxu0 0.0
  %6650 = vmatprep.subr.mxu0 0.0
  %6651 = vmatpush2.xpose.msra.mxu0 0.0
  %6652 = vmatprep.subr.mxu0 0.0
  %6653 = vmatpush2.xpose.msra.mxu0 0.0
  %6654 = vmatprep.subr.mxu0 0.0
  %6655 = vmatpush2.xpose.msra.mxu0 0.0
  %6656 = vmatprep.subr.mxu0 0.0
  %6657 = vmatpush2.xpose.msra.mxu0 0.0
  %6658 = vmatprep.subr.mxu0 0.0
  %6659 = vmatpush2.xpose.msra.mxu0 0.0
  %6660 = vmatprep.subr.mxu0 0.0
  %6661 = vmatpush2.xpose.msra.mxu0 0.0
  %6662 = vmatprep.subr.mxu0 0.0
  %6663 = vmatpush2.xpose.msra.mxu0 0.0
  %6664 = vmatprep.subr.mxu0 0.0
  %6665 = vmatpush2.xpose.msra.mxu0 0.0
  %6666 = vmatprep.subr.mxu0 0.0
  %6667 = vmatpush2.xpose.msra.mxu0 0.0
  %6668 = vmatprep.subr.mxu0 0.0
  %6669 = vmatpush2.xpose.msra.mxu0 0.0
  %6670 = vmatprep.subr.mxu0 0.0
  %6671 = vmatpush2.xpose.msra.mxu0 0.0
  %6672 = vmatprep.subr.mxu0 0.0
  %6673 = vmatpush2.xpose.msra.mxu0 0.0
  %6674 = vmatprep.subr.mxu0 0.0
  %6675 = vmatpush2.xpose.msra.mxu0 0.0
  %6676 = vmatprep.mubr.f32.mxu0 0.0
  %6677 = vmatmul.mubr.f32.gmra.mxu0 %v6607
  %v6678 = vpop.f32.mrf.mxu0
  %v6679 = vadd.f32 0.0, %v6678
  %v6680 = vpop.f32.mrf.mxu0
  %6681 = vdwg.mxu0
  %v6683 = vsel %vm523, %v6069, 0
  %v6686 = vsel %vm523, %v6179, 0
  %6688 = vmatprep.subr.mxu0 0.0
  %6689 = vmatpush1.xpose.msra.mxu0 0.0
  %6690 = vmatprep.subr.mxu0 0.0
  %6691 = vmatpush1.xpose.msra.mxu0 0.0
  %6692 = vmatprep.subr.mxu0 0.0
  %6693 = vmatpush1.xpose.msra.mxu0 0.0
  %6694 = vmatprep.subr.mxu0 0.0
  %6695 = vmatpush1.xpose.msra.mxu0 0.0
  %6696 = vmatprep.subr.mxu0 0.0
  %6697 = vmatpush1.xpose.msra.mxu0 0.0
  %6698 = vmatprep.subr.mxu0 0.0
  %6699 = vmatpush1.xpose.msra.mxu0 0.0
  %6700 = vmatprep.subr.mxu0 0.0
  %6701 = vmatpush1.xpose.msra.mxu0 0.0
  %6702 = vmatprep.subr.mxu0 0.0
  %6703 = vmatpush1.xpose.msra.mxu0 0.0
  %6704 = vmatprep.subr.mxu0 0.0
  %6705 = vmatpush1.xpose.msra.mxu0 0.0
  %6706 = vmatprep.subr.mxu0 0.0
  %6707 = vmatpush1.xpose.msra.mxu0 0.0
  %6708 = vmatprep.subr.mxu0 0.0
  %6709 = vmatpush1.xpose.msra.mxu0 0.0
  %6710 = vmatprep.subr.mxu0 0.0
  %6711 = vmatpush1.xpose.msra.mxu0 0.0
  %6712 = vmatprep.subr.mxu0 0.0
  %6713 = vmatpush1.xpose.msra.mxu0 0.0
  %6714 = vmatprep.subr.mxu0 0.0
  %6715 = vmatpush1.xpose.msra.mxu0 0.0
  %6716 = vmatprep.subr.mxu0 0.0
  %6717 = vmatpush1.xpose.msra.mxu0 0.0
  %6718 = vmatprep.subr.mxu0 0.0
  %6719 = vmatpush1.xpose.msra.mxu0 %v6686
  %6720 = vmatprep.subr.mxu0 0.0
  %6721 = vmatpush2.xpose.msra.mxu0 0.0
  %6722 = vmatprep.subr.mxu0 0.0
  %6723 = vmatpush2.xpose.msra.mxu0 0.0
  %6724 = vmatprep.subr.mxu0 0.0
  %6725 = vmatpush2.xpose.msra.mxu0 0.0
  %6726 = vmatprep.subr.mxu0 0.0
  %6727 = vmatpush2.xpose.msra.mxu0 0.0
  %6728 = vmatprep.subr.mxu0 0.0
  %6729 = vmatpush2.xpose.msra.mxu0 0.0
  %6730 = vmatprep.subr.mxu0 0.0
  %6731 = vmatpush2.xpose.msra.mxu0 0.0
  %6732 = vmatprep.subr.mxu0 0.0
  %6733 = vmatpush2.xpose.msra.mxu0 0.0
  %6734 = vmatprep.subr.mxu0 0.0
  %6735 = vmatpush2.xpose.msra.mxu0 0.0
  %6736 = vmatprep.subr.mxu0 0.0
  %6737 = vmatpush2.xpose.msra.mxu0 0.0
  %6738 = vmatprep.subr.mxu0 0.0
  %6739 = vmatpush2.xpose.msra.mxu0 0.0
  %6740 = vmatprep.subr.mxu0 0.0
  %6741 = vmatpush2.xpose.msra.mxu0 0.0
  %6742 = vmatprep.subr.mxu0 0.0
  %6743 = vmatpush2.xpose.msra.mxu0 0.0
  %6744 = vmatprep.subr.mxu0 0.0
  %6745 = vmatpush2.xpose.msra.mxu0 0.0
  %6746 = vmatprep.subr.mxu0 0.0
  %6747 = vmatpush2.xpose.msra.mxu0 0.0
  %6748 = vmatprep.subr.mxu0 0.0
  %6749 = vmatpush2.xpose.msra.mxu0 0.0
  %6750 = vmatprep.subr.mxu0 0.0
  %6751 = vmatpush2.xpose.msra.mxu0 0.0
  %6752 = vmatprep.mubr.f32.mxu0 0.0
  %6753 = vmatmul.mubr.f32.gmra.mxu0 %v6683
  %v6754 = vpop.f32.mrf.mxu0
  %v6755 = vadd.f32 0.0, %v6754
  %v6756 = vpop.f32.mrf.mxu0
  %6757 = vdwg.mxu0
  %v6759 = vsel %vm523, %v6074, 0
  %v6762 = vsel %vm523, %v6184, 0
  %6764 = vmatprep.subr.mxu0 0.0
  %6765 = vmatpush1.xpose.msra.mxu0 0.0
  %6766 = vmatprep.subr.mxu0 0.0
  %6767 = vmatpush1.xpose.msra.mxu0 0.0
  %6768 = vmatprep.subr.mxu0 0.0
  %6769 = vmatpush1.xpose.msra.mxu0 0.0
  %6770 = vmatprep.subr.mxu0 0.0
  %6771 = vmatpush1.xpose.msra.mxu0 0.0
  %6772 = vmatprep.subr.mxu0 0.0
  %6773 = vmatpush1.xpose.msra.mxu0 0.0
  %6774 = vmatprep.subr.mxu0 0.0
  %6775 = vmatpush1.xpose.msra.mxu0 0.0
  %6776 = vmatprep.subr.mxu0 0.0
  %6777 = vmatpush1.xpose.msra.mxu0 0.0
  %6778 = vmatprep.subr.mxu0 0.0
  %6779 = vmatpush1.xpose.msra.mxu0 0.0
  %6780 = vmatprep.subr.mxu0 0.0
  %6781 = vmatpush1.xpose.msra.mxu0 0.0
  %6782 = vmatprep.subr.mxu0 0.0
  %6783 = vmatpush1.xpose.msra.mxu0 0.0
  %6784 = vmatprep.subr.mxu0 0.0
  %6785 = vmatpush1.xpose.msra.mxu0 0.0
  %6786 = vmatprep.subr.mxu0 0.0
  %6787 = vmatpush1.xpose.msra.mxu0 0.0
  %6788 = vmatprep.subr.mxu0 0.0
  %6789 = vmatpush1.xpose.msra.mxu0 0.0
  %6790 = vmatprep.subr.mxu0 0.0
  %6791 = vmatpush1.xpose.msra.mxu0 0.0
  %6792 = vmatprep.subr.mxu0 0.0
  %6793 = vmatpush1.xpose.msra.mxu0 0.0
  %6794 = vmatprep.subr.mxu0 0.0
  %6795 = vmatpush1.xpose.msra.mxu0 %v6762
  %6796 = vmatprep.subr.mxu0 0.0
  %6797 = vmatpush2.xpose.msra.mxu0 0.0
  %6798 = vmatprep.subr.mxu0 0.0
  %6799 = vmatpush2.xpose.msra.mxu0 0.0
  %6800 = vmatprep.subr.mxu0 0.0
  %6801 = vmatpush2.xpose.msra.mxu0 0.0
  %6802 = vmatprep.subr.mxu0 0.0
  %6803 = vmatpush2.xpose.msra.mxu0 0.0
  %6804 = vmatprep.subr.mxu0 0.0
  %6805 = vmatpush2.xpose.msra.mxu0 0.0
  %6806 = vmatprep.subr.mxu0 0.0
  %6807 = vmatpush2.xpose.msra.mxu0 0.0
  %6808 = vmatprep.subr.mxu0 0.0
  %6809 = vmatpush2.xpose.msra.mxu0 0.0
  %6810 = vmatprep.subr.mxu0 0.0
  %6811 = vmatpush2.xpose.msra.mxu0 0.0
  %6812 = vmatprep.subr.mxu0 0.0
  %6813 = vmatpush2.xpose.msra.mxu0 0.0
  %6814 = vmatprep.subr.mxu0 0.0
  %6815 = vmatpush2.xpose.msra.mxu0 0.0
  %6816 = vmatprep.subr.mxu0 0.0
  %6817 = vmatpush2.xpose.msra.mxu0 0.0
  %6818 = vmatprep.subr.mxu0 0.0
  %6819 = vmatpush2.xpose.msra.mxu0 0.0
  %6820 = vmatprep.subr.mxu0 0.0
  %6821 = vmatpush2.xpose.msra.mxu0 0.0
  %6822 = vmatprep.subr.mxu0 0.0
  %6823 = vmatpush2.xpose.msra.mxu0 0.0
  %6824 = vmatprep.subr.mxu0 0.0
  %6825 = vmatpush2.xpose.msra.mxu0 0.0
  %6826 = vmatprep.subr.mxu0 0.0
  %6827 = vmatpush2.xpose.msra.mxu0 0.0
  %6828 = vmatprep.mubr.f32.mxu0 0.0
  %6829 = vmatmul.mubr.f32.gmra.mxu0 %v6759
  %v6830 = vpop.f32.mrf.mxu0
  %v6831 = vadd.f32 0.0, %v6830
  %v6832 = vpop.f32.mrf.mxu0
  %6833 = vdwg.mxu0
  %v6835 = vsel %vm523, %v6079, 0
  %v6838 = vsel %vm523, %v6189, 0
  %6840 = vmatprep.subr.mxu0 0.0
  %6841 = vmatpush1.xpose.msra.mxu0 0.0
  %6842 = vmatprep.subr.mxu0 0.0
  %6843 = vmatpush1.xpose.msra.mxu0 0.0
  %6844 = vmatprep.subr.mxu0 0.0
  %6845 = vmatpush1.xpose.msra.mxu0 0.0
  %6846 = vmatprep.subr.mxu0 0.0
  %6847 = vmatpush1.xpose.msra.mxu0 0.0
  %6848 = vmatprep.subr.mxu0 0.0
  %6849 = vmatpush1.xpose.msra.mxu0 0.0
  %6850 = vmatprep.subr.mxu0 0.0
  %6851 = vmatpush1.xpose.msra.mxu0 0.0
  %6852 = vmatprep.subr.mxu0 0.0
  %6853 = vmatpush1.xpose.msra.mxu0 0.0
  %6854 = vmatprep.subr.mxu0 0.0
  %6855 = vmatpush1.xpose.msra.mxu0 0.0
  %6856 = vmatprep.subr.mxu0 0.0
  %6857 = vmatpush1.xpose.msra.mxu0 0.0
  %6858 = vmatprep.subr.mxu0 0.0
  %6859 = vmatpush1.xpose.msra.mxu0 0.0
  %6860 = vmatprep.subr.mxu0 0.0
  %6861 = vmatpush1.xpose.msra.mxu0 0.0
  %6862 = vmatprep.subr.mxu0 0.0
  %6863 = vmatpush1.xpose.msra.mxu0 0.0
  %6864 = vmatprep.subr.mxu0 0.0
  %6865 = vmatpush1.xpose.msra.mxu0 0.0
  %6866 = vmatprep.subr.mxu0 0.0
  %6867 = vmatpush1.xpose.msra.mxu0 0.0
  %6868 = vmatprep.subr.mxu0 0.0
  %6869 = vmatpush1.xpose.msra.mxu0 0.0
  %6870 = vmatprep.subr.mxu0 0.0
  %6871 = vmatpush1.xpose.msra.mxu0 %v6838
  %6872 = vmatprep.subr.mxu0 0.0
  %6873 = vmatpush2.xpose.msra.mxu0 0.0
  %6874 = vmatprep.subr.mxu0 0.0
  %6875 = vmatpush2.xpose.msra.mxu0 0.0
  %6876 = vmatprep.subr.mxu0 0.0
  %6877 = vmatpush2.xpose.msra.mxu0 0.0
  %6878 = vmatprep.subr.mxu0 0.0
  %6879 = vmatpush2.xpose.msra.mxu0 0.0
  %6880 = vmatprep.subr.mxu0 0.0
  %6881 = vmatpush2.xpose.msra.mxu0 0.0
  %6882 = vmatprep.subr.mxu0 0.0
  %6883 = vmatpush2.xpose.msra.mxu0 0.0
  %6884 = vmatprep.subr.mxu0 0.0
  %6885 = vmatpush2.xpose.msra.mxu0 0.0
  %6886 = vmatprep.subr.mxu0 0.0
  %6887 = vmatpush2.xpose.msra.mxu0 0.0
  %6888 = vmatprep.subr.mxu0 0.0
  %6889 = vmatpush2.xpose.msra.mxu0 0.0
  %6890 = vmatprep.subr.mxu0 0.0
  %6891 = vmatpush2.xpose.msra.mxu0 0.0
  %6892 = vmatprep.subr.mxu0 0.0
  %6893 = vmatpush2.xpose.msra.mxu0 0.0
  %6894 = vmatprep.subr.mxu0 0.0
  %6895 = vmatpush2.xpose.msra.mxu0 0.0
  %6896 = vmatprep.subr.mxu0 0.0
  %6897 = vmatpush2.xpose.msra.mxu0 0.0
  %6898 = vmatprep.subr.mxu0 0.0
  %6899 = vmatpush2.xpose.msra.mxu0 0.0
  %6900 = vmatprep.subr.mxu0 0.0
  %6901 = vmatpush2.xpose.msra.mxu0 0.0
  %6902 = vmatprep.subr.mxu0 0.0
  %6903 = vmatpush2.xpose.msra.mxu0 0.0
  %6904 = vmatprep.mubr.f32.mxu0 0.0
  %6905 = vmatmul.mubr.f32.gmra.mxu0 %v6835
  %v6906 = vpop.f32.mrf.mxu0
  %v6907 = vadd.f32 0.0, %v6906
  %v6908 = vpop.f32.mrf.mxu0
  %6909 = vdwg.mxu0
  %v6910 = vmul.f32 %v6375, 0.25
  %v6911 = vmul.f32 %v6451, 0.25
  %v6912 = vmul.f32 %v6527, 0.25
  %v6913 = vmul.f32 %v6603, 0.25
  %v6914 = vmul.f32 %v6679, 0.25
  %v6915 = vmul.f32 %v6755, 0.25
  %v6916 = vmul.f32 %v6831, 0.25
  %v6917 = vmul.f32 %v6907, 0.25
  %v6918 = vsel %vm1140, %v6910, -inf
  %6919 = vmax.xlane.f32.xlu0 %v6918
  %v6920 = vpop.xlane.xlu0 %6919
  %v6921 = vsel %vm1140, %v6911, -inf
  %6922 = vmax.xlane.f32.xlu0 %v6921
  %v6923 = vpop.xlane.xlu0 %6922
  %v6924 = vsel %vm1140, %v6912, -inf
  %6925 = vmax.xlane.f32.xlu0 %v6924
  %v6926 = vpop.xlane.xlu0 %6925
  %v6927 = vsel %vm1140, %v6913, -inf
  %6928 = vmax.xlane.f32.xlu0 %v6927
  %v6929 = vpop.xlane.xlu0 %6928
  %v6930 = vsel %vm1140, %v6914, -inf
  %6931 = vmax.xlane.f32.xlu0 %v6930
  %v6932 = vpop.xlane.xlu0 %6931
  %v6933 = vsel %vm1140, %v6915, -inf
  %6934 = vmax.xlane.f32.xlu0 %v6933
  %v6935 = vpop.xlane.xlu0 %6934
  %v6936 = vsel %vm1140, %v6916, -inf
  %6937 = vmax.xlane.f32.xlu0 %v6936
  %v6938 = vpop.xlane.xlu0 %6937
  %v6939 = vsel %vm1140, %v6917, -inf
  %6940 = vmax.xlane.f32.xlu0 %v6939
  %v6941 = vpop.xlane.xlu0 %6940
  %v6942 = vsub.f32 %v6910, %v6920
  %v6943 = vsub.f32 %v6911, %v6923
  %v6944 = vsub.f32 %v6912, %v6926
  %v6945 = vsub.f32 %v6913, %v6929
  %v6946 = vsub.f32 %v6914, %v6932
  %v6947 = vsub.f32 %v6915, %v6935
  %v6948 = vsub.f32 %v6916, %v6938
  %v6949 = vsub.f32 %v6917, %v6941
  %v6950 = vmul.f32 %v6942, 1.442695
  %v6951 = vpow.pop %v6950
  %v6952 = vmul.f32 %v6943, 1.442695
  %v6953 = vpow.pop %v6952
  %v6954 = vmul.f32 %v6944, 1.442695
  %v6955 = vpow.pop %v6954
  %v6956 = vmul.f32 %v6945, 1.442695
  %v6957 = vpow.pop %v6956
  %v6958 = vmul.f32 %v6946, 1.442695
  %v6959 = vpow.pop %v6958
  %v6960 = vmul.f32 %v6947, 1.442695
  %v6961 = vpow.pop %v6960
  %v6962 = vmul.f32 %v6948, 1.442695
  %v6963 = vpow.pop %v6962
  %v6964 = vmul.f32 %v6949, 1.442695
  %v6965 = vpow.pop %v6964
  %v6966 = vsel %vm1140, %v6951, 0.0
  %6967 = vadd.xlane.f32.xlu0 %v6966
  %v6968 = vpop.xlane.xlu0 %6967
  %v6969 = vsel %vm1140, %v6953, 0.0
  %6970 = vadd.xlane.f32.xlu0 %v6969
  %v6971 = vpop.xlane.xlu0 %6970
  %v6972 = vsel %vm1140, %v6955, 0.0
  %6973 = vadd.xlane.f32.xlu0 %v6972
  %v6974 = vpop.xlane.xlu0 %6973
  %v6975 = vsel %vm1140, %v6957, 0.0
  %6976 = vadd.xlane.f32.xlu0 %v6975
  %v6977 = vpop.xlane.xlu0 %6976
  %v6978 = vsel %vm1140, %v6959, 0.0
  %6979 = vadd.xlane.f32.xlu0 %v6978
  %v6980 = vpop.xlane.xlu0 %6979
  %v6981 = vsel %vm1140, %v6961, 0.0
  %6982 = vadd.xlane.f32.xlu0 %v6981
  %v6983 = vpop.xlane.xlu0 %6982
  %v6984 = vsel %vm1140, %v6963, 0.0
  %6985 = vadd.xlane.f32.xlu0 %v6984
  %v6986 = vpop.xlane.xlu0 %6985
  %v6987 = vsel %vm1140, %v6965, 0.0
  %6988 = vadd.xlane.f32.xlu0 %v6987
  %v6989 = vpop.xlane.xlu0 %6988
  %v6990 = vrcp.pop %v6968
  %v6991 = vmul.f32 %v6951, %v6990
  %v6992 = vrcp.pop %v6971
  %v6993 = vmul.f32 %v6953, %v6992
  %v6994 = vrcp.pop %v6974
  %v6995 = vmul.f32 %v6955, %v6994
  %v6996 = vrcp.pop %v6977
  %v6997 = vmul.f32 %v6957, %v6996
  %v6998 = vrcp.pop %v6980
  %v6999 = vmul.f32 %v6959, %v6998
  %v7000 = vrcp.pop %v6983
  %v7001 = vmul.f32 %v6961, %v7000
  %v7002 = vrcp.pop %v6986
  %v7003 = vmul.f32 %v6963, %v7002
  %v7004 = vrcp.pop %v6989
  %v7005 = vmul.f32 %v6965, %v7004
  %v7007 = vsel %vm1140, %v6991, 0
  %7009 = vmatprep.subr.mxu0 0.0
  %7010 = vmatpush1.msra.mxu0 0.0
  %7011 = vmatprep.subr.mxu0 0.0
  %7012 = vmatpush1.msra.mxu0 0.0
  %7013 = vmatprep.subr.mxu0 0.0
  %7014 = vmatpush1.msra.mxu0 0.0
  %7015 = vmatprep.subr.mxu0 0.0
  %7016 = vmatpush1.msra.mxu0 0.0
  %7017 = vmatprep.subr.mxu0 0.0
  %7018 = vmatpush1.msra.mxu0 0.0
  %7019 = vmatprep.subr.mxu0 0.0
  %7020 = vmatpush1.msra.mxu0 0.0
  %7021 = vmatprep.subr.mxu0 0.0
  %7022 = vmatpush1.msra.mxu0 0.0
  %7023 = vmatprep.subr.mxu0 0.0
  %7024 = vmatpush1.msra.mxu0 0.0
  %7025 = vmatprep.subr.mxu0 0.0
  %7026 = vmatpush1.msra.mxu0 0.0
  %7027 = vmatprep.subr.mxu0 0.0
  %7028 = vmatpush1.msra.mxu0 0.0
  %7029 = vmatprep.subr.mxu0 0.0
  %7030 = vmatpush1.msra.mxu0 0.0
  %7031 = vmatprep.subr.mxu0 0.0
  %7032 = vmatpush1.msra.mxu0 0.0
  %7033 = vmatprep.subr.mxu0 0.0
  %7034 = vmatpush1.msra.mxu0 0.0
  %7035 = vmatprep.subr.mxu0 0.0
  %7036 = vmatpush1.msra.mxu0 0.0
  %7037 = vmatprep.subr.mxu0 0.0
  %7038 = vmatpush1.msra.mxu0 0.0
  %7039 = vmatprep.subr.mxu0 0.0
  %7040 = vmatpush1.msra.mxu0 %v6264
  %7041 = vmatprep.subr.mxu0 0.0
  %7042 = vmatpush2.msra.mxu0 0.0
  %7043 = vmatprep.subr.mxu0 0.0
  %7044 = vmatpush2.msra.mxu0 0.0
  %7045 = vmatprep.subr.mxu0 0.0
  %7046 = vmatpush2.msra.mxu0 0.0
  %7047 = vmatprep.subr.mxu0 0.0
  %7048 = vmatpush2.msra.mxu0 0.0
  %7049 = vmatprep.subr.mxu0 0.0
  %7050 = vmatpush2.msra.mxu0 0.0
  %7051 = vmatprep.subr.mxu0 0.0
  %7052 = vmatpush2.msra.mxu0 0.0
  %7053 = vmatprep.subr.mxu0 0.0
  %7054 = vmatpush2.msra.mxu0 0.0
  %7055 = vmatprep.subr.mxu0 0.0
  %7056 = vmatpush2.msra.mxu0 0.0
  %7057 = vmatprep.subr.mxu0 0.0
  %7058 = vmatpush2.msra.mxu0 0.0
  %7059 = vmatprep.subr.mxu0 0.0
  %7060 = vmatpush2.msra.mxu0 0.0
  %7061 = vmatprep.subr.mxu0 0.0
  %7062 = vmatpush2.msra.mxu0 0.0
  %7063 = vmatprep.subr.mxu0 0.0
  %7064 = vmatpush2.msra.mxu0 0.0
  %7065 = vmatprep.subr.mxu0 0.0
  %7066 = vmatpush2.msra.mxu0 0.0
  %7067 = vmatprep.subr.mxu0 0.0
  %7068 = vmatpush2.msra.mxu0 0.0
  %7069 = vmatprep.subr.mxu0 0.0
  %7070 = vmatpush2.msra.mxu0 0.0
  %7071 = vmatprep.subr.mxu0 0.0
  %7072 = vmatpush2.msra.mxu0 0.0
  %7073 = vmatprep.mubr.f32.mxu0 0.0
  %7074 = vmatmul.mubr.f32.gmra.mxu0 %v7007
  %v7075 = vpop.f32.mrf.mxu0
  %v7076 = vadd.f32 0.0, %v7075
  %v7077 = vpop.f32.mrf.mxu0
  %7078 = vdwg.mxu0
  %v7080 = vsel %vm1140, %v6993, 0
  %7082 = vmatprep.subr.mxu0 0.0
  %7083 = vmatpush1.msra.mxu0 0.0
  %7084 = vmatprep.subr.mxu0 0.0
  %7085 = vmatpush1.msra.mxu0 0.0
  %7086 = vmatprep.subr.mxu0 0.0
  %7087 = vmatpush1.msra.mxu0 0.0
  %7088 = vmatprep.subr.mxu0 0.0
  %7089 = vmatpush1.msra.mxu0 0.0
  %7090 = vmatprep.subr.mxu0 0.0
  %7091 = vmatpush1.msra.mxu0 0.0
  %7092 = vmatprep.subr.mxu0 0.0
  %7093 = vmatpush1.msra.mxu0 0.0
  %7094 = vmatprep.subr.mxu0 0.0
  %7095 = vmatpush1.msra.mxu0 0.0
  %7096 = vmatprep.subr.mxu0 0.0
  %7097 = vmatpush1.msra.mxu0 0.0
  %7098 = vmatprep.subr.mxu0 0.0
  %7099 = vmatpush1.msra.mxu0 0.0
  %7100 = vmatprep.subr.mxu0 0.0
  %7101 = vmatpush1.msra.mxu0 0.0
  %7102 = vmatprep.subr.mxu0 0.0
  %7103 = vmatpush1.msra.mxu0 0.0
  %7104 = vmatprep.subr.mxu0 0.0
  %7105 = vmatpush1.msra.mxu0 0.0
  %7106 = vmatprep.subr.mxu0 0.0
  %7107 = vmatpush1.msra.mxu0 0.0
  %7108 = vmatprep.subr.mxu0 0.0
  %7109 = vmatpush1.msra.mxu0 0.0
  %7110 = vmatprep.subr.mxu0 0.0
  %7111 = vmatpush1.msra.mxu0 0.0
  %7112 = vmatprep.subr.mxu0 0.0
  %7113 = vmatpush1.msra.mxu0 %v6269
  %7114 = vmatprep.subr.mxu0 0.0
  %7115 = vmatpush2.msra.mxu0 0.0
  %7116 = vmatprep.subr.mxu0 0.0
  %7117 = vmatpush2.msra.mxu0 0.0
  %7118 = vmatprep.subr.mxu0 0.0
  %7119 = vmatpush2.msra.mxu0 0.0
  %7120 = vmatprep.subr.mxu0 0.0
  %7121 = vmatpush2.msra.mxu0 0.0
  %7122 = vmatprep.subr.mxu0 0.0
  %7123 = vmatpush2.msra.mxu0 0.0
  %7124 = vmatprep.subr.mxu0 0.0
  %7125 = vmatpush2.msra.mxu0 0.0
  %7126 = vmatprep.subr.mxu0 0.0
  %7127 = vmatpush2.msra.mxu0 0.0
  %7128 = vmatprep.subr.mxu0 0.0
  %7129 = vmatpush2.msra.mxu0 0.0
  %7130 = vmatprep.subr.mxu0 0.0
  %7131 = vmatpush2.msra.mxu0 0.0
  %7132 = vmatprep.subr.mxu0 0.0
  %7133 = vmatpush2.msra.mxu0 0.0
  %7134 = vmatprep.subr.mxu0 0.0
  %7135 = vmatpush2.msra.mxu0 0.0
  %7136 = vmatprep.subr.mxu0 0.0
  %7137 = vmatpush2.msra.mxu0 0.0
  %7138 = vmatprep.subr.mxu0 0.0
  %7139 = vmatpush2.msra.mxu0 0.0
  %7140 = vmatprep.subr.mxu0 0.0
  %7141 = vmatpush2.msra.mxu0 0.0
  %7142 = vmatprep.subr.mxu0 0.0
  %7143 = vmatpush2.msra.mxu0 0.0
  %7144 = vmatprep.subr.mxu0 0.0
  %7145 = vmatpush2.msra.mxu0 0.0
  %7146 = vmatprep.mubr.f32.mxu0 0.0
  %7147 = vmatmul.mubr.f32.gmra.mxu0 %v7080
  %v7148 = vpop.f32.mrf.mxu0
  %v7149 = vadd.f32 0.0, %v7148
  %v7150 = vpop.f32.mrf.mxu0
  %7151 = vdwg.mxu0
  %v7153 = vsel %vm1140, %v6995, 0
  %7155 = vmatprep.subr.mxu0 0.0
  %7156 = vmatpush1.msra.mxu0 0.0
  %7157 = vmatprep.subr.mxu0 0.0
  %7158 = vmatpush1.msra.mxu0 0.0
  %7159 = vmatprep.subr.mxu0 0.0
  %7160 = vmatpush1.msra.mxu0 0.0
  %7161 = vmatprep.subr.mxu0 0.0
  %7162 = vmatpush1.msra.mxu0 0.0
  %7163 = vmatprep.subr.mxu0 0.0
  %7164 = vmatpush1.msra.mxu0 0.0
  %7165 = vmatprep.subr.mxu0 0.0
  %7166 = vmatpush1.msra.mxu0 0.0
  %7167 = vmatprep.subr.mxu0 0.0
  %7168 = vmatpush1.msra.mxu0 0.0
  %7169 = vmatprep.subr.mxu0 0.0
  %7170 = vmatpush1.msra.mxu0 0.0
  %7171 = vmatprep.subr.mxu0 0.0
  %7172 = vmatpush1.msra.mxu0 0.0
  %7173 = vmatprep.subr.mxu0 0.0
  %7174 = vmatpush1.msra.mxu0 0.0
  %7175 = vmatprep.subr.mxu0 0.0
  %7176 = vmatpush1.msra.mxu0 0.0
  %7177 = vmatprep.subr.mxu0 0.0
  %7178 = vmatpush1.msra.mxu0 0.0
  %7179 = vmatprep.subr.mxu0 0.0
  %7180 = vmatpush1.msra.mxu0 0.0
  %7181 = vmatprep.subr.mxu0 0.0
  %7182 = vmatpush1.msra.mxu0 0.0
  %7183 = vmatprep.subr.mxu0 0.0
  %7184 = vmatpush1.msra.mxu0 0.0
  %7185 = vmatprep.subr.mxu0 0.0
  %7186 = vmatpush1.msra.mxu0 %v6274
  %7187 = vmatprep.subr.mxu0 0.0
  %7188 = vmatpush2.msra.mxu0 0.0
  %7189 = vmatprep.subr.mxu0 0.0
  %7190 = vmatpush2.msra.mxu0 0.0
  %7191 = vmatprep.subr.mxu0 0.0
  %7192 = vmatpush2.msra.mxu0 0.0
  %7193 = vmatprep.subr.mxu0 0.0
  %7194 = vmatpush2.msra.mxu0 0.0
  %7195 = vmatprep.subr.mxu0 0.0
  %7196 = vmatpush2.msra.mxu0 0.0
  %7197 = vmatprep.subr.mxu0 0.0
  %7198 = vmatpush2.msra.mxu0 0.0
  %7199 = vmatprep.subr.mxu0 0.0
  %7200 = vmatpush2.msra.mxu0 0.0
  %7201 = vmatprep.subr.mxu0 0.0
  %7202 = vmatpush2.msra.mxu0 0.0
  %7203 = vmatprep.subr.mxu0 0.0
  %7204 = vmatpush2.msra.mxu0 0.0
  %7205 = vmatprep.subr.mxu0 0.0
  %7206 = vmatpush2.msra.mxu0 0.0
  %7207 = vmatprep.subr.mxu0 0.0
  %7208 = vmatpush2.msra.mxu0 0.0
  %7209 = vmatprep.subr.mxu0 0.0
  %7210 = vmatpush2.msra.mxu0 0.0
  %7211 = vmatprep.subr.mxu0 0.0
  %7212 = vmatpush2.msra.mxu0 0.0
  %7213 = vmatprep.subr.mxu0 0.0
  %7214 = vmatpush2.msra.mxu0 0.0
  %7215 = vmatprep.subr.mxu0 0.0
  %7216 = vmatpush2.msra.mxu0 0.0
  %7217 = vmatprep.subr.mxu0 0.0
  %7218 = vmatpush2.msra.mxu0 0.0
  %7219 = vmatprep.mubr.f32.mxu0 0.0
  %7220 = vmatmul.mubr.f32.gmra.mxu0 %v7153
  %v7221 = vpop.f32.mrf.mxu0
  %v7222 = vadd.f32 0.0, %v7221
  %v7223 = vpop.f32.mrf.mxu0
  %7224 = vdwg.mxu0
  %v7226 = vsel %vm1140, %v6997, 0
  %7228 = vmatprep.subr.mxu0 0.0
  %7229 = vmatpush1.msra.mxu0 0.0
  %7230 = vmatprep.subr.mxu0 0.0
  %7231 = vmatpush1.msra.mxu0 0.0
  %7232 = vmatprep.subr.mxu0 0.0
  %7233 = vmatpush1.msra.mxu0 0.0
  %7234 = vmatprep.subr.mxu0 0.0
  %7235 = vmatpush1.msra.mxu0 0.0
  %7236 = vmatprep.subr.mxu0 0.0
  %7237 = vmatpush1.msra.mxu0 0.0
  %7238 = vmatprep.subr.mxu0 0.0
  %7239 = vmatpush1.msra.mxu0 0.0
  %7240 = vmatprep.subr.mxu0 0.0
  %7241 = vmatpush1.msra.mxu0 0.0
  %7242 = vmatprep.subr.mxu0 0.0
  %7243 = vmatpush1.msra.mxu0 0.0
  %7244 = vmatprep.subr.mxu0 0.0
  %7245 = vmatpush1.msra.mxu0 0.0
  %7246 = vmatprep.subr.mxu0 0.0
  %7247 = vmatpush1.msra.mxu0 0.0
  %7248 = vmatprep.subr.mxu0 0.0
  %7249 = vmatpush1.msra.mxu0 0.0
  %7250 = vmatprep.subr.mxu0 0.0
  %7251 = vmatpush1.msra.mxu0 0.0
  %7252 = vmatprep.subr.mxu0 0.0
  %7253 = vmatpush1.msra.mxu0 0.0
  %7254 = vmatprep.subr.mxu0 0.0
  %7255 = vmatpush1.msra.mxu0 0.0
  %7256 = vmatprep.subr.mxu0 0.0
  %7257 = vmatpush1.msra.mxu0 0.0
  %7258 = vmatprep.subr.mxu0 0.0
  %7259 = vmatpush1.msra.mxu0 %v6279
  %7260 = vmatprep.subr.mxu0 0.0
  %7261 = vmatpush2.msra.mxu0 0.0
  %7262 = vmatprep.subr.mxu0 0.0
  %7263 = vmatpush2.msra.mxu0 0.0
  %7264 = vmatprep.subr.mxu0 0.0
  %7265 = vmatpush2.msra.mxu0 0.0
  %7266 = vmatprep.subr.mxu0 0.0
  %7267 = vmatpush2.msra.mxu0 0.0
  %7268 = vmatprep.subr.mxu0 0.0
  %7269 = vmatpush2.msra.mxu0 0.0
  %7270 = vmatprep.subr.mxu0 0.0
  %7271 = vmatpush2.msra.mxu0 0.0
  %7272 = vmatprep.subr.mxu0 0.0
  %7273 = vmatpush2.msra.mxu0 0.0
  %7274 = vmatprep.subr.mxu0 0.0
  %7275 = vmatpush2.msra.mxu0 0.0
  %7276 = vmatprep.subr.mxu0 0.0
  %7277 = vmatpush2.msra.mxu0 0.0
  %7278 = vmatprep.subr.mxu0 0.0
  %7279 = vmatpush2.msra.mxu0 0.0
  %7280 = vmatprep.subr.mxu0 0.0
  %7281 = vmatpush2.msra.mxu0 0.0
  %7282 = vmatprep.subr.mxu0 0.0
  %7283 = vmatpush2.msra.mxu0 0.0
  %7284 = vmatprep.subr.mxu0 0.0
  %7285 = vmatpush2.msra.mxu0 0.0
  %7286 = vmatprep.subr.mxu0 0.0
  %7287 = vmatpush2.msra.mxu0 0.0
  %7288 = vmatprep.subr.mxu0 0.0
  %7289 = vmatpush2.msra.mxu0 0.0
  %7290 = vmatprep.subr.mxu0 0.0
  %7291 = vmatpush2.msra.mxu0 0.0
  %7292 = vmatprep.mubr.f32.mxu0 0.0
  %7293 = vmatmul.mubr.f32.gmra.mxu0 %v7226
  %v7294 = vpop.f32.mrf.mxu0
  %v7295 = vadd.f32 0.0, %v7294
  %v7296 = vpop.f32.mrf.mxu0
  %7297 = vdwg.mxu0
  %v7299 = vsel %vm1140, %v6999, 0
  %7301 = vmatprep.subr.mxu0 0.0
  %7302 = vmatpush1.msra.mxu0 0.0
  %7303 = vmatprep.subr.mxu0 0.0
  %7304 = vmatpush1.msra.mxu0 0.0
  %7305 = vmatprep.subr.mxu0 0.0
  %7306 = vmatpush1.msra.mxu0 0.0
  %7307 = vmatprep.subr.mxu0 0.0
  %7308 = vmatpush1.msra.mxu0 0.0
  %7309 = vmatprep.subr.mxu0 0.0
  %7310 = vmatpush1.msra.mxu0 0.0
  %7311 = vmatprep.subr.mxu0 0.0
  %7312 = vmatpush1.msra.mxu0 0.0
  %7313 = vmatprep.subr.mxu0 0.0
  %7314 = vmatpush1.msra.mxu0 0.0
  %7315 = vmatprep.subr.mxu0 0.0
  %7316 = vmatpush1.msra.mxu0 0.0
  %7317 = vmatprep.subr.mxu0 0.0
  %7318 = vmatpush1.msra.mxu0 0.0
  %7319 = vmatprep.subr.mxu0 0.0
  %7320 = vmatpush1.msra.mxu0 0.0
  %7321 = vmatprep.subr.mxu0 0.0
  %7322 = vmatpush1.msra.mxu0 0.0
  %7323 = vmatprep.subr.mxu0 0.0
  %7324 = vmatpush1.msra.mxu0 0.0
  %7325 = vmatprep.subr.mxu0 0.0
  %7326 = vmatpush1.msra.mxu0 0.0
  %7327 = vmatprep.subr.mxu0 0.0
  %7328 = vmatpush1.msra.mxu0 0.0
  %7329 = vmatprep.subr.mxu0 0.0
  %7330 = vmatpush1.msra.mxu0 0.0
  %7331 = vmatprep.subr.mxu0 0.0
  %7332 = vmatpush1.msra.mxu0 %v6284
  %7333 = vmatprep.subr.mxu0 0.0
  %7334 = vmatpush2.msra.mxu0 0.0
  %7335 = vmatprep.subr.mxu0 0.0
  %7336 = vmatpush2.msra.mxu0 0.0
  %7337 = vmatprep.subr.mxu0 0.0
  %7338 = vmatpush2.msra.mxu0 0.0
  %7339 = vmatprep.subr.mxu0 0.0
  %7340 = vmatpush2.msra.mxu0 0.0
  %7341 = vmatprep.subr.mxu0 0.0
  %7342 = vmatpush2.msra.mxu0 0.0
  %7343 = vmatprep.subr.mxu0 0.0
  %7344 = vmatpush2.msra.mxu0 0.0
  %7345 = vmatprep.subr.mxu0 0.0
  %7346 = vmatpush2.msra.mxu0 0.0
  %7347 = vmatprep.subr.mxu0 0.0
  %7348 = vmatpush2.msra.mxu0 0.0
  %7349 = vmatprep.subr.mxu0 0.0
  %7350 = vmatpush2.msra.mxu0 0.0
  %7351 = vmatprep.subr.mxu0 0.0
  %7352 = vmatpush2.msra.mxu0 0.0
  %7353 = vmatprep.subr.mxu0 0.0
  %7354 = vmatpush2.msra.mxu0 0.0
  %7355 = vmatprep.subr.mxu0 0.0
  %7356 = vmatpush2.msra.mxu0 0.0
  %7357 = vmatprep.subr.mxu0 0.0
  %7358 = vmatpush2.msra.mxu0 0.0
  %7359 = vmatprep.subr.mxu0 0.0
  %7360 = vmatpush2.msra.mxu0 0.0
  %7361 = vmatprep.subr.mxu0 0.0
  %7362 = vmatpush2.msra.mxu0 0.0
  %7363 = vmatprep.subr.mxu0 0.0
  %7364 = vmatpush2.msra.mxu0 0.0
  %7365 = vmatprep.mubr.f32.mxu0 0.0
  %7366 = vmatmul.mubr.f32.gmra.mxu0 %v7299
  %v7367 = vpop.f32.mrf.mxu0
  %v7368 = vadd.f32 0.0, %v7367
  %v7369 = vpop.f32.mrf.mxu0
  %7370 = vdwg.mxu0
  %v7372 = vsel %vm1140, %v7001, 0
  %7374 = vmatprep.subr.mxu0 0.0
  %7375 = vmatpush1.msra.mxu0 0.0
  %7376 = vmatprep.subr.mxu0 0.0
  %7377 = vmatpush1.msra.mxu0 0.0
  %7378 = vmatprep.subr.mxu0 0.0
  %7379 = vmatpush1.msra.mxu0 0.0
  %7380 = vmatprep.subr.mxu0 0.0
  %7381 = vmatpush1.msra.mxu0 0.0
  %7382 = vmatprep.subr.mxu0 0.0
  %7383 = vmatpush1.msra.mxu0 0.0
  %7384 = vmatprep.subr.mxu0 0.0
  %7385 = vmatpush1.msra.mxu0 0.0
  %7386 = vmatprep.subr.mxu0 0.0
  %7387 = vmatpush1.msra.mxu0 0.0
  %7388 = vmatprep.subr.mxu0 0.0
  %7389 = vmatpush1.msra.mxu0 0.0
  %7390 = vmatprep.subr.mxu0 0.0
  %7391 = vmatpush1.msra.mxu0 0.0
  %7392 = vmatprep.subr.mxu0 0.0
  %7393 = vmatpush1.msra.mxu0 0.0
  %7394 = vmatprep.subr.mxu0 0.0
  %7395 = vmatpush1.msra.mxu0 0.0
  %7396 = vmatprep.subr.mxu0 0.0
  %7397 = vmatpush1.msra.mxu0 0.0
  %7398 = vmatprep.subr.mxu0 0.0
  %7399 = vmatpush1.msra.mxu0 0.0
  %7400 = vmatprep.subr.mxu0 0.0
  %7401 = vmatpush1.msra.mxu0 0.0
  %7402 = vmatprep.subr.mxu0 0.0
  %7403 = vmatpush1.msra.mxu0 0.0
  %7404 = vmatprep.subr.mxu0 0.0
  %7405 = vmatpush1.msra.mxu0 %v6289
  %7406 = vmatprep.subr.mxu0 0.0
  %7407 = vmatpush2.msra.mxu0 0.0
  %7408 = vmatprep.subr.mxu0 0.0
  %7409 = vmatpush2.msra.mxu0 0.0
  %7410 = vmatprep.subr.mxu0 0.0
  %7411 = vmatpush2.msra.mxu0 0.0
  %7412 = vmatprep.subr.mxu0 0.0
  %7413 = vmatpush2.msra.mxu0 0.0
  %7414 = vmatprep.subr.mxu0 0.0
  %7415 = vmatpush2.msra.mxu0 0.0
  %7416 = vmatprep.subr.mxu0 0.0
  %7417 = vmatpush2.msra.mxu0 0.0
  %7418 = vmatprep.subr.mxu0 0.0
  %7419 = vmatpush2.msra.mxu0 0.0
  %7420 = vmatprep.subr.mxu0 0.0
  %7421 = vmatpush2.msra.mxu0 0.0
  %7422 = vmatprep.subr.mxu0 0.0
  %7423 = vmatpush2.msra.mxu0 0.0
  %7424 = vmatprep.subr.mxu0 0.0
  %7425 = vmatpush2.msra.mxu0 0.0
  %7426 = vmatprep.subr.mxu0 0.0
  %7427 = vmatpush2.msra.mxu0 0.0
  %7428 = vmatprep.subr.mxu0 0.0
  %7429 = vmatpush2.msra.mxu0 0.0
  %7430 = vmatprep.subr.mxu0 0.0
  %7431 = vmatpush2.msra.mxu0 0.0
  %7432 = vmatprep.subr.mxu0 0.0
  %7433 = vmatpush2.msra.mxu0 0.0
  %7434 = vmatprep.subr.mxu0 0.0
  %7435 = vmatpush2.msra.mxu0 0.0
  %7436 = vmatprep.subr.mxu0 0.0
  %7437 = vmatpush2.msra.mxu0 0.0
  %7438 = vmatprep.mubr.f32.mxu0 0.0
  %7439 = vmatmul.mubr.f32.gmra.mxu0 %v7372
  %v7440 = vpop.f32.mrf.mxu0
  %v7441 = vadd.f32 0.0, %v7440
  %v7442 = vpop.f32.mrf.mxu0
  %7443 = vdwg.mxu0
  %v7445 = vsel %vm1140, %v7003, 0
  %7447 = vmatprep.subr.mxu0 0.0
  %7448 = vmatpush1.msra.mxu0 0.0
  %7449 = vmatprep.subr.mxu0 0.0
  %7450 = vmatpush1.msra.mxu0 0.0
  %7451 = vmatprep.subr.mxu0 0.0
  %7452 = vmatpush1.msra.mxu0 0.0
  %7453 = vmatprep.subr.mxu0 0.0
  %7454 = vmatpush1.msra.mxu0 0.0
  %7455 = vmatprep.subr.mxu0 0.0
  %7456 = vmatpush1.msra.mxu0 0.0
  %7457 = vmatprep.subr.mxu0 0.0
  %7458 = vmatpush1.msra.mxu0 0.0
  %7459 = vmatprep.subr.mxu0 0.0
  %7460 = vmatpush1.msra.mxu0 0.0
  %7461 = vmatprep.subr.mxu0 0.0
  %7462 = vmatpush1.msra.mxu0 0.0
  %7463 = vmatprep.subr.mxu0 0.0
  %7464 = vmatpush1.msra.mxu0 0.0
  %7465 = vmatprep.subr.mxu0 0.0
  %7466 = vmatpush1.msra.mxu0 0.0
  %7467 = vmatprep.subr.mxu0 0.0
  %7468 = vmatpush1.msra.mxu0 0.0
  %7469 = vmatprep.subr.mxu0 0.0
  %7470 = vmatpush1.msra.mxu0 0.0
  %7471 = vmatprep.subr.mxu0 0.0
  %7472 = vmatpush1.msra.mxu0 0.0
  %7473 = vmatprep.subr.mxu0 0.0
  %7474 = vmatpush1.msra.mxu0 0.0
  %7475 = vmatprep.subr.mxu0 0.0
  %7476 = vmatpush1.msra.mxu0 0.0
  %7477 = vmatprep.subr.mxu0 0.0
  %7478 = vmatpush1.msra.mxu0 %v6294
  %7479 = vmatprep.subr.mxu0 0.0
  %7480 = vmatpush2.msra.mxu0 0.0
  %7481 = vmatprep.subr.mxu0 0.0
  %7482 = vmatpush2.msra.mxu0 0.0
  %7483 = vmatprep.subr.mxu0 0.0
  %7484 = vmatpush2.msra.mxu0 0.0
  %7485 = vmatprep.subr.mxu0 0.0
  %7486 = vmatpush2.msra.mxu0 0.0
  %7487 = vmatprep.subr.mxu0 0.0
  %7488 = vmatpush2.msra.mxu0 0.0
  %7489 = vmatprep.subr.mxu0 0.0
  %7490 = vmatpush2.msra.mxu0 0.0
  %7491 = vmatprep.subr.mxu0 0.0
  %7492 = vmatpush2.msra.mxu0 0.0
  %7493 = vmatprep.subr.mxu0 0.0
  %7494 = vmatpush2.msra.mxu0 0.0
  %7495 = vmatprep.subr.mxu0 0.0
  %7496 = vmatpush2.msra.mxu0 0.0
  %7497 = vmatprep.subr.mxu0 0.0
  %7498 = vmatpush2.msra.mxu0 0.0
  %7499 = vmatprep.subr.mxu0 0.0
  %7500 = vmatpush2.msra.mxu0 0.0
  %7501 = vmatprep.subr.mxu0 0.0
  %7502 = vmatpush2.msra.mxu0 0.0
  %7503 = vmatprep.subr.mxu0 0.0
  %7504 = vmatpush2.msra.mxu0 0.0
  %7505 = vmatprep.subr.mxu0 0.0
  %7506 = vmatpush2.msra.mxu0 0.0
  %7507 = vmatprep.subr.mxu0 0.0
  %7508 = vmatpush2.msra.mxu0 0.0
  %7509 = vmatprep.subr.mxu0 0.0
  %7510 = vmatpush2.msra.mxu0 0.0
  %7511 = vmatprep.mubr.f32.mxu0 0.0
  %7512 = vmatmul.mubr.f32.gmra.mxu0 %v7445
  %v7513 = vpop.f32.mrf.mxu0
  %v7514 = vadd.f32 0.0, %v7513
  %v7515 = vpop.f32.mrf.mxu0
  %7516 = vdwg.mxu0
  %v7518 = vsel %vm1140, %v7005, 0
  %7520 = vmatprep.subr.mxu0 0.0
  %7521 = vmatpush1.msra.mxu0 0.0
  %7522 = vmatprep.subr.mxu0 0.0
  %7523 = vmatpush1.msra.mxu0 0.0
  %7524 = vmatprep.subr.mxu0 0.0
  %7525 = vmatpush1.msra.mxu0 0.0
  %7526 = vmatprep.subr.mxu0 0.0
  %7527 = vmatpush1.msra.mxu0 0.0
  %7528 = vmatprep.subr.mxu0 0.0
  %7529 = vmatpush1.msra.mxu0 0.0
  %7530 = vmatprep.subr.mxu0 0.0
  %7531 = vmatpush1.msra.mxu0 0.0
  %7532 = vmatprep.subr.mxu0 0.0
  %7533 = vmatpush1.msra.mxu0 0.0
  %7534 = vmatprep.subr.mxu0 0.0
  %7535 = vmatpush1.msra.mxu0 0.0
  %7536 = vmatprep.subr.mxu0 0.0
  %7537 = vmatpush1.msra.mxu0 0.0
  %7538 = vmatprep.subr.mxu0 0.0
  %7539 = vmatpush1.msra.mxu0 0.0
  %7540 = vmatprep.subr.mxu0 0.0
  %7541 = vmatpush1.msra.mxu0 0.0
  %7542 = vmatprep.subr.mxu0 0.0
  %7543 = vmatpush1.msra.mxu0 0.0
  %7544 = vmatprep.subr.mxu0 0.0
  %7545 = vmatpush1.msra.mxu0 0.0
  %7546 = vmatprep.subr.mxu0 0.0
  %7547 = vmatpush1.msra.mxu0 0.0
  %7548 = vmatprep.subr.mxu0 0.0
  %7549 = vmatpush1.msra.mxu0 0.0
  %7550 = vmatprep.subr.mxu0 0.0
  %7551 = vmatpush1.msra.mxu0 %v6299
  %7552 = vmatprep.subr.mxu0 0.0
  %7553 = vmatpush2.msra.mxu0 0.0
  %7554 = vmatprep.subr.mxu0 0.0
  %7555 = vmatpush2.msra.mxu0 0.0
  %7556 = vmatprep.subr.mxu0 0.0
  %7557 = vmatpush2.msra.mxu0 0.0
  %7558 = vmatprep.subr.mxu0 0.0
  %7559 = vmatpush2.msra.mxu0 0.0
  %7560 = vmatprep.subr.mxu0 0.0
  %7561 = vmatpush2.msra.mxu0 0.0
  %7562 = vmatprep.subr.mxu0 0.0
  %7563 = vmatpush2.msra.mxu0 0.0
  %7564 = vmatprep.subr.mxu0 0.0
  %7565 = vmatpush2.msra.mxu0 0.0
  %7566 = vmatprep.subr.mxu0 0.0
  %7567 = vmatpush2.msra.mxu0 0.0
  %7568 = vmatprep.subr.mxu0 0.0
  %7569 = vmatpush2.msra.mxu0 0.0
  %7570 = vmatprep.subr.mxu0 0.0
  %7571 = vmatpush2.msra.mxu0 0.0
  %7572 = vmatprep.subr.mxu0 0.0
  %7573 = vmatpush2.msra.mxu0 0.0
  %7574 = vmatprep.subr.mxu0 0.0
  %7575 = vmatpush2.msra.mxu0 0.0
  %7576 = vmatprep.subr.mxu0 0.0
  %7577 = vmatpush2.msra.mxu0 0.0
  %7578 = vmatprep.subr.mxu0 0.0
  %7579 = vmatpush2.msra.mxu0 0.0
  %7580 = vmatprep.subr.mxu0 0.0
  %7581 = vmatpush2.msra.mxu0 0.0
  %7582 = vmatprep.subr.mxu0 0.0
  %7583 = vmatpush2.msra.mxu0 0.0
  %7584 = vmatprep.mubr.f32.mxu0 0.0
  %7585 = vmatmul.mubr.f32.gmra.mxu0 %v7518
  %v7586 = vpop.f32.mrf.mxu0
  %v7587 = vadd.f32 0.0, %v7586
  %v7588 = vpop.f32.mrf.mxu0
  %7589 = vdwg.mxu0
  %s7590 = scalar_lea.vmem %s4, 48
  %v7591 = vld [vmem:[%s7590] sm:$0xff]
  %v7592 = vld [vmem:[%s7590 + $0x8] sm:$0xff]
  %v7594 = vsel %vm523, %v7076, 0
  %v7597 = vsel %vm523, %v7149, 0
  %v7600 = vsel %vm523, %v7222, 0
  %v7603 = vsel %vm523, %v7295, 0
  %v7606 = vsel %vm523, %v7368, 0
  %v7609 = vsel %vm523, %v7441, 0
  %v7612 = vsel %vm523, %v7514, 0
  %v7615 = vsel %vm523, %v7587, 0
  %7617 = vmatprep.subr.mxu0 0.0
  %7618 = vmatpush1.msra.mxu0 0.0
  %7619 = vmatprep.subr.mxu0 0.0
  %7620 = vmatpush1.msra.mxu0 0.0
  %7621 = vmatprep.subr.mxu0 0.0
  %7622 = vmatpush1.msra.mxu0 0.0
  %7623 = vmatprep.subr.mxu0 0.0
  %7624 = vmatpush1.msra.mxu0 0.0
  %7625 = vmatprep.subr.mxu0 0.0
  %7626 = vmatpush1.msra.mxu0 0.0
  %7627 = vmatprep.subr.mxu0 0.0
  %7628 = vmatpush1.msra.mxu0 0.0
  %7629 = vmatprep.subr.mxu0 0.0
  %7630 = vmatpush1.msra.mxu0 0.0
  %7631 = vmatprep.subr.mxu0 0.0
  %7632 = vmatpush1.msra.mxu0 0.0
  %7633 = vmatprep.subr.mxu0 0.0
  %7634 = vmatpush1.msra.mxu0 0.0
  %7635 = vmatprep.subr.mxu0 0.0
  %7636 = vmatpush1.msra.mxu0 0.0
  %7637 = vmatprep.subr.mxu0 0.0
  %7638 = vmatpush1.msra.mxu0 0.0
  %7639 = vmatprep.subr.mxu0 0.0
  %7640 = vmatpush1.msra.mxu0 0.0
  %7641 = vmatprep.subr.mxu0 0.0
  %7642 = vmatpush1.msra.mxu0 0.0
  %7643 = vmatprep.subr.mxu0 0.0
  %7644 = vmatpush1.msra.mxu0 0.0
  %7645 = vmatprep.subr.mxu0 0.0
  %7646 = vmatpush1.msra.mxu0 %v7592
  %7647 = vmatprep.subr.mxu0 0.0
  %7648 = vmatpush1.msra.mxu0 %v7591
  %7649 = vmatprep.subr.mxu0 0.0
  %7650 = vmatpush2.msra.mxu0 0.0
  %7651 = vmatprep.subr.mxu0 0.0
  %7652 = vmatpush2.msra.mxu0 0.0
  %7653 = vmatprep.subr.mxu0 0.0
  %7654 = vmatpush2.msra.mxu0 0.0
  %7655 = vmatprep.subr.mxu0 0.0
  %7656 = vmatpush2.msra.mxu0 0.0
  %7657 = vmatprep.subr.mxu0 0.0
  %7658 = vmatpush2.msra.mxu0 0.0
  %7659 = vmatprep.subr.mxu0 0.0
  %7660 = vmatpush2.msra.mxu0 0.0
  %7661 = vmatprep.subr.mxu0 0.0
  %7662 = vmatpush2.msra.mxu0 0.0
  %7663 = vmatprep.subr.mxu0 0.0
  %7664 = vmatpush2.msra.mxu0 0.0
  %7665 = vmatprep.subr.mxu0 0.0
  %7666 = vmatpush2.msra.mxu0 0.0
  %7667 = vmatprep.subr.mxu0 0.0
  %7668 = vmatpush2.msra.mxu0 0.0
  %7669 = vmatprep.subr.mxu0 0.0
  %7670 = vmatpush2.msra.mxu0 0.0
  %7671 = vmatprep.subr.mxu0 0.0
  %7672 = vmatpush2.msra.mxu0 0.0
  %7673 = vmatprep.subr.mxu0 0.0
  %7674 = vmatpush2.msra.mxu0 0.0
  %7675 = vmatprep.subr.mxu0 0.0
  %7676 = vmatpush2.msra.mxu0 0.0
  %7677 = vmatprep.subr.mxu0 0.0
  %7678 = vmatpush2.msra.mxu0 0.0
  %7679 = vmatprep.subr.mxu0 0.0
  %7680 = vmatpush2.msra.mxu0 0.0
  %7681 = vmatprep.mubr.f32.mxu0 0.0
  %7682 = vmatmul.mubr.f32.gmra.mxu0 %v7594
  %v7683 = vpop.f32.mrf.mxu0
  %v7684 = vadd.f32 0.0, %v7683
  %v7685 = vpop.f32.mrf.mxu0
  %7686 = vmatprep.mubr.f32.mxu0 0.0
  %7687 = vmatmul.mubr.f32.gmra.mxu0 %v7597
  %v7688 = vpop.f32.mrf.mxu0
  %v7689 = vadd.f32 0.0, %v7688
  %v7690 = vpop.f32.mrf.mxu0
  %7691 = vmatprep.mubr.f32.mxu0 0.0
  %7692 = vmatmul.mubr.f32.gmra.mxu0 %v7600
  %v7693 = vpop.f32.mrf.mxu0
  %v7694 = vadd.f32 0.0, %v7693
  %v7695 = vpop.f32.mrf.mxu0
  %7696 = vmatprep.mubr.f32.mxu0 0.0
  %7697 = vmatmul.mubr.f32.gmra.mxu0 %v7603
  %v7698 = vpop.f32.mrf.mxu0
  %v7699 = vadd.f32 0.0, %v7698
  %v7700 = vpop.f32.mrf.mxu0
  %7701 = vmatprep.mubr.f32.mxu0 0.0
  %7702 = vmatmul.mubr.f32.gmra.mxu0 %v7606
  %v7703 = vpop.f32.mrf.mxu0
  %v7704 = vadd.f32 0.0, %v7703
  %v7705 = vpop.f32.mrf.mxu0
  %7706 = vmatprep.mubr.f32.mxu0 0.0
  %7707 = vmatmul.mubr.f32.gmra.mxu0 %v7609
  %v7708 = vpop.f32.mrf.mxu0
  %v7709 = vadd.f32 0.0, %v7708
  %v7710 = vpop.f32.mrf.mxu0
  %7711 = vmatprep.mubr.f32.mxu0 0.0
  %7712 = vmatmul.mubr.f32.gmra.mxu0 %v7612
  %v7713 = vpop.f32.mrf.mxu0
  %v7714 = vadd.f32 0.0, %v7713
  %v7715 = vpop.f32.mrf.mxu0
  %7716 = vmatprep.mubr.f32.mxu0 0.0
  %7717 = vmatmul.mubr.f32.gmra.mxu0 %v7615
  %v7718 = vpop.f32.mrf.mxu0
  %v7719 = vadd.f32 0.0, %v7718
  %v7720 = vpop.f32.mrf.mxu0
  %7721 = vdwg.mxu0
  %v7723 = vsel %vm523, %v5455, 0
  %v7726 = vsel %vm523, %v5528, 0
  %v7729 = vsel %vm523, %v5601, 0
  %v7732 = vsel %vm523, %v5674, 0
  %v7735 = vsel %vm523, %v5747, 0
  %v7738 = vsel %vm523, %v5820, 0
  %v7741 = vsel %vm523, %v5893, 0
  %v7744 = vsel %vm523, %v5966, 0
  %7746 = vmatprep.subr.mxu0 0.0
  %7747 = vmatpush1.msra.mxu0 0.0
  %7748 = vmatprep.subr.mxu0 0.0
  %7749 = vmatpush1.msra.mxu0 0.0
  %7750 = vmatprep.subr.mxu0 0.0
  %7751 = vmatpush1.msra.mxu0 0.0
  %7752 = vmatprep.subr.mxu0 0.0
  %7753 = vmatpush1.msra.mxu0 0.0
  %7754 = vmatprep.subr.mxu0 0.0
  %7755 = vmatpush1.msra.mxu0 0.0
  %7756 = vmatprep.subr.mxu0 0.0
  %7757 = vmatpush1.msra.mxu0 0.0
  %7758 = vmatprep.subr.mxu0 0.0
  %7759 = vmatpush1.msra.mxu0 0.0
  %7760 = vmatprep.subr.mxu0 0.0
  %7761 = vmatpush1.msra.mxu0 0.0
  %7762 = vmatprep.subr.mxu0 0.0
  %7763 = vmatpush1.msra.mxu0 0.0
  %7764 = vmatprep.subr.mxu0 0.0
  %7765 = vmatpush1.msra.mxu0 0.0
  %7766 = vmatprep.subr.mxu0 0.0
  %7767 = vmatpush1.msra.mxu0 0.0
  %7768 = vmatprep.subr.mxu0 0.0
  %7769 = vmatpush1.msra.mxu0 0.0
  %7770 = vmatprep.subr.mxu0 0.0
  %7771 = vmatpush1.msra.mxu0 0.0
  %7772 = vmatprep.subr.mxu0 0.0
  %7773 = vmatpush1.msra.mxu0 0.0
  %7774 = vmatprep.subr.mxu0 0.0
  %7775 = vmatpush1.msra.mxu0 %v5971
  %7776 = vmatprep.subr.mxu0 0.0
  %7777 = vmatpush1.msra.mxu0 %v5970
  %7778 = vmatprep.subr.mxu0 0.0
  %7779 = vmatpush2.msra.mxu0 0.0
  %7780 = vmatprep.subr.mxu0 0.0
  %7781 = vmatpush2.msra.mxu0 0.0
  %7782 = vmatprep.subr.mxu0 0.0
  %7783 = vmatpush2.msra.mxu0 0.0
  %7784 = vmatprep.subr.mxu0 0.0
  %7785 = vmatpush2.msra.mxu0 0.0
  %7786 = vmatprep.subr.mxu0 0.0
  %7787 = vmatpush2.msra.mxu0 0.0
  %7788 = vmatprep.subr.mxu0 0.0
  %7789 = vmatpush2.msra.mxu0 0.0
  %7790 = vmatprep.subr.mxu0 0.0
  %7791 = vmatpush2.msra.mxu0 0.0
  %7792 = vmatprep.subr.mxu0 0.0
  %7793 = vmatpush2.msra.mxu0 0.0
  %7794 = vmatprep.subr.mxu0 0.0
  %7795 = vmatpush2.msra.mxu0 0.0
  %7796 = vmatprep.subr.mxu0 0.0
  %7797 = vmatpush2.msra.mxu0 0.0
  %7798 = vmatprep.subr.mxu0 0.0
  %7799 = vmatpush2.msra.mxu0 0.0
  %7800 = vmatprep.subr.mxu0 0.0
  %7801 = vmatpush2.msra.mxu0 0.0
  %7802 = vmatprep.subr.mxu0 0.0
  %7803 = vmatpush2.msra.mxu0 0.0
  %7804 = vmatprep.subr.mxu0 0.0
  %7805 = vmatpush2.msra.mxu0 0.0
  %7806 = vmatprep.subr.mxu0 0.0
  %7807 = vmatpush2.msra.mxu0 0.0
  %7808 = vmatprep.subr.mxu0 0.0
  %7809 = vmatpush2.msra.mxu0 0.0
  %7810 = vmatprep.mubr.f32.mxu0 0.0
  %7811 = vmatmul.mubr.f32.gmra.mxu0 %v7723
  %v7812 = vpop.f32.mrf.mxu0
  %v7813 = vadd.f32 %v7684, %v7812
  %v7814 = vpop.f32.mrf.mxu0
  %7815 = vmatprep.mubr.f32.mxu0 0.0
  %7816 = vmatmul.mubr.f32.gmra.mxu0 %v7726
  %v7817 = vpop.f32.mrf.mxu0
  %v7818 = vadd.f32 %v7689, %v7817
  %v7819 = vpop.f32.mrf.mxu0
  %7820 = vmatprep.mubr.f32.mxu0 0.0
  %7821 = vmatmul.mubr.f32.gmra.mxu0 %v7729
  %v7822 = vpop.f32.mrf.mxu0
  %v7823 = vadd.f32 %v7694, %v7822
  %v7824 = vpop.f32.mrf.mxu0
  %7825 = vmatprep.mubr.f32.mxu0 0.0
  %7826 = vmatmul.mubr.f32.gmra.mxu0 %v7732
  %v7827 = vpop.f32.mrf.mxu0
  %v7828 = vadd.f32 %v7699, %v7827
  %v7829 = vpop.f32.mrf.mxu0
  %7830 = vmatprep.mubr.f32.mxu0 0.0
  %7831 = vmatmul.mubr.f32.gmra.mxu0 %v7735
  %v7832 = vpop.f32.mrf.mxu0
  %v7833 = vadd.f32 %v7704, %v7832
  %v7834 = vpop.f32.mrf.mxu0
  %7835 = vmatprep.mubr.f32.mxu0 0.0
  %7836 = vmatmul.mubr.f32.gmra.mxu0 %v7738
  %v7837 = vpop.f32.mrf.mxu0
  %v7838 = vadd.f32 %v7709, %v7837
  %v7839 = vpop.f32.mrf.mxu0
  %7840 = vmatprep.mubr.f32.mxu0 0.0
  %7841 = vmatmul.mubr.f32.gmra.mxu0 %v7741
  %v7842 = vpop.f32.mrf.mxu0
  %v7843 = vadd.f32 %v7714, %v7842
  %v7844 = vpop.f32.mrf.mxu0
  %7845 = vmatprep.mubr.f32.mxu0 0.0
  %7846 = vmatmul.mubr.f32.gmra.mxu0 %v7744
  %v7847 = vpop.f32.mrf.mxu0
  %v7848 = vadd.f32 %v7719, %v7847
  %v7849 = vpop.f32.mrf.mxu0
  %7850 = vdwg.mxu0
  %v7851 = vadd.f32 %v4187, %v7813
  %v7852 = vadd.f32 %v4188, %v7818
  %v7853 = vadd.f32 %v4189, %v7823
  %v7854 = vadd.f32 %v4190, %v7828
  %v7855 = vadd.f32 %v4191, %v7833
  %v7856 = vadd.f32 %v4192, %v7838
  %v7857 = vadd.f32 %v4193, %v7843
  %v7858 = vadd.f32 %v4194, %v7848
  %v7859 = vlaneseq
  %v7860 = vshrl.u32 %v7859, 7
  %v7861 = vsub.s32 2, %v7860
  %v7862 = vrot.slane %v4196, %v7861
  %v7863 = vadd.f32 %v7851, %v7862
  %v7864 = vadd.f32 %v7852, %v7862
  %v7865 = vadd.f32 %v7853, %v7862
  %v7866 = vadd.f32 %v7854, %v7862
  %v7867 = vadd.f32 %v7855, %v7862
  %v7868 = vadd.f32 %v7856, %v7862
  %v7869 = vadd.f32 %v7857, %v7862
  %v7870 = vadd.f32 %v7858, %v7862
  %v7871 = vsel %vm42, %v7863, 0.0
  %7872 = vadd.xlane.f32.xlu0 %v7871
  %v7873 = vpop.xlane.xlu0 %7872
  %v7874 = vsel %vm42, %v7864, 0.0
  %7875 = vadd.xlane.f32.xlu0 %v7874
  %v7876 = vpop.xlane.xlu0 %7875
  %v7877 = vsel %vm42, %v7865, 0.0
  %7878 = vadd.xlane.f32.xlu0 %v7877
  %v7879 = vpop.xlane.xlu0 %7878
  %v7880 = vsel %vm42, %v7866, 0.0
  %7881 = vadd.xlane.f32.xlu0 %v7880
  %v7882 = vpop.xlane.xlu0 %7881
  %v7883 = vsel %vm42, %v7867, 0.0
  %7884 = vadd.xlane.f32.xlu0 %v7883
  %v7885 = vpop.xlane.xlu0 %7884
  %v7886 = vsel %vm42, %v7868, 0.0
  %7887 = vadd.xlane.f32.xlu0 %v7886
  %v7888 = vpop.xlane.xlu0 %7887
  %v7889 = vsel %vm42, %v7869, 0.0
  %7890 = vadd.xlane.f32.xlu0 %v7889
  %v7891 = vpop.xlane.xlu0 %7890
  %v7892 = vsel %vm42, %v7870, 0.0
  %7893 = vadd.xlane.f32.xlu0 %v7892
  %v7894 = vpop.xlane.xlu0 %7893
  %v7895 = vmul.f32 %v7873, %v67
  %v7896 = vmul.f32 %v7876, %v67
  %v7897 = vmul.f32 %v7879, %v67
  %v7898 = vmul.f32 %v7882, %v67
  %v7899 = vmul.f32 %v7885, %v67
  %v7900 = vmul.f32 %v7888, %v67
  %v7901 = vmul.f32 %v7891, %v67
  %v7902 = vmul.f32 %v7894, %v67
  %v7903 = vsub.f32 %v7863, %v7895
  %v7904 = vsub.f32 %v7864, %v7896
  %v7905 = vsub.f32 %v7865, %v7897
  %v7906 = vsub.f32 %v7866, %v7898
  %v7907 = vsub.f32 %v7867, %v7899
  %v7908 = vsub.f32 %v7868, %v7900
  %v7909 = vsub.f32 %v7869, %v7901
  %v7910 = vsub.f32 %v7870, %v7902
  %v7911 = vmul.f32 %v7903, %v7903
  %v7912 = vmul.f32 %v7904, %v7904
  %v7913 = vmul.f32 %v7905, %v7905
  %v7914 = vmul.f32 %v7906, %v7906
  %v7915 = vmul.f32 %v7907, %v7907
  %v7916 = vmul.f32 %v7908, %v7908
  %v7917 = vmul.f32 %v7909, %v7909
  %v7918 = vmul.f32 %v7910, %v7910
  %v7919 = vsel %vm42, %v7911, 0.0
  %7920 = vadd.xlane.f32.xlu0 %v7919
  %v7921 = vpop.xlane.xlu0 %7920
  %v7922 = vsel %vm42, %v7912, 0.0
  %7923 = vadd.xlane.f32.xlu0 %v7922
  %v7924 = vpop.xlane.xlu0 %7923
  %v7925 = vsel %vm42, %v7913, 0.0
  %7926 = vadd.xlane.f32.xlu0 %v7925
  %v7927 = vpop.xlane.xlu0 %7926
  %v7928 = vsel %vm42, %v7914, 0.0
  %7929 = vadd.xlane.f32.xlu0 %v7928
  %v7930 = vpop.xlane.xlu0 %7929
  %v7931 = vsel %vm42, %v7915, 0.0
  %7932 = vadd.xlane.f32.xlu0 %v7931
  %v7933 = vpop.xlane.xlu0 %7932
  %v7934 = vsel %vm42, %v7916, 0.0
  %7935 = vadd.xlane.f32.xlu0 %v7934
  %v7936 = vpop.xlane.xlu0 %7935
  %v7937 = vsel %vm42, %v7917, 0.0
  %7938 = vadd.xlane.f32.xlu0 %v7937
  %v7939 = vpop.xlane.xlu0 %7938
  %v7940 = vsel %vm42, %v7918, 0.0
  %7941 = vadd.xlane.f32.xlu0 %v7940
  %v7942 = vpop.xlane.xlu0 %7941
  %v7943 = vmul.f32 %v7921, %v67
  %v7944 = vmul.f32 %v7924, %v67
  %v7945 = vmul.f32 %v7927, %v67
  %v7946 = vmul.f32 %v7930, %v67
  %v7947 = vmul.f32 %v7933, %v67
  %v7948 = vmul.f32 %v7936, %v67
  %v7949 = vmul.f32 %v7939, %v67
  %v7950 = vmul.f32 %v7942, %v67
  %v7951 = vadd.f32 %v7943, 1e-05
  %v7952 = vadd.f32 %v7944, 1e-05
  %v7953 = vadd.f32 %v7945, 1e-05
  %v7954 = vadd.f32 %v7946, 1e-05
  %v7955 = vadd.f32 %v7947, 1e-05
  %v7956 = vadd.f32 %v7948, 1e-05
  %v7957 = vadd.f32 %v7949, 1e-05
  %v7958 = vadd.f32 %v7950, 1e-05
  %v7959 = vrsqrt.pop %v7951
  %v7960 = vrsqrt.pop %v7952
  %v7961 = vrsqrt.pop %v7953
  %v7962 = vrsqrt.pop %v7954
  %v7963 = vrsqrt.pop %v7955
  %v7964 = vrsqrt.pop %v7956
  %v7965 = vrsqrt.pop %v7957
  %v7966 = vrsqrt.pop %v7958
  %v7967 = vmul.f32 %v7903, %v7959
  %v7968 = vmul.f32 %v7904, %v7960
  %v7969 = vmul.f32 %v7905, %v7961
  %v7970 = vmul.f32 %v7906, %v7962
  %v7971 = vmul.f32 %v7907, %v7963
  %v7972 = vmul.f32 %v7908, %v7964
  %v7973 = vmul.f32 %v7909, %v7965
  %v7974 = vmul.f32 %v7910, %v7966
  %v7975 = vlaneseq
  %v7976 = vshrl.u32 %v7975, 7
  %v7977 = vsub.s32 3, %v7976
  %v7978 = vrot.slane %v4196, %v7977
  %v7979 = vmul.f32 %v7967, %v7978
  %v7980 = vmul.f32 %v7968, %v7978
  %v7981 = vmul.f32 %v7969, %v7978
  %v7982 = vmul.f32 %v7970, %v7978
  %v7983 = vmul.f32 %v7971, %v7978
  %v7984 = vmul.f32 %v7972, %v7978
  %v7985 = vmul.f32 %v7973, %v7978
  %v7986 = vmul.f32 %v7974, %v7978
  %v7987 = vlaneseq
  %v7988 = vshrl.u32 %v7987, 7
  %v7989 = vsub.s32 4, %v7988
  %v7990 = vrot.slane %v4196, %v7989
  %v7991 = vadd.f32 %v7979, %v7990
  %v7992 = vadd.f32 %v7980, %v7990
  %v7993 = vadd.f32 %v7981, %v7990
  %v7994 = vadd.f32 %v7982, %v7990
  %v7995 = vadd.f32 %v7983, %v7990
  %v7996 = vadd.f32 %v7984, %v7990
  %v7997 = vadd.f32 %v7985, %v7990
  %v7998 = vadd.f32 %v7986, %v7990
  %s7999 = scalar_lea.vmem %s5, 32
  %v8000 = vld [vmem:[%s7999] sm:$0xff]
  %v8001 = vld [vmem:[%s7999 + $0x8] sm:$0xff]
  %v8002 = vld [vmem:[%s7999 + $0x10] sm:$0xff]
  %v8003 = vld [vmem:[%s7999 + $0x18] sm:$0xff]
  %v8005 = vlaneseq
  %v8006 = vshrl.u32 %v8005, 7
  %v8007 = vsub.s32 0, %v8006
  %v8008 = vrot.slane %v4198, %v8007
  %v8011 = vsel %vm42, %v7991, 0
  %v8014 = vsel %vm42, %v7992, 0
  %v8017 = vsel %vm42, %v7993, 0
  %v8020 = vsel %vm42, %v7994, 0
  %v8023 = vsel %vm42, %v7995, 0
  %v8026 = vsel %vm42, %v7996, 0
  %v8029 = vsel %vm42, %v7997, 0
  %v8032 = vsel %vm42, %v7998, 0
  %8034 = vmatprep.subr.mxu0 0.0
  %8035 = vmatpush1.msra.mxu0 0.0
  %8036 = vmatprep.subr.mxu0 0.0
  %8037 = vmatpush1.msra.mxu0 0.0
  %8038 = vmatprep.subr.mxu0 0.0
  %8039 = vmatpush1.msra.mxu0 0.0
  %8040 = vmatprep.subr.mxu0 0.0
  %8041 = vmatpush1.msra.mxu0 0.0
  %8042 = vmatprep.subr.mxu0 0.0
  %8043 = vmatpush1.msra.mxu0 0.0
  %8044 = vmatprep.subr.mxu0 0.0
  %8045 = vmatpush1.msra.mxu0 0.0
  %8046 = vmatprep.subr.mxu0 0.0
  %8047 = vmatpush1.msra.mxu0 0.0
  %8048 = vmatprep.subr.mxu0 0.0
  %8049 = vmatpush1.msra.mxu0 0.0
  %8050 = vmatprep.subr.mxu0 0.0
  %8051 = vmatpush1.msra.mxu0 0.0
  %8052 = vmatprep.subr.mxu0 0.0
  %8053 = vmatpush1.msra.mxu0 0.0
  %8054 = vmatprep.subr.mxu0 0.0
  %8055 = vmatpush1.msra.mxu0 0.0
  %8056 = vmatprep.subr.mxu0 0.0
  %8057 = vmatpush1.msra.mxu0 0.0
  %8058 = vmatprep.subr.mxu0 0.0
  %8059 = vmatpush1.msra.mxu0 %v8003
  %8060 = vmatprep.subr.mxu0 0.0
  %8061 = vmatpush1.msra.mxu0 %v8002
  %8062 = vmatprep.subr.mxu0 0.0
  %8063 = vmatpush1.msra.mxu0 %v8001
  %8064 = vmatprep.subr.mxu0 0.0
  %8065 = vmatpush1.msra.mxu0 %v8000
  %8066 = vmatprep.subr.mxu0 0.0
  %8067 = vmatpush2.msra.mxu0 0.0
  %8068 = vmatprep.subr.mxu0 0.0
  %8069 = vmatpush2.msra.mxu0 0.0
  %8070 = vmatprep.subr.mxu0 0.0
  %8071 = vmatpush2.msra.mxu0 0.0
  %8072 = vmatprep.subr.mxu0 0.0
  %8073 = vmatpush2.msra.mxu0 0.0
  %8074 = vmatprep.subr.mxu0 0.0
  %8075 = vmatpush2.msra.mxu0 0.0
  %8076 = vmatprep.subr.mxu0 0.0
  %8077 = vmatpush2.msra.mxu0 0.0
  %8078 = vmatprep.subr.mxu0 0.0
  %8079 = vmatpush2.msra.mxu0 0.0
  %8080 = vmatprep.subr.mxu0 0.0
  %8081 = vmatpush2.msra.mxu0 0.0
  %8082 = vmatprep.subr.mxu0 0.0
  %8083 = vmatpush2.msra.mxu0 0.0
  %8084 = vmatprep.subr.mxu0 0.0
  %8085 = vmatpush2.msra.mxu0 0.0
  %8086 = vmatprep.subr.mxu0 0.0
  %8087 = vmatpush2.msra.mxu0 0.0
  %8088 = vmatprep.subr.mxu0 0.0
  %8089 = vmatpush2.msra.mxu0 0.0
  %8090 = vmatprep.subr.mxu0 0.0
  %8091 = vmatpush2.msra.mxu0 0.0
  %8092 = vmatprep.subr.mxu0 0.0
  %8093 = vmatpush2.msra.mxu0 0.0
  %8094 = vmatprep.subr.mxu0 0.0
  %8095 = vmatpush2.msra.mxu0 0.0
  %8096 = vmatprep.subr.mxu0 0.0
  %8097 = vmatpush2.msra.mxu0 0.0
  %8098 = vmatprep.mubr.f32.mxu0 0.0
  %8099 = vmatmul.mubr.f32.gmra.mxu0 %v8011
  %v8100 = vpop.f32.mrf.mxu0
  %v8101 = vadd.f32 %v8008, %v8100
  %v8102 = vpop.f32.mrf.mxu0
  %8103 = vmatprep.mubr.f32.mxu0 0.0
  %8104 = vmatmul.mubr.f32.gmra.mxu0 %v8014
  %v8105 = vpop.f32.mrf.mxu0
  %v8106 = vadd.f32 %v8008, %v8105
  %v8107 = vpop.f32.mrf.mxu0
  %8108 = vmatprep.mubr.f32.mxu0 0.0
  %8109 = vmatmul.mubr.f32.gmra.mxu0 %v8017
  %v8110 = vpop.f32.mrf.mxu0
  %v8111 = vadd.f32 %v8008, %v8110
  %v8112 = vpop.f32.mrf.mxu0
  %8113 = vmatprep.mubr.f32.mxu0 0.0
  %8114 = vmatmul.mubr.f32.gmra.mxu0 %v8020
  %v8115 = vpop.f32.mrf.mxu0
  %v8116 = vadd.f32 %v8008, %v8115
  %v8117 = vpop.f32.mrf.mxu0
  %8118 = vmatprep.mubr.f32.mxu0 0.0
  %8119 = vmatmul.mubr.f32.gmra.mxu0 %v8023
  %v8120 = vpop.f32.mrf.mxu0
  %v8121 = vadd.f32 %v8008, %v8120
  %v8122 = vpop.f32.mrf.mxu0
  %8123 = vmatprep.mubr.f32.mxu0 0.0
  %8124 = vmatmul.mubr.f32.gmra.mxu0 %v8026
  %v8125 = vpop.f32.mrf.mxu0
  %v8126 = vadd.f32 %v8008, %v8125
  %v8127 = vpop.f32.mrf.mxu0
  %8128 = vmatprep.mubr.f32.mxu0 0.0
  %8129 = vmatmul.mubr.f32.gmra.mxu0 %v8029
  %v8130 = vpop.f32.mrf.mxu0
  %v8131 = vadd.f32 %v8008, %v8130
  %v8132 = vpop.f32.mrf.mxu0
  %8133 = vmatprep.mubr.f32.mxu0 0.0
  %8134 = vmatmul.mubr.f32.gmra.mxu0 %v8032
  %v8135 = vpop.f32.mrf.mxu0
  %v8136 = vadd.f32 %v8008, %v8135
  %v8137 = vpop.f32.mrf.mxu0
  %8138 = vdwg.mxu0
  %v8139 = vxor.u32 %v8101, 2147483648
  %v8140 = vxor.u32 %v8106, 2147483648
  %v8141 = vxor.u32 %v8111, 2147483648
  %v8142 = vxor.u32 %v8116, 2147483648
  %v8143 = vxor.u32 %v8121, 2147483648
  %v8144 = vxor.u32 %v8126, 2147483648
  %v8145 = vxor.u32 %v8131, 2147483648
  %v8146 = vxor.u32 %v8136, 2147483648
  %v8147 = vmul.f32 %v8139, 1.442695
  %v8148 = vpow.pop %v8147
  %v8149 = vmul.f32 %v8140, 1.442695
  %v8150 = vpow.pop %v8149
  %v8151 = vmul.f32 %v8141, 1.442695
  %v8152 = vpow.pop %v8151
  %v8153 = vmul.f32 %v8142, 1.442695
  %v8154 = vpow.pop %v8153
  %v8155 = vmul.f32 %v8143, 1.442695
  %v8156 = vpow.pop %v8155
  %v8157 = vmul.f32 %v8144, 1.442695
  %v8158 = vpow.pop %v8157
  %v8159 = vmul.f32 %v8145, 1.442695
  %v8160 = vpow.pop %v8159
  %v8161 = vmul.f32 %v8146, 1.442695
  %v8162 = vpow.pop %v8161
  %v8163 = vadd.f32 %v8148, 1.0
  %v8164 = vadd.f32 %v8150, 1.0
  %v8165 = vadd.f32 %v8152, 1.0
  %v8166 = vadd.f32 %v8154, 1.0
  %v8167 = vadd.f32 %v8156, 1.0
  %v8168 = vadd.f32 %v8158, 1.0
  %v8169 = vadd.f32 %v8160, 1.0
  %v8170 = vadd.f32 %v8162, 1.0
  %v8171 = vrcp.pop %v8163
  %v8172 = vmul.f32 1.0, %v8171
  %v8173 = vrcp.pop %v8164
  %v8174 = vmul.f32 1.0, %v8173
  %v8175 = vrcp.pop %v8165
  %v8176 = vmul.f32 1.0, %v8175
  %v8177 = vrcp.pop %v8166
  %v8178 = vmul.f32 1.0, %v8177
  %v8179 = vrcp.pop %v8167
  %v8180 = vmul.f32 1.0, %v8179
  %v8181 = vrcp.pop %v8168
  %v8182 = vmul.f32 1.0, %v8181
  %v8183 = vrcp.pop %v8169
  %v8184 = vmul.f32 1.0, %v8183
  %v8185 = vrcp.pop %v8170
  %v8186 = vmul.f32 1.0, %v8185
  %v8187 = vmul.f32 %v8101, %v8172
  %v8188 = vmul.f32 %v8106, %v8174
  %v8189 = vmul.f32 %v8111, %v8176
  %v8190 = vmul.f32 %v8116, %v8178
  %v8191 = vmul.f32 %v8121, %v8180
  %v8192 = vmul.f32 %v8126, %v8182
  %v8193 = vmul.f32 %v8131, %v8184
  %v8194 = vmul.f32 %v8136, %v8186
  %s8195 = scalar_lea.vmem %s6, 64
  %v8196 = vld [vmem:[%s8195] sm:$0xff]
  %v8197 = vld [vmem:[%s8195 + $0x8] sm:$0xff]
  %v8198 = vld [vmem:[%s8195 + $0x10] sm:$0xff]
  %v8199 = vld [vmem:[%s8195 + $0x18] sm:$0xff]
  %v8200 = vld [vmem:[%s8195 + $0x20] sm:$0xff]
  %v8201 = vld [vmem:[%s8195 + $0x28] sm:$0xff]
  %v8202 = vld [vmem:[%s8195 + $0x30] sm:$0xff]
  %v8203 = vld [vmem:[%s8195 + $0x38] sm:$0xff]
  %v8205 = vsel %vm4045, %v8187, 0
  %v8208 = vsel %vm4045, %v8188, 0
  %v8211 = vsel %vm4045, %v8189, 0
  %v8214 = vsel %vm4045, %v8190, 0
  %v8217 = vsel %vm4045, %v8191, 0
  %v8220 = vsel %vm4045, %v8192, 0
  %v8223 = vsel %vm4045, %v8193, 0
  %v8226 = vsel %vm4045, %v8194, 0
  %8228 = vmatprep.subr.mxu0 0.0
  %8229 = vmatpush1.msra.mxu0 0.0
  %8230 = vmatprep.subr.mxu0 0.0
  %8231 = vmatpush1.msra.mxu0 0.0
  %8232 = vmatprep.subr.mxu0 0.0
  %8233 = vmatpush1.msra.mxu0 0.0
  %8234 = vmatprep.subr.mxu0 0.0
  %8235 = vmatpush1.msra.mxu0 0.0
  %8236 = vmatprep.subr.mxu0 0.0
  %8237 = vmatpush1.msra.mxu0 0.0
  %8238 = vmatprep.subr.mxu0 0.0
  %8239 = vmatpush1.msra.mxu0 0.0
  %8240 = vmatprep.subr.mxu0 0.0
  %8241 = vmatpush1.msra.mxu0 0.0
  %8242 = vmatprep.subr.mxu0 0.0
  %8243 = vmatpush1.msra.mxu0 0.0
  %8244 = vmatprep.subr.mxu0 0.0
  %8245 = vmatpush1.msra.mxu0 %v8203
  %8246 = vmatprep.subr.mxu0 0.0
  %8247 = vmatpush1.msra.mxu0 %v8202
  %8248 = vmatprep.subr.mxu0 0.0
  %8249 = vmatpush1.msra.mxu0 %v8201
  %8250 = vmatprep.subr.mxu0 0.0
  %8251 = vmatpush1.msra.mxu0 %v8200
  %8252 = vmatprep.subr.mxu0 0.0
  %8253 = vmatpush1.msra.mxu0 %v8199
  %8254 = vmatprep.subr.mxu0 0.0
  %8255 = vmatpush1.msra.mxu0 %v8198
  %8256 = vmatprep.subr.mxu0 0.0
  %8257 = vmatpush1.msra.mxu0 %v8197
  %8258 = vmatprep.subr.mxu0 0.0
  %8259 = vmatpush1.msra.mxu0 %v8196
  %8260 = vmatprep.subr.mxu0 0.0
  %8261 = vmatpush2.msra.mxu0 0.0
  %8262 = vmatprep.subr.mxu0 0.0
  %8263 = vmatpush2.msra.mxu0 0.0
  %8264 = vmatprep.subr.mxu0 0.0
  %8265 = vmatpush2.msra.mxu0 0.0
  %8266 = vmatprep.subr.mxu0 0.0
  %8267 = vmatpush2.msra.mxu0 0.0
  %8268 = vmatprep.subr.mxu0 0.0
  %8269 = vmatpush2.msra.mxu0 0.0
  %8270 = vmatprep.subr.mxu0 0.0
  %8271 = vmatpush2.msra.mxu0 0.0
  %8272 = vmatprep.subr.mxu0 0.0
  %8273 = vmatpush2.msra.mxu0 0.0
  %8274 = vmatprep.subr.mxu0 0.0
  %8275 = vmatpush2.msra.mxu0 0.0
  %8276 = vmatprep.subr.mxu0 0.0
  %8277 = vmatpush2.msra.mxu0 0.0
  %8278 = vmatprep.subr.mxu0 0.0
  %8279 = vmatpush2.msra.mxu0 0.0
  %8280 = vmatprep.subr.mxu0 0.0
  %8281 = vmatpush2.msra.mxu0 0.0
  %8282 = vmatprep.subr.mxu0 0.0
  %8283 = vmatpush2.msra.mxu0 0.0
  %8284 = vmatprep.subr.mxu0 0.0
  %8285 = vmatpush2.msra.mxu0 0.0
  %8286 = vmatprep.subr.mxu0 0.0
  %8287 = vmatpush2.msra.mxu0 0.0
  %8288 = vmatprep.subr.mxu0 0.0
  %8289 = vmatpush2.msra.mxu0 0.0
  %8290 = vmatprep.subr.mxu0 0.0
  %8291 = vmatpush2.msra.mxu0 0.0
  %8292 = vmatprep.mubr.f32.mxu0 0.0
  %8293 = vmatmul.mubr.f32.gmra.mxu0 %v8205
  %v8294 = vpop.f32.mrf.mxu0
  %v8295 = vadd.f32 0.0, %v8294
  %v8296 = vpop.f32.mrf.mxu0
  %8297 = vmatprep.mubr.f32.mxu0 0.0
  %8298 = vmatmul.mubr.f32.gmra.mxu0 %v8208
  %v8299 = vpop.f32.mrf.mxu0
  %v8300 = vadd.f32 0.0, %v8299
  %v8301 = vpop.f32.mrf.mxu0
  %8302 = vmatprep.mubr.f32.mxu0 0.0
  %8303 = vmatmul.mubr.f32.gmra.mxu0 %v8211
  %v8304 = vpop.f32.mrf.mxu0
  %v8305 = vadd.f32 0.0, %v8304
  %v8306 = vpop.f32.mrf.mxu0
  %8307 = vmatprep.mubr.f32.mxu0 0.0
  %8308 = vmatmul.mubr.f32.gmra.mxu0 %v8214
  %v8309 = vpop.f32.mrf.mxu0
  %v8310 = vadd.f32 0.0, %v8309
  %v8311 = vpop.f32.mrf.mxu0
  %8312 = vmatprep.mubr.f32.mxu0 0.0
  %8313 = vmatmul.mubr.f32.gmra.mxu0 %v8217
  %v8314 = vpop.f32.mrf.mxu0
  %v8315 = vadd.f32 0.0, %v8314
  %v8316 = vpop.f32.mrf.mxu0
  %8317 = vmatprep.mubr.f32.mxu0 0.0
  %8318 = vmatmul.mubr.f32.gmra.mxu0 %v8220
  %v8319 = vpop.f32.mrf.mxu0
  %v8320 = vadd.f32 0.0, %v8319
  %v8321 = vpop.f32.mrf.mxu0
  %8322 = vmatprep.mubr.f32.mxu0 0.0
  %8323 = vmatmul.mubr.f32.gmra.mxu0 %v8223
  %v8324 = vpop.f32.mrf.mxu0
  %v8325 = vadd.f32 0.0, %v8324
  %v8326 = vpop.f32.mrf.mxu0
  %8327 = vmatprep.mubr.f32.mxu0 0.0
  %8328 = vmatmul.mubr.f32.gmra.mxu0 %v8226
  %v8329 = vpop.f32.mrf.mxu0
  %v8330 = vadd.f32 0.0, %v8329
  %v8331 = vpop.f32.mrf.mxu0
  %8332 = vdwg.mxu0
  %v8333 = vadd.f32 %v7863, %v8295
  %v8334 = vadd.f32 %v7864, %v8300
  %v8335 = vadd.f32 %v7865, %v8305
  %v8336 = vadd.f32 %v7866, %v8310
  %v8337 = vadd.f32 %v7867, %v8315
  %v8338 = vadd.f32 %v7868, %v8320
  %v8339 = vadd.f32 %v7869, %v8325
  %v8340 = vadd.f32 %v7870, %v8330
  %v8341 = vlaneseq
  %v8342 = vshrl.u32 %v8341, 7
  %v8343 = vsub.s32 5, %v8342
  %v8344 = vrot.slane %v4196, %v8343
  %v8345 = vadd.f32 %v8333, %v8344
  %v8346 = vadd.f32 %v8334, %v8344
  %v8347 = vadd.f32 %v8335, %v8344
  %v8348 = vadd.f32 %v8336, %v8344
  %v8349 = vadd.f32 %v8337, %v8344
  %v8350 = vadd.f32 %v8338, %v8344
  %v8351 = vadd.f32 %v8339, %v8344
  %v8352 = vadd.f32 %v8340, %v8344
  %8353 = vst.msk [vmem:[%s9] sm:$0xff] %vm42, %v8345
  %8354 = vst.msk [vmem:[%s9 + $0x8] sm:$0xff] %vm42, %v8346
  %8355 = vst.msk [vmem:[%s9 + $0x10] sm:$0xff] %vm42, %v8347
  %8356 = vst.msk [vmem:[%s9 + $0x18] sm:$0xff] %vm42, %v8348
  %8357 = vst.msk [vmem:[%s9 + $0x20] sm:$0xff] %vm42, %v8349
  %8358 = vst.msk [vmem:[%s9 + $0x28] sm:$0xff] %vm42, %v8350
  %8359 = vst.msk [vmem:[%s9 + $0x30] sm:$0xff] %vm42, %v8351
  %8360 = vst.msk [vmem:[%s9 + $0x38] sm:$0xff] %vm42, %v8352
  // Predicated region
  $region38: #{tpu_custom_call.1} parent=0 // pred_check
    _
  $region39: #{tpu_custom_call.1} parent=0 // pred_check_branch
    %8362 = sbr.rel (0) target = $region41
  $region40: #{tpu_custom_call.1} parent=0 // pred_region
    _
  $region41: #{tpu_custom_call.1} parent=0 // pred_fallthru
    _
  // Predicated region
  $region42: #{tpu_custom_call.1} parent=0 // pred_check
    _
  $region43: #{tpu_custom_call.1} parent=0 // pred_check_branch
    %8364 = sbr.rel (0) target = $region45
  $region44: #{tpu_custom_call.1} parent=0 // pred_region
    _
  $region45: #{tpu_custom_call.1} parent=0 // pred_fallthru
    _

</llo_original>
